<compile_context>
chip_gen: v7x
topology: tpu7x:2x2x1
jax: 0.10.0
libtpu: 0.0.40
codegen_flags: <defaults>
</compile_context>

<pallas_src>
import jax
import jax.numpy as jnp
from jax.experimental import pallas as pl
from jax.experimental.pallas import tpu as pltpu


def _lstm_fc_kernel(x_ref,      # (T*B, I) f32, time-major
                    wih0_ref,   # (4, I, H) f32  layer-0 input weights, per gate (i,f,g,o)
                    b0_ref,     # (4, 1, H) f32  bih0 + bhh0, per gate
                    whh0_ref,   # (4, H, H) bf16 layer-0 recurrent weights, per gate
                    wih1_ref,   # (4, H, H) bf16 layer-1 input weights, per gate
                    whh1_ref,   # (4, H, H) bf16 layer-1 recurrent weights, per gate
                    b1_ref,     # (4, 1, H) f32  bih1 + bhh1, per gate
                    wfc_ref,    # (H, O) f32
                    bfc_ref,    # (1, O) f32
                    out_ref):   # (B, O) f32
    B, _ = out_ref.shape
    TB = x_ref.shape[0]
    T = TB // B
    H = whh0_ref.shape[-1]
    f32, bf16 = jnp.float32, jnp.bfloat16

    # Loop-invariant bias broadcasts (hoisted: JAX does not CSE broadcast_in_dim).
    b1 = [jnp.broadcast_to(b1_ref[k], (B, H)) for k in range(4)]

    # Layer-0 input projection for ALL timesteps, per gate, in f32.
    # Off the serial recurrence chain; per-gate (T*B, H) outputs keep every
    # later per-step slice lane-aligned (no lane rotates feeding the gate math).
    x = x_ref[...]
    g0x = [jnp.dot(x, wih0_ref[k], preferred_element_type=f32) + b0_ref[k]
           for k in range(4)]                              # 4 x (T*B, H)

    def cell(pre_i, pre_f, pre_g, pre_o, c):
        # PyTorch LSTM gate order: i, f, g, o — each already a lane-aligned (B, H).
        i = jax.nn.sigmoid(pre_i)
        f = jax.nn.sigmoid(pre_f)
        g = jnp.tanh(pre_g)
        o = jax.nn.sigmoid(pre_o)
        c_new = f * c + i * g
        h_new = o * jnp.tanh(c_new)
        return h_new, c_new

    zeros = jnp.zeros((B, H), f32)                         # torch h0/c0 are zeros
    h0, c0, h1, c1 = zeros, zeros, zeros, zeros

    # Wavefront-fused recurrence (statically unrolled; T is small and static).
    # Super-step s: layer-0 of timestep s and layer-1 of timestep s-1, both
    # consuming only state from super-step s-1 -> they overlap on the TC.
    for s in range(T + 1):
        h0_prev = h0                                       # h0 after timestep s-1
        h0_prev_b = h0_prev.astype(bf16)                   # bf16 MXU operand
        h1_b = h1.astype(bf16)

        if s < T:                                          # ---- layer 0, timestep s
            pre0 = [g[s * B:(s + 1) * B, :] for g in g0x]
            if s > 0:                                      # h0_prev == 0 at s == 0
                pre0 = [pre0[k] + jnp.dot(h0_prev_b, whh0_ref[k],
                                          preferred_element_type=f32)
                        for k in range(4)]
            h0, c0 = cell(pre0[0], pre0[1], pre0[2], pre0[3], c0)

        if s >= 1:                                         # ---- layer 1, timestep s-1
            pre1 = [b1[k]
                    + jnp.dot(h0_prev_b, wih1_ref[k], preferred_element_type=f32)
                    + jnp.dot(h1_b, whh1_ref[k], preferred_element_type=f32)
                    for k in range(4)]
            h1, c1 = cell(pre1[0], pre1[1], pre1[2], pre1[3], c1)

    # fc(out[:, -1, :]) == fc(top-layer h at the last timestep); f32 epilogue.
    out_ref[...] = (jnp.dot(h1, wfc_ref[...], preferred_element_type=f32)
                    + bfc_ref[...])


def lstm_model_forward(x, params):
    """x: (B, T, I) float32 (batch_first, like the PyTorch module)."""
    B, T, I = x.shape
    H = params["whh0"].shape[1]
    O = params["wfc"].shape[0]

    # Parameter / layout plumbing (not the hot path).
    x2d = jnp.transpose(x, (1, 0, 2)).reshape(T * B, I)    # time-major 2-D slab

    def per_gate_t(w):   # (4H, K) -> (4, K, H); [k] == W_gate_k.T, torch order i,f,g,o
        return jnp.transpose(w.reshape(4, H, -1), (0, 2, 1))

    wih0 = per_gate_t(params["wih0"])                          # (4, I, H) f32
    whh0 = per_gate_t(params["whh0"]).astype(jnp.bfloat16)     # (4, H, H) bf16
    wih1 = per_gate_t(params["wih1"]).astype(jnp.bfloat16)     # (4, H, H) bf16
    whh1 = per_gate_t(params["whh1"]).astype(jnp.bfloat16)     # (4, H, H) bf16
    b0 = (params["bih0"] + params["bhh0"]).reshape(4, 1, H)
    b1 = (params["bih1"] + params["bhh1"]).reshape(4, 1, H)
    wfc_t = params["wfc"].T                                    # (H, O)
    bfc = params["bfc"].reshape(1, O)

    vmem = pl.BlockSpec(memory_space=pltpu.MemorySpace.VMEM)
    return pl.pallas_call(
        _lstm_fc_kernel,
        out_shape=jax.ShapeDtypeStruct((B, O), jnp.float32),
        in_specs=[vmem] * 9,
        out_specs=vmem,
    )(x2d, wih0, b0, whh0, wih1, whh1, b1, wfc_t, bfc)


def _reference_forward(x, params):
    """Pure-JAX f32 reference matching torch.nn.LSTM (2 layers) + Linear."""
    B, T, I = x.shape
    H = params["whh0"].shape[1]

    def cell(x_t, h, c, wih, whh, bih, bhh):
        gates = x_t @ wih.T + bih + h @ whh.T + bhh
        i, f, g, o = jnp.split(gates, 4, axis=-1)
        i, f, o = jax.nn.sigmoid(i), jax.nn.sigmoid(f), jax.nn.sigmoid(o)
        g = jnp.tanh(g)
        c_new = f * c + i * g
        return o * jnp.tanh(c_new), c_new

    h0 = c0 = h1 = c1 = jnp.zeros((B, H), jnp.float32)
    for t in range(T):
        h0, c0 = cell(x[:, t, :], h0, c0, params["wih0"], params["whh0"],
                      params["bih0"], params["bhh0"])
        h1, c1 = cell(h0, h1, c1, params["wih1"], params["whh1"],
                      params["bih1"], params["bhh1"])
    return h1 @ params["wfc"].T + params["bfc"]


def _init_params(key, input_dim, hidden_dim, output_dim):
    """Deterministic init mimicking PyTorch's U(-1/sqrt(H), 1/sqrt(H))."""
    H, I, O = hidden_dim, input_dim, output_dim
    k = 1.0 / jnp.sqrt(jnp.float32(H))
    keys = jax.random.split(key, 10)
    u = lambda kk, shape: jax.random.uniform(kk, shape, jnp.float32, -k, k)
    return {
        "wih0": u(keys[0], (4 * H, I)), "whh0": u(keys[1], (4 * H, H)),
        "bih0": u(keys[2], (4 * H,)),   "bhh0": u(keys[3], (4 * H,)),
        "wih1": u(keys[4], (4 * H, H)), "whh1": u(keys[5], (4 * H, H)),
        "bih1": u(keys[6], (4 * H,)),   "bhh1": u(keys[7], (4 * H,)),
        "wfc":  u(keys[8], (O, H)),     "bfc": u(keys[9], (O,)),
    }


if __name__ == "__main__":
    # Small shapes consistent with the module: batch=2, seq=8, input_dim=4,
    # hidden_dim=32, layer_dim=2, output_dim=4.
    B, T, I, H, O = 2, 8, 4, 32, 4

    key = jax.random.PRNGKey(0)
    kx, kp = jax.random.split(key)
    x = jax.random.normal(kx, (B, T, I), jnp.float32)
    params = _init_params(kp, I, H, O)

    out = jax.block_until_ready(lstm_model_forward(x, params))
    ref = _reference_forward(x, params)

    assert out.shape == (B, O)
    # bf16 MXU operands on the recurrence dots loosen the match vs. the pure
    # f32 reference (was 1e-4 when everything stayed f32); expected error is
    # ~1e-3, so 5e-2 is a comfortable but still meaningful bound.
    assert jnp.allclose(out, ref, rtol=5e-2, atol=5e-2), (out, ref)
    print("KERNEL_OK")
</pallas_src>

<mosaic_0001>
module attributes {stable_mosaic.version = 11 : i64} {
  func.func @_lstm_fc_kernel(%arg0: memref<16x4xf32, #tpu.memory_space<vmem>>, %arg1: memref<4x4x32xf32, #tpu.memory_space<vmem>>, %arg2: memref<4x1x32xf32, #tpu.memory_space<vmem>>, %arg3: memref<4x32x32xbf16, #tpu.memory_space<vmem>>, %arg4: memref<4x32x32xbf16, #tpu.memory_space<vmem>>, %arg5: memref<4x32x32xbf16, #tpu.memory_space<vmem>>, %arg6: memref<4x1x32xf32, #tpu.memory_space<vmem>>, %arg7: memref<32x4xf32, #tpu.memory_space<vmem>>, %arg8: memref<1x4xf32, #tpu.memory_space<vmem>>, %arg9: memref<2x4xf32, #tpu.memory_space<vmem>>) attributes {dimension_semantics = [], scalar_prefetch = 0 : i64, scratch_operands = 0 : i64, tpu.core_type = #tpu.core_type<tc>} {
    %c0 = arith.constant 0 : index
    %c0_0 = arith.constant 0 : index
    %c0_1 = arith.constant 0 : index
    %0 = vector.load %arg6[%c0, %c0_0, %c0_1] : memref<4x1x32xf32, #tpu.memory_space<vmem>>, vector<1x1x32xf32>
    %1 = vector.shape_cast %0 : vector<1x1x32xf32> to vector<1x32xf32>
    %2 = vector.shape_cast %1 : vector<1x32xf32> to vector<1x32xf32>
    %3 = vector.broadcast %2 : vector<1x32xf32> to vector<2x32xf32>
    %c1 = arith.constant 1 : index
    %c0_2 = arith.constant 0 : index
    %c0_3 = arith.constant 0 : index
    %4 = vector.load %arg6[%c1, %c0_2, %c0_3] : memref<4x1x32xf32, #tpu.memory_space<vmem>>, vector<1x1x32xf32>
    %5 = vector.shape_cast %4 : vector<1x1x32xf32> to vector<1x32xf32>
    %6 = vector.shape_cast %5 : vector<1x32xf32> to vector<1x32xf32>
    %7 = vector.broadcast %6 : vector<1x32xf32> to vector<2x32xf32>
    %c2 = arith.constant 2 : index
    %c0_4 = arith.constant 0 : index
    %c0_5 = arith.constant 0 : index
    %8 = vector.load %arg6[%c2, %c0_4, %c0_5] : memref<4x1x32xf32, #tpu.memory_space<vmem>>, vector<1x1x32xf32>
    %9 = vector.shape_cast %8 : vector<1x1x32xf32> to vector<1x32xf32>
    %10 = vector.shape_cast %9 : vector<1x32xf32> to vector<1x32xf32>
    %11 = vector.broadcast %10 : vector<1x32xf32> to vector<2x32xf32>
    %c3 = arith.constant 3 : index
    %c0_6 = arith.constant 0 : index
    %c0_7 = arith.constant 0 : index
    %12 = vector.load %arg6[%c3, %c0_6, %c0_7] : memref<4x1x32xf32, #tpu.memory_space<vmem>>, vector<1x1x32xf32>
    %13 = vector.shape_cast %12 : vector<1x1x32xf32> to vector<1x32xf32>
    %14 = vector.shape_cast %13 : vector<1x32xf32> to vector<1x32xf32>
    %15 = vector.broadcast %14 : vector<1x32xf32> to vector<2x32xf32>
    %c0_8 = arith.constant 0 : index
    %c0_9 = arith.constant 0 : index
    %16 = vector.load %arg0[%c0_8, %c0_9] : memref<16x4xf32, #tpu.memory_space<vmem>>, vector<16x4xf32>
    %c0_10 = arith.constant 0 : index
    %c0_11 = arith.constant 0 : index
    %c0_12 = arith.constant 0 : index
    %17 = vector.load %arg1[%c0_10, %c0_11, %c0_12] : memref<4x4x32xf32, #tpu.memory_space<vmem>>, vector<1x4x32xf32>
    %18 = vector.shape_cast %17 : vector<1x4x32xf32> to vector<4x32xf32>
    %cst = arith.constant dense<0.000000e+00> : vector<16x32xf32>
    %19 = tpu.matmul %16, %18, %cst {dimension_numbers = #tpu.dot_dimension_numbers<[1], [0], [0], [1], [0, 0, 1, 1], [], []>} : vector<16x4xf32>, vector<4x32xf32>, vector<16x32xf32> -> vector<16x32xf32>
    %c0_13 = arith.constant 0 : index
    %c0_14 = arith.constant 0 : index
    %c0_15 = arith.constant 0 : index
    %20 = vector.load %arg2[%c0_13, %c0_14, %c0_15] : memref<4x1x32xf32, #tpu.memory_space<vmem>>, vector<1x1x32xf32>
    %21 = vector.shape_cast %20 : vector<1x1x32xf32> to vector<1x32xf32>
    %22 = vector.broadcast %21 : vector<1x32xf32> to vector<16x32xf32>
    %23 = arith.addf %19, %22 : vector<16x32xf32>
    %c1_16 = arith.constant 1 : index
    %c0_17 = arith.constant 0 : index
    %c0_18 = arith.constant 0 : index
    %24 = vector.load %arg1[%c1_16, %c0_17, %c0_18] : memref<4x4x32xf32, #tpu.memory_space<vmem>>, vector<1x4x32xf32>
    %25 = vector.shape_cast %24 : vector<1x4x32xf32> to vector<4x32xf32>
    %cst_19 = arith.constant dense<0.000000e+00> : vector<16x32xf32>
    %26 = tpu.matmul %16, %25, %cst_19 {dimension_numbers = #tpu.dot_dimension_numbers<[1], [0], [0], [1], [0, 0, 1, 1], [], []>} : vector<16x4xf32>, vector<4x32xf32>, vector<16x32xf32> -> vector<16x32xf32>
    %c1_20 = arith.constant 1 : index
    %c0_21 = arith.constant 0 : index
    %c0_22 = arith.constant 0 : index
    %27 = vector.load %arg2[%c1_20, %c0_21, %c0_22] : memref<4x1x32xf32, #tpu.memory_space<vmem>>, vector<1x1x32xf32>
    %28 = vector.shape_cast %27 : vector<1x1x32xf32> to vector<1x32xf32>
    %29 = vector.broadcast %28 : vector<1x32xf32> to vector<16x32xf32>
    %30 = arith.addf %26, %29 : vector<16x32xf32>
    %c2_23 = arith.constant 2 : index
    %c0_24 = arith.constant 0 : index
    %c0_25 = arith.constant 0 : index
    %31 = vector.load %arg1[%c2_23, %c0_24, %c0_25] : memref<4x4x32xf32, #tpu.memory_space<vmem>>, vector<1x4x32xf32>
    %32 = vector.shape_cast %31 : vector<1x4x32xf32> to vector<4x32xf32>
    %cst_26 = arith.constant dense<0.000000e+00> : vector<16x32xf32>
    %33 = tpu.matmul %16, %32, %cst_26 {dimension_numbers = #tpu.dot_dimension_numbers<[1], [0], [0], [1], [0, 0, 1, 1], [], []>} : vector<16x4xf32>, vector<4x32xf32>, vector<16x32xf32> -> vector<16x32xf32>
    %c2_27 = arith.constant 2 : index
    %c0_28 = arith.constant 0 : index
    %c0_29 = arith.constant 0 : index
    %34 = vector.load %arg2[%c2_27, %c0_28, %c0_29] : memref<4x1x32xf32, #tpu.memory_space<vmem>>, vector<1x1x32xf32>
    %35 = vector.shape_cast %34 : vector<1x1x32xf32> to vector<1x32xf32>
    %36 = vector.broadcast %35 : vector<1x32xf32> to vector<16x32xf32>
    %37 = arith.addf %33, %36 : vector<16x32xf32>
    %c3_30 = arith.constant 3 : index
    %c0_31 = arith.constant 0 : index
    %c0_32 = arith.constant 0 : index
    %38 = vector.load %arg1[%c3_30, %c0_31, %c0_32] : memref<4x4x32xf32, #tpu.memory_space<vmem>>, vector<1x4x32xf32>
    %39 = vector.shape_cast %38 : vector<1x4x32xf32> to vector<4x32xf32>
    %cst_33 = arith.constant dense<0.000000e+00> : vector<16x32xf32>
    %40 = tpu.matmul %16, %39, %cst_33 {dimension_numbers = #tpu.dot_dimension_numbers<[1], [0], [0], [1], [0, 0, 1, 1], [], []>} : vector<16x4xf32>, vector<4x32xf32>, vector<16x32xf32> -> vector<16x32xf32>
    %c3_34 = arith.constant 3 : index
    %c0_35 = arith.constant 0 : index
    %c0_36 = arith.constant 0 : index
    %41 = vector.load %arg2[%c3_34, %c0_35, %c0_36] : memref<4x1x32xf32, #tpu.memory_space<vmem>>, vector<1x1x32xf32>
    %42 = vector.shape_cast %41 : vector<1x1x32xf32> to vector<1x32xf32>
    %43 = vector.broadcast %42 : vector<1x32xf32> to vector<16x32xf32>
    %44 = arith.addf %40, %43 : vector<16x32xf32>
    %cst_37 = arith.constant 0.000000e+00 : f32
    %45 = vector.broadcast %cst_37 : f32 to vector<2x32xf32>
    %46 = vector.extract_strided_slice %23 {offsets = [0, 0], sizes = [2, 32], strides = [1, 1]} : vector<16x32xf32> to vector<2x32xf32>
    %47 = vector.extract_strided_slice %30 {offsets = [0, 0], sizes = [2, 32], strides = [1, 1]} : vector<16x32xf32> to vector<2x32xf32>
    %48 = vector.extract_strided_slice %37 {offsets = [0, 0], sizes = [2, 32], strides = [1, 1]} : vector<16x32xf32> to vector<2x32xf32>
    %49 = vector.extract_strided_slice %44 {offsets = [0, 0], sizes = [2, 32], strides = [1, 1]} : vector<16x32xf32> to vector<2x32xf32>
    %50 = arith.negf %46 : vector<2x32xf32>
    %51 = math.exp %50 : vector<2x32xf32>
    %cst_38 = arith.constant 1.000000e+00 : f32
    %52 = vector.broadcast %cst_38 : f32 to vector<2x32xf32>
    %53 = arith.addf %52, %51 : vector<2x32xf32>
    %54 = arith.divf %52, %53 : vector<2x32xf32>
    %55 = arith.negf %47 : vector<2x32xf32>
    %56 = math.exp %55 : vector<2x32xf32>
    %cst_39 = arith.constant 1.000000e+00 : f32
    %57 = vector.broadcast %cst_39 : f32 to vector<2x32xf32>
    %58 = arith.addf %57, %56 : vector<2x32xf32>
    %59 = arith.divf %57, %58 : vector<2x32xf32>
    %60 = math.tanh %48 : vector<2x32xf32>
    %61 = arith.negf %49 : vector<2x32xf32>
    %62 = math.exp %61 : vector<2x32xf32>
    %cst_40 = arith.constant 1.000000e+00 : f32
    %63 = vector.broadcast %cst_40 : f32 to vector<2x32xf32>
    %64 = arith.addf %63, %62 : vector<2x32xf32>
    %65 = arith.divf %63, %64 : vector<2x32xf32>
    %66 = arith.mulf %59, %45 : vector<2x32xf32>
    %67 = arith.mulf %54, %60 : vector<2x32xf32>
    %68 = arith.addf %66, %67 : vector<2x32xf32>
    %69 = math.tanh %68 : vector<2x32xf32>
    %70 = arith.mulf %65, %69 : vector<2x32xf32>
    %71 = arith.truncf %70 : vector<2x32xf32> to vector<2x32xbf16>
    %72 = arith.truncf %45 : vector<2x32xf32> to vector<2x32xbf16>
    %73 = vector.extract_strided_slice %23 {offsets = [2, 0], sizes = [2, 32], strides = [1, 1]} : vector<16x32xf32> to vector<2x32xf32>
    %74 = vector.extract_strided_slice %30 {offsets = [2, 0], sizes = [2, 32], strides = [1, 1]} : vector<16x32xf32> to vector<2x32xf32>
    %75 = vector.extract_strided_slice %37 {offsets = [2, 0], sizes = [2, 32], strides = [1, 1]} : vector<16x32xf32> to vector<2x32xf32>
    %76 = vector.extract_strided_slice %44 {offsets = [2, 0], sizes = [2, 32], strides = [1, 1]} : vector<16x32xf32> to vector<2x32xf32>
    %c0_41 = arith.constant 0 : index
    %c0_42 = arith.constant 0 : index
    %c0_43 = arith.constant 0 : index
    %77 = vector.load %arg3[%c0_41, %c0_42, %c0_43] : memref<4x32x32xbf16, #tpu.memory_space<vmem>>, vector<1x32x32xbf16>
    %78 = vector.shape_cast %77 : vector<1x32x32xbf16> to vector<32x32xbf16>
    %cst_44 = arith.constant dense<0.000000e+00> : vector<2x32xf32>
    %79 = tpu.matmul %71, %78, %cst_44 {dimension_numbers = #tpu.dot_dimension_numbers<[1], [0], [0], [1], [0, 0, 1, 1], [], []>} : vector<2x32xbf16>, vector<32x32xbf16>, vector<2x32xf32> -> vector<2x32xf32>
    %80 = arith.addf %73, %79 : vector<2x32xf32>
    %c1_45 = arith.constant 1 : index
    %c0_46 = arith.constant 0 : index
    %c0_47 = arith.constant 0 : index
    %81 = vector.load %arg3[%c1_45, %c0_46, %c0_47] : memref<4x32x32xbf16, #tpu.memory_space<vmem>>, vector<1x32x32xbf16>
    %82 = vector.shape_cast %81 : vector<1x32x32xbf16> to vector<32x32xbf16>
    %cst_48 = arith.constant dense<0.000000e+00> : vector<2x32xf32>
    %83 = tpu.matmul %71, %82, %cst_48 {dimension_numbers = #tpu.dot_dimension_numbers<[1], [0], [0], [1], [0, 0, 1, 1], [], []>} : vector<2x32xbf16>, vector<32x32xbf16>, vector<2x32xf32> -> vector<2x32xf32>
    %84 = arith.addf %74, %83 : vector<2x32xf32>
    %c2_49 = arith.constant 2 : index
    %c0_50 = arith.constant 0 : index
    %c0_51 = arith.constant 0 : index
    %85 = vector.load %arg3[%c2_49, %c0_50, %c0_51] : memref<4x32x32xbf16, #tpu.memory_space<vmem>>, vector<1x32x32xbf16>
    %86 = vector.shape_cast %85 : vector<1x32x32xbf16> to vector<32x32xbf16>
    %cst_52 = arith.constant dense<0.000000e+00> : vector<2x32xf32>
    %87 = tpu.matmul %71, %86, %cst_52 {dimension_numbers = #tpu.dot_dimension_numbers<[1], [0], [0], [1], [0, 0, 1, 1], [], []>} : vector<2x32xbf16>, vector<32x32xbf16>, vector<2x32xf32> -> vector<2x32xf32>
    %88 = arith.addf %75, %87 : vector<2x32xf32>
    %c3_53 = arith.constant 3 : index
    %c0_54 = arith.constant 0 : index
    %c0_55 = arith.constant 0 : index
    %89 = vector.load %arg3[%c3_53, %c0_54, %c0_55] : memref<4x32x32xbf16, #tpu.memory_space<vmem>>, vector<1x32x32xbf16>
    %90 = vector.shape_cast %89 : vector<1x32x32xbf16> to vector<32x32xbf16>
    %cst_56 = arith.constant dense<0.000000e+00> : vector<2x32xf32>
    %91 = tpu.matmul %71, %90, %cst_56 {dimension_numbers = #tpu.dot_dimension_numbers<[1], [0], [0], [1], [0, 0, 1, 1], [], []>} : vector<2x32xbf16>, vector<32x32xbf16>, vector<2x32xf32> -> vector<2x32xf32>
    %92 = arith.addf %76, %91 : vector<2x32xf32>
    %93 = arith.negf %80 : vector<2x32xf32>
    %94 = math.exp %93 : vector<2x32xf32>
    %cst_57 = arith.constant 1.000000e+00 : f32
    %95 = vector.broadcast %cst_57 : f32 to vector<2x32xf32>
    %96 = arith.addf %95, %94 : vector<2x32xf32>
    %97 = arith.divf %95, %96 : vector<2x32xf32>
    %98 = arith.negf %84 : vector<2x32xf32>
    %99 = math.exp %98 : vector<2x32xf32>
    %cst_58 = arith.constant 1.000000e+00 : f32
    %100 = vector.broadcast %cst_58 : f32 to vector<2x32xf32>
    %101 = arith.addf %100, %99 : vector<2x32xf32>
    %102 = arith.divf %100, %101 : vector<2x32xf32>
    %103 = math.tanh %88 : vector<2x32xf32>
    %104 = arith.negf %92 : vector<2x32xf32>
    %105 = math.exp %104 : vector<2x32xf32>
    %cst_59 = arith.constant 1.000000e+00 : f32
    %106 = vector.broadcast %cst_59 : f32 to vector<2x32xf32>
    %107 = arith.addf %106, %105 : vector<2x32xf32>
    %108 = arith.divf %106, %107 : vector<2x32xf32>
    %109 = arith.mulf %102, %68 : vector<2x32xf32>
    %110 = arith.mulf %97, %103 : vector<2x32xf32>
    %111 = arith.addf %109, %110 : vector<2x32xf32>
    %112 = math.tanh %111 : vector<2x32xf32>
    %113 = arith.mulf %108, %112 : vector<2x32xf32>
    %c0_60 = arith.constant 0 : index
    %c0_61 = arith.constant 0 : index
    %c0_62 = arith.constant 0 : index
    %114 = vector.load %arg4[%c0_60, %c0_61, %c0_62] : memref<4x32x32xbf16, #tpu.memory_space<vmem>>, vector<1x32x32xbf16>
    %115 = vector.shape_cast %114 : vector<1x32x32xbf16> to vector<32x32xbf16>
    %cst_63 = arith.constant dense<0.000000e+00> : vector<2x32xf32>
    %116 = tpu.matmul %71, %115, %cst_63 {dimension_numbers = #tpu.dot_dimension_numbers<[1], [0], [0], [1], [0, 0, 1, 1], [], []>} : vector<2x32xbf16>, vector<32x32xbf16>, vector<2x32xf32> -> vector<2x32xf32>
    %117 = arith.addf %3, %116 : vector<2x32xf32>
    %c0_64 = arith.constant 0 : index
    %c0_65 = arith.constant 0 : index
    %c0_66 = arith.constant 0 : index
    %118 = vector.load %arg5[%c0_64, %c0_65, %c0_66] : memref<4x32x32xbf16, #tpu.memory_space<vmem>>, vector<1x32x32xbf16>
    %119 = vector.shape_cast %118 : vector<1x32x32xbf16> to vector<32x32xbf16>
    %cst_67 = arith.constant dense<0.000000e+00> : vector<2x32xf32>
    %120 = tpu.matmul %72, %119, %cst_67 {dimension_numbers = #tpu.dot_dimension_numbers<[1], [0], [0], [1], [0, 0, 1, 1], [], []>} : vector<2x32xbf16>, vector<32x32xbf16>, vector<2x32xf32> -> vector<2x32xf32>
    %121 = arith.addf %117, %120 : vector<2x32xf32>
    %c1_68 = arith.constant 1 : index
    %c0_69 = arith.constant 0 : index
    %c0_70 = arith.constant 0 : index
    %122 = vector.load %arg4[%c1_68, %c0_69, %c0_70] : memref<4x32x32xbf16, #tpu.memory_space<vmem>>, vector<1x32x32xbf16>
    %123 = vector.shape_cast %122 : vector<1x32x32xbf16> to vector<32x32xbf16>
    %cst_71 = arith.constant dense<0.000000e+00> : vector<2x32xf32>
    %124 = tpu.matmul %71, %123, %cst_71 {dimension_numbers = #tpu.dot_dimension_numbers<[1], [0], [0], [1], [0, 0, 1, 1], [], []>} : vector<2x32xbf16>, vector<32x32xbf16>, vector<2x32xf32> -> vector<2x32xf32>
    %125 = arith.addf %7, %124 : vector<2x32xf32>
    %c1_72 = arith.constant 1 : index
    %c0_73 = arith.constant 0 : index
    %c0_74 = arith.constant 0 : index
    %126 = vector.load %arg5[%c1_72, %c0_73, %c0_74] : memref<4x32x32xbf16, #tpu.memory_space<vmem>>, vector<1x32x32xbf16>
    %127 = vector.shape_cast %126 : vector<1x32x32xbf16> to vector<32x32xbf16>
    %cst_75 = arith.constant dense<0.000000e+00> : vector<2x32xf32>
    %128 = tpu.matmul %72, %127, %cst_75 {dimension_numbers = #tpu.dot_dimension_numbers<[1], [0], [0], [1], [0, 0, 1, 1], [], []>} : vector<2x32xbf16>, vector<32x32xbf16>, vector<2x32xf32> -> vector<2x32xf32>
    %129 = arith.addf %125, %128 : vector<2x32xf32>
    %c2_76 = arith.constant 2 : index
    %c0_77 = arith.constant 0 : index
    %c0_78 = arith.constant 0 : index
    %130 = vector.load %arg4[%c2_76, %c0_77, %c0_78] : memref<4x32x32xbf16, #tpu.memory_space<vmem>>, vector<1x32x32xbf16>
    %131 = vector.shape_cast %130 : vector<1x32x32xbf16> to vector<32x32xbf16>
    %cst_79 = arith.constant dense<0.000000e+00> : vector<2x32xf32>
    %132 = tpu.matmul %71, %131, %cst_79 {dimension_numbers = #tpu.dot_dimension_numbers<[1], [0], [0], [1], [0, 0, 1, 1], [], []>} : vector<2x32xbf16>, vector<32x32xbf16>, vector<2x32xf32> -> vector<2x32xf32>
    %133 = arith.addf %11, %132 : vector<2x32xf32>
    %c2_80 = arith.constant 2 : index
    %c0_81 = arith.constant 0 : index
    %c0_82 = arith.constant 0 : index
    %134 = vector.load %arg5[%c2_80, %c0_81, %c0_82] : memref<4x32x32xbf16, #tpu.memory_space<vmem>>, vector<1x32x32xbf16>
    %135 = vector.shape_cast %134 : vector<1x32x32xbf16> to vector<32x32xbf16>
    %cst_83 = arith.constant dense<0.000000e+00> : vector<2x32xf32>
    %136 = tpu.matmul %72, %135, %cst_83 {dimension_numbers = #tpu.dot_dimension_numbers<[1], [0], [0], [1], [0, 0, 1, 1], [], []>} : vector<2x32xbf16>, vector<32x32xbf16>, vector<2x32xf32> -> vector<2x32xf32>
    %137 = arith.addf %133, %136 : vector<2x32xf32>
    %c3_84 = arith.constant 3 : index
    %c0_85 = arith.constant 0 : index
    %c0_86 = arith.constant 0 : index
    %138 = vector.load %arg4[%c3_84, %c0_85, %c0_86] : memref<4x32x32xbf16, #tpu.memory_space<vmem>>, vector<1x32x32xbf16>
    %139 = vector.shape_cast %138 : vector<1x32x32xbf16> to vector<32x32xbf16>
    %cst_87 = arith.constant dense<0.000000e+00> : vector<2x32xf32>
    %140 = tpu.matmul %71, %139, %cst_87 {dimension_numbers = #tpu.dot_dimension_numbers<[1], [0], [0], [1], [0, 0, 1, 1], [], []>} : vector<2x32xbf16>, vector<32x32xbf16>, vector<2x32xf32> -> vector<2x32xf32>
    %141 = arith.addf %15, %140 : vector<2x32xf32>
    %c3_88 = arith.constant 3 : index
    %c0_89 = arith.constant 0 : index
    %c0_90 = arith.constant 0 : index
    %142 = vector.load %arg5[%c3_88, %c0_89, %c0_90] : memref<4x32x32xbf16, #tpu.memory_space<vmem>>, vector<1x32x32xbf16>
    %143 = vector.shape_cast %142 : vector<1x32x32xbf16> to vector<32x32xbf16>
    %cst_91 = arith.constant dense<0.000000e+00> : vector<2x32xf32>
    %144 = tpu.matmul %72, %143, %cst_91 {dimension_numbers = #tpu.dot_dimension_numbers<[1], [0], [0], [1], [0, 0, 1, 1], [], []>} : vector<2x32xbf16>, vector<32x32xbf16>, vector<2x32xf32> -> vector<2x32xf32>
    %145 = arith.addf %141, %144 : vector<2x32xf32>
    %146 = arith.negf %121 : vector<2x32xf32>
    %147 = math.exp %146 : vector<2x32xf32>
    %cst_92 = arith.constant 1.000000e+00 : f32
    %148 = vector.broadcast %cst_92 : f32 to vector<2x32xf32>
    %149 = arith.addf %148, %147 : vector<2x32xf32>
    %150 = arith.divf %148, %149 : vector<2x32xf32>
    %151 = arith.negf %129 : vector<2x32xf32>
    %152 = math.exp %151 : vector<2x32xf32>
    %cst_93 = arith.constant 1.000000e+00 : f32
    %153 = vector.broadcast %cst_93 : f32 to vector<2x32xf32>
    %154 = arith.addf %153, %152 : vector<2x32xf32>
    %155 = arith.divf %153, %154 : vector<2x32xf32>
    %156 = math.tanh %137 : vector<2x32xf32>
    %157 = arith.negf %145 : vector<2x32xf32>
    %158 = math.exp %157 : vector<2x32xf32>
    %cst_94 = arith.constant 1.000000e+00 : f32
    %159 = vector.broadcast %cst_94 : f32 to vector<2x32xf32>
    %160 = arith.addf %159, %158 : vector<2x32xf32>
    %161 = arith.divf %159, %160 : vector<2x32xf32>
    %162 = arith.mulf %155, %45 : vector<2x32xf32>
    %163 = arith.mulf %150, %156 : vector<2x32xf32>
    %164 = arith.addf %162, %163 : vector<2x32xf32>
    %165 = math.tanh %164 : vector<2x32xf32>
    %166 = arith.mulf %161, %165 : vector<2x32xf32>
    %167 = arith.truncf %113 : vector<2x32xf32> to vector<2x32xbf16>
    %168 = arith.truncf %166 : vector<2x32xf32> to vector<2x32xbf16>
    %169 = vector.extract_strided_slice %23 {offsets = [4, 0], sizes = [2, 32], strides = [1, 1]} : vector<16x32xf32> to vector<2x32xf32>
    %170 = vector.extract_strided_slice %30 {offsets = [4, 0], sizes = [2, 32], strides = [1, 1]} : vector<16x32xf32> to vector<2x32xf32>
    %171 = vector.extract_strided_slice %37 {offsets = [4, 0], sizes = [2, 32], strides = [1, 1]} : vector<16x32xf32> to vector<2x32xf32>
    %172 = vector.extract_strided_slice %44 {offsets = [4, 0], sizes = [2, 32], strides = [1, 1]} : vector<16x32xf32> to vector<2x32xf32>
    %c0_95 = arith.constant 0 : index
    %c0_96 = arith.constant 0 : index
    %c0_97 = arith.constant 0 : index
    %173 = vector.load %arg3[%c0_95, %c0_96, %c0_97] : memref<4x32x32xbf16, #tpu.memory_space<vmem>>, vector<1x32x32xbf16>
    %174 = vector.shape_cast %173 : vector<1x32x32xbf16> to vector<32x32xbf16>
    %cst_98 = arith.constant dense<0.000000e+00> : vector<2x32xf32>
    %175 = tpu.matmul %167, %174, %cst_98 {dimension_numbers = #tpu.dot_dimension_numbers<[1], [0], [0], [1], [0, 0, 1, 1], [], []>} : vector<2x32xbf16>, vector<32x32xbf16>, vector<2x32xf32> -> vector<2x32xf32>
    %176 = arith.addf %169, %175 : vector<2x32xf32>
    %c1_99 = arith.constant 1 : index
    %c0_100 = arith.constant 0 : index
    %c0_101 = arith.constant 0 : index
    %177 = vector.load %arg3[%c1_99, %c0_100, %c0_101] : memref<4x32x32xbf16, #tpu.memory_space<vmem>>, vector<1x32x32xbf16>
    %178 = vector.shape_cast %177 : vector<1x32x32xbf16> to vector<32x32xbf16>
    %cst_102 = arith.constant dense<0.000000e+00> : vector<2x32xf32>
    %179 = tpu.matmul %167, %178, %cst_102 {dimension_numbers = #tpu.dot_dimension_numbers<[1], [0], [0], [1], [0, 0, 1, 1], [], []>} : vector<2x32xbf16>, vector<32x32xbf16>, vector<2x32xf32> -> vector<2x32xf32>
    %180 = arith.addf %170, %179 : vector<2x32xf32>
    %c2_103 = arith.constant 2 : index
    %c0_104 = arith.constant 0 : index
    %c0_105 = arith.constant 0 : index
    %181 = vector.load %arg3[%c2_103, %c0_104, %c0_105] : memref<4x32x32xbf16, #tpu.memory_space<vmem>>, vector<1x32x32xbf16>
    %182 = vector.shape_cast %181 : vector<1x32x32xbf16> to vector<32x32xbf16>
    %cst_106 = arith.constant dense<0.000000e+00> : vector<2x32xf32>
    %183 = tpu.matmul %167, %182, %cst_106 {dimension_numbers = #tpu.dot_dimension_numbers<[1], [0], [0], [1], [0, 0, 1, 1], [], []>} : vector<2x32xbf16>, vector<32x32xbf16>, vector<2x32xf32> -> vector<2x32xf32>
    %184 = arith.addf %171, %183 : vector<2x32xf32>
    %c3_107 = arith.constant 3 : index
    %c0_108 = arith.constant 0 : index
    %c0_109 = arith.constant 0 : index
    %185 = vector.load %arg3[%c3_107, %c0_108, %c0_109] : memref<4x32x32xbf16, #tpu.memory_space<vmem>>, vector<1x32x32xbf16>
    %186 = vector.shape_cast %185 : vector<1x32x32xbf16> to vector<32x32xbf16>
    %cst_110 = arith.constant dense<0.000000e+00> : vector<2x32xf32>
    %187 = tpu.matmul %167, %186, %cst_110 {dimension_numbers = #tpu.dot_dimension_numbers<[1], [0], [0], [1], [0, 0, 1, 1], [], []>} : vector<2x32xbf16>, vector<32x32xbf16>, vector<2x32xf32> -> vector<2x32xf32>
    %188 = arith.addf %172, %187 : vector<2x32xf32>
    %189 = arith.negf %176 : vector<2x32xf32>
    %190 = math.exp %189 : vector<2x32xf32>
    %cst_111 = arith.constant 1.000000e+00 : f32
    %191 = vector.broadcast %cst_111 : f32 to vector<2x32xf32>
    %192 = arith.addf %191, %190 : vector<2x32xf32>
    %193 = arith.divf %191, %192 : vector<2x32xf32>
    %194 = arith.negf %180 : vector<2x32xf32>
    %195 = math.exp %194 : vector<2x32xf32>
    %cst_112 = arith.constant 1.000000e+00 : f32
    %196 = vector.broadcast %cst_112 : f32 to vector<2x32xf32>
    %197 = arith.addf %196, %195 : vector<2x32xf32>
    %198 = arith.divf %196, %197 : vector<2x32xf32>
    %199 = math.tanh %184 : vector<2x32xf32>
    %200 = arith.negf %188 : vector<2x32xf32>
    %201 = math.exp %200 : vector<2x32xf32>
    %cst_113 = arith.constant 1.000000e+00 : f32
    %202 = vector.broadcast %cst_113 : f32 to vector<2x32xf32>
    %203 = arith.addf %202, %201 : vector<2x32xf32>
    %204 = arith.divf %202, %203 : vector<2x32xf32>
    %205 = arith.mulf %198, %111 : vector<2x32xf32>
    %206 = arith.mulf %193, %199 : vector<2x32xf32>
    %207 = arith.addf %205, %206 : vector<2x32xf32>
    %208 = math.tanh %207 : vector<2x32xf32>
    %209 = arith.mulf %204, %208 : vector<2x32xf32>
    %c0_114 = arith.constant 0 : index
    %c0_115 = arith.constant 0 : index
    %c0_116 = arith.constant 0 : index
    %210 = vector.load %arg4[%c0_114, %c0_115, %c0_116] : memref<4x32x32xbf16, #tpu.memory_space<vmem>>, vector<1x32x32xbf16>
    %211 = vector.shape_cast %210 : vector<1x32x32xbf16> to vector<32x32xbf16>
    %cst_117 = arith.constant dense<0.000000e+00> : vector<2x32xf32>
    %212 = tpu.matmul %167, %211, %cst_117 {dimension_numbers = #tpu.dot_dimension_numbers<[1], [0], [0], [1], [0, 0, 1, 1], [], []>} : vector<2x32xbf16>, vector<32x32xbf16>, vector<2x32xf32> -> vector<2x32xf32>
    %213 = arith.addf %3, %212 : vector<2x32xf32>
    %c0_118 = arith.constant 0 : index
    %c0_119 = arith.constant 0 : index
    %c0_120 = arith.constant 0 : index
    %214 = vector.load %arg5[%c0_118, %c0_119, %c0_120] : memref<4x32x32xbf16, #tpu.memory_space<vmem>>, vector<1x32x32xbf16>
    %215 = vector.shape_cast %214 : vector<1x32x32xbf16> to vector<32x32xbf16>
    %cst_121 = arith.constant dense<0.000000e+00> : vector<2x32xf32>
    %216 = tpu.matmul %168, %215, %cst_121 {dimension_numbers = #tpu.dot_dimension_numbers<[1], [0], [0], [1], [0, 0, 1, 1], [], []>} : vector<2x32xbf16>, vector<32x32xbf16>, vector<2x32xf32> -> vector<2x32xf32>
    %217 = arith.addf %213, %216 : vector<2x32xf32>
    %c1_122 = arith.constant 1 : index
    %c0_123 = arith.constant 0 : index
    %c0_124 = arith.constant 0 : index
    %218 = vector.load %arg4[%c1_122, %c0_123, %c0_124] : memref<4x32x32xbf16, #tpu.memory_space<vmem>>, vector<1x32x32xbf16>
    %219 = vector.shape_cast %218 : vector<1x32x32xbf16> to vector<32x32xbf16>
    %cst_125 = arith.constant dense<0.000000e+00> : vector<2x32xf32>
    %220 = tpu.matmul %167, %219, %cst_125 {dimension_numbers = #tpu.dot_dimension_numbers<[1], [0], [0], [1], [0, 0, 1, 1], [], []>} : vector<2x32xbf16>, vector<32x32xbf16>, vector<2x32xf32> -> vector<2x32xf32>
    %221 = arith.addf %7, %220 : vector<2x32xf32>
    %c1_126 = arith.constant 1 : index
    %c0_127 = arith.constant 0 : index
    %c0_128 = arith.constant 0 : index
    %222 = vector.load %arg5[%c1_126, %c0_127, %c0_128] : memref<4x32x32xbf16, #tpu.memory_space<vmem>>, vector<1x32x32xbf16>
    %223 = vector.shape_cast %222 : vector<1x32x32xbf16> to vector<32x32xbf16>
    %cst_129 = arith.constant dense<0.000000e+00> : vector<2x32xf32>
    %224 = tpu.matmul %168, %223, %cst_129 {dimension_numbers = #tpu.dot_dimension_numbers<[1], [0], [0], [1], [0, 0, 1, 1], [], []>} : vector<2x32xbf16>, vector<32x32xbf16>, vector<2x32xf32> -> vector<2x32xf32>
    %225 = arith.addf %221, %224 : vector<2x32xf32>
    %c2_130 = arith.constant 2 : index
    %c0_131 = arith.constant 0 : index
    %c0_132 = arith.constant 0 : index
    %226 = vector.load %arg4[%c2_130, %c0_131, %c0_132] : memref<4x32x32xbf16, #tpu.memory_space<vmem>>, vector<1x32x32xbf16>
    %227 = vector.shape_cast %226 : vector<1x32x32xbf16> to vector<32x32xbf16>
    %cst_133 = arith.constant dense<0.000000e+00> : vector<2x32xf32>
    %228 = tpu.matmul %167, %227, %cst_133 {dimension_numbers = #tpu.dot_dimension_numbers<[1], [0], [0], [1], [0, 0, 1, 1], [], []>} : vector<2x32xbf16>, vector<32x32xbf16>, vector<2x32xf32> -> vector<2x32xf32>
    %229 = arith.addf %11, %228 : vector<2x32xf32>
    %c2_134 = arith.constant 2 : index
    %c0_135 = arith.constant 0 : index
    %c0_136 = arith.constant 0 : index
    %230 = vector.load %arg5[%c2_134, %c0_135, %c0_136] : memref<4x32x32xbf16, #tpu.memory_space<vmem>>, vector<1x32x32xbf16>
    %231 = vector.shape_cast %230 : vector<1x32x32xbf16> to vector<32x32xbf16>
    %cst_137 = arith.constant dense<0.000000e+00> : vector<2x32xf32>
    %232 = tpu.matmul %168, %231, %cst_137 {dimension_numbers = #tpu.dot_dimension_numbers<[1], [0], [0], [1], [0, 0, 1, 1], [], []>} : vector<2x32xbf16>, vector<32x32xbf16>, vector<2x32xf32> -> vector<2x32xf32>
    %233 = arith.addf %229, %232 : vector<2x32xf32>
    %c3_138 = arith.constant 3 : index
    %c0_139 = arith.constant 0 : index
    %c0_140 = arith.constant 0 : index
    %234 = vector.load %arg4[%c3_138, %c0_139, %c0_140] : memref<4x32x32xbf16, #tpu.memory_space<vmem>>, vector<1x32x32xbf16>
    %235 = vector.shape_cast %234 : vector<1x32x32xbf16> to vector<32x32xbf16>
    %cst_141 = arith.constant dense<0.000000e+00> : vector<2x32xf32>
    %236 = tpu.matmul %167, %235, %cst_141 {dimension_numbers = #tpu.dot_dimension_numbers<[1], [0], [0], [1], [0, 0, 1, 1], [], []>} : vector<2x32xbf16>, vector<32x32xbf16>, vector<2x32xf32> -> vector<2x32xf32>
    %237 = arith.addf %15, %236 : vector<2x32xf32>
    %c3_142 = arith.constant 3 : index
    %c0_143 = arith.constant 0 : index
    %c0_144 = arith.constant 0 : index
    %238 = vector.load %arg5[%c3_142, %c0_143, %c0_144] : memref<4x32x32xbf16, #tpu.memory_space<vmem>>, vector<1x32x32xbf16>
    %239 = vector.shape_cast %238 : vector<1x32x32xbf16> to vector<32x32xbf16>
    %cst_145 = arith.constant dense<0.000000e+00> : vector<2x32xf32>
    %240 = tpu.matmul %168, %239, %cst_145 {dimension_numbers = #tpu.dot_dimension_numbers<[1], [0], [0], [1], [0, 0, 1, 1], [], []>} : vector<2x32xbf16>, vector<32x32xbf16>, vector<2x32xf32> -> vector<2x32xf32>
    %241 = arith.addf %237, %240 : vector<2x32xf32>
    %242 = arith.negf %217 : vector<2x32xf32>
    %243 = math.exp %242 : vector<2x32xf32>
    %cst_146 = arith.constant 1.000000e+00 : f32
    %244 = vector.broadcast %cst_146 : f32 to vector<2x32xf32>
    %245 = arith.addf %244, %243 : vector<2x32xf32>
    %246 = arith.divf %244, %245 : vector<2x32xf32>
    %247 = arith.negf %225 : vector<2x32xf32>
    %248 = math.exp %247 : vector<2x32xf32>
    %cst_147 = arith.constant 1.000000e+00 : f32
    %249 = vector.broadcast %cst_147 : f32 to vector<2x32xf32>
    %250 = arith.addf %249, %248 : vector<2x32xf32>
    %251 = arith.divf %249, %250 : vector<2x32xf32>
    %252 = math.tanh %233 : vector<2x32xf32>
    %253 = arith.negf %241 : vector<2x32xf32>
    %254 = math.exp %253 : vector<2x32xf32>
    %cst_148 = arith.constant 1.000000e+00 : f32
    %255 = vector.broadcast %cst_148 : f32 to vector<2x32xf32>
    %256 = arith.addf %255, %254 : vector<2x32xf32>
    %257 = arith.divf %255, %256 : vector<2x32xf32>
    %258 = arith.mulf %251, %164 : vector<2x32xf32>
    %259 = arith.mulf %246, %252 : vector<2x32xf32>
    %260 = arith.addf %258, %259 : vector<2x32xf32>
    %261 = math.tanh %260 : vector<2x32xf32>
    %262 = arith.mulf %257, %261 : vector<2x32xf32>
    %263 = arith.truncf %209 : vector<2x32xf32> to vector<2x32xbf16>
    %264 = arith.truncf %262 : vector<2x32xf32> to vector<2x32xbf16>
    %265 = vector.extract_strided_slice %23 {offsets = [6, 0], sizes = [2, 32], strides = [1, 1]} : vector<16x32xf32> to vector<2x32xf32>
    %266 = vector.extract_strided_slice %30 {offsets = [6, 0], sizes = [2, 32], strides = [1, 1]} : vector<16x32xf32> to vector<2x32xf32>
    %267 = vector.extract_strided_slice %37 {offsets = [6, 0], sizes = [2, 32], strides = [1, 1]} : vector<16x32xf32> to vector<2x32xf32>
    %268 = vector.extract_strided_slice %44 {offsets = [6, 0], sizes = [2, 32], strides = [1, 1]} : vector<16x32xf32> to vector<2x32xf32>
    %c0_149 = arith.constant 0 : index
    %c0_150 = arith.constant 0 : index
    %c0_151 = arith.constant 0 : index
    %269 = vector.load %arg3[%c0_149, %c0_150, %c0_151] : memref<4x32x32xbf16, #tpu.memory_space<vmem>>, vector<1x32x32xbf16>
    %270 = vector.shape_cast %269 : vector<1x32x32xbf16> to vector<32x32xbf16>
    %cst_152 = arith.constant dense<0.000000e+00> : vector<2x32xf32>
    %271 = tpu.matmul %263, %270, %cst_152 {dimension_numbers = #tpu.dot_dimension_numbers<[1], [0], [0], [1], [0, 0, 1, 1], [], []>} : vector<2x32xbf16>, vector<32x32xbf16>, vector<2x32xf32> -> vector<2x32xf32>
    %272 = arith.addf %265, %271 : vector<2x32xf32>
    %c1_153 = arith.constant 1 : index
    %c0_154 = arith.constant 0 : index
    %c0_155 = arith.constant 0 : index
    %273 = vector.load %arg3[%c1_153, %c0_154, %c0_155] : memref<4x32x32xbf16, #tpu.memory_space<vmem>>, vector<1x32x32xbf16>
    %274 = vector.shape_cast %273 : vector<1x32x32xbf16> to vector<32x32xbf16>
    %cst_156 = arith.constant dense<0.000000e+00> : vector<2x32xf32>
    %275 = tpu.matmul %263, %274, %cst_156 {dimension_numbers = #tpu.dot_dimension_numbers<[1], [0], [0], [1], [0, 0, 1, 1], [], []>} : vector<2x32xbf16>, vector<32x32xbf16>, vector<2x32xf32> -> vector<2x32xf32>
    %276 = arith.addf %266, %275 : vector<2x32xf32>
    %c2_157 = arith.constant 2 : index
    %c0_158 = arith.constant 0 : index
    %c0_159 = arith.constant 0 : index
    %277 = vector.load %arg3[%c2_157, %c0_158, %c0_159] : memref<4x32x32xbf16, #tpu.memory_space<vmem>>, vector<1x32x32xbf16>
    %278 = vector.shape_cast %277 : vector<1x32x32xbf16> to vector<32x32xbf16>
    %cst_160 = arith.constant dense<0.000000e+00> : vector<2x32xf32>
    %279 = tpu.matmul %263, %278, %cst_160 {dimension_numbers = #tpu.dot_dimension_numbers<[1], [0], [0], [1], [0, 0, 1, 1], [], []>} : vector<2x32xbf16>, vector<32x32xbf16>, vector<2x32xf32> -> vector<2x32xf32>
    %280 = arith.addf %267, %279 : vector<2x32xf32>
    %c3_161 = arith.constant 3 : index
    %c0_162 = arith.constant 0 : index
    %c0_163 = arith.constant 0 : index
    %281 = vector.load %arg3[%c3_161, %c0_162, %c0_163] : memref<4x32x32xbf16, #tpu.memory_space<vmem>>, vector<1x32x32xbf16>
    %282 = vector.shape_cast %281 : vector<1x32x32xbf16> to vector<32x32xbf16>
    %cst_164 = arith.constant dense<0.000000e+00> : vector<2x32xf32>
    %283 = tpu.matmul %263, %282, %cst_164 {dimension_numbers = #tpu.dot_dimension_numbers<[1], [0], [0], [1], [0, 0, 1, 1], [], []>} : vector<2x32xbf16>, vector<32x32xbf16>, vector<2x32xf32> -> vector<2x32xf32>
    %284 = arith.addf %268, %283 : vector<2x32xf32>
    %285 = arith.negf %272 : vector<2x32xf32>
    %286 = math.exp %285 : vector<2x32xf32>
    %cst_165 = arith.constant 1.000000e+00 : f32
    %287 = vector.broadcast %cst_165 : f32 to vector<2x32xf32>
    %288 = arith.addf %287, %286 : vector<2x32xf32>
    %289 = arith.divf %287, %288 : vector<2x32xf32>
    %290 = arith.negf %276 : vector<2x32xf32>
    %291 = math.exp %290 : vector<2x32xf32>
    %cst_166 = arith.constant 1.000000e+00 : f32
    %292 = vector.broadcast %cst_166 : f32 to vector<2x32xf32>
    %293 = arith.addf %292, %291 : vector<2x32xf32>
    %294 = arith.divf %292, %293 : vector<2x32xf32>
    %295 = math.tanh %280 : vector<2x32xf32>
    %296 = arith.negf %284 : vector<2x32xf32>
    %297 = math.exp %296 : vector<2x32xf32>
    %cst_167 = arith.constant 1.000000e+00 : f32
    %298 = vector.broadcast %cst_167 : f32 to vector<2x32xf32>
    %299 = arith.addf %298, %297 : vector<2x32xf32>
    %300 = arith.divf %298, %299 : vector<2x32xf32>
    %301 = arith.mulf %294, %207 : vector<2x32xf32>
    %302 = arith.mulf %289, %295 : vector<2x32xf32>
    %303 = arith.addf %301, %302 : vector<2x32xf32>
    %304 = math.tanh %303 : vector<2x32xf32>
    %305 = arith.mulf %300, %304 : vector<2x32xf32>
    %c0_168 = arith.constant 0 : index
    %c0_169 = arith.constant 0 : index
    %c0_170 = arith.constant 0 : index
    %306 = vector.load %arg4[%c0_168, %c0_169, %c0_170] : memref<4x32x32xbf16, #tpu.memory_space<vmem>>, vector<1x32x32xbf16>
    %307 = vector.shape_cast %306 : vector<1x32x32xbf16> to vector<32x32xbf16>
    %cst_171 = arith.constant dense<0.000000e+00> : vector<2x32xf32>
    %308 = tpu.matmul %263, %307, %cst_171 {dimension_numbers = #tpu.dot_dimension_numbers<[1], [0], [0], [1], [0, 0, 1, 1], [], []>} : vector<2x32xbf16>, vector<32x32xbf16>, vector<2x32xf32> -> vector<2x32xf32>
    %309 = arith.addf %3, %308 : vector<2x32xf32>
    %c0_172 = arith.constant 0 : index
    %c0_173 = arith.constant 0 : index
    %c0_174 = arith.constant 0 : index
    %310 = vector.load %arg5[%c0_172, %c0_173, %c0_174] : memref<4x32x32xbf16, #tpu.memory_space<vmem>>, vector<1x32x32xbf16>
    %311 = vector.shape_cast %310 : vector<1x32x32xbf16> to vector<32x32xbf16>
    %cst_175 = arith.constant dense<0.000000e+00> : vector<2x32xf32>
    %312 = tpu.matmul %264, %311, %cst_175 {dimension_numbers = #tpu.dot_dimension_numbers<[1], [0], [0], [1], [0, 0, 1, 1], [], []>} : vector<2x32xbf16>, vector<32x32xbf16>, vector<2x32xf32> -> vector<2x32xf32>
    %313 = arith.addf %309, %312 : vector<2x32xf32>
    %c1_176 = arith.constant 1 : index
    %c0_177 = arith.constant 0 : index
    %c0_178 = arith.constant 0 : index
    %314 = vector.load %arg4[%c1_176, %c0_177, %c0_178] : memref<4x32x32xbf16, #tpu.memory_space<vmem>>, vector<1x32x32xbf16>
    %315 = vector.shape_cast %314 : vector<1x32x32xbf16> to vector<32x32xbf16>
    %cst_179 = arith.constant dense<0.000000e+00> : vector<2x32xf32>
    %316 = tpu.matmul %263, %315, %cst_179 {dimension_numbers = #tpu.dot_dimension_numbers<[1], [0], [0], [1], [0, 0, 1, 1], [], []>} : vector<2x32xbf16>, vector<32x32xbf16>, vector<2x32xf32> -> vector<2x32xf32>
    %317 = arith.addf %7, %316 : vector<2x32xf32>
    %c1_180 = arith.constant 1 : index
    %c0_181 = arith.constant 0 : index
    %c0_182 = arith.constant 0 : index
    %318 = vector.load %arg5[%c1_180, %c0_181, %c0_182] : memref<4x32x32xbf16, #tpu.memory_space<vmem>>, vector<1x32x32xbf16>
    %319 = vector.shape_cast %318 : vector<1x32x32xbf16> to vector<32x32xbf16>
    %cst_183 = arith.constant dense<0.000000e+00> : vector<2x32xf32>
    %320 = tpu.matmul %264, %319, %cst_183 {dimension_numbers = #tpu.dot_dimension_numbers<[1], [0], [0], [1], [0, 0, 1, 1], [], []>} : vector<2x32xbf16>, vector<32x32xbf16>, vector<2x32xf32> -> vector<2x32xf32>
    %321 = arith.addf %317, %320 : vector<2x32xf32>
    %c2_184 = arith.constant 2 : index
    %c0_185 = arith.constant 0 : index
    %c0_186 = arith.constant 0 : index
    %322 = vector.load %arg4[%c2_184, %c0_185, %c0_186] : memref<4x32x32xbf16, #tpu.memory_space<vmem>>, vector<1x32x32xbf16>
    %323 = vector.shape_cast %322 : vector<1x32x32xbf16> to vector<32x32xbf16>
    %cst_187 = arith.constant dense<0.000000e+00> : vector<2x32xf32>
    %324 = tpu.matmul %263, %323, %cst_187 {dimension_numbers = #tpu.dot_dimension_numbers<[1], [0], [0], [1], [0, 0, 1, 1], [], []>} : vector<2x32xbf16>, vector<32x32xbf16>, vector<2x32xf32> -> vector<2x32xf32>
    %325 = arith.addf %11, %324 : vector<2x32xf32>
    %c2_188 = arith.constant 2 : index
    %c0_189 = arith.constant 0 : index
    %c0_190 = arith.constant 0 : index
    %326 = vector.load %arg5[%c2_188, %c0_189, %c0_190] : memref<4x32x32xbf16, #tpu.memory_space<vmem>>, vector<1x32x32xbf16>
    %327 = vector.shape_cast %326 : vector<1x32x32xbf16> to vector<32x32xbf16>
    %cst_191 = arith.constant dense<0.000000e+00> : vector<2x32xf32>
    %328 = tpu.matmul %264, %327, %cst_191 {dimension_numbers = #tpu.dot_dimension_numbers<[1], [0], [0], [1], [0, 0, 1, 1], [], []>} : vector<2x32xbf16>, vector<32x32xbf16>, vector<2x32xf32> -> vector<2x32xf32>
    %329 = arith.addf %325, %328 : vector<2x32xf32>
    %c3_192 = arith.constant 3 : index
    %c0_193 = arith.constant 0 : index
    %c0_194 = arith.constant 0 : index
    %330 = vector.load %arg4[%c3_192, %c0_193, %c0_194] : memref<4x32x32xbf16, #tpu.memory_space<vmem>>, vector<1x32x32xbf16>
    %331 = vector.shape_cast %330 : vector<1x32x32xbf16> to vector<32x32xbf16>
    %cst_195 = arith.constant dense<0.000000e+00> : vector<2x32xf32>
    %332 = tpu.matmul %263, %331, %cst_195 {dimension_numbers = #tpu.dot_dimension_numbers<[1], [0], [0], [1], [0, 0, 1, 1], [], []>} : vector<2x32xbf16>, vector<32x32xbf16>, vector<2x32xf32> -> vector<2x32xf32>
    %333 = arith.addf %15, %332 : vector<2x32xf32>
    %c3_196 = arith.constant 3 : index
    %c0_197 = arith.constant 0 : index
    %c0_198 = arith.constant 0 : index
    %334 = vector.load %arg5[%c3_196, %c0_197, %c0_198] : memref<4x32x32xbf16, #tpu.memory_space<vmem>>, vector<1x32x32xbf16>
    %335 = vector.shape_cast %334 : vector<1x32x32xbf16> to vector<32x32xbf16>
    %cst_199 = arith.constant dense<0.000000e+00> : vector<2x32xf32>
    %336 = tpu.matmul %264, %335, %cst_199 {dimension_numbers = #tpu.dot_dimension_numbers<[1], [0], [0], [1], [0, 0, 1, 1], [], []>} : vector<2x32xbf16>, vector<32x32xbf16>, vector<2x32xf32> -> vector<2x32xf32>
    %337 = arith.addf %333, %336 : vector<2x32xf32>
    %338 = arith.negf %313 : vector<2x32xf32>
    %339 = math.exp %338 : vector<2x32xf32>
    %cst_200 = arith.constant 1.000000e+00 : f32
    %340 = vector.broadcast %cst_200 : f32 to vector<2x32xf32>
    %341 = arith.addf %340, %339 : vector<2x32xf32>
    %342 = arith.divf %340, %341 : vector<2x32xf32>
    %343 = arith.negf %321 : vector<2x32xf32>
    %344 = math.exp %343 : vector<2x32xf32>
    %cst_201 = arith.constant 1.000000e+00 : f32
    %345 = vector.broadcast %cst_201 : f32 to vector<2x32xf32>
    %346 = arith.addf %345, %344 : vector<2x32xf32>
    %347 = arith.divf %345, %346 : vector<2x32xf32>
    %348 = math.tanh %329 : vector<2x32xf32>
    %349 = arith.negf %337 : vector<2x32xf32>
    %350 = math.exp %349 : vector<2x32xf32>
    %cst_202 = arith.constant 1.000000e+00 : f32
    %351 = vector.broadcast %cst_202 : f32 to vector<2x32xf32>
    %352 = arith.addf %351, %350 : vector<2x32xf32>
    %353 = arith.divf %351, %352 : vector<2x32xf32>
    %354 = arith.mulf %347, %260 : vector<2x32xf32>
    %355 = arith.mulf %342, %348 : vector<2x32xf32>
    %356 = arith.addf %354, %355 : vector<2x32xf32>
    %357 = math.tanh %356 : vector<2x32xf32>
    %358 = arith.mulf %353, %357 : vector<2x32xf32>
    %359 = arith.truncf %305 : vector<2x32xf32> to vector<2x32xbf16>
    %360 = arith.truncf %358 : vector<2x32xf32> to vector<2x32xbf16>
    %361 = vector.extract_strided_slice %23 {offsets = [8, 0], sizes = [2, 32], strides = [1, 1]} : vector<16x32xf32> to vector<2x32xf32>
    %362 = vector.extract_strided_slice %30 {offsets = [8, 0], sizes = [2, 32], strides = [1, 1]} : vector<16x32xf32> to vector<2x32xf32>
    %363 = vector.extract_strided_slice %37 {offsets = [8, 0], sizes = [2, 32], strides = [1, 1]} : vector<16x32xf32> to vector<2x32xf32>
    %364 = vector.extract_strided_slice %44 {offsets = [8, 0], sizes = [2, 32], strides = [1, 1]} : vector<16x32xf32> to vector<2x32xf32>
    %c0_203 = arith.constant 0 : index
    %c0_204 = arith.constant 0 : index
    %c0_205 = arith.constant 0 : index
    %365 = vector.load %arg3[%c0_203, %c0_204, %c0_205] : memref<4x32x32xbf16, #tpu.memory_space<vmem>>, vector<1x32x32xbf16>
    %366 = vector.shape_cast %365 : vector<1x32x32xbf16> to vector<32x32xbf16>
    %cst_206 = arith.constant dense<0.000000e+00> : vector<2x32xf32>
    %367 = tpu.matmul %359, %366, %cst_206 {dimension_numbers = #tpu.dot_dimension_numbers<[1], [0], [0], [1], [0, 0, 1, 1], [], []>} : vector<2x32xbf16>, vector<32x32xbf16>, vector<2x32xf32> -> vector<2x32xf32>
    %368 = arith.addf %361, %367 : vector<2x32xf32>
    %c1_207 = arith.constant 1 : index
    %c0_208 = arith.constant 0 : index
    %c0_209 = arith.constant 0 : index
    %369 = vector.load %arg3[%c1_207, %c0_208, %c0_209] : memref<4x32x32xbf16, #tpu.memory_space<vmem>>, vector<1x32x32xbf16>
    %370 = vector.shape_cast %369 : vector<1x32x32xbf16> to vector<32x32xbf16>
    %cst_210 = arith.constant dense<0.000000e+00> : vector<2x32xf32>
    %371 = tpu.matmul %359, %370, %cst_210 {dimension_numbers = #tpu.dot_dimension_numbers<[1], [0], [0], [1], [0, 0, 1, 1], [], []>} : vector<2x32xbf16>, vector<32x32xbf16>, vector<2x32xf32> -> vector<2x32xf32>
    %372 = arith.addf %362, %371 : vector<2x32xf32>
    %c2_211 = arith.constant 2 : index
    %c0_212 = arith.constant 0 : index
    %c0_213 = arith.constant 0 : index
    %373 = vector.load %arg3[%c2_211, %c0_212, %c0_213] : memref<4x32x32xbf16, #tpu.memory_space<vmem>>, vector<1x32x32xbf16>
    %374 = vector.shape_cast %373 : vector<1x32x32xbf16> to vector<32x32xbf16>
    %cst_214 = arith.constant dense<0.000000e+00> : vector<2x32xf32>
    %375 = tpu.matmul %359, %374, %cst_214 {dimension_numbers = #tpu.dot_dimension_numbers<[1], [0], [0], [1], [0, 0, 1, 1], [], []>} : vector<2x32xbf16>, vector<32x32xbf16>, vector<2x32xf32> -> vector<2x32xf32>
    %376 = arith.addf %363, %375 : vector<2x32xf32>
    %c3_215 = arith.constant 3 : index
    %c0_216 = arith.constant 0 : index
    %c0_217 = arith.constant 0 : index
    %377 = vector.load %arg3[%c3_215, %c0_216, %c0_217] : memref<4x32x32xbf16, #tpu.memory_space<vmem>>, vector<1x32x32xbf16>
    %378 = vector.shape_cast %377 : vector<1x32x32xbf16> to vector<32x32xbf16>
    %cst_218 = arith.constant dense<0.000000e+00> : vector<2x32xf32>
    %379 = tpu.matmul %359, %378, %cst_218 {dimension_numbers = #tpu.dot_dimension_numbers<[1], [0], [0], [1], [0, 0, 1, 1], [], []>} : vector<2x32xbf16>, vector<32x32xbf16>, vector<2x32xf32> -> vector<2x32xf32>
    %380 = arith.addf %364, %379 : vector<2x32xf32>
    %381 = arith.negf %368 : vector<2x32xf32>
    %382 = math.exp %381 : vector<2x32xf32>
    %cst_219 = arith.constant 1.000000e+00 : f32
    %383 = vector.broadcast %cst_219 : f32 to vector<2x32xf32>
    %384 = arith.addf %383, %382 : vector<2x32xf32>
    %385 = arith.divf %383, %384 : vector<2x32xf32>
    %386 = arith.negf %372 : vector<2x32xf32>
    %387 = math.exp %386 : vector<2x32xf32>
    %cst_220 = arith.constant 1.000000e+00 : f32
    %388 = vector.broadcast %cst_220 : f32 to vector<2x32xf32>
    %389 = arith.addf %388, %387 : vector<2x32xf32>
    %390 = arith.divf %388, %389 : vector<2x32xf32>
    %391 = math.tanh %376 : vector<2x32xf32>
    %392 = arith.negf %380 : vector<2x32xf32>
    %393 = math.exp %392 : vector<2x32xf32>
    %cst_221 = arith.constant 1.000000e+00 : f32
    %394 = vector.broadcast %cst_221 : f32 to vector<2x32xf32>
    %395 = arith.addf %394, %393 : vector<2x32xf32>
    %396 = arith.divf %394, %395 : vector<2x32xf32>
    %397 = arith.mulf %390, %303 : vector<2x32xf32>
    %398 = arith.mulf %385, %391 : vector<2x32xf32>
    %399 = arith.addf %397, %398 : vector<2x32xf32>
    %400 = math.tanh %399 : vector<2x32xf32>
    %401 = arith.mulf %396, %400 : vector<2x32xf32>
    %c0_222 = arith.constant 0 : index
    %c0_223 = arith.constant 0 : index
    %c0_224 = arith.constant 0 : index
    %402 = vector.load %arg4[%c0_222, %c0_223, %c0_224] : memref<4x32x32xbf16, #tpu.memory_space<vmem>>, vector<1x32x32xbf16>
    %403 = vector.shape_cast %402 : vector<1x32x32xbf16> to vector<32x32xbf16>
    %cst_225 = arith.constant dense<0.000000e+00> : vector<2x32xf32>
    %404 = tpu.matmul %359, %403, %cst_225 {dimension_numbers = #tpu.dot_dimension_numbers<[1], [0], [0], [1], [0, 0, 1, 1], [], []>} : vector<2x32xbf16>, vector<32x32xbf16>, vector<2x32xf32> -> vector<2x32xf32>
    %405 = arith.addf %3, %404 : vector<2x32xf32>
    %c0_226 = arith.constant 0 : index
    %c0_227 = arith.constant 0 : index
    %c0_228 = arith.constant 0 : index
    %406 = vector.load %arg5[%c0_226, %c0_227, %c0_228] : memref<4x32x32xbf16, #tpu.memory_space<vmem>>, vector<1x32x32xbf16>
    %407 = vector.shape_cast %406 : vector<1x32x32xbf16> to vector<32x32xbf16>
    %cst_229 = arith.constant dense<0.000000e+00> : vector<2x32xf32>
    %408 = tpu.matmul %360, %407, %cst_229 {dimension_numbers = #tpu.dot_dimension_numbers<[1], [0], [0], [1], [0, 0, 1, 1], [], []>} : vector<2x32xbf16>, vector<32x32xbf16>, vector<2x32xf32> -> vector<2x32xf32>
    %409 = arith.addf %405, %408 : vector<2x32xf32>
    %c1_230 = arith.constant 1 : index
    %c0_231 = arith.constant 0 : index
    %c0_232 = arith.constant 0 : index
    %410 = vector.load %arg4[%c1_230, %c0_231, %c0_232] : memref<4x32x32xbf16, #tpu.memory_space<vmem>>, vector<1x32x32xbf16>
    %411 = vector.shape_cast %410 : vector<1x32x32xbf16> to vector<32x32xbf16>
    %cst_233 = arith.constant dense<0.000000e+00> : vector<2x32xf32>
    %412 = tpu.matmul %359, %411, %cst_233 {dimension_numbers = #tpu.dot_dimension_numbers<[1], [0], [0], [1], [0, 0, 1, 1], [], []>} : vector<2x32xbf16>, vector<32x32xbf16>, vector<2x32xf32> -> vector<2x32xf32>
    %413 = arith.addf %7, %412 : vector<2x32xf32>
    %c1_234 = arith.constant 1 : index
    %c0_235 = arith.constant 0 : index
    %c0_236 = arith.constant 0 : index
    %414 = vector.load %arg5[%c1_234, %c0_235, %c0_236] : memref<4x32x32xbf16, #tpu.memory_space<vmem>>, vector<1x32x32xbf16>
    %415 = vector.shape_cast %414 : vector<1x32x32xbf16> to vector<32x32xbf16>
    %cst_237 = arith.constant dense<0.000000e+00> : vector<2x32xf32>
    %416 = tpu.matmul %360, %415, %cst_237 {dimension_numbers = #tpu.dot_dimension_numbers<[1], [0], [0], [1], [0, 0, 1, 1], [], []>} : vector<2x32xbf16>, vector<32x32xbf16>, vector<2x32xf32> -> vector<2x32xf32>
    %417 = arith.addf %413, %416 : vector<2x32xf32>
    %c2_238 = arith.constant 2 : index
    %c0_239 = arith.constant 0 : index
    %c0_240 = arith.constant 0 : index
    %418 = vector.load %arg4[%c2_238, %c0_239, %c0_240] : memref<4x32x32xbf16, #tpu.memory_space<vmem>>, vector<1x32x32xbf16>
    %419 = vector.shape_cast %418 : vector<1x32x32xbf16> to vector<32x32xbf16>
    %cst_241 = arith.constant dense<0.000000e+00> : vector<2x32xf32>
    %420 = tpu.matmul %359, %419, %cst_241 {dimension_numbers = #tpu.dot_dimension_numbers<[1], [0], [0], [1], [0, 0, 1, 1], [], []>} : vector<2x32xbf16>, vector<32x32xbf16>, vector<2x32xf32> -> vector<2x32xf32>
    %421 = arith.addf %11, %420 : vector<2x32xf32>
    %c2_242 = arith.constant 2 : index
    %c0_243 = arith.constant 0 : index
    %c0_244 = arith.constant 0 : index
    %422 = vector.load %arg5[%c2_242, %c0_243, %c0_244] : memref<4x32x32xbf16, #tpu.memory_space<vmem>>, vector<1x32x32xbf16>
    %423 = vector.shape_cast %422 : vector<1x32x32xbf16> to vector<32x32xbf16>
    %cst_245 = arith.constant dense<0.000000e+00> : vector<2x32xf32>
    %424 = tpu.matmul %360, %423, %cst_245 {dimension_numbers = #tpu.dot_dimension_numbers<[1], [0], [0], [1], [0, 0, 1, 1], [], []>} : vector<2x32xbf16>, vector<32x32xbf16>, vector<2x32xf32> -> vector<2x32xf32>
    %425 = arith.addf %421, %424 : vector<2x32xf32>
    %c3_246 = arith.constant 3 : index
    %c0_247 = arith.constant 0 : index
    %c0_248 = arith.constant 0 : index
    %426 = vector.load %arg4[%c3_246, %c0_247, %c0_248] : memref<4x32x32xbf16, #tpu.memory_space<vmem>>, vector<1x32x32xbf16>
    %427 = vector.shape_cast %426 : vector<1x32x32xbf16> to vector<32x32xbf16>
    %cst_249 = arith.constant dense<0.000000e+00> : vector<2x32xf32>
    %428 = tpu.matmul %359, %427, %cst_249 {dimension_numbers = #tpu.dot_dimension_numbers<[1], [0], [0], [1], [0, 0, 1, 1], [], []>} : vector<2x32xbf16>, vector<32x32xbf16>, vector<2x32xf32> -> vector<2x32xf32>
    %429 = arith.addf %15, %428 : vector<2x32xf32>
    %c3_250 = arith.constant 3 : index
    %c0_251 = arith.constant 0 : index
    %c0_252 = arith.constant 0 : index
    %430 = vector.load %arg5[%c3_250, %c0_251, %c0_252] : memref<4x32x32xbf16, #tpu.memory_space<vmem>>, vector<1x32x32xbf16>
    %431 = vector.shape_cast %430 : vector<1x32x32xbf16> to vector<32x32xbf16>
    %cst_253 = arith.constant dense<0.000000e+00> : vector<2x32xf32>
    %432 = tpu.matmul %360, %431, %cst_253 {dimension_numbers = #tpu.dot_dimension_numbers<[1], [0], [0], [1], [0, 0, 1, 1], [], []>} : vector<2x32xbf16>, vector<32x32xbf16>, vector<2x32xf32> -> vector<2x32xf32>
    %433 = arith.addf %429, %432 : vector<2x32xf32>
    %434 = arith.negf %409 : vector<2x32xf32>
    %435 = math.exp %434 : vector<2x32xf32>
    %cst_254 = arith.constant 1.000000e+00 : f32
    %436 = vector.broadcast %cst_254 : f32 to vector<2x32xf32>
    %437 = arith.addf %436, %435 : vector<2x32xf32>
    %438 = arith.divf %436, %437 : vector<2x32xf32>
    %439 = arith.negf %417 : vector<2x32xf32>
    %440 = math.exp %439 : vector<2x32xf32>
    %cst_255 = arith.constant 1.000000e+00 : f32
    %441 = vector.broadcast %cst_255 : f32 to vector<2x32xf32>
    %442 = arith.addf %441, %440 : vector<2x32xf32>
    %443 = arith.divf %441, %442 : vector<2x32xf32>
    %444 = math.tanh %425 : vector<2x32xf32>
    %445 = arith.negf %433 : vector<2x32xf32>
    %446 = math.exp %445 : vector<2x32xf32>
    %cst_256 = arith.constant 1.000000e+00 : f32
    %447 = vector.broadcast %cst_256 : f32 to vector<2x32xf32>
    %448 = arith.addf %447, %446 : vector<2x32xf32>
    %449 = arith.divf %447, %448 : vector<2x32xf32>
    %450 = arith.mulf %443, %356 : vector<2x32xf32>
    %451 = arith.mulf %438, %444 : vector<2x32xf32>
    %452 = arith.addf %450, %451 : vector<2x32xf32>
    %453 = math.tanh %452 : vector<2x32xf32>
    %454 = arith.mulf %449, %453 : vector<2x32xf32>
    %455 = arith.truncf %401 : vector<2x32xf32> to vector<2x32xbf16>
    %456 = arith.truncf %454 : vector<2x32xf32> to vector<2x32xbf16>
    %457 = vector.extract_strided_slice %23 {offsets = [10, 0], sizes = [2, 32], strides = [1, 1]} : vector<16x32xf32> to vector<2x32xf32>
    %458 = vector.extract_strided_slice %30 {offsets = [10, 0], sizes = [2, 32], strides = [1, 1]} : vector<16x32xf32> to vector<2x32xf32>
    %459 = vector.extract_strided_slice %37 {offsets = [10, 0], sizes = [2, 32], strides = [1, 1]} : vector<16x32xf32> to vector<2x32xf32>
    %460 = vector.extract_strided_slice %44 {offsets = [10, 0], sizes = [2, 32], strides = [1, 1]} : vector<16x32xf32> to vector<2x32xf32>
    %c0_257 = arith.constant 0 : index
    %c0_258 = arith.constant 0 : index
    %c0_259 = arith.constant 0 : index
    %461 = vector.load %arg3[%c0_257, %c0_258, %c0_259] : memref<4x32x32xbf16, #tpu.memory_space<vmem>>, vector<1x32x32xbf16>
    %462 = vector.shape_cast %461 : vector<1x32x32xbf16> to vector<32x32xbf16>
    %cst_260 = arith.constant dense<0.000000e+00> : vector<2x32xf32>
    %463 = tpu.matmul %455, %462, %cst_260 {dimension_numbers = #tpu.dot_dimension_numbers<[1], [0], [0], [1], [0, 0, 1, 1], [], []>} : vector<2x32xbf16>, vector<32x32xbf16>, vector<2x32xf32> -> vector<2x32xf32>
    %464 = arith.addf %457, %463 : vector<2x32xf32>
    %c1_261 = arith.constant 1 : index
    %c0_262 = arith.constant 0 : index
    %c0_263 = arith.constant 0 : index
    %465 = vector.load %arg3[%c1_261, %c0_262, %c0_263] : memref<4x32x32xbf16, #tpu.memory_space<vmem>>, vector<1x32x32xbf16>
    %466 = vector.shape_cast %465 : vector<1x32x32xbf16> to vector<32x32xbf16>
    %cst_264 = arith.constant dense<0.000000e+00> : vector<2x32xf32>
    %467 = tpu.matmul %455, %466, %cst_264 {dimension_numbers = #tpu.dot_dimension_numbers<[1], [0], [0], [1], [0, 0, 1, 1], [], []>} : vector<2x32xbf16>, vector<32x32xbf16>, vector<2x32xf32> -> vector<2x32xf32>
    %468 = arith.addf %458, %467 : vector<2x32xf32>
    %c2_265 = arith.constant 2 : index
    %c0_266 = arith.constant 0 : index
    %c0_267 = arith.constant 0 : index
    %469 = vector.load %arg3[%c2_265, %c0_266, %c0_267] : memref<4x32x32xbf16, #tpu.memory_space<vmem>>, vector<1x32x32xbf16>
    %470 = vector.shape_cast %469 : vector<1x32x32xbf16> to vector<32x32xbf16>
    %cst_268 = arith.constant dense<0.000000e+00> : vector<2x32xf32>
    %471 = tpu.matmul %455, %470, %cst_268 {dimension_numbers = #tpu.dot_dimension_numbers<[1], [0], [0], [1], [0, 0, 1, 1], [], []>} : vector<2x32xbf16>, vector<32x32xbf16>, vector<2x32xf32> -> vector<2x32xf32>
    %472 = arith.addf %459, %471 : vector<2x32xf32>
    %c3_269 = arith.constant 3 : index
    %c0_270 = arith.constant 0 : index
    %c0_271 = arith.constant 0 : index
    %473 = vector.load %arg3[%c3_269, %c0_270, %c0_271] : memref<4x32x32xbf16, #tpu.memory_space<vmem>>, vector<1x32x32xbf16>
    %474 = vector.shape_cast %473 : vector<1x32x32xbf16> to vector<32x32xbf16>
    %cst_272 = arith.constant dense<0.000000e+00> : vector<2x32xf32>
    %475 = tpu.matmul %455, %474, %cst_272 {dimension_numbers = #tpu.dot_dimension_numbers<[1], [0], [0], [1], [0, 0, 1, 1], [], []>} : vector<2x32xbf16>, vector<32x32xbf16>, vector<2x32xf32> -> vector<2x32xf32>
    %476 = arith.addf %460, %475 : vector<2x32xf32>
    %477 = arith.negf %464 : vector<2x32xf32>
    %478 = math.exp %477 : vector<2x32xf32>
    %cst_273 = arith.constant 1.000000e+00 : f32
    %479 = vector.broadcast %cst_273 : f32 to vector<2x32xf32>
    %480 = arith.addf %479, %478 : vector<2x32xf32>
    %481 = arith.divf %479, %480 : vector<2x32xf32>
    %482 = arith.negf %468 : vector<2x32xf32>
    %483 = math.exp %482 : vector<2x32xf32>
    %cst_274 = arith.constant 1.000000e+00 : f32
    %484 = vector.broadcast %cst_274 : f32 to vector<2x32xf32>
    %485 = arith.addf %484, %483 : vector<2x32xf32>
    %486 = arith.divf %484, %485 : vector<2x32xf32>
    %487 = math.tanh %472 : vector<2x32xf32>
    %488 = arith.negf %476 : vector<2x32xf32>
    %489 = math.exp %488 : vector<2x32xf32>
    %cst_275 = arith.constant 1.000000e+00 : f32
    %490 = vector.broadcast %cst_275 : f32 to vector<2x32xf32>
    %491 = arith.addf %490, %489 : vector<2x32xf32>
    %492 = arith.divf %490, %491 : vector<2x32xf32>
    %493 = arith.mulf %486, %399 : vector<2x32xf32>
    %494 = arith.mulf %481, %487 : vector<2x32xf32>
    %495 = arith.addf %493, %494 : vector<2x32xf32>
    %496 = math.tanh %495 : vector<2x32xf32>
    %497 = arith.mulf %492, %496 : vector<2x32xf32>
    %c0_276 = arith.constant 0 : index
    %c0_277 = arith.constant 0 : index
    %c0_278 = arith.constant 0 : index
    %498 = vector.load %arg4[%c0_276, %c0_277, %c0_278] : memref<4x32x32xbf16, #tpu.memory_space<vmem>>, vector<1x32x32xbf16>
    %499 = vector.shape_cast %498 : vector<1x32x32xbf16> to vector<32x32xbf16>
    %cst_279 = arith.constant dense<0.000000e+00> : vector<2x32xf32>
    %500 = tpu.matmul %455, %499, %cst_279 {dimension_numbers = #tpu.dot_dimension_numbers<[1], [0], [0], [1], [0, 0, 1, 1], [], []>} : vector<2x32xbf16>, vector<32x32xbf16>, vector<2x32xf32> -> vector<2x32xf32>
    %501 = arith.addf %3, %500 : vector<2x32xf32>
    %c0_280 = arith.constant 0 : index
    %c0_281 = arith.constant 0 : index
    %c0_282 = arith.constant 0 : index
    %502 = vector.load %arg5[%c0_280, %c0_281, %c0_282] : memref<4x32x32xbf16, #tpu.memory_space<vmem>>, vector<1x32x32xbf16>
    %503 = vector.shape_cast %502 : vector<1x32x32xbf16> to vector<32x32xbf16>
    %cst_283 = arith.constant dense<0.000000e+00> : vector<2x32xf32>
    %504 = tpu.matmul %456, %503, %cst_283 {dimension_numbers = #tpu.dot_dimension_numbers<[1], [0], [0], [1], [0, 0, 1, 1], [], []>} : vector<2x32xbf16>, vector<32x32xbf16>, vector<2x32xf32> -> vector<2x32xf32>
    %505 = arith.addf %501, %504 : vector<2x32xf32>
    %c1_284 = arith.constant 1 : index
    %c0_285 = arith.constant 0 : index
    %c0_286 = arith.constant 0 : index
    %506 = vector.load %arg4[%c1_284, %c0_285, %c0_286] : memref<4x32x32xbf16, #tpu.memory_space<vmem>>, vector<1x32x32xbf16>
    %507 = vector.shape_cast %506 : vector<1x32x32xbf16> to vector<32x32xbf16>
    %cst_287 = arith.constant dense<0.000000e+00> : vector<2x32xf32>
    %508 = tpu.matmul %455, %507, %cst_287 {dimension_numbers = #tpu.dot_dimension_numbers<[1], [0], [0], [1], [0, 0, 1, 1], [], []>} : vector<2x32xbf16>, vector<32x32xbf16>, vector<2x32xf32> -> vector<2x32xf32>
    %509 = arith.addf %7, %508 : vector<2x32xf32>
    %c1_288 = arith.constant 1 : index
    %c0_289 = arith.constant 0 : index
    %c0_290 = arith.constant 0 : index
    %510 = vector.load %arg5[%c1_288, %c0_289, %c0_290] : memref<4x32x32xbf16, #tpu.memory_space<vmem>>, vector<1x32x32xbf16>
    %511 = vector.shape_cast %510 : vector<1x32x32xbf16> to vector<32x32xbf16>
    %cst_291 = arith.constant dense<0.000000e+00> : vector<2x32xf32>
    %512 = tpu.matmul %456, %511, %cst_291 {dimension_numbers = #tpu.dot_dimension_numbers<[1], [0], [0], [1], [0, 0, 1, 1], [], []>} : vector<2x32xbf16>, vector<32x32xbf16>, vector<2x32xf32> -> vector<2x32xf32>
    %513 = arith.addf %509, %512 : vector<2x32xf32>
    %c2_292 = arith.constant 2 : index
    %c0_293 = arith.constant 0 : index
    %c0_294 = arith.constant 0 : index
    %514 = vector.load %arg4[%c2_292, %c0_293, %c0_294] : memref<4x32x32xbf16, #tpu.memory_space<vmem>>, vector<1x32x32xbf16>
    %515 = vector.shape_cast %514 : vector<1x32x32xbf16> to vector<32x32xbf16>
    %cst_295 = arith.constant dense<0.000000e+00> : vector<2x32xf32>
    %516 = tpu.matmul %455, %515, %cst_295 {dimension_numbers = #tpu.dot_dimension_numbers<[1], [0], [0], [1], [0, 0, 1, 1], [], []>} : vector<2x32xbf16>, vector<32x32xbf16>, vector<2x32xf32> -> vector<2x32xf32>
    %517 = arith.addf %11, %516 : vector<2x32xf32>
    %c2_296 = arith.constant 2 : index
    %c0_297 = arith.constant 0 : index
    %c0_298 = arith.constant 0 : index
    %518 = vector.load %arg5[%c2_296, %c0_297, %c0_298] : memref<4x32x32xbf16, #tpu.memory_space<vmem>>, vector<1x32x32xbf16>
    %519 = vector.shape_cast %518 : vector<1x32x32xbf16> to vector<32x32xbf16>
    %cst_299 = arith.constant dense<0.000000e+00> : vector<2x32xf32>
    %520 = tpu.matmul %456, %519, %cst_299 {dimension_numbers = #tpu.dot_dimension_numbers<[1], [0], [0], [1], [0, 0, 1, 1], [], []>} : vector<2x32xbf16>, vector<32x32xbf16>, vector<2x32xf32> -> vector<2x32xf32>
    %521 = arith.addf %517, %520 : vector<2x32xf32>
    %c3_300 = arith.constant 3 : index
    %c0_301 = arith.constant 0 : index
    %c0_302 = arith.constant 0 : index
    %522 = vector.load %arg4[%c3_300, %c0_301, %c0_302] : memref<4x32x32xbf16, #tpu.memory_space<vmem>>, vector<1x32x32xbf16>
    %523 = vector.shape_cast %522 : vector<1x32x32xbf16> to vector<32x32xbf16>
    %cst_303 = arith.constant dense<0.000000e+00> : vector<2x32xf32>
    %524 = tpu.matmul %455, %523, %cst_303 {dimension_numbers = #tpu.dot_dimension_numbers<[1], [0], [0], [1], [0, 0, 1, 1], [], []>} : vector<2x32xbf16>, vector<32x32xbf16>, vector<2x32xf32> -> vector<2x32xf32>
    %525 = arith.addf %15, %524 : vector<2x32xf32>
    %c3_304 = arith.constant 3 : index
    %c0_305 = arith.constant 0 : index
    %c0_306 = arith.constant 0 : index
    %526 = vector.load %arg5[%c3_304, %c0_305, %c0_306] : memref<4x32x32xbf16, #tpu.memory_space<vmem>>, vector<1x32x32xbf16>
    %527 = vector.shape_cast %526 : vector<1x32x32xbf16> to vector<32x32xbf16>
    %cst_307 = arith.constant dense<0.000000e+00> : vector<2x32xf32>
    %528 = tpu.matmul %456, %527, %cst_307 {dimension_numbers = #tpu.dot_dimension_numbers<[1], [0], [0], [1], [0, 0, 1, 1], [], []>} : vector<2x32xbf16>, vector<32x32xbf16>, vector<2x32xf32> -> vector<2x32xf32>
    %529 = arith.addf %525, %528 : vector<2x32xf32>
    %530 = arith.negf %505 : vector<2x32xf32>
    %531 = math.exp %530 : vector<2x32xf32>
    %cst_308 = arith.constant 1.000000e+00 : f32
    %532 = vector.broadcast %cst_308 : f32 to vector<2x32xf32>
    %533 = arith.addf %532, %531 : vector<2x32xf32>
    %534 = arith.divf %532, %533 : vector<2x32xf32>
    %535 = arith.negf %513 : vector<2x32xf32>
    %536 = math.exp %535 : vector<2x32xf32>
    %cst_309 = arith.constant 1.000000e+00 : f32
    %537 = vector.broadcast %cst_309 : f32 to vector<2x32xf32>
    %538 = arith.addf %537, %536 : vector<2x32xf32>
    %539 = arith.divf %537, %538 : vector<2x32xf32>
    %540 = math.tanh %521 : vector<2x32xf32>
    %541 = arith.negf %529 : vector<2x32xf32>
    %542 = math.exp %541 : vector<2x32xf32>
    %cst_310 = arith.constant 1.000000e+00 : f32
    %543 = vector.broadcast %cst_310 : f32 to vector<2x32xf32>
    %544 = arith.addf %543, %542 : vector<2x32xf32>
    %545 = arith.divf %543, %544 : vector<2x32xf32>
    %546 = arith.mulf %539, %452 : vector<2x32xf32>
    %547 = arith.mulf %534, %540 : vector<2x32xf32>
    %548 = arith.addf %546, %547 : vector<2x32xf32>
    %549 = math.tanh %548 : vector<2x32xf32>
    %550 = arith.mulf %545, %549 : vector<2x32xf32>
    %551 = arith.truncf %497 : vector<2x32xf32> to vector<2x32xbf16>
    %552 = arith.truncf %550 : vector<2x32xf32> to vector<2x32xbf16>
    %553 = vector.extract_strided_slice %23 {offsets = [12, 0], sizes = [2, 32], strides = [1, 1]} : vector<16x32xf32> to vector<2x32xf32>
    %554 = vector.extract_strided_slice %30 {offsets = [12, 0], sizes = [2, 32], strides = [1, 1]} : vector<16x32xf32> to vector<2x32xf32>
    %555 = vector.extract_strided_slice %37 {offsets = [12, 0], sizes = [2, 32], strides = [1, 1]} : vector<16x32xf32> to vector<2x32xf32>
    %556 = vector.extract_strided_slice %44 {offsets = [12, 0], sizes = [2, 32], strides = [1, 1]} : vector<16x32xf32> to vector<2x32xf32>
    %c0_311 = arith.constant 0 : index
    %c0_312 = arith.constant 0 : index
    %c0_313 = arith.constant 0 : index
    %557 = vector.load %arg3[%c0_311, %c0_312, %c0_313] : memref<4x32x32xbf16, #tpu.memory_space<vmem>>, vector<1x32x32xbf16>
    %558 = vector.shape_cast %557 : vector<1x32x32xbf16> to vector<32x32xbf16>
    %cst_314 = arith.constant dense<0.000000e+00> : vector<2x32xf32>
    %559 = tpu.matmul %551, %558, %cst_314 {dimension_numbers = #tpu.dot_dimension_numbers<[1], [0], [0], [1], [0, 0, 1, 1], [], []>} : vector<2x32xbf16>, vector<32x32xbf16>, vector<2x32xf32> -> vector<2x32xf32>
    %560 = arith.addf %553, %559 : vector<2x32xf32>
    %c1_315 = arith.constant 1 : index
    %c0_316 = arith.constant 0 : index
    %c0_317 = arith.constant 0 : index
    %561 = vector.load %arg3[%c1_315, %c0_316, %c0_317] : memref<4x32x32xbf16, #tpu.memory_space<vmem>>, vector<1x32x32xbf16>
    %562 = vector.shape_cast %561 : vector<1x32x32xbf16> to vector<32x32xbf16>
    %cst_318 = arith.constant dense<0.000000e+00> : vector<2x32xf32>
    %563 = tpu.matmul %551, %562, %cst_318 {dimension_numbers = #tpu.dot_dimension_numbers<[1], [0], [0], [1], [0, 0, 1, 1], [], []>} : vector<2x32xbf16>, vector<32x32xbf16>, vector<2x32xf32> -> vector<2x32xf32>
    %564 = arith.addf %554, %563 : vector<2x32xf32>
    %c2_319 = arith.constant 2 : index
    %c0_320 = arith.constant 0 : index
    %c0_321 = arith.constant 0 : index
    %565 = vector.load %arg3[%c2_319, %c0_320, %c0_321] : memref<4x32x32xbf16, #tpu.memory_space<vmem>>, vector<1x32x32xbf16>
    %566 = vector.shape_cast %565 : vector<1x32x32xbf16> to vector<32x32xbf16>
    %cst_322 = arith.constant dense<0.000000e+00> : vector<2x32xf32>
    %567 = tpu.matmul %551, %566, %cst_322 {dimension_numbers = #tpu.dot_dimension_numbers<[1], [0], [0], [1], [0, 0, 1, 1], [], []>} : vector<2x32xbf16>, vector<32x32xbf16>, vector<2x32xf32> -> vector<2x32xf32>
    %568 = arith.addf %555, %567 : vector<2x32xf32>
    %c3_323 = arith.constant 3 : index
    %c0_324 = arith.constant 0 : index
    %c0_325 = arith.constant 0 : index
    %569 = vector.load %arg3[%c3_323, %c0_324, %c0_325] : memref<4x32x32xbf16, #tpu.memory_space<vmem>>, vector<1x32x32xbf16>
    %570 = vector.shape_cast %569 : vector<1x32x32xbf16> to vector<32x32xbf16>
    %cst_326 = arith.constant dense<0.000000e+00> : vector<2x32xf32>
    %571 = tpu.matmul %551, %570, %cst_326 {dimension_numbers = #tpu.dot_dimension_numbers<[1], [0], [0], [1], [0, 0, 1, 1], [], []>} : vector<2x32xbf16>, vector<32x32xbf16>, vector<2x32xf32> -> vector<2x32xf32>
    %572 = arith.addf %556, %571 : vector<2x32xf32>
    %573 = arith.negf %560 : vector<2x32xf32>
    %574 = math.exp %573 : vector<2x32xf32>
    %cst_327 = arith.constant 1.000000e+00 : f32
    %575 = vector.broadcast %cst_327 : f32 to vector<2x32xf32>
    %576 = arith.addf %575, %574 : vector<2x32xf32>
    %577 = arith.divf %575, %576 : vector<2x32xf32>
    %578 = arith.negf %564 : vector<2x32xf32>
    %579 = math.exp %578 : vector<2x32xf32>
    %cst_328 = arith.constant 1.000000e+00 : f32
    %580 = vector.broadcast %cst_328 : f32 to vector<2x32xf32>
    %581 = arith.addf %580, %579 : vector<2x32xf32>
    %582 = arith.divf %580, %581 : vector<2x32xf32>
    %583 = math.tanh %568 : vector<2x32xf32>
    %584 = arith.negf %572 : vector<2x32xf32>
    %585 = math.exp %584 : vector<2x32xf32>
    %cst_329 = arith.constant 1.000000e+00 : f32
    %586 = vector.broadcast %cst_329 : f32 to vector<2x32xf32>
    %587 = arith.addf %586, %585 : vector<2x32xf32>
    %588 = arith.divf %586, %587 : vector<2x32xf32>
    %589 = arith.mulf %582, %495 : vector<2x32xf32>
    %590 = arith.mulf %577, %583 : vector<2x32xf32>
    %591 = arith.addf %589, %590 : vector<2x32xf32>
    %592 = math.tanh %591 : vector<2x32xf32>
    %593 = arith.mulf %588, %592 : vector<2x32xf32>
    %c0_330 = arith.constant 0 : index
    %c0_331 = arith.constant 0 : index
    %c0_332 = arith.constant 0 : index
    %594 = vector.load %arg4[%c0_330, %c0_331, %c0_332] : memref<4x32x32xbf16, #tpu.memory_space<vmem>>, vector<1x32x32xbf16>
    %595 = vector.shape_cast %594 : vector<1x32x32xbf16> to vector<32x32xbf16>
    %cst_333 = arith.constant dense<0.000000e+00> : vector<2x32xf32>
    %596 = tpu.matmul %551, %595, %cst_333 {dimension_numbers = #tpu.dot_dimension_numbers<[1], [0], [0], [1], [0, 0, 1, 1], [], []>} : vector<2x32xbf16>, vector<32x32xbf16>, vector<2x32xf32> -> vector<2x32xf32>
    %597 = arith.addf %3, %596 : vector<2x32xf32>
    %c0_334 = arith.constant 0 : index
    %c0_335 = arith.constant 0 : index
    %c0_336 = arith.constant 0 : index
    %598 = vector.load %arg5[%c0_334, %c0_335, %c0_336] : memref<4x32x32xbf16, #tpu.memory_space<vmem>>, vector<1x32x32xbf16>
    %599 = vector.shape_cast %598 : vector<1x32x32xbf16> to vector<32x32xbf16>
    %cst_337 = arith.constant dense<0.000000e+00> : vector<2x32xf32>
    %600 = tpu.matmul %552, %599, %cst_337 {dimension_numbers = #tpu.dot_dimension_numbers<[1], [0], [0], [1], [0, 0, 1, 1], [], []>} : vector<2x32xbf16>, vector<32x32xbf16>, vector<2x32xf32> -> vector<2x32xf32>
    %601 = arith.addf %597, %600 : vector<2x32xf32>
    %c1_338 = arith.constant 1 : index
    %c0_339 = arith.constant 0 : index
    %c0_340 = arith.constant 0 : index
    %602 = vector.load %arg4[%c1_338, %c0_339, %c0_340] : memref<4x32x32xbf16, #tpu.memory_space<vmem>>, vector<1x32x32xbf16>
    %603 = vector.shape_cast %602 : vector<1x32x32xbf16> to vector<32x32xbf16>
    %cst_341 = arith.constant dense<0.000000e+00> : vector<2x32xf32>
    %604 = tpu.matmul %551, %603, %cst_341 {dimension_numbers = #tpu.dot_dimension_numbers<[1], [0], [0], [1], [0, 0, 1, 1], [], []>} : vector<2x32xbf16>, vector<32x32xbf16>, vector<2x32xf32> -> vector<2x32xf32>
    %605 = arith.addf %7, %604 : vector<2x32xf32>
    %c1_342 = arith.constant 1 : index
    %c0_343 = arith.constant 0 : index
    %c0_344 = arith.constant 0 : index
    %606 = vector.load %arg5[%c1_342, %c0_343, %c0_344] : memref<4x32x32xbf16, #tpu.memory_space<vmem>>, vector<1x32x32xbf16>
    %607 = vector.shape_cast %606 : vector<1x32x32xbf16> to vector<32x32xbf16>
    %cst_345 = arith.constant dense<0.000000e+00> : vector<2x32xf32>
    %608 = tpu.matmul %552, %607, %cst_345 {dimension_numbers = #tpu.dot_dimension_numbers<[1], [0], [0], [1], [0, 0, 1, 1], [], []>} : vector<2x32xbf16>, vector<32x32xbf16>, vector<2x32xf32> -> vector<2x32xf32>
    %609 = arith.addf %605, %608 : vector<2x32xf32>
    %c2_346 = arith.constant 2 : index
    %c0_347 = arith.constant 0 : index
    %c0_348 = arith.constant 0 : index
    %610 = vector.load %arg4[%c2_346, %c0_347, %c0_348] : memref<4x32x32xbf16, #tpu.memory_space<vmem>>, vector<1x32x32xbf16>
    %611 = vector.shape_cast %610 : vector<1x32x32xbf16> to vector<32x32xbf16>
    %cst_349 = arith.constant dense<0.000000e+00> : vector<2x32xf32>
    %612 = tpu.matmul %551, %611, %cst_349 {dimension_numbers = #tpu.dot_dimension_numbers<[1], [0], [0], [1], [0, 0, 1, 1], [], []>} : vector<2x32xbf16>, vector<32x32xbf16>, vector<2x32xf32> -> vector<2x32xf32>
    %613 = arith.addf %11, %612 : vector<2x32xf32>
    %c2_350 = arith.constant 2 : index
    %c0_351 = arith.constant 0 : index
    %c0_352 = arith.constant 0 : index
    %614 = vector.load %arg5[%c2_350, %c0_351, %c0_352] : memref<4x32x32xbf16, #tpu.memory_space<vmem>>, vector<1x32x32xbf16>
    %615 = vector.shape_cast %614 : vector<1x32x32xbf16> to vector<32x32xbf16>
    %cst_353 = arith.constant dense<0.000000e+00> : vector<2x32xf32>
    %616 = tpu.matmul %552, %615, %cst_353 {dimension_numbers = #tpu.dot_dimension_numbers<[1], [0], [0], [1], [0, 0, 1, 1], [], []>} : vector<2x32xbf16>, vector<32x32xbf16>, vector<2x32xf32> -> vector<2x32xf32>
    %617 = arith.addf %613, %616 : vector<2x32xf32>
    %c3_354 = arith.constant 3 : index
    %c0_355 = arith.constant 0 : index
    %c0_356 = arith.constant 0 : index
    %618 = vector.load %arg4[%c3_354, %c0_355, %c0_356] : memref<4x32x32xbf16, #tpu.memory_space<vmem>>, vector<1x32x32xbf16>
    %619 = vector.shape_cast %618 : vector<1x32x32xbf16> to vector<32x32xbf16>
    %cst_357 = arith.constant dense<0.000000e+00> : vector<2x32xf32>
    %620 = tpu.matmul %551, %619, %cst_357 {dimension_numbers = #tpu.dot_dimension_numbers<[1], [0], [0], [1], [0, 0, 1, 1], [], []>} : vector<2x32xbf16>, vector<32x32xbf16>, vector<2x32xf32> -> vector<2x32xf32>
    %621 = arith.addf %15, %620 : vector<2x32xf32>
    %c3_358 = arith.constant 3 : index
    %c0_359 = arith.constant 0 : index
    %c0_360 = arith.constant 0 : index
    %622 = vector.load %arg5[%c3_358, %c0_359, %c0_360] : memref<4x32x32xbf16, #tpu.memory_space<vmem>>, vector<1x32x32xbf16>
    %623 = vector.shape_cast %622 : vector<1x32x32xbf16> to vector<32x32xbf16>
    %cst_361 = arith.constant dense<0.000000e+00> : vector<2x32xf32>
    %624 = tpu.matmul %552, %623, %cst_361 {dimension_numbers = #tpu.dot_dimension_numbers<[1], [0], [0], [1], [0, 0, 1, 1], [], []>} : vector<2x32xbf16>, vector<32x32xbf16>, vector<2x32xf32> -> vector<2x32xf32>
    %625 = arith.addf %621, %624 : vector<2x32xf32>
    %626 = arith.negf %601 : vector<2x32xf32>
    %627 = math.exp %626 : vector<2x32xf32>
    %cst_362 = arith.constant 1.000000e+00 : f32
    %628 = vector.broadcast %cst_362 : f32 to vector<2x32xf32>
    %629 = arith.addf %628, %627 : vector<2x32xf32>
    %630 = arith.divf %628, %629 : vector<2x32xf32>
    %631 = arith.negf %609 : vector<2x32xf32>
    %632 = math.exp %631 : vector<2x32xf32>
    %cst_363 = arith.constant 1.000000e+00 : f32
    %633 = vector.broadcast %cst_363 : f32 to vector<2x32xf32>
    %634 = arith.addf %633, %632 : vector<2x32xf32>
    %635 = arith.divf %633, %634 : vector<2x32xf32>
    %636 = math.tanh %617 : vector<2x32xf32>
    %637 = arith.negf %625 : vector<2x32xf32>
    %638 = math.exp %637 : vector<2x32xf32>
    %cst_364 = arith.constant 1.000000e+00 : f32
    %639 = vector.broadcast %cst_364 : f32 to vector<2x32xf32>
    %640 = arith.addf %639, %638 : vector<2x32xf32>
    %641 = arith.divf %639, %640 : vector<2x32xf32>
    %642 = arith.mulf %635, %548 : vector<2x32xf32>
    %643 = arith.mulf %630, %636 : vector<2x32xf32>
    %644 = arith.addf %642, %643 : vector<2x32xf32>
    %645 = math.tanh %644 : vector<2x32xf32>
    %646 = arith.mulf %641, %645 : vector<2x32xf32>
    %647 = arith.truncf %593 : vector<2x32xf32> to vector<2x32xbf16>
    %648 = arith.truncf %646 : vector<2x32xf32> to vector<2x32xbf16>
    %649 = vector.extract_strided_slice %23 {offsets = [14, 0], sizes = [2, 32], strides = [1, 1]} : vector<16x32xf32> to vector<2x32xf32>
    %650 = vector.extract_strided_slice %30 {offsets = [14, 0], sizes = [2, 32], strides = [1, 1]} : vector<16x32xf32> to vector<2x32xf32>
    %651 = vector.extract_strided_slice %37 {offsets = [14, 0], sizes = [2, 32], strides = [1, 1]} : vector<16x32xf32> to vector<2x32xf32>
    %652 = vector.extract_strided_slice %44 {offsets = [14, 0], sizes = [2, 32], strides = [1, 1]} : vector<16x32xf32> to vector<2x32xf32>
    %c0_365 = arith.constant 0 : index
    %c0_366 = arith.constant 0 : index
    %c0_367 = arith.constant 0 : index
    %653 = vector.load %arg3[%c0_365, %c0_366, %c0_367] : memref<4x32x32xbf16, #tpu.memory_space<vmem>>, vector<1x32x32xbf16>
    %654 = vector.shape_cast %653 : vector<1x32x32xbf16> to vector<32x32xbf16>
    %cst_368 = arith.constant dense<0.000000e+00> : vector<2x32xf32>
    %655 = tpu.matmul %647, %654, %cst_368 {dimension_numbers = #tpu.dot_dimension_numbers<[1], [0], [0], [1], [0, 0, 1, 1], [], []>} : vector<2x32xbf16>, vector<32x32xbf16>, vector<2x32xf32> -> vector<2x32xf32>
    %656 = arith.addf %649, %655 : vector<2x32xf32>
    %c1_369 = arith.constant 1 : index
    %c0_370 = arith.constant 0 : index
    %c0_371 = arith.constant 0 : index
    %657 = vector.load %arg3[%c1_369, %c0_370, %c0_371] : memref<4x32x32xbf16, #tpu.memory_space<vmem>>, vector<1x32x32xbf16>
    %658 = vector.shape_cast %657 : vector<1x32x32xbf16> to vector<32x32xbf16>
    %cst_372 = arith.constant dense<0.000000e+00> : vector<2x32xf32>
    %659 = tpu.matmul %647, %658, %cst_372 {dimension_numbers = #tpu.dot_dimension_numbers<[1], [0], [0], [1], [0, 0, 1, 1], [], []>} : vector<2x32xbf16>, vector<32x32xbf16>, vector<2x32xf32> -> vector<2x32xf32>
    %660 = arith.addf %650, %659 : vector<2x32xf32>
    %c2_373 = arith.constant 2 : index
    %c0_374 = arith.constant 0 : index
    %c0_375 = arith.constant 0 : index
    %661 = vector.load %arg3[%c2_373, %c0_374, %c0_375] : memref<4x32x32xbf16, #tpu.memory_space<vmem>>, vector<1x32x32xbf16>
    %662 = vector.shape_cast %661 : vector<1x32x32xbf16> to vector<32x32xbf16>
    %cst_376 = arith.constant dense<0.000000e+00> : vector<2x32xf32>
    %663 = tpu.matmul %647, %662, %cst_376 {dimension_numbers = #tpu.dot_dimension_numbers<[1], [0], [0], [1], [0, 0, 1, 1], [], []>} : vector<2x32xbf16>, vector<32x32xbf16>, vector<2x32xf32> -> vector<2x32xf32>
    %664 = arith.addf %651, %663 : vector<2x32xf32>
    %c3_377 = arith.constant 3 : index
    %c0_378 = arith.constant 0 : index
    %c0_379 = arith.constant 0 : index
    %665 = vector.load %arg3[%c3_377, %c0_378, %c0_379] : memref<4x32x32xbf16, #tpu.memory_space<vmem>>, vector<1x32x32xbf16>
    %666 = vector.shape_cast %665 : vector<1x32x32xbf16> to vector<32x32xbf16>
    %cst_380 = arith.constant dense<0.000000e+00> : vector<2x32xf32>
    %667 = tpu.matmul %647, %666, %cst_380 {dimension_numbers = #tpu.dot_dimension_numbers<[1], [0], [0], [1], [0, 0, 1, 1], [], []>} : vector<2x32xbf16>, vector<32x32xbf16>, vector<2x32xf32> -> vector<2x32xf32>
    %668 = arith.addf %652, %667 : vector<2x32xf32>
    %669 = arith.negf %656 : vector<2x32xf32>
    %670 = math.exp %669 : vector<2x32xf32>
    %cst_381 = arith.constant 1.000000e+00 : f32
    %671 = vector.broadcast %cst_381 : f32 to vector<2x32xf32>
    %672 = arith.addf %671, %670 : vector<2x32xf32>
    %673 = arith.divf %671, %672 : vector<2x32xf32>
    %674 = arith.negf %660 : vector<2x32xf32>
    %675 = math.exp %674 : vector<2x32xf32>
    %cst_382 = arith.constant 1.000000e+00 : f32
    %676 = vector.broadcast %cst_382 : f32 to vector<2x32xf32>
    %677 = arith.addf %676, %675 : vector<2x32xf32>
    %678 = arith.divf %676, %677 : vector<2x32xf32>
    %679 = math.tanh %664 : vector<2x32xf32>
    %680 = arith.negf %668 : vector<2x32xf32>
    %681 = math.exp %680 : vector<2x32xf32>
    %cst_383 = arith.constant 1.000000e+00 : f32
    %682 = vector.broadcast %cst_383 : f32 to vector<2x32xf32>
    %683 = arith.addf %682, %681 : vector<2x32xf32>
    %684 = arith.divf %682, %683 : vector<2x32xf32>
    %685 = arith.mulf %678, %591 : vector<2x32xf32>
    %686 = arith.mulf %673, %679 : vector<2x32xf32>
    %687 = arith.addf %685, %686 : vector<2x32xf32>
    %688 = math.tanh %687 : vector<2x32xf32>
    %689 = arith.mulf %684, %688 : vector<2x32xf32>
    %c0_384 = arith.constant 0 : index
    %c0_385 = arith.constant 0 : index
    %c0_386 = arith.constant 0 : index
    %690 = vector.load %arg4[%c0_384, %c0_385, %c0_386] : memref<4x32x32xbf16, #tpu.memory_space<vmem>>, vector<1x32x32xbf16>
    %691 = vector.shape_cast %690 : vector<1x32x32xbf16> to vector<32x32xbf16>
    %cst_387 = arith.constant dense<0.000000e+00> : vector<2x32xf32>
    %692 = tpu.matmul %647, %691, %cst_387 {dimension_numbers = #tpu.dot_dimension_numbers<[1], [0], [0], [1], [0, 0, 1, 1], [], []>} : vector<2x32xbf16>, vector<32x32xbf16>, vector<2x32xf32> -> vector<2x32xf32>
    %693 = arith.addf %3, %692 : vector<2x32xf32>
    %c0_388 = arith.constant 0 : index
    %c0_389 = arith.constant 0 : index
    %c0_390 = arith.constant 0 : index
    %694 = vector.load %arg5[%c0_388, %c0_389, %c0_390] : memref<4x32x32xbf16, #tpu.memory_space<vmem>>, vector<1x32x32xbf16>
    %695 = vector.shape_cast %694 : vector<1x32x32xbf16> to vector<32x32xbf16>
    %cst_391 = arith.constant dense<0.000000e+00> : vector<2x32xf32>
    %696 = tpu.matmul %648, %695, %cst_391 {dimension_numbers = #tpu.dot_dimension_numbers<[1], [0], [0], [1], [0, 0, 1, 1], [], []>} : vector<2x32xbf16>, vector<32x32xbf16>, vector<2x32xf32> -> vector<2x32xf32>
    %697 = arith.addf %693, %696 : vector<2x32xf32>
    %c1_392 = arith.constant 1 : index
    %c0_393 = arith.constant 0 : index
    %c0_394 = arith.constant 0 : index
    %698 = vector.load %arg4[%c1_392, %c0_393, %c0_394] : memref<4x32x32xbf16, #tpu.memory_space<vmem>>, vector<1x32x32xbf16>
    %699 = vector.shape_cast %698 : vector<1x32x32xbf16> to vector<32x32xbf16>
    %cst_395 = arith.constant dense<0.000000e+00> : vector<2x32xf32>
    %700 = tpu.matmul %647, %699, %cst_395 {dimension_numbers = #tpu.dot_dimension_numbers<[1], [0], [0], [1], [0, 0, 1, 1], [], []>} : vector<2x32xbf16>, vector<32x32xbf16>, vector<2x32xf32> -> vector<2x32xf32>
    %701 = arith.addf %7, %700 : vector<2x32xf32>
    %c1_396 = arith.constant 1 : index
    %c0_397 = arith.constant 0 : index
    %c0_398 = arith.constant 0 : index
    %702 = vector.load %arg5[%c1_396, %c0_397, %c0_398] : memref<4x32x32xbf16, #tpu.memory_space<vmem>>, vector<1x32x32xbf16>
    %703 = vector.shape_cast %702 : vector<1x32x32xbf16> to vector<32x32xbf16>
    %cst_399 = arith.constant dense<0.000000e+00> : vector<2x32xf32>
    %704 = tpu.matmul %648, %703, %cst_399 {dimension_numbers = #tpu.dot_dimension_numbers<[1], [0], [0], [1], [0, 0, 1, 1], [], []>} : vector<2x32xbf16>, vector<32x32xbf16>, vector<2x32xf32> -> vector<2x32xf32>
    %705 = arith.addf %701, %704 : vector<2x32xf32>
    %c2_400 = arith.constant 2 : index
    %c0_401 = arith.constant 0 : index
    %c0_402 = arith.constant 0 : index
    %706 = vector.load %arg4[%c2_400, %c0_401, %c0_402] : memref<4x32x32xbf16, #tpu.memory_space<vmem>>, vector<1x32x32xbf16>
    %707 = vector.shape_cast %706 : vector<1x32x32xbf16> to vector<32x32xbf16>
    %cst_403 = arith.constant dense<0.000000e+00> : vector<2x32xf32>
    %708 = tpu.matmul %647, %707, %cst_403 {dimension_numbers = #tpu.dot_dimension_numbers<[1], [0], [0], [1], [0, 0, 1, 1], [], []>} : vector<2x32xbf16>, vector<32x32xbf16>, vector<2x32xf32> -> vector<2x32xf32>
    %709 = arith.addf %11, %708 : vector<2x32xf32>
    %c2_404 = arith.constant 2 : index
    %c0_405 = arith.constant 0 : index
    %c0_406 = arith.constant 0 : index
    %710 = vector.load %arg5[%c2_404, %c0_405, %c0_406] : memref<4x32x32xbf16, #tpu.memory_space<vmem>>, vector<1x32x32xbf16>
    %711 = vector.shape_cast %710 : vector<1x32x32xbf16> to vector<32x32xbf16>
    %cst_407 = arith.constant dense<0.000000e+00> : vector<2x32xf32>
    %712 = tpu.matmul %648, %711, %cst_407 {dimension_numbers = #tpu.dot_dimension_numbers<[1], [0], [0], [1], [0, 0, 1, 1], [], []>} : vector<2x32xbf16>, vector<32x32xbf16>, vector<2x32xf32> -> vector<2x32xf32>
    %713 = arith.addf %709, %712 : vector<2x32xf32>
    %c3_408 = arith.constant 3 : index
    %c0_409 = arith.constant 0 : index
    %c0_410 = arith.constant 0 : index
    %714 = vector.load %arg4[%c3_408, %c0_409, %c0_410] : memref<4x32x32xbf16, #tpu.memory_space<vmem>>, vector<1x32x32xbf16>
    %715 = vector.shape_cast %714 : vector<1x32x32xbf16> to vector<32x32xbf16>
    %cst_411 = arith.constant dense<0.000000e+00> : vector<2x32xf32>
    %716 = tpu.matmul %647, %715, %cst_411 {dimension_numbers = #tpu.dot_dimension_numbers<[1], [0], [0], [1], [0, 0, 1, 1], [], []>} : vector<2x32xbf16>, vector<32x32xbf16>, vector<2x32xf32> -> vector<2x32xf32>
    %717 = arith.addf %15, %716 : vector<2x32xf32>
    %c3_412 = arith.constant 3 : index
    %c0_413 = arith.constant 0 : index
    %c0_414 = arith.constant 0 : index
    %718 = vector.load %arg5[%c3_412, %c0_413, %c0_414] : memref<4x32x32xbf16, #tpu.memory_space<vmem>>, vector<1x32x32xbf16>
    %719 = vector.shape_cast %718 : vector<1x32x32xbf16> to vector<32x32xbf16>
    %cst_415 = arith.constant dense<0.000000e+00> : vector<2x32xf32>
    %720 = tpu.matmul %648, %719, %cst_415 {dimension_numbers = #tpu.dot_dimension_numbers<[1], [0], [0], [1], [0, 0, 1, 1], [], []>} : vector<2x32xbf16>, vector<32x32xbf16>, vector<2x32xf32> -> vector<2x32xf32>
    %721 = arith.addf %717, %720 : vector<2x32xf32>
    %722 = arith.negf %697 : vector<2x32xf32>
    %723 = math.exp %722 : vector<2x32xf32>
    %cst_416 = arith.constant 1.000000e+00 : f32
    %724 = vector.broadcast %cst_416 : f32 to vector<2x32xf32>
    %725 = arith.addf %724, %723 : vector<2x32xf32>
    %726 = arith.divf %724, %725 : vector<2x32xf32>
    %727 = arith.negf %705 : vector<2x32xf32>
    %728 = math.exp %727 : vector<2x32xf32>
    %cst_417 = arith.constant 1.000000e+00 : f32
    %729 = vector.broadcast %cst_417 : f32 to vector<2x32xf32>
    %730 = arith.addf %729, %728 : vector<2x32xf32>
    %731 = arith.divf %729, %730 : vector<2x32xf32>
    %732 = math.tanh %713 : vector<2x32xf32>
    %733 = arith.negf %721 : vector<2x32xf32>
    %734 = math.exp %733 : vector<2x32xf32>
    %cst_418 = arith.constant 1.000000e+00 : f32
    %735 = vector.broadcast %cst_418 : f32 to vector<2x32xf32>
    %736 = arith.addf %735, %734 : vector<2x32xf32>
    %737 = arith.divf %735, %736 : vector<2x32xf32>
    %738 = arith.mulf %731, %644 : vector<2x32xf32>
    %739 = arith.mulf %726, %732 : vector<2x32xf32>
    %740 = arith.addf %738, %739 : vector<2x32xf32>
    %741 = math.tanh %740 : vector<2x32xf32>
    %742 = arith.mulf %737, %741 : vector<2x32xf32>
    %743 = arith.truncf %689 : vector<2x32xf32> to vector<2x32xbf16>
    %744 = arith.truncf %742 : vector<2x32xf32> to vector<2x32xbf16>
    %c0_419 = arith.constant 0 : index
    %c0_420 = arith.constant 0 : index
    %c0_421 = arith.constant 0 : index
    %745 = vector.load %arg4[%c0_419, %c0_420, %c0_421] : memref<4x32x32xbf16, #tpu.memory_space<vmem>>, vector<1x32x32xbf16>
    %746 = vector.shape_cast %745 : vector<1x32x32xbf16> to vector<32x32xbf16>
    %cst_422 = arith.constant dense<0.000000e+00> : vector<2x32xf32>
    %747 = tpu.matmul %743, %746, %cst_422 {dimension_numbers = #tpu.dot_dimension_numbers<[1], [0], [0], [1], [0, 0, 1, 1], [], []>} : vector<2x32xbf16>, vector<32x32xbf16>, vector<2x32xf32> -> vector<2x32xf32>
    %748 = arith.addf %3, %747 : vector<2x32xf32>
    %c0_423 = arith.constant 0 : index
    %c0_424 = arith.constant 0 : index
    %c0_425 = arith.constant 0 : index
    %749 = vector.load %arg5[%c0_423, %c0_424, %c0_425] : memref<4x32x32xbf16, #tpu.memory_space<vmem>>, vector<1x32x32xbf16>
    %750 = vector.shape_cast %749 : vector<1x32x32xbf16> to vector<32x32xbf16>
    %cst_426 = arith.constant dense<0.000000e+00> : vector<2x32xf32>
    %751 = tpu.matmul %744, %750, %cst_426 {dimension_numbers = #tpu.dot_dimension_numbers<[1], [0], [0], [1], [0, 0, 1, 1], [], []>} : vector<2x32xbf16>, vector<32x32xbf16>, vector<2x32xf32> -> vector<2x32xf32>
    %752 = arith.addf %748, %751 : vector<2x32xf32>
    %c1_427 = arith.constant 1 : index
    %c0_428 = arith.constant 0 : index
    %c0_429 = arith.constant 0 : index
    %753 = vector.load %arg4[%c1_427, %c0_428, %c0_429] : memref<4x32x32xbf16, #tpu.memory_space<vmem>>, vector<1x32x32xbf16>
    %754 = vector.shape_cast %753 : vector<1x32x32xbf16> to vector<32x32xbf16>
    %cst_430 = arith.constant dense<0.000000e+00> : vector<2x32xf32>
    %755 = tpu.matmul %743, %754, %cst_430 {dimension_numbers = #tpu.dot_dimension_numbers<[1], [0], [0], [1], [0, 0, 1, 1], [], []>} : vector<2x32xbf16>, vector<32x32xbf16>, vector<2x32xf32> -> vector<2x32xf32>
    %756 = arith.addf %7, %755 : vector<2x32xf32>
    %c1_431 = arith.constant 1 : index
    %c0_432 = arith.constant 0 : index
    %c0_433 = arith.constant 0 : index
    %757 = vector.load %arg5[%c1_431, %c0_432, %c0_433] : memref<4x32x32xbf16, #tpu.memory_space<vmem>>, vector<1x32x32xbf16>
    %758 = vector.shape_cast %757 : vector<1x32x32xbf16> to vector<32x32xbf16>
    %cst_434 = arith.constant dense<0.000000e+00> : vector<2x32xf32>
    %759 = tpu.matmul %744, %758, %cst_434 {dimension_numbers = #tpu.dot_dimension_numbers<[1], [0], [0], [1], [0, 0, 1, 1], [], []>} : vector<2x32xbf16>, vector<32x32xbf16>, vector<2x32xf32> -> vector<2x32xf32>
    %760 = arith.addf %756, %759 : vector<2x32xf32>
    %c2_435 = arith.constant 2 : index
    %c0_436 = arith.constant 0 : index
    %c0_437 = arith.constant 0 : index
    %761 = vector.load %arg4[%c2_435, %c0_436, %c0_437] : memref<4x32x32xbf16, #tpu.memory_space<vmem>>, vector<1x32x32xbf16>
    %762 = vector.shape_cast %761 : vector<1x32x32xbf16> to vector<32x32xbf16>
    %cst_438 = arith.constant dense<0.000000e+00> : vector<2x32xf32>
    %763 = tpu.matmul %743, %762, %cst_438 {dimension_numbers = #tpu.dot_dimension_numbers<[1], [0], [0], [1], [0, 0, 1, 1], [], []>} : vector<2x32xbf16>, vector<32x32xbf16>, vector<2x32xf32> -> vector<2x32xf32>
    %764 = arith.addf %11, %763 : vector<2x32xf32>
    %c2_439 = arith.constant 2 : index
    %c0_440 = arith.constant 0 : index
    %c0_441 = arith.constant 0 : index
    %765 = vector.load %arg5[%c2_439, %c0_440, %c0_441] : memref<4x32x32xbf16, #tpu.memory_space<vmem>>, vector<1x32x32xbf16>
    %766 = vector.shape_cast %765 : vector<1x32x32xbf16> to vector<32x32xbf16>
    %cst_442 = arith.constant dense<0.000000e+00> : vector<2x32xf32>
    %767 = tpu.matmul %744, %766, %cst_442 {dimension_numbers = #tpu.dot_dimension_numbers<[1], [0], [0], [1], [0, 0, 1, 1], [], []>} : vector<2x32xbf16>, vector<32x32xbf16>, vector<2x32xf32> -> vector<2x32xf32>
    %768 = arith.addf %764, %767 : vector<2x32xf32>
    %c3_443 = arith.constant 3 : index
    %c0_444 = arith.constant 0 : index
    %c0_445 = arith.constant 0 : index
    %769 = vector.load %arg4[%c3_443, %c0_444, %c0_445] : memref<4x32x32xbf16, #tpu.memory_space<vmem>>, vector<1x32x32xbf16>
    %770 = vector.shape_cast %769 : vector<1x32x32xbf16> to vector<32x32xbf16>
    %cst_446 = arith.constant dense<0.000000e+00> : vector<2x32xf32>
    %771 = tpu.matmul %743, %770, %cst_446 {dimension_numbers = #tpu.dot_dimension_numbers<[1], [0], [0], [1], [0, 0, 1, 1], [], []>} : vector<2x32xbf16>, vector<32x32xbf16>, vector<2x32xf32> -> vector<2x32xf32>
    %772 = arith.addf %15, %771 : vector<2x32xf32>
    %c3_447 = arith.constant 3 : index
    %c0_448 = arith.constant 0 : index
    %c0_449 = arith.constant 0 : index
    %773 = vector.load %arg5[%c3_447, %c0_448, %c0_449] : memref<4x32x32xbf16, #tpu.memory_space<vmem>>, vector<1x32x32xbf16>
    %774 = vector.shape_cast %773 : vector<1x32x32xbf16> to vector<32x32xbf16>
    %cst_450 = arith.constant dense<0.000000e+00> : vector<2x32xf32>
    %775 = tpu.matmul %744, %774, %cst_450 {dimension_numbers = #tpu.dot_dimension_numbers<[1], [0], [0], [1], [0, 0, 1, 1], [], []>} : vector<2x32xbf16>, vector<32x32xbf16>, vector<2x32xf32> -> vector<2x32xf32>
    %776 = arith.addf %772, %775 : vector<2x32xf32>
    %777 = arith.negf %752 : vector<2x32xf32>
    %778 = math.exp %777 : vector<2x32xf32>
    %cst_451 = arith.constant 1.000000e+00 : f32
    %779 = vector.broadcast %cst_451 : f32 to vector<2x32xf32>
    %780 = arith.addf %779, %778 : vector<2x32xf32>
    %781 = arith.divf %779, %780 : vector<2x32xf32>
    %782 = arith.negf %760 : vector<2x32xf32>
    %783 = math.exp %782 : vector<2x32xf32>
    %cst_452 = arith.constant 1.000000e+00 : f32
    %784 = vector.broadcast %cst_452 : f32 to vector<2x32xf32>
    %785 = arith.addf %784, %783 : vector<2x32xf32>
    %786 = arith.divf %784, %785 : vector<2x32xf32>
    %787 = math.tanh %768 : vector<2x32xf32>
    %788 = arith.negf %776 : vector<2x32xf32>
    %789 = math.exp %788 : vector<2x32xf32>
    %cst_453 = arith.constant 1.000000e+00 : f32
    %790 = vector.broadcast %cst_453 : f32 to vector<2x32xf32>
    %791 = arith.addf %790, %789 : vector<2x32xf32>
    %792 = arith.divf %790, %791 : vector<2x32xf32>
    %793 = arith.mulf %786, %740 : vector<2x32xf32>
    %794 = arith.mulf %781, %787 : vector<2x32xf32>
    %795 = arith.addf %793, %794 : vector<2x32xf32>
    %796 = math.tanh %795 : vector<2x32xf32>
    %797 = arith.mulf %792, %796 : vector<2x32xf32>
    %c0_454 = arith.constant 0 : index
    %c0_455 = arith.constant 0 : index
    %798 = vector.load %arg7[%c0_454, %c0_455] : memref<32x4xf32, #tpu.memory_space<vmem>>, vector<32x4xf32>
    %cst_456 = arith.constant dense<0.000000e+00> : vector<2x4xf32>
    %799 = tpu.matmul %797, %798, %cst_456 {dimension_numbers = #tpu.dot_dimension_numbers<[1], [0], [0], [1], [0, 0, 1, 1], [], []>} : vector<2x32xf32>, vector<32x4xf32>, vector<2x4xf32> -> vector<2x4xf32>
    %c0_457 = arith.constant 0 : index
    %c0_458 = arith.constant 0 : index
    %800 = vector.load %arg8[%c0_457, %c0_458] : memref<1x4xf32, #tpu.memory_space<vmem>>, vector<1x4xf32>
    %801 = vector.broadcast %800 : vector<1x4xf32> to vector<2x4xf32>
    %802 = arith.addf %799, %801 : vector<2x4xf32>
    %c0_459 = arith.constant 0 : index
    %c0_460 = arith.constant 0 : index
    %803 = vector.load %arg9[%c0_459, %c0_460] : memref<2x4xf32, #tpu.memory_space<vmem>>, vector<2x4xf32>
    tpu.vector_store %arg9[%c0_459, %c0_460], %802 {strides = array<i32>} : memref<2x4xf32, #tpu.memory_space<vmem>>, vector<2x4xf32>,
    return
  }
}

</mosaic_0001>

<llo_original>
// kernel: tpu_custom_call.1
$region0: #{tpu_custom_call.1}
  #allocation0 [shape = 'u32[]', space=smem, size = 0x4, offset = 0x4, fixed_abs, tag = 'smem constant byte address 0x4 - core index']
  #allocation1 [shape = 'u32[144,128]{1,0:T(1,128)}', space=vmem, size = 0x12000, scoped, tag = 'internal scratch']
  %s0 = inlined_call_operand.vmem [shape: f32[16,4], index: 0, kind: input, shape index: {}]
  %s1 = inlined_call_operand.hbm [shape: f32[4,4,32], index: 1, kind: input, shape index: {}]
  %s2 = inlined_call_operand.hbm [shape: f32[4,1,32], index: 2, kind: input, shape index: {}]
  %s3 = inlined_call_operand.vmem [shape: bf16[4,32,32], index: 3, kind: input, shape index: {}]
  %s4 = inlined_call_operand.hbm [shape: bf16[4,32,32], index: 4, kind: input, shape index: {}]
  %s5 = inlined_call_operand.hbm [shape: bf16[4,32,32], index: 5, kind: input, shape index: {}]
  %s6 = inlined_call_operand.vmem [shape: f32[4,1,32], index: 6, kind: input, shape index: {}]
  %s7 = inlined_call_operand.vmem [shape: f32[32,4], index: 7, kind: input, shape index: {}]
  %s8 = inlined_call_operand.vmem [shape: f32[1,4], index: 8, kind: input, shape index: {}]
  %s9 = inlined_call_operand.hbm [shape: f32[2,4], index: 9, kind: output, shape index: {}]
  %s10 = sld [smem:[#allocation0]]
  $region62: #{tpu_custom_call.1} parent=0
    _
  %s12 = ssub.s32 1, %s10
  %s13 = scalar_select 0, %s12, %s10
  $region1: #{tpu_custom_call.1} parent=0
    #allocation2 [shape = 'u8[8192]{0}', space=vmem, size = 0x2000, scoped, tag = 'input window, operand 1, single buffered']
    #allocation3 [shape = 's32[1]{0}', space=sflag, size = 0x4, scoped, tag = 'scoped memory for tpu_custom_call.1']
    #allocation4 [shape = 's32[1]{0}', space=sflag, size = 0x4, scoped, tag = 'scoped memory for tpu_custom_call.1']
    #allocation5 [shape = 'u8[2048]{0}', space=vmem, size = 0x800, scoped, tag = 'input window, operand 2, single buffered']
    #allocation6 [shape = 's32[1]{0}', space=sflag, size = 0x4, scoped, tag = 'scoped memory for tpu_custom_call.1']
    #allocation7 [shape = 'u8[32768]{0}', space=vmem, size = 0x8000, scoped, tag = 'input window, operand 4, single buffered']
    #allocation8 [shape = 'u8[32768]{0}', space=vmem, size = 0x8000, scoped, tag = 'input window, operand 5, single buffered']
    #allocation9 [shape = 's32[1]{0}', space=sflag, size = 0x4, scoped, tag = 'scoped memory for tpu_custom_call.1']
    #allocation10 [shape = 'u8[1024]{0}', space=vmem, size = 0x400, scoped, tag = 'output window, operand 0, single buffered']
    %14 = vsyncpa [#allocation3], 0
    %15 = vsyncpa [#allocation6], 0
    %16 = vsyncpa [#allocation9], 0
    %17 = vsyncpa [#allocation4], 0
    // Predicated region
    $region2: #{tpu_custom_call.1} parent=1 // pred_check
      _
    $region3: #{tpu_custom_call.1} parent=1 // pred_check_branch
      %19 = sbr.rel (0) target = $region5
    $region4: #{tpu_custom_call.1} parent=1 // pred_region
      _
    $region5: #{tpu_custom_call.1} parent=1 // pred_fallthru
      _
    // Predicated region
    $region6: #{tpu_custom_call.1} parent=1 // pred_check
      _
    $region7: #{tpu_custom_call.1} parent=1 // pred_check_branch
      %21 = sbr.rel (0) target = $region9
    $region8: #{tpu_custom_call.1} parent=1 // pred_region
      %s23 = ssub.s32 256, 256
      %24 = vsyncadd [#allocation3], %s23
      %s25 = sshll.u32 [#allocation2], 4
      %s26 = int_to_ptr.vmem [resolvable:$true] %s25
      %31 = dma.hbm_to_vmem [thread:$0]  %s1, 256, %s26, [#allocation3], 64, 64, 4
    $region9: #{tpu_custom_call.1} parent=1 // pred_fallthru
      _
    // Predicated region
    $region10: #{tpu_custom_call.1} parent=1 // pred_check
      _
    $region11: #{tpu_custom_call.1} parent=1 // pred_check_branch
      %33 = sbr.rel (0) target = $region13
    $region12: #{tpu_custom_call.1} parent=1 // pred_region
      %s35 = ssub.s32 64, 64
      %36 = vsyncadd [#allocation6], %s35
      %s37 = sshll.u32 [#allocation5], 4
      %s38 = int_to_ptr.vmem [resolvable:$true] %s37
      %43 = dma.hbm_to_vmem [thread:$0]  %s2, 64, %s38, [#allocation6], 16, 16, 1
    $region13: #{tpu_custom_call.1} parent=1 // pred_fallthru
      _
    // Predicated region
    $region14: #{tpu_custom_call.1} parent=1 // pred_check
      _
    $region15: #{tpu_custom_call.1} parent=1 // pred_check_branch
      %45 = sbr.rel (0) target = $region17
    $region16: #{tpu_custom_call.1} parent=1 // pred_region
      _
    $region17: #{tpu_custom_call.1} parent=1 // pred_fallthru
      _
    // Predicated region
    $region18: #{tpu_custom_call.1} parent=1 // pred_check
      _
    $region19: #{tpu_custom_call.1} parent=1 // pred_check_branch
      %47 = sbr.rel (0) target = $region21
    $region20: #{tpu_custom_call.1} parent=1 // pred_region
      %s49 = ssub.s32 1024, 1024
      %50 = vsyncadd [#allocation6], %s49
      %s51 = sshll.u32 [#allocation7], 4
      %s52 = int_to_ptr.vmem [resolvable:$true] %s51
      %57 = dma.hbm_to_vmem [thread:$0]  %s4, 1024, %s52, [#allocation6], 64, 64, 4
    $region21: #{tpu_custom_call.1} parent=1 // pred_fallthru
      _
    // Predicated region
    $region22: #{tpu_custom_call.1} parent=1 // pred_check
      _
    $region23: #{tpu_custom_call.1} parent=1 // pred_check_branch
      %59 = sbr.rel (0) target = $region25
    $region24: #{tpu_custom_call.1} parent=1 // pred_region
      %s61 = ssub.s32 1024, 1024
      %62 = vsyncadd [#allocation9], %s61
      %s63 = sshll.u32 [#allocation8], 4
      %s64 = int_to_ptr.vmem [resolvable:$true] %s63
      %69 = dma.hbm_to_vmem [thread:$0]  %s5, 1024, %s64, [#allocation9], 64, 64, 4
    $region25: #{tpu_custom_call.1} parent=1 // pred_fallthru
      _
    // Predicated region
    $region26: #{tpu_custom_call.1} parent=1 // pred_check
      _
    $region27: #{tpu_custom_call.1} parent=1 // pred_check_branch
      %71 = sbr.rel (0) target = $region29
    $region28: #{tpu_custom_call.1} parent=1 // pred_region
      _
    $region29: #{tpu_custom_call.1} parent=1 // pred_fallthru
      _
    // Predicated region
    $region30: #{tpu_custom_call.1} parent=1 // pred_check
      _
    $region31: #{tpu_custom_call.1} parent=1 // pred_check_branch
      %73 = sbr.rel (0) target = $region33
    $region32: #{tpu_custom_call.1} parent=1 // pred_region
      _
    $region33: #{tpu_custom_call.1} parent=1 // pred_fallthru
      _
    // Predicated region
    $region34: #{tpu_custom_call.1} parent=1 // pred_check
      _
    $region35: #{tpu_custom_call.1} parent=1 // pred_check_branch
      %75 = sbr.rel (0) target = $region37
    $region36: #{tpu_custom_call.1} parent=1 // pred_region
      _
    $region37: #{tpu_custom_call.1} parent=1 // pred_fallthru
      _
    // Predicated region
    $region38: #{tpu_custom_call.1} parent=1 // pred_check
      _
    $region39: #{tpu_custom_call.1} parent=1 // pred_check_branch
      %77 = sbr.rel (0) target = $region41
    $region40: #{tpu_custom_call.1} parent=1 // pred_region
      %78 = dma.done [#allocation3], 256
    $region41: #{tpu_custom_call.1} parent=1 // pred_fallthru
      _
    // Predicated region
    $region42: #{tpu_custom_call.1} parent=1 // pred_check
      _
    $region43: #{tpu_custom_call.1} parent=1 // pred_check_branch
      %80 = sbr.rel (0) target = $region45
    $region44: #{tpu_custom_call.1} parent=1 // pred_region
      %81 = dma.done [#allocation6], 64
    $region45: #{tpu_custom_call.1} parent=1 // pred_fallthru
      _
    // Predicated region
    $region46: #{tpu_custom_call.1} parent=1 // pred_check
      _
    $region47: #{tpu_custom_call.1} parent=1 // pred_check_branch
      %83 = sbr.rel (0) target = $region49
    $region48: #{tpu_custom_call.1} parent=1 // pred_region
      %84 = dma.done [#allocation6], 1024
    $region49: #{tpu_custom_call.1} parent=1 // pred_fallthru
      _
    // Predicated region
    $region50: #{tpu_custom_call.1} parent=1 // pred_check
      _
    $region51: #{tpu_custom_call.1} parent=1 // pred_check_branch
      %86 = sbr.rel (0) target = $region53
    $region52: #{tpu_custom_call.1} parent=1 // pred_region
      %87 = dma.done [#allocation9], 1024
    $region53: #{tpu_custom_call.1} parent=1 // pred_fallthru
      _
    %v89 = vld [vmem:[%s6] sm:$0x1]
    %v91 = vlaneseq
    %v92 = vshrl.u32 %v91, 7
    %v93 = vsub.s32 0, %v92
    %v94 = vrot.slane %v89, %v93
    %s96 = scalar_lea.vmem %s6, 1
    %v97 = vld [vmem:[%s96] sm:$0x1]
    %v99 = vlaneseq
    %v100 = vshrl.u32 %v99, 7
    %v101 = vsub.s32 0, %v100
    %v102 = vrot.slane %v97, %v101
    %s104 = scalar_lea.vmem %s6, 2
    %v105 = vld [vmem:[%s104] sm:$0x1]
    %v107 = vlaneseq
    %v108 = vshrl.u32 %v107, 7
    %v109 = vsub.s32 0, %v108
    %v110 = vrot.slane %v105, %v109
    %s112 = scalar_lea.vmem %s6, 3
    %v113 = vld [vmem:[%s112] sm:$0x1]
    %v115 = vlaneseq
    %v116 = vshrl.u32 %v115, 7
    %v117 = vsub.s32 0, %v116
    %v118 = vrot.slane %v113, %v117
    %v120 = vld [vmem:[%s0] sm:$0xff]
    %v121 = vld [vmem:[%s0 + $0x8] sm:$0xff]
    %v122 = vld [vmem:[#allocation2] sm:$0xf]
    %v123 = vld [vmem:[#allocation5] sm:$0x1]
    %v125 = vlaneseq
    %v126 = vshrl.u32 %v125, 7
    %v127 = vsub.s32 0, %v126
    %v128 = vrot.slane %v123, %v127
    %vm130 = vcmask 31744
    %v132 = vsel %vm130, %v120, 0
    %v135 = vsel %vm130, %v121, 0
    %vm137 = vcmask 1043456
    %v139 = vsel %vm137, %v122, 0
    %141 = vmatprep.subr.mxu0 0.0
    %142 = vmatpush1.msra.mxu0 %v139
    %143 = vmatprep.subr.mxu0 0.0
    %144 = vmatpush1.msra.mxu0 0.0
    %145 = vmatprep.subr.mxu0 0.0
    %146 = vmatpush1.msra.mxu0 0.0
    %147 = vmatprep.subr.mxu0 0.0
    %148 = vmatpush1.msra.mxu0 0.0
    %149 = vmatprep.subr.mxu0 0.0
    %150 = vmatpush1.msra.mxu0 0.0
    %151 = vmatprep.subr.mxu0 0.0
    %152 = vmatpush1.msra.mxu0 0.0
    %153 = vmatprep.subr.mxu0 0.0
    %154 = vmatpush1.msra.mxu0 0.0
    %155 = vmatprep.subr.mxu0 0.0
    %156 = vmatpush1.msra.mxu0 0.0
    %157 = vmatprep.subr.mxu0 0.0
    %158 = vmatpush1.msra.mxu0 0.0
    %159 = vmatprep.subr.mxu0 0.0
    %160 = vmatpush1.msra.mxu0 0.0
    %161 = vmatprep.subr.mxu0 0.0
    %162 = vmatpush1.msra.mxu0 0.0
    %163 = vmatprep.subr.mxu0 0.0
    %164 = vmatpush1.msra.mxu0 0.0
    %165 = vmatprep.subr.mxu0 0.0
    %166 = vmatpush1.msra.mxu0 0.0
    %167 = vmatprep.subr.mxu0 0.0
    %168 = vmatpush1.msra.mxu0 0.0
    %169 = vmatprep.subr.mxu0 0.0
    %170 = vmatpush1.msra.mxu0 0.0
    %171 = vmatprep.subr.mxu0 0.0
    %172 = vmatpush1.msra.mxu0 0.0
    %173 = vmatprep.subr.mxu0 0.0
    %174 = vmatpush1.msra.mxu0 0.0
    %175 = vmatprep.subr.mxu0 0.0
    %176 = vmatpush1.msra.mxu0 0.0
    %177 = vmatprep.subr.mxu0 0.0
    %178 = vmatpush1.msra.mxu0 0.0
    %179 = vmatprep.subr.mxu0 0.0
    %180 = vmatpush1.msra.mxu0 0.0
    %181 = vmatprep.subr.mxu0 0.0
    %182 = vmatpush1.msra.mxu0 0.0
    %183 = vmatprep.subr.mxu0 0.0
    %184 = vmatpush1.msra.mxu0 0.0
    %185 = vmatprep.subr.mxu0 0.0
    %186 = vmatpush1.msra.mxu0 0.0
    %187 = vmatprep.subr.mxu0 0.0
    %188 = vmatpush1.msra.mxu0 0.0
    %189 = vmatprep.subr.mxu0 0.0
    %190 = vmatpush1.msra.mxu0 0.0
    %191 = vmatprep.subr.mxu0 0.0
    %192 = vmatpush1.msra.mxu0 0.0
    %193 = vmatprep.subr.mxu0 0.0
    %194 = vmatpush1.msra.mxu0 0.0
    %195 = vmatprep.subr.mxu0 0.0
    %196 = vmatpush1.msra.mxu0 0.0
    %197 = vmatprep.subr.mxu0 0.0
    %198 = vmatpush1.msra.mxu0 0.0
    %199 = vmatprep.subr.mxu0 0.0
    %200 = vmatpush1.msra.mxu0 0.0
    %201 = vmatprep.subr.mxu0 0.0
    %202 = vmatpush1.msra.mxu0 0.0
    %203 = vmatprep.subr.mxu0 0.0
    %204 = vmatpush1.msra.mxu0 0.0
    %205 = vmatprep.mubr.f32.mxu0 0.0
    %206 = vmatmul.mubr.f32.gmra.mrb[0].mxu0 %v132
    %v207 = vpop.f32.mrb[0].mxu0
    %v208 = vadd.f32 %v128, %v207
    %v209 = vpop.f32.mrb[0].mxu0
    %210 = vmatprep.mubr.f32.mxu0 0.0
    %211 = vmatmul.mubr.f32.gmra.mrb[0].mxu0 %v135
    %v212 = vpop.f32.mrb[0].mxu0
    %v213 = vadd.f32 %v128, %v212
    %v214 = vpop.f32.mrb[0].mxu0
    %215 = vdwg.mxu0
    %s216 = scalar_lea.vmem [#allocation2], 4
    %v217 = vld [vmem:[%s216] sm:$0xf]
    %s218 = scalar_lea.vmem [#allocation5], 1
    %v219 = vld [vmem:[%s218] sm:$0x1]
    %v221 = vlaneseq
    %v222 = vshrl.u32 %v221, 7
    %v223 = vsub.s32 0, %v222
    %v224 = vrot.slane %v219, %v223
    %v227 = vsel %vm137, %v217, 0
    %229 = vmatprep.subr.mxu0 0.0
    %230 = vmatpush1.msra.mxu0 %v227
    %231 = vmatprep.subr.mxu0 0.0
    %232 = vmatpush1.msra.mxu0 0.0
    %233 = vmatprep.subr.mxu0 0.0
    %234 = vmatpush1.msra.mxu0 0.0
    %235 = vmatprep.subr.mxu0 0.0
    %236 = vmatpush1.msra.mxu0 0.0
    %237 = vmatprep.subr.mxu0 0.0
    %238 = vmatpush1.msra.mxu0 0.0
    %239 = vmatprep.subr.mxu0 0.0
    %240 = vmatpush1.msra.mxu0 0.0
    %241 = vmatprep.subr.mxu0 0.0
    %242 = vmatpush1.msra.mxu0 0.0
    %243 = vmatprep.subr.mxu0 0.0
    %244 = vmatpush1.msra.mxu0 0.0
    %245 = vmatprep.subr.mxu0 0.0
    %246 = vmatpush1.msra.mxu0 0.0
    %247 = vmatprep.subr.mxu0 0.0
    %248 = vmatpush1.msra.mxu0 0.0
    %249 = vmatprep.subr.mxu0 0.0
    %250 = vmatpush1.msra.mxu0 0.0
    %251 = vmatprep.subr.mxu0 0.0
    %252 = vmatpush1.msra.mxu0 0.0
    %253 = vmatprep.subr.mxu0 0.0
    %254 = vmatpush1.msra.mxu0 0.0
    %255 = vmatprep.subr.mxu0 0.0
    %256 = vmatpush1.msra.mxu0 0.0
    %257 = vmatprep.subr.mxu0 0.0
    %258 = vmatpush1.msra.mxu0 0.0
    %259 = vmatprep.subr.mxu0 0.0
    %260 = vmatpush1.msra.mxu0 0.0
    %261 = vmatprep.subr.mxu0 0.0
    %262 = vmatpush1.msra.mxu0 0.0
    %263 = vmatprep.subr.mxu0 0.0
    %264 = vmatpush1.msra.mxu0 0.0
    %265 = vmatprep.subr.mxu0 0.0
    %266 = vmatpush1.msra.mxu0 0.0
    %267 = vmatprep.subr.mxu0 0.0
    %268 = vmatpush1.msra.mxu0 0.0
    %269 = vmatprep.subr.mxu0 0.0
    %270 = vmatpush1.msra.mxu0 0.0
    %271 = vmatprep.subr.mxu0 0.0
    %272 = vmatpush1.msra.mxu0 0.0
    %273 = vmatprep.subr.mxu0 0.0
    %274 = vmatpush1.msra.mxu0 0.0
    %275 = vmatprep.subr.mxu0 0.0
    %276 = vmatpush1.msra.mxu0 0.0
    %277 = vmatprep.subr.mxu0 0.0
    %278 = vmatpush1.msra.mxu0 0.0
    %279 = vmatprep.subr.mxu0 0.0
    %280 = vmatpush1.msra.mxu0 0.0
    %281 = vmatprep.subr.mxu0 0.0
    %282 = vmatpush1.msra.mxu0 0.0
    %283 = vmatprep.subr.mxu0 0.0
    %284 = vmatpush1.msra.mxu0 0.0
    %285 = vmatprep.subr.mxu0 0.0
    %286 = vmatpush1.msra.mxu0 0.0
    %287 = vmatprep.subr.mxu0 0.0
    %288 = vmatpush1.msra.mxu0 0.0
    %289 = vmatprep.subr.mxu0 0.0
    %290 = vmatpush1.msra.mxu0 0.0
    %291 = vmatprep.subr.mxu0 0.0
    %292 = vmatpush1.msra.mxu0 0.0
    %293 = vmatprep.mubr.f32.mxu0 0.0
    %294 = vmatmul.mubr.f32.gmra.mrb[0].mxu0 %v132
    %v295 = vpop.f32.mrb[0].mxu0
    %v296 = vadd.f32 %v224, %v295
    %v297 = vpop.f32.mrb[0].mxu0
    %298 = vmatprep.mubr.f32.mxu0 0.0
    %299 = vmatmul.mubr.f32.gmra.mrb[0].mxu0 %v135
    %v300 = vpop.f32.mrb[0].mxu0
    %v301 = vadd.f32 %v224, %v300
    %v302 = vpop.f32.mrb[0].mxu0
    %303 = vdwg.mxu0
    %s304 = scalar_lea.vmem [#allocation2], 8
    %v305 = vld [vmem:[%s304] sm:$0xf]
    %s306 = scalar_lea.vmem [#allocation5], 2
    %v307 = vld [vmem:[%s306] sm:$0x1]
    %v309 = vlaneseq
    %v310 = vshrl.u32 %v309, 7
    %v311 = vsub.s32 0, %v310
    %v312 = vrot.slane %v307, %v311
    %v315 = vsel %vm137, %v305, 0
    %317 = vmatprep.subr.mxu0 0.0
    %318 = vmatpush1.msra.mxu0 %v315
    %319 = vmatprep.subr.mxu0 0.0
    %320 = vmatpush1.msra.mxu0 0.0
    %321 = vmatprep.subr.mxu0 0.0
    %322 = vmatpush1.msra.mxu0 0.0
    %323 = vmatprep.subr.mxu0 0.0
    %324 = vmatpush1.msra.mxu0 0.0
    %325 = vmatprep.subr.mxu0 0.0
    %326 = vmatpush1.msra.mxu0 0.0
    %327 = vmatprep.subr.mxu0 0.0
    %328 = vmatpush1.msra.mxu0 0.0
    %329 = vmatprep.subr.mxu0 0.0
    %330 = vmatpush1.msra.mxu0 0.0
    %331 = vmatprep.subr.mxu0 0.0
    %332 = vmatpush1.msra.mxu0 0.0
    %333 = vmatprep.subr.mxu0 0.0
    %334 = vmatpush1.msra.mxu0 0.0
    %335 = vmatprep.subr.mxu0 0.0
    %336 = vmatpush1.msra.mxu0 0.0
    %337 = vmatprep.subr.mxu0 0.0
    %338 = vmatpush1.msra.mxu0 0.0
    %339 = vmatprep.subr.mxu0 0.0
    %340 = vmatpush1.msra.mxu0 0.0
    %341 = vmatprep.subr.mxu0 0.0
    %342 = vmatpush1.msra.mxu0 0.0
    %343 = vmatprep.subr.mxu0 0.0
    %344 = vmatpush1.msra.mxu0 0.0
    %345 = vmatprep.subr.mxu0 0.0
    %346 = vmatpush1.msra.mxu0 0.0
    %347 = vmatprep.subr.mxu0 0.0
    %348 = vmatpush1.msra.mxu0 0.0
    %349 = vmatprep.subr.mxu0 0.0
    %350 = vmatpush1.msra.mxu0 0.0
    %351 = vmatprep.subr.mxu0 0.0
    %352 = vmatpush1.msra.mxu0 0.0
    %353 = vmatprep.subr.mxu0 0.0
    %354 = vmatpush1.msra.mxu0 0.0
    %355 = vmatprep.subr.mxu0 0.0
    %356 = vmatpush1.msra.mxu0 0.0
    %357 = vmatprep.subr.mxu0 0.0
    %358 = vmatpush1.msra.mxu0 0.0
    %359 = vmatprep.subr.mxu0 0.0
    %360 = vmatpush1.msra.mxu0 0.0
    %361 = vmatprep.subr.mxu0 0.0
    %362 = vmatpush1.msra.mxu0 0.0
    %363 = vmatprep.subr.mxu0 0.0
    %364 = vmatpush1.msra.mxu0 0.0
    %365 = vmatprep.subr.mxu0 0.0
    %366 = vmatpush1.msra.mxu0 0.0
    %367 = vmatprep.subr.mxu0 0.0
    %368 = vmatpush1.msra.mxu0 0.0
    %369 = vmatprep.subr.mxu0 0.0
    %370 = vmatpush1.msra.mxu0 0.0
    %371 = vmatprep.subr.mxu0 0.0
    %372 = vmatpush1.msra.mxu0 0.0
    %373 = vmatprep.subr.mxu0 0.0
    %374 = vmatpush1.msra.mxu0 0.0
    %375 = vmatprep.subr.mxu0 0.0
    %376 = vmatpush1.msra.mxu0 0.0
    %377 = vmatprep.subr.mxu0 0.0
    %378 = vmatpush1.msra.mxu0 0.0
    %379 = vmatprep.subr.mxu0 0.0
    %380 = vmatpush1.msra.mxu0 0.0
    %381 = vmatprep.mubr.f32.mxu0 0.0
    %382 = vmatmul.mubr.f32.gmra.mrb[0].mxu0 %v132
    %v383 = vpop.f32.mrb[0].mxu0
    %v384 = vadd.f32 %v312, %v383
    %v385 = vpop.f32.mrb[0].mxu0
    %386 = vmatprep.mubr.f32.mxu0 0.0
    %387 = vmatmul.mubr.f32.gmra.mrb[0].mxu0 %v135
    %v388 = vpop.f32.mrb[0].mxu0
    %v389 = vadd.f32 %v312, %v388
    %v390 = vpop.f32.mrb[0].mxu0
    %391 = vdwg.mxu0
    %s392 = scalar_lea.vmem [#allocation2], 12
    %v393 = vld [vmem:[%s392] sm:$0xf]
    %s394 = scalar_lea.vmem [#allocation5], 3
    %v395 = vld [vmem:[%s394] sm:$0x1]
    %v397 = vlaneseq
    %v398 = vshrl.u32 %v397, 7
    %v399 = vsub.s32 0, %v398
    %v400 = vrot.slane %v395, %v399
    %v403 = vsel %vm137, %v393, 0
    %405 = vmatprep.subr.mxu0 0.0
    %406 = vmatpush1.msra.mxu0 %v403
    %407 = vmatprep.subr.mxu0 0.0
    %408 = vmatpush1.msra.mxu0 0.0
    %409 = vmatprep.subr.mxu0 0.0
    %410 = vmatpush1.msra.mxu0 0.0
    %411 = vmatprep.subr.mxu0 0.0
    %412 = vmatpush1.msra.mxu0 0.0
    %413 = vmatprep.subr.mxu0 0.0
    %414 = vmatpush1.msra.mxu0 0.0
    %415 = vmatprep.subr.mxu0 0.0
    %416 = vmatpush1.msra.mxu0 0.0
    %417 = vmatprep.subr.mxu0 0.0
    %418 = vmatpush1.msra.mxu0 0.0
    %419 = vmatprep.subr.mxu0 0.0
    %420 = vmatpush1.msra.mxu0 0.0
    %421 = vmatprep.subr.mxu0 0.0
    %422 = vmatpush1.msra.mxu0 0.0
    %423 = vmatprep.subr.mxu0 0.0
    %424 = vmatpush1.msra.mxu0 0.0
    %425 = vmatprep.subr.mxu0 0.0
    %426 = vmatpush1.msra.mxu0 0.0
    %427 = vmatprep.subr.mxu0 0.0
    %428 = vmatpush1.msra.mxu0 0.0
    %429 = vmatprep.subr.mxu0 0.0
    %430 = vmatpush1.msra.mxu0 0.0
    %431 = vmatprep.subr.mxu0 0.0
    %432 = vmatpush1.msra.mxu0 0.0
    %433 = vmatprep.subr.mxu0 0.0
    %434 = vmatpush1.msra.mxu0 0.0
    %435 = vmatprep.subr.mxu0 0.0
    %436 = vmatpush1.msra.mxu0 0.0
    %437 = vmatprep.subr.mxu0 0.0
    %438 = vmatpush1.msra.mxu0 0.0
    %439 = vmatprep.subr.mxu0 0.0
    %440 = vmatpush1.msra.mxu0 0.0
    %441 = vmatprep.subr.mxu0 0.0
    %442 = vmatpush1.msra.mxu0 0.0
    %443 = vmatprep.subr.mxu0 0.0
    %444 = vmatpush1.msra.mxu0 0.0
    %445 = vmatprep.subr.mxu0 0.0
    %446 = vmatpush1.msra.mxu0 0.0
    %447 = vmatprep.subr.mxu0 0.0
    %448 = vmatpush1.msra.mxu0 0.0
    %449 = vmatprep.subr.mxu0 0.0
    %450 = vmatpush1.msra.mxu0 0.0
    %451 = vmatprep.subr.mxu0 0.0
    %452 = vmatpush1.msra.mxu0 0.0
    %453 = vmatprep.subr.mxu0 0.0
    %454 = vmatpush1.msra.mxu0 0.0
    %455 = vmatprep.subr.mxu0 0.0
    %456 = vmatpush1.msra.mxu0 0.0
    %457 = vmatprep.subr.mxu0 0.0
    %458 = vmatpush1.msra.mxu0 0.0
    %459 = vmatprep.subr.mxu0 0.0
    %460 = vmatpush1.msra.mxu0 0.0
    %461 = vmatprep.subr.mxu0 0.0
    %462 = vmatpush1.msra.mxu0 0.0
    %463 = vmatprep.subr.mxu0 0.0
    %464 = vmatpush1.msra.mxu0 0.0
    %465 = vmatprep.subr.mxu0 0.0
    %466 = vmatpush1.msra.mxu0 0.0
    %467 = vmatprep.subr.mxu0 0.0
    %468 = vmatpush1.msra.mxu0 0.0
    %469 = vmatprep.mubr.f32.mxu0 0.0
    %470 = vmatmul.mubr.f32.gmra.mrb[0].mxu0 %v132
    %v471 = vpop.f32.mrb[0].mxu0
    %v472 = vadd.f32 %v400, %v471
    %v473 = vpop.f32.mrb[0].mxu0
    %474 = vmatprep.mubr.f32.mxu0 0.0
    %475 = vmatmul.mubr.f32.gmra.mrb[0].mxu0 %v135
    %v476 = vpop.f32.mrb[0].mxu0
    %v477 = vadd.f32 %v400, %v476
    %v478 = vpop.f32.mrb[0].mxu0
    %479 = vdwg.mxu0
    %v480 = vxor.u32 %v208, 2147483648
    %v481 = vmul.f32 %v480, 1.442695
    %v482 = vpow.pop %v481
    %v483 = vadd.f32 %v482, 1.0
    %v484 = vrcp.pop %v483
    %v485 = vmul.f32 1.0, %v484
    %v486 = vxor.u32 %v296, 2147483648
    %v487 = vmul.f32 %v486, 1.442695
    %v488 = vpow.pop %v487
    %v489 = vadd.f32 %v488, 1.0
    %v490 = vrcp.pop %v489
    %v491 = vmul.f32 1.0, %v490
    %v492 = vtanh.pop %v384
    %v493 = vxor.u32 %v472, 2147483648
    %v494 = vmul.f32 %v493, 1.442695
    %v495 = vpow.pop %v494
    %v496 = vadd.f32 %v495, 1.0
    %v497 = vrcp.pop %v496
    %v498 = vmul.f32 1.0, %v497
    %v499 = vmul.f32 %v491, 0.0
    %v500 = vmul.f32 %v485, %v492
    %v501 = vadd.f32 %v499, %v500
    %v502 = vtanh.pop %v501
    %v503 = vmul.f32 %v498, %v502
    %v504 = vpack.c.bf16 %v503, %v503
    %v505 = vld [vmem:[%s3] sm:$0xf]
    %v506 = vld [vmem:[%s3 + $0x4] sm:$0xf]
    %v507 = vld [vmem:[%s3 + $0x8] sm:$0xf]
    %v508 = vld [vmem:[%s3 + $0xc] sm:$0xf]
    %v513 = vunpack.c.l.b16 %v505
    %v514 = vunpack.c.l.b16 %v506
    %v515 = vunpack.c.l.b16 %v507
    %v516 = vunpack.c.l.b16 %v508
    %v517 = vpack.c.b16 %v514, %v513
    %v518 = vpack.c.b16 %v516, %v515
    %vm521 = vcmask 261120
    %v523 = vsel %vm521, %v504, 0
    %525 = vmatprep.subr.bf16.mxu0 0
    %526 = vmatpush1.bf16.msra.mxu0 %v517
    %527 = vmatprep.subr.bf16.mxu0 0
    %528 = vmatpush1.bf16.msra.mxu0 %v518
    %529 = vmatprep.subr.bf16.mxu0 0
    %530 = vmatpush1.bf16.msra.mxu0 0
    %531 = vmatprep.subr.bf16.mxu0 0
    %532 = vmatpush1.bf16.msra.mxu0 0
    %533 = vmatprep.subr.bf16.mxu0 0
    %534 = vmatpush1.bf16.msra.mxu0 0
    %535 = vmatprep.subr.bf16.mxu0 0
    %536 = vmatpush1.bf16.msra.mxu0 0
    %537 = vmatprep.subr.bf16.mxu0 0
    %538 = vmatpush1.bf16.msra.mxu0 0
    %539 = vmatprep.subr.bf16.mxu0 0
    %540 = vmatpush1.bf16.msra.mxu0 0
    %541 = vmatprep.subr.bf16.mxu0 0
    %542 = vmatpush1.bf16.msra.mxu0 0
    %543 = vmatprep.subr.bf16.mxu0 0
    %544 = vmatpush1.bf16.msra.mxu0 0
    %545 = vmatprep.subr.bf16.mxu0 0
    %546 = vmatpush1.bf16.msra.mxu0 0
    %547 = vmatprep.subr.bf16.mxu0 0
    %548 = vmatpush1.bf16.msra.mxu0 0
    %549 = vmatprep.subr.bf16.mxu0 0
    %550 = vmatpush1.bf16.msra.mxu0 0
    %551 = vmatprep.subr.bf16.mxu0 0
    %552 = vmatpush1.bf16.msra.mxu0 0
    %553 = vmatprep.subr.bf16.mxu0 0
    %554 = vmatpush1.bf16.msra.mxu0 0
    %555 = vmatprep.subr.bf16.mxu0 0
    %556 = vmatpush1.bf16.msra.mxu0 0
    %557 = vmatprep.mubr.bf16.mxu0 0
    %558 = vmatmul.mubr.bf16.gmra.mrb[0].mxu0 %v523
    %v559 = vpop.f32.mrb[0].mxu0
    %v560 = vadd.f32 0.0, %v559
    %v561 = vpop.f32.mrb[0].mxu0
    %v562 = vpop.f32.mrb[0].mxu0
    %v563 = vpop.f32.mrb[0].mxu0
    %564 = vdwg.mxu0
    %v566 = vrot.slane %v560, 6
    %v568 = vadd.f32 %v208, %v566
    %s569 = scalar_lea.vmem %s3, 16
    %v570 = vld [vmem:[%s569] sm:$0xf]
    %v571 = vld [vmem:[%s569 + $0x4] sm:$0xf]
    %v572 = vld [vmem:[%s569 + $0x8] sm:$0xf]
    %v573 = vld [vmem:[%s569 + $0xc] sm:$0xf]
    %v578 = vunpack.c.l.b16 %v570
    %v579 = vunpack.c.l.b16 %v571
    %v580 = vunpack.c.l.b16 %v572
    %v581 = vunpack.c.l.b16 %v573
    %v582 = vpack.c.b16 %v579, %v578
    %v583 = vpack.c.b16 %v581, %v580
    %586 = vmatprep.subr.bf16.mxu0 0
    %587 = vmatpush1.bf16.msra.mxu0 %v582
    %588 = vmatprep.subr.bf16.mxu0 0
    %589 = vmatpush1.bf16.msra.mxu0 %v583
    %590 = vmatprep.subr.bf16.mxu0 0
    %591 = vmatpush1.bf16.msra.mxu0 0
    %592 = vmatprep.subr.bf16.mxu0 0
    %593 = vmatpush1.bf16.msra.mxu0 0
    %594 = vmatprep.subr.bf16.mxu0 0
    %595 = vmatpush1.bf16.msra.mxu0 0
    %596 = vmatprep.subr.bf16.mxu0 0
    %597 = vmatpush1.bf16.msra.mxu0 0
    %598 = vmatprep.subr.bf16.mxu0 0
    %599 = vmatpush1.bf16.msra.mxu0 0
    %600 = vmatprep.subr.bf16.mxu0 0
    %601 = vmatpush1.bf16.msra.mxu0 0
    %602 = vmatprep.subr.bf16.mxu0 0
    %603 = vmatpush1.bf16.msra.mxu0 0
    %604 = vmatprep.subr.bf16.mxu0 0
    %605 = vmatpush1.bf16.msra.mxu0 0
    %606 = vmatprep.subr.bf16.mxu0 0
    %607 = vmatpush1.bf16.msra.mxu0 0
    %608 = vmatprep.subr.bf16.mxu0 0
    %609 = vmatpush1.bf16.msra.mxu0 0
    %610 = vmatprep.subr.bf16.mxu0 0
    %611 = vmatpush1.bf16.msra.mxu0 0
    %612 = vmatprep.subr.bf16.mxu0 0
    %613 = vmatpush1.bf16.msra.mxu0 0
    %614 = vmatprep.subr.bf16.mxu0 0
    %615 = vmatpush1.bf16.msra.mxu0 0
    %616 = vmatprep.subr.bf16.mxu0 0
    %617 = vmatpush1.bf16.msra.mxu0 0
    %618 = vmatprep.mubr.bf16.mxu0 0
    %619 = vmatmul.mubr.bf16.gmra.mrb[0].mxu0 %v523
    %v620 = vpop.f32.mrb[0].mxu0
    %v621 = vadd.f32 0.0, %v620
    %v622 = vpop.f32.mrb[0].mxu0
    %v623 = vpop.f32.mrb[0].mxu0
    %v624 = vpop.f32.mrb[0].mxu0
    %625 = vdwg.mxu0
    %v627 = vrot.slane %v621, 6
    %v629 = vadd.f32 %v296, %v627
    %s630 = scalar_lea.vmem %s3, 32
    %v631 = vld [vmem:[%s630] sm:$0xf]
    %v632 = vld [vmem:[%s630 + $0x4] sm:$0xf]
    %v633 = vld [vmem:[%s630 + $0x8] sm:$0xf]
    %v634 = vld [vmem:[%s630 + $0xc] sm:$0xf]
    %v639 = vunpack.c.l.b16 %v631
    %v640 = vunpack.c.l.b16 %v632
    %v641 = vunpack.c.l.b16 %v633
    %v642 = vunpack.c.l.b16 %v634
    %v643 = vpack.c.b16 %v640, %v639
    %v644 = vpack.c.b16 %v642, %v641
    %647 = vmatprep.subr.bf16.mxu0 0
    %648 = vmatpush1.bf16.msra.mxu0 %v643
    %649 = vmatprep.subr.bf16.mxu0 0
    %650 = vmatpush1.bf16.msra.mxu0 %v644
    %651 = vmatprep.subr.bf16.mxu0 0
    %652 = vmatpush1.bf16.msra.mxu0 0
    %653 = vmatprep.subr.bf16.mxu0 0
    %654 = vmatpush1.bf16.msra.mxu0 0
    %655 = vmatprep.subr.bf16.mxu0 0
    %656 = vmatpush1.bf16.msra.mxu0 0
    %657 = vmatprep.subr.bf16.mxu0 0
    %658 = vmatpush1.bf16.msra.mxu0 0
    %659 = vmatprep.subr.bf16.mxu0 0
    %660 = vmatpush1.bf16.msra.mxu0 0
    %661 = vmatprep.subr.bf16.mxu0 0
    %662 = vmatpush1.bf16.msra.mxu0 0
    %663 = vmatprep.subr.bf16.mxu0 0
    %664 = vmatpush1.bf16.msra.mxu0 0
    %665 = vmatprep.subr.bf16.mxu0 0
    %666 = vmatpush1.bf16.msra.mxu0 0
    %667 = vmatprep.subr.bf16.mxu0 0
    %668 = vmatpush1.bf16.msra.mxu0 0
    %669 = vmatprep.subr.bf16.mxu0 0
    %670 = vmatpush1.bf16.msra.mxu0 0
    %671 = vmatprep.subr.bf16.mxu0 0
    %672 = vmatpush1.bf16.msra.mxu0 0
    %673 = vmatprep.subr.bf16.mxu0 0
    %674 = vmatpush1.bf16.msra.mxu0 0
    %675 = vmatprep.subr.bf16.mxu0 0
    %676 = vmatpush1.bf16.msra.mxu0 0
    %677 = vmatprep.subr.bf16.mxu0 0
    %678 = vmatpush1.bf16.msra.mxu0 0
    %679 = vmatprep.mubr.bf16.mxu0 0
    %680 = vmatmul.mubr.bf16.gmra.mrb[0].mxu0 %v523
    %v681 = vpop.f32.mrb[0].mxu0
    %v682 = vadd.f32 0.0, %v681
    %v683 = vpop.f32.mrb[0].mxu0
    %v684 = vpop.f32.mrb[0].mxu0
    %v685 = vpop.f32.mrb[0].mxu0
    %686 = vdwg.mxu0
    %v688 = vrot.slane %v682, 6
    %v690 = vadd.f32 %v384, %v688
    %s691 = scalar_lea.vmem %s3, 48
    %v692 = vld [vmem:[%s691] sm:$0xf]
    %v693 = vld [vmem:[%s691 + $0x4] sm:$0xf]
    %v694 = vld [vmem:[%s691 + $0x8] sm:$0xf]
    %v695 = vld [vmem:[%s691 + $0xc] sm:$0xf]
    %v700 = vunpack.c.l.b16 %v692
    %v701 = vunpack.c.l.b16 %v693
    %v702 = vunpack.c.l.b16 %v694
    %v703 = vunpack.c.l.b16 %v695
    %v704 = vpack.c.b16 %v701, %v700
    %v705 = vpack.c.b16 %v703, %v702
    %708 = vmatprep.subr.bf16.mxu0 0
    %709 = vmatpush1.bf16.msra.mxu0 %v704
    %710 = vmatprep.subr.bf16.mxu0 0
    %711 = vmatpush1.bf16.msra.mxu0 %v705
    %712 = vmatprep.subr.bf16.mxu0 0
    %713 = vmatpush1.bf16.msra.mxu0 0
    %714 = vmatprep.subr.bf16.mxu0 0
    %715 = vmatpush1.bf16.msra.mxu0 0
    %716 = vmatprep.subr.bf16.mxu0 0
    %717 = vmatpush1.bf16.msra.mxu0 0
    %718 = vmatprep.subr.bf16.mxu0 0
    %719 = vmatpush1.bf16.msra.mxu0 0
    %720 = vmatprep.subr.bf16.mxu0 0
    %721 = vmatpush1.bf16.msra.mxu0 0
    %722 = vmatprep.subr.bf16.mxu0 0
    %723 = vmatpush1.bf16.msra.mxu0 0
    %724 = vmatprep.subr.bf16.mxu0 0
    %725 = vmatpush1.bf16.msra.mxu0 0
    %726 = vmatprep.subr.bf16.mxu0 0
    %727 = vmatpush1.bf16.msra.mxu0 0
    %728 = vmatprep.subr.bf16.mxu0 0
    %729 = vmatpush1.bf16.msra.mxu0 0
    %730 = vmatprep.subr.bf16.mxu0 0
    %731 = vmatpush1.bf16.msra.mxu0 0
    %732 = vmatprep.subr.bf16.mxu0 0
    %733 = vmatpush1.bf16.msra.mxu0 0
    %734 = vmatprep.subr.bf16.mxu0 0
    %735 = vmatpush1.bf16.msra.mxu0 0
    %736 = vmatprep.subr.bf16.mxu0 0
    %737 = vmatpush1.bf16.msra.mxu0 0
    %738 = vmatprep.subr.bf16.mxu0 0
    %739 = vmatpush1.bf16.msra.mxu0 0
    %740 = vmatprep.mubr.bf16.mxu0 0
    %741 = vmatmul.mubr.bf16.gmra.mrb[0].mxu0 %v523
    %v742 = vpop.f32.mrb[0].mxu0
    %v743 = vadd.f32 0.0, %v742
    %v744 = vpop.f32.mrb[0].mxu0
    %v745 = vpop.f32.mrb[0].mxu0
    %v746 = vpop.f32.mrb[0].mxu0
    %747 = vdwg.mxu0
    %v749 = vrot.slane %v743, 6
    %v751 = vadd.f32 %v472, %v749
    %v752 = vxor.u32 %v568, 2147483648
    %v753 = vmul.f32 %v752, 1.442695
    %v754 = vpow.pop %v753
    %v755 = vadd.f32 %v754, 1.0
    %v756 = vrcp.pop %v755
    %v757 = vmul.f32 1.0, %v756
    %v758 = vxor.u32 %v629, 2147483648
    %v759 = vmul.f32 %v758, 1.442695
    %v760 = vpow.pop %v759
    %v761 = vadd.f32 %v760, 1.0
    %v762 = vrcp.pop %v761
    %v763 = vmul.f32 1.0, %v762
    %v764 = vtanh.pop %v690
    %v765 = vxor.u32 %v751, 2147483648
    %v766 = vmul.f32 %v765, 1.442695
    %v767 = vpow.pop %v766
    %v768 = vadd.f32 %v767, 1.0
    %v769 = vrcp.pop %v768
    %v770 = vmul.f32 1.0, %v769
    %v772 = vrot.slane %v501, 6
    %v774 = vmul.f32 %v763, %v772
    %v775 = vmul.f32 %v757, %v764
    %v776 = vadd.f32 %v774, %v775
    %v777 = vtanh.pop %v776
    %v778 = vmul.f32 %v770, %v777
    %v779 = vld [vmem:[#allocation7] sm:$0xf]
    %v780 = vld [vmem:[#allocation7 + $0x4] sm:$0xf]
    %v781 = vld [vmem:[#allocation7 + $0x8] sm:$0xf]
    %v782 = vld [vmem:[#allocation7 + $0xc] sm:$0xf]
    %v787 = vunpack.c.l.b16 %v779
    %v788 = vunpack.c.l.b16 %v780
    %v789 = vunpack.c.l.b16 %v781
    %v790 = vunpack.c.l.b16 %v782
    %v791 = vpack.c.b16 %v788, %v787
    %v792 = vpack.c.b16 %v790, %v789
    %795 = vmatprep.subr.bf16.mxu0 0
    %796 = vmatpush1.bf16.msra.mxu0 %v791
    %797 = vmatprep.subr.bf16.mxu0 0
    %798 = vmatpush1.bf16.msra.mxu0 %v792
    %799 = vmatprep.subr.bf16.mxu0 0
    %800 = vmatpush1.bf16.msra.mxu0 0
    %801 = vmatprep.subr.bf16.mxu0 0
    %802 = vmatpush1.bf16.msra.mxu0 0
    %803 = vmatprep.subr.bf16.mxu0 0
    %804 = vmatpush1.bf16.msra.mxu0 0
    %805 = vmatprep.subr.bf16.mxu0 0
    %806 = vmatpush1.bf16.msra.mxu0 0
    %807 = vmatprep.subr.bf16.mxu0 0
    %808 = vmatpush1.bf16.msra.mxu0 0
    %809 = vmatprep.subr.bf16.mxu0 0
    %810 = vmatpush1.bf16.msra.mxu0 0
    %811 = vmatprep.subr.bf16.mxu0 0
    %812 = vmatpush1.bf16.msra.mxu0 0
    %813 = vmatprep.subr.bf16.mxu0 0
    %814 = vmatpush1.bf16.msra.mxu0 0
    %815 = vmatprep.subr.bf16.mxu0 0
    %816 = vmatpush1.bf16.msra.mxu0 0
    %817 = vmatprep.subr.bf16.mxu0 0
    %818 = vmatpush1.bf16.msra.mxu0 0
    %819 = vmatprep.subr.bf16.mxu0 0
    %820 = vmatpush1.bf16.msra.mxu0 0
    %821 = vmatprep.subr.bf16.mxu0 0
    %822 = vmatpush1.bf16.msra.mxu0 0
    %823 = vmatprep.subr.bf16.mxu0 0
    %824 = vmatpush1.bf16.msra.mxu0 0
    %825 = vmatprep.subr.bf16.mxu0 0
    %826 = vmatpush1.bf16.msra.mxu0 0
    %827 = vmatprep.mubr.bf16.mxu0 0
    %828 = vmatmul.mubr.bf16.gmra.mrb[0].mxu0 %v523
    %v829 = vpop.f32.mrb[0].mxu0
    %v830 = vadd.f32 0.0, %v829
    %v831 = vpop.f32.mrb[0].mxu0
    %v832 = vpop.f32.mrb[0].mxu0
    %v833 = vpop.f32.mrb[0].mxu0
    %834 = vdwg.mxu0
    %v835 = vadd.f32 %v94, %v830
    %v836 = vld [vmem:[#allocation8] sm:$0xf]
    %v837 = vld [vmem:[#allocation8 + $0x4] sm:$0xf]
    %v838 = vld [vmem:[#allocation8 + $0x8] sm:$0xf]
    %v839 = vld [vmem:[#allocation8 + $0xc] sm:$0xf]
    %v844 = vunpack.c.l.b16 %v836
    %v845 = vunpack.c.l.b16 %v837
    %v846 = vunpack.c.l.b16 %v838
    %v847 = vunpack.c.l.b16 %v839
    %v848 = vpack.c.b16 %v845, %v844
    %v849 = vpack.c.b16 %v847, %v846
    %v853 = vsel %vm521, 0, 0
    %855 = vmatprep.subr.bf16.mxu0 0
    %856 = vmatpush1.bf16.msra.mxu0 %v848
    %857 = vmatprep.subr.bf16.mxu0 0
    %858 = vmatpush1.bf16.msra.mxu0 %v849
    %859 = vmatprep.subr.bf16.mxu0 0
    %860 = vmatpush1.bf16.msra.mxu0 0
    %861 = vmatprep.subr.bf16.mxu0 0
    %862 = vmatpush1.bf16.msra.mxu0 0
    %863 = vmatprep.subr.bf16.mxu0 0
    %864 = vmatpush1.bf16.msra.mxu0 0
    %865 = vmatprep.subr.bf16.mxu0 0
    %866 = vmatpush1.bf16.msra.mxu0 0
    %867 = vmatprep.subr.bf16.mxu0 0
    %868 = vmatpush1.bf16.msra.mxu0 0
    %869 = vmatprep.subr.bf16.mxu0 0
    %870 = vmatpush1.bf16.msra.mxu0 0
    %871 = vmatprep.subr.bf16.mxu0 0
    %872 = vmatpush1.bf16.msra.mxu0 0
    %873 = vmatprep.subr.bf16.mxu0 0
    %874 = vmatpush1.bf16.msra.mxu0 0
    %875 = vmatprep.subr.bf16.mxu0 0
    %876 = vmatpush1.bf16.msra.mxu0 0
    %877 = vmatprep.subr.bf16.mxu0 0
    %878 = vmatpush1.bf16.msra.mxu0 0
    %879 = vmatprep.subr.bf16.mxu0 0
    %880 = vmatpush1.bf16.msra.mxu0 0
    %881 = vmatprep.subr.bf16.mxu0 0
    %882 = vmatpush1.bf16.msra.mxu0 0
    %883 = vmatprep.subr.bf16.mxu0 0
    %884 = vmatpush1.bf16.msra.mxu0 0
    %885 = vmatprep.subr.bf16.mxu0 0
    %886 = vmatpush1.bf16.msra.mxu0 0
    %887 = vmatprep.mubr.bf16.mxu0 0
    %888 = vmatmul.mubr.bf16.gmra.mrb[0].mxu0 %v853
    %v889 = vpop.f32.mrb[0].mxu0
    %v890 = vadd.f32 0.0, %v889
    %v891 = vpop.f32.mrb[0].mxu0
    %v892 = vpop.f32.mrb[0].mxu0
    %v893 = vpop.f32.mrb[0].mxu0
    %894 = vdwg.mxu0
    %v895 = vadd.f32 %v835, %v890
    %s896 = scalar_lea.vmem [#allocation7], 16
    %v897 = vld [vmem:[%s896] sm:$0xf]
    %v898 = vld [vmem:[%s896 + $0x4] sm:$0xf]
    %v899 = vld [vmem:[%s896 + $0x8] sm:$0xf]
    %v900 = vld [vmem:[%s896 + $0xc] sm:$0xf]
    %v905 = vunpack.c.l.b16 %v897
    %v906 = vunpack.c.l.b16 %v898
    %v907 = vunpack.c.l.b16 %v899
    %v908 = vunpack.c.l.b16 %v900
    %v909 = vpack.c.b16 %v906, %v905
    %v910 = vpack.c.b16 %v908, %v907
    %913 = vmatprep.subr.bf16.mxu0 0
    %914 = vmatpush1.bf16.msra.mxu0 %v909
    %915 = vmatprep.subr.bf16.mxu0 0
    %916 = vmatpush1.bf16.msra.mxu0 %v910
    %917 = vmatprep.subr.bf16.mxu0 0
    %918 = vmatpush1.bf16.msra.mxu0 0
    %919 = vmatprep.subr.bf16.mxu0 0
    %920 = vmatpush1.bf16.msra.mxu0 0
    %921 = vmatprep.subr.bf16.mxu0 0
    %922 = vmatpush1.bf16.msra.mxu0 0
    %923 = vmatprep.subr.bf16.mxu0 0
    %924 = vmatpush1.bf16.msra.mxu0 0
    %925 = vmatprep.subr.bf16.mxu0 0
    %926 = vmatpush1.bf16.msra.mxu0 0
    %927 = vmatprep.subr.bf16.mxu0 0
    %928 = vmatpush1.bf16.msra.mxu0 0
    %929 = vmatprep.subr.bf16.mxu0 0
    %930 = vmatpush1.bf16.msra.mxu0 0
    %931 = vmatprep.subr.bf16.mxu0 0
    %932 = vmatpush1.bf16.msra.mxu0 0
    %933 = vmatprep.subr.bf16.mxu0 0
    %934 = vmatpush1.bf16.msra.mxu0 0
    %935 = vmatprep.subr.bf16.mxu0 0
    %936 = vmatpush1.bf16.msra.mxu0 0
    %937 = vmatprep.subr.bf16.mxu0 0
    %938 = vmatpush1.bf16.msra.mxu0 0
    %939 = vmatprep.subr.bf16.mxu0 0
    %940 = vmatpush1.bf16.msra.mxu0 0
    %941 = vmatprep.subr.bf16.mxu0 0
    %942 = vmatpush1.bf16.msra.mxu0 0
    %943 = vmatprep.subr.bf16.mxu0 0
    %944 = vmatpush1.bf16.msra.mxu0 0
    %945 = vmatprep.mubr.bf16.mxu0 0
    %946 = vmatmul.mubr.bf16.gmra.mrb[0].mxu0 %v523
    %v947 = vpop.f32.mrb[0].mxu0
    %v948 = vadd.f32 0.0, %v947
    %v949 = vpop.f32.mrb[0].mxu0
    %v950 = vpop.f32.mrb[0].mxu0
    %v951 = vpop.f32.mrb[0].mxu0
    %952 = vdwg.mxu0
    %v953 = vadd.f32 %v102, %v948
    %s954 = scalar_lea.vmem [#allocation8], 16
    %v955 = vld [vmem:[%s954] sm:$0xf]
    %v956 = vld [vmem:[%s954 + $0x4] sm:$0xf]
    %v957 = vld [vmem:[%s954 + $0x8] sm:$0xf]
    %v958 = vld [vmem:[%s954 + $0xc] sm:$0xf]
    %v963 = vunpack.c.l.b16 %v955
    %v964 = vunpack.c.l.b16 %v956
    %v965 = vunpack.c.l.b16 %v957
    %v966 = vunpack.c.l.b16 %v958
    %v967 = vpack.c.b16 %v964, %v963
    %v968 = vpack.c.b16 %v966, %v965
    %971 = vmatprep.subr.bf16.mxu0 0
    %972 = vmatpush1.bf16.msra.mxu0 %v967
    %973 = vmatprep.subr.bf16.mxu0 0
    %974 = vmatpush1.bf16.msra.mxu0 %v968
    %975 = vmatprep.subr.bf16.mxu0 0
    %976 = vmatpush1.bf16.msra.mxu0 0
    %977 = vmatprep.subr.bf16.mxu0 0
    %978 = vmatpush1.bf16.msra.mxu0 0
    %979 = vmatprep.subr.bf16.mxu0 0
    %980 = vmatpush1.bf16.msra.mxu0 0
    %981 = vmatprep.subr.bf16.mxu0 0
    %982 = vmatpush1.bf16.msra.mxu0 0
    %983 = vmatprep.subr.bf16.mxu0 0
    %984 = vmatpush1.bf16.msra.mxu0 0
    %985 = vmatprep.subr.bf16.mxu0 0
    %986 = vmatpush1.bf16.msra.mxu0 0
    %987 = vmatprep.subr.bf16.mxu0 0
    %988 = vmatpush1.bf16.msra.mxu0 0
    %989 = vmatprep.subr.bf16.mxu0 0
    %990 = vmatpush1.bf16.msra.mxu0 0
    %991 = vmatprep.subr.bf16.mxu0 0
    %992 = vmatpush1.bf16.msra.mxu0 0
    %993 = vmatprep.subr.bf16.mxu0 0
    %994 = vmatpush1.bf16.msra.mxu0 0
    %995 = vmatprep.subr.bf16.mxu0 0
    %996 = vmatpush1.bf16.msra.mxu0 0
    %997 = vmatprep.subr.bf16.mxu0 0
    %998 = vmatpush1.bf16.msra.mxu0 0
    %999 = vmatprep.subr.bf16.mxu0 0
    %1000 = vmatpush1.bf16.msra.mxu0 0
    %1001 = vmatprep.subr.bf16.mxu0 0
    %1002 = vmatpush1.bf16.msra.mxu0 0
    %1003 = vmatprep.mubr.bf16.mxu0 0
    %1004 = vmatmul.mubr.bf16.gmra.mrb[0].mxu0 %v853
    %v1005 = vpop.f32.mrb[0].mxu0
    %v1006 = vadd.f32 0.0, %v1005
    %v1007 = vpop.f32.mrb[0].mxu0
    %v1008 = vpop.f32.mrb[0].mxu0
    %v1009 = vpop.f32.mrb[0].mxu0
    %1010 = vdwg.mxu0
    %v1011 = vadd.f32 %v953, %v1006
    %s1012 = scalar_lea.vmem [#allocation7], 32
    %v1013 = vld [vmem:[%s1012] sm:$0xf]
    %v1014 = vld [vmem:[%s1012 + $0x4] sm:$0xf]
    %v1015 = vld [vmem:[%s1012 + $0x8] sm:$0xf]
    %v1016 = vld [vmem:[%s1012 + $0xc] sm:$0xf]
    %v1021 = vunpack.c.l.b16 %v1013
    %v1022 = vunpack.c.l.b16 %v1014
    %v1023 = vunpack.c.l.b16 %v1015
    %v1024 = vunpack.c.l.b16 %v1016
    %v1025 = vpack.c.b16 %v1022, %v1021
    %v1026 = vpack.c.b16 %v1024, %v1023
    %1029 = vmatprep.subr.bf16.mxu0 0
    %1030 = vmatpush1.bf16.msra.mxu0 %v1025
    %1031 = vmatprep.subr.bf16.mxu0 0
    %1032 = vmatpush1.bf16.msra.mxu0 %v1026
    %1033 = vmatprep.subr.bf16.mxu0 0
    %1034 = vmatpush1.bf16.msra.mxu0 0
    %1035 = vmatprep.subr.bf16.mxu0 0
    %1036 = vmatpush1.bf16.msra.mxu0 0
    %1037 = vmatprep.subr.bf16.mxu0 0
    %1038 = vmatpush1.bf16.msra.mxu0 0
    %1039 = vmatprep.subr.bf16.mxu0 0
    %1040 = vmatpush1.bf16.msra.mxu0 0
    %1041 = vmatprep.subr.bf16.mxu0 0
    %1042 = vmatpush1.bf16.msra.mxu0 0
    %1043 = vmatprep.subr.bf16.mxu0 0
    %1044 = vmatpush1.bf16.msra.mxu0 0
    %1045 = vmatprep.subr.bf16.mxu0 0
    %1046 = vmatpush1.bf16.msra.mxu0 0
    %1047 = vmatprep.subr.bf16.mxu0 0
    %1048 = vmatpush1.bf16.msra.mxu0 0
    %1049 = vmatprep.subr.bf16.mxu0 0
    %1050 = vmatpush1.bf16.msra.mxu0 0
    %1051 = vmatprep.subr.bf16.mxu0 0
    %1052 = vmatpush1.bf16.msra.mxu0 0
    %1053 = vmatprep.subr.bf16.mxu0 0
    %1054 = vmatpush1.bf16.msra.mxu0 0
    %1055 = vmatprep.subr.bf16.mxu0 0
    %1056 = vmatpush1.bf16.msra.mxu0 0
    %1057 = vmatprep.subr.bf16.mxu0 0
    %1058 = vmatpush1.bf16.msra.mxu0 0
    %1059 = vmatprep.subr.bf16.mxu0 0
    %1060 = vmatpush1.bf16.msra.mxu0 0
    %1061 = vmatprep.mubr.bf16.mxu0 0
    %1062 = vmatmul.mubr.bf16.gmra.mrb[0].mxu0 %v523
    %v1063 = vpop.f32.mrb[0].mxu0
    %v1064 = vadd.f32 0.0, %v1063
    %v1065 = vpop.f32.mrb[0].mxu0
    %v1066 = vpop.f32.mrb[0].mxu0
    %v1067 = vpop.f32.mrb[0].mxu0
    %1068 = vdwg.mxu0
    %v1069 = vadd.f32 %v110, %v1064
    %s1070 = scalar_lea.vmem [#allocation8], 32
    %v1071 = vld [vmem:[%s1070] sm:$0xf]
    %v1072 = vld [vmem:[%s1070 + $0x4] sm:$0xf]
    %v1073 = vld [vmem:[%s1070 + $0x8] sm:$0xf]
    %v1074 = vld [vmem:[%s1070 + $0xc] sm:$0xf]
    %v1079 = vunpack.c.l.b16 %v1071
    %v1080 = vunpack.c.l.b16 %v1072
    %v1081 = vunpack.c.l.b16 %v1073
    %v1082 = vunpack.c.l.b16 %v1074
    %v1083 = vpack.c.b16 %v1080, %v1079
    %v1084 = vpack.c.b16 %v1082, %v1081
    %1087 = vmatprep.subr.bf16.mxu0 0
    %1088 = vmatpush1.bf16.msra.mxu0 %v1083
    %1089 = vmatprep.subr.bf16.mxu0 0
    %1090 = vmatpush1.bf16.msra.mxu0 %v1084
    %1091 = vmatprep.subr.bf16.mxu0 0
    %1092 = vmatpush1.bf16.msra.mxu0 0
    %1093 = vmatprep.subr.bf16.mxu0 0
    %1094 = vmatpush1.bf16.msra.mxu0 0
    %1095 = vmatprep.subr.bf16.mxu0 0
    %1096 = vmatpush1.bf16.msra.mxu0 0
    %1097 = vmatprep.subr.bf16.mxu0 0
    %1098 = vmatpush1.bf16.msra.mxu0 0
    %1099 = vmatprep.subr.bf16.mxu0 0
    %1100 = vmatpush1.bf16.msra.mxu0 0
    %1101 = vmatprep.subr.bf16.mxu0 0
    %1102 = vmatpush1.bf16.msra.mxu0 0
    %1103 = vmatprep.subr.bf16.mxu0 0
    %1104 = vmatpush1.bf16.msra.mxu0 0
    %1105 = vmatprep.subr.bf16.mxu0 0
    %1106 = vmatpush1.bf16.msra.mxu0 0
    %1107 = vmatprep.subr.bf16.mxu0 0
    %1108 = vmatpush1.bf16.msra.mxu0 0
    %1109 = vmatprep.subr.bf16.mxu0 0
    %1110 = vmatpush1.bf16.msra.mxu0 0
    %1111 = vmatprep.subr.bf16.mxu0 0
    %1112 = vmatpush1.bf16.msra.mxu0 0
    %1113 = vmatprep.subr.bf16.mxu0 0
    %1114 = vmatpush1.bf16.msra.mxu0 0
    %1115 = vmatprep.subr.bf16.mxu0 0
    %1116 = vmatpush1.bf16.msra.mxu0 0
    %1117 = vmatprep.subr.bf16.mxu0 0
    %1118 = vmatpush1.bf16.msra.mxu0 0
    %1119 = vmatprep.mubr.bf16.mxu0 0
    %1120 = vmatmul.mubr.bf16.gmra.mrb[0].mxu0 %v853
    %v1121 = vpop.f32.mrb[0].mxu0
    %v1122 = vadd.f32 0.0, %v1121
    %v1123 = vpop.f32.mrb[0].mxu0
    %v1124 = vpop.f32.mrb[0].mxu0
    %v1125 = vpop.f32.mrb[0].mxu0
    %1126 = vdwg.mxu0
    %v1127 = vadd.f32 %v1069, %v1122
    %s1128 = scalar_lea.vmem [#allocation7], 48
    %v1129 = vld [vmem:[%s1128] sm:$0xf]
    %v1130 = vld [vmem:[%s1128 + $0x4] sm:$0xf]
    %v1131 = vld [vmem:[%s1128 + $0x8] sm:$0xf]
    %v1132 = vld [vmem:[%s1128 + $0xc] sm:$0xf]
    %v1137 = vunpack.c.l.b16 %v1129
    %v1138 = vunpack.c.l.b16 %v1130
    %v1139 = vunpack.c.l.b16 %v1131
    %v1140 = vunpack.c.l.b16 %v1132
    %v1141 = vpack.c.b16 %v1138, %v1137
    %v1142 = vpack.c.b16 %v1140, %v1139
    %1145 = vmatprep.subr.bf16.mxu0 0
    %1146 = vmatpush1.bf16.msra.mxu0 %v1141
    %1147 = vmatprep.subr.bf16.mxu0 0
    %1148 = vmatpush1.bf16.msra.mxu0 %v1142
    %1149 = vmatprep.subr.bf16.mxu0 0
    %1150 = vmatpush1.bf16.msra.mxu0 0
    %1151 = vmatprep.subr.bf16.mxu0 0
    %1152 = vmatpush1.bf16.msra.mxu0 0
    %1153 = vmatprep.subr.bf16.mxu0 0
    %1154 = vmatpush1.bf16.msra.mxu0 0
    %1155 = vmatprep.subr.bf16.mxu0 0
    %1156 = vmatpush1.bf16.msra.mxu0 0
    %1157 = vmatprep.subr.bf16.mxu0 0
    %1158 = vmatpush1.bf16.msra.mxu0 0
    %1159 = vmatprep.subr.bf16.mxu0 0
    %1160 = vmatpush1.bf16.msra.mxu0 0
    %1161 = vmatprep.subr.bf16.mxu0 0
    %1162 = vmatpush1.bf16.msra.mxu0 0
    %1163 = vmatprep.subr.bf16.mxu0 0
    %1164 = vmatpush1.bf16.msra.mxu0 0
    %1165 = vmatprep.subr.bf16.mxu0 0
    %1166 = vmatpush1.bf16.msra.mxu0 0
    %1167 = vmatprep.subr.bf16.mxu0 0
    %1168 = vmatpush1.bf16.msra.mxu0 0
    %1169 = vmatprep.subr.bf16.mxu0 0
    %1170 = vmatpush1.bf16.msra.mxu0 0
    %1171 = vmatprep.subr.bf16.mxu0 0
    %1172 = vmatpush1.bf16.msra.mxu0 0
    %1173 = vmatprep.subr.bf16.mxu0 0
    %1174 = vmatpush1.bf16.msra.mxu0 0
    %1175 = vmatprep.subr.bf16.mxu0 0
    %1176 = vmatpush1.bf16.msra.mxu0 0
    %1177 = vmatprep.mubr.bf16.mxu0 0
    %1178 = vmatmul.mubr.bf16.gmra.mrb[0].mxu0 %v523
    %v1179 = vpop.f32.mrb[0].mxu0
    %v1180 = vadd.f32 0.0, %v1179
    %v1181 = vpop.f32.mrb[0].mxu0
    %v1182 = vpop.f32.mrb[0].mxu0
    %v1183 = vpop.f32.mrb[0].mxu0
    %1184 = vdwg.mxu0
    %v1185 = vadd.f32 %v118, %v1180
    %s1186 = scalar_lea.vmem [#allocation8], 48
    %v1187 = vld [vmem:[%s1186] sm:$0xf]
    %v1188 = vld [vmem:[%s1186 + $0x4] sm:$0xf]
    %v1189 = vld [vmem:[%s1186 + $0x8] sm:$0xf]
    %v1190 = vld [vmem:[%s1186 + $0xc] sm:$0xf]
    %v1195 = vunpack.c.l.b16 %v1187
    %v1196 = vunpack.c.l.b16 %v1188
    %v1197 = vunpack.c.l.b16 %v1189
    %v1198 = vunpack.c.l.b16 %v1190
    %v1199 = vpack.c.b16 %v1196, %v1195
    %v1200 = vpack.c.b16 %v1198, %v1197
    %1203 = vmatprep.subr.bf16.mxu0 0
    %1204 = vmatpush1.bf16.msra.mxu0 %v1199
    %1205 = vmatprep.subr.bf16.mxu0 0
    %1206 = vmatpush1.bf16.msra.mxu0 %v1200
    %1207 = vmatprep.subr.bf16.mxu0 0
    %1208 = vmatpush1.bf16.msra.mxu0 0
    %1209 = vmatprep.subr.bf16.mxu0 0
    %1210 = vmatpush1.bf16.msra.mxu0 0
    %1211 = vmatprep.subr.bf16.mxu0 0
    %1212 = vmatpush1.bf16.msra.mxu0 0
    %1213 = vmatprep.subr.bf16.mxu0 0
    %1214 = vmatpush1.bf16.msra.mxu0 0
    %1215 = vmatprep.subr.bf16.mxu0 0
    %1216 = vmatpush1.bf16.msra.mxu0 0
    %1217 = vmatprep.subr.bf16.mxu0 0
    %1218 = vmatpush1.bf16.msra.mxu0 0
    %1219 = vmatprep.subr.bf16.mxu0 0
    %1220 = vmatpush1.bf16.msra.mxu0 0
    %1221 = vmatprep.subr.bf16.mxu0 0
    %1222 = vmatpush1.bf16.msra.mxu0 0
    %1223 = vmatprep.subr.bf16.mxu0 0
    %1224 = vmatpush1.bf16.msra.mxu0 0
    %1225 = vmatprep.subr.bf16.mxu0 0
    %1226 = vmatpush1.bf16.msra.mxu0 0
    %1227 = vmatprep.subr.bf16.mxu0 0
    %1228 = vmatpush1.bf16.msra.mxu0 0
    %1229 = vmatprep.subr.bf16.mxu0 0
    %1230 = vmatpush1.bf16.msra.mxu0 0
    %1231 = vmatprep.subr.bf16.mxu0 0
    %1232 = vmatpush1.bf16.msra.mxu0 0
    %1233 = vmatprep.subr.bf16.mxu0 0
    %1234 = vmatpush1.bf16.msra.mxu0 0
    %1235 = vmatprep.mubr.bf16.mxu0 0
    %1236 = vmatmul.mubr.bf16.gmra.mrb[0].mxu0 %v853
    %v1237 = vpop.f32.mrb[0].mxu0
    %v1238 = vadd.f32 0.0, %v1237
    %v1239 = vpop.f32.mrb[0].mxu0
    %v1240 = vpop.f32.mrb[0].mxu0
    %v1241 = vpop.f32.mrb[0].mxu0
    %1242 = vdwg.mxu0
    %v1243 = vadd.f32 %v1185, %v1238
    %v1244 = vxor.u32 %v895, 2147483648
    %v1245 = vmul.f32 %v1244, 1.442695
    %v1246 = vpow.pop %v1245
    %v1247 = vadd.f32 %v1246, 1.0
    %v1248 = vrcp.pop %v1247
    %v1249 = vmul.f32 1.0, %v1248
    %v1250 = vxor.u32 %v1011, 2147483648
    %v1251 = vmul.f32 %v1250, 1.442695
    %v1252 = vpow.pop %v1251
    %v1253 = vadd.f32 %v1252, 1.0
    %v1254 = vrcp.pop %v1253
    %v1255 = vmul.f32 1.0, %v1254
    %v1256 = vtanh.pop %v1127
    %v1257 = vxor.u32 %v1243, 2147483648
    %v1258 = vmul.f32 %v1257, 1.442695
    %v1259 = vpow.pop %v1258
    %v1260 = vadd.f32 %v1259, 1.0
    %v1261 = vrcp.pop %v1260
    %v1262 = vmul.f32 1.0, %v1261
    %v1263 = vmul.f32 %v1255, 0.0
    %v1264 = vmul.f32 %v1249, %v1256
    %v1265 = vadd.f32 %v1263, %v1264
    %v1266 = vtanh.pop %v1265
    %v1267 = vmul.f32 %v1262, %v1266
    %v1268 = vpack.c.bf16 %v778, %v778
    %v1269 = vpack.c.bf16 %v1267, %v1267
    %v1271 = vrot.slane %v1268, 1
    %v1273 = vsel %vm521, %v1271, 0
    %1275 = vmatprep.subr.bf16.mxu0 0
    %1276 = vmatpush1.bf16.msra.mxu0 %v517
    %1277 = vmatprep.subr.bf16.mxu0 0
    %1278 = vmatpush1.bf16.msra.mxu0 %v518
    %1279 = vmatprep.subr.bf16.mxu0 0
    %1280 = vmatpush1.bf16.msra.mxu0 0
    %1281 = vmatprep.subr.bf16.mxu0 0
    %1282 = vmatpush1.bf16.msra.mxu0 0
    %1283 = vmatprep.subr.bf16.mxu0 0
    %1284 = vmatpush1.bf16.msra.mxu0 0
    %1285 = vmatprep.subr.bf16.mxu0 0
    %1286 = vmatpush1.bf16.msra.mxu0 0
    %1287 = vmatprep.subr.bf16.mxu0 0
    %1288 = vmatpush1.bf16.msra.mxu0 0
    %1289 = vmatprep.subr.bf16.mxu0 0
    %1290 = vmatpush1.bf16.msra.mxu0 0
    %1291 = vmatprep.subr.bf16.mxu0 0
    %1292 = vmatpush1.bf16.msra.mxu0 0
    %1293 = vmatprep.subr.bf16.mxu0 0
    %1294 = vmatpush1.bf16.msra.mxu0 0
    %1295 = vmatprep.subr.bf16.mxu0 0
    %1296 = vmatpush1.bf16.msra.mxu0 0
    %1297 = vmatprep.subr.bf16.mxu0 0
    %1298 = vmatpush1.bf16.msra.mxu0 0
    %1299 = vmatprep.subr.bf16.mxu0 0
    %1300 = vmatpush1.bf16.msra.mxu0 0
    %1301 = vmatprep.subr.bf16.mxu0 0
    %1302 = vmatpush1.bf16.msra.mxu0 0
    %1303 = vmatprep.subr.bf16.mxu0 0
    %1304 = vmatpush1.bf16.msra.mxu0 0
    %1305 = vmatprep.subr.bf16.mxu0 0
    %1306 = vmatpush1.bf16.msra.mxu0 0
    %1307 = vmatprep.mubr.bf16.mxu0 0
    %1308 = vmatmul.mubr.bf16.gmra.mrb[0].mxu0 %v1273
    %v1309 = vpop.f32.mrb[0].mxu0
    %v1310 = vadd.f32 0.0, %v1309
    %v1311 = vpop.f32.mrb[0].mxu0
    %v1312 = vpop.f32.mrb[0].mxu0
    %v1313 = vpop.f32.mrb[0].mxu0
    %1314 = vdwg.mxu0
    %v1316 = vrot.slane %v1310, 4
    %v1318 = vadd.f32 %v208, %v1316
    %1319 = vmatprep.subr.bf16.mxu0 0
    %1320 = vmatpush1.bf16.msra.mxu0 %v582
    %1321 = vmatprep.subr.bf16.mxu0 0
    %1322 = vmatpush1.bf16.msra.mxu0 %v583
    %1323 = vmatprep.subr.bf16.mxu0 0
    %1324 = vmatpush1.bf16.msra.mxu0 0
    %1325 = vmatprep.subr.bf16.mxu0 0
    %1326 = vmatpush1.bf16.msra.mxu0 0
    %1327 = vmatprep.subr.bf16.mxu0 0
    %1328 = vmatpush1.bf16.msra.mxu0 0
    %1329 = vmatprep.subr.bf16.mxu0 0
    %1330 = vmatpush1.bf16.msra.mxu0 0
    %1331 = vmatprep.subr.bf16.mxu0 0
    %1332 = vmatpush1.bf16.msra.mxu0 0
    %1333 = vmatprep.subr.bf16.mxu0 0
    %1334 = vmatpush1.bf16.msra.mxu0 0
    %1335 = vmatprep.subr.bf16.mxu0 0
    %1336 = vmatpush1.bf16.msra.mxu0 0
    %1337 = vmatprep.subr.bf16.mxu0 0
    %1338 = vmatpush1.bf16.msra.mxu0 0
    %1339 = vmatprep.subr.bf16.mxu0 0
    %1340 = vmatpush1.bf16.msra.mxu0 0
    %1341 = vmatprep.subr.bf16.mxu0 0
    %1342 = vmatpush1.bf16.msra.mxu0 0
    %1343 = vmatprep.subr.bf16.mxu0 0
    %1344 = vmatpush1.bf16.msra.mxu0 0
    %1345 = vmatprep.subr.bf16.mxu0 0
    %1346 = vmatpush1.bf16.msra.mxu0 0
    %1347 = vmatprep.subr.bf16.mxu0 0
    %1348 = vmatpush1.bf16.msra.mxu0 0
    %1349 = vmatprep.subr.bf16.mxu0 0
    %1350 = vmatpush1.bf16.msra.mxu0 0
    %1351 = vmatprep.mubr.bf16.mxu0 0
    %1352 = vmatmul.mubr.bf16.gmra.mrb[0].mxu0 %v1273
    %v1353 = vpop.f32.mrb[0].mxu0
    %v1354 = vadd.f32 0.0, %v1353
    %v1355 = vpop.f32.mrb[0].mxu0
    %v1356 = vpop.f32.mrb[0].mxu0
    %v1357 = vpop.f32.mrb[0].mxu0
    %1358 = vdwg.mxu0
    %v1360 = vrot.slane %v1354, 4
    %v1362 = vadd.f32 %v296, %v1360
    %1363 = vmatprep.subr.bf16.mxu0 0
    %1364 = vmatpush1.bf16.msra.mxu0 %v643
    %1365 = vmatprep.subr.bf16.mxu0 0
    %1366 = vmatpush1.bf16.msra.mxu0 %v644
    %1367 = vmatprep.subr.bf16.mxu0 0
    %1368 = vmatpush1.bf16.msra.mxu0 0
    %1369 = vmatprep.subr.bf16.mxu0 0
    %1370 = vmatpush1.bf16.msra.mxu0 0
    %1371 = vmatprep.subr.bf16.mxu0 0
    %1372 = vmatpush1.bf16.msra.mxu0 0
    %1373 = vmatprep.subr.bf16.mxu0 0
    %1374 = vmatpush1.bf16.msra.mxu0 0
    %1375 = vmatprep.subr.bf16.mxu0 0
    %1376 = vmatpush1.bf16.msra.mxu0 0
    %1377 = vmatprep.subr.bf16.mxu0 0
    %1378 = vmatpush1.bf16.msra.mxu0 0
    %1379 = vmatprep.subr.bf16.mxu0 0
    %1380 = vmatpush1.bf16.msra.mxu0 0
    %1381 = vmatprep.subr.bf16.mxu0 0
    %1382 = vmatpush1.bf16.msra.mxu0 0
    %1383 = vmatprep.subr.bf16.mxu0 0
    %1384 = vmatpush1.bf16.msra.mxu0 0
    %1385 = vmatprep.subr.bf16.mxu0 0
    %1386 = vmatpush1.bf16.msra.mxu0 0
    %1387 = vmatprep.subr.bf16.mxu0 0
    %1388 = vmatpush1.bf16.msra.mxu0 0
    %1389 = vmatprep.subr.bf16.mxu0 0
    %1390 = vmatpush1.bf16.msra.mxu0 0
    %1391 = vmatprep.subr.bf16.mxu0 0
    %1392 = vmatpush1.bf16.msra.mxu0 0
    %1393 = vmatprep.subr.bf16.mxu0 0
    %1394 = vmatpush1.bf16.msra.mxu0 0
    %1395 = vmatprep.mubr.bf16.mxu0 0
    %1396 = vmatmul.mubr.bf16.gmra.mrb[0].mxu0 %v1273
    %v1397 = vpop.f32.mrb[0].mxu0
    %v1398 = vadd.f32 0.0, %v1397
    %v1399 = vpop.f32.mrb[0].mxu0
    %v1400 = vpop.f32.mrb[0].mxu0
    %v1401 = vpop.f32.mrb[0].mxu0
    %1402 = vdwg.mxu0
    %v1404 = vrot.slane %v1398, 4
    %v1406 = vadd.f32 %v384, %v1404
    %1407 = vmatprep.subr.bf16.mxu0 0
    %1408 = vmatpush1.bf16.msra.mxu0 %v704
    %1409 = vmatprep.subr.bf16.mxu0 0
    %1410 = vmatpush1.bf16.msra.mxu0 %v705
    %1411 = vmatprep.subr.bf16.mxu0 0
    %1412 = vmatpush1.bf16.msra.mxu0 0
    %1413 = vmatprep.subr.bf16.mxu0 0
    %1414 = vmatpush1.bf16.msra.mxu0 0
    %1415 = vmatprep.subr.bf16.mxu0 0
    %1416 = vmatpush1.bf16.msra.mxu0 0
    %1417 = vmatprep.subr.bf16.mxu0 0
    %1418 = vmatpush1.bf16.msra.mxu0 0
    %1419 = vmatprep.subr.bf16.mxu0 0
    %1420 = vmatpush1.bf16.msra.mxu0 0
    %1421 = vmatprep.subr.bf16.mxu0 0
    %1422 = vmatpush1.bf16.msra.mxu0 0
    %1423 = vmatprep.subr.bf16.mxu0 0
    %1424 = vmatpush1.bf16.msra.mxu0 0
    %1425 = vmatprep.subr.bf16.mxu0 0
    %1426 = vmatpush1.bf16.msra.mxu0 0
    %1427 = vmatprep.subr.bf16.mxu0 0
    %1428 = vmatpush1.bf16.msra.mxu0 0
    %1429 = vmatprep.subr.bf16.mxu0 0
    %1430 = vmatpush1.bf16.msra.mxu0 0
    %1431 = vmatprep.subr.bf16.mxu0 0
    %1432 = vmatpush1.bf16.msra.mxu0 0
    %1433 = vmatprep.subr.bf16.mxu0 0
    %1434 = vmatpush1.bf16.msra.mxu0 0
    %1435 = vmatprep.subr.bf16.mxu0 0
    %1436 = vmatpush1.bf16.msra.mxu0 0
    %1437 = vmatprep.subr.bf16.mxu0 0
    %1438 = vmatpush1.bf16.msra.mxu0 0
    %1439 = vmatprep.mubr.bf16.mxu0 0
    %1440 = vmatmul.mubr.bf16.gmra.mrb[0].mxu0 %v1273
    %v1441 = vpop.f32.mrb[0].mxu0
    %v1442 = vadd.f32 0.0, %v1441
    %v1443 = vpop.f32.mrb[0].mxu0
    %v1444 = vpop.f32.mrb[0].mxu0
    %v1445 = vpop.f32.mrb[0].mxu0
    %1446 = vdwg.mxu0
    %v1448 = vrot.slane %v1442, 4
    %v1450 = vadd.f32 %v472, %v1448
    %v1451 = vxor.u32 %v1318, 2147483648
    %v1452 = vmul.f32 %v1451, 1.442695
    %v1453 = vpow.pop %v1452
    %v1454 = vadd.f32 %v1453, 1.0
    %v1455 = vrcp.pop %v1454
    %v1456 = vmul.f32 1.0, %v1455
    %v1457 = vxor.u32 %v1362, 2147483648
    %v1458 = vmul.f32 %v1457, 1.442695
    %v1459 = vpow.pop %v1458
    %v1460 = vadd.f32 %v1459, 1.0
    %v1461 = vrcp.pop %v1460
    %v1462 = vmul.f32 1.0, %v1461
    %v1463 = vtanh.pop %v1406
    %v1464 = vxor.u32 %v1450, 2147483648
    %v1465 = vmul.f32 %v1464, 1.442695
    %v1466 = vpow.pop %v1465
    %v1467 = vadd.f32 %v1466, 1.0
    %v1468 = vrcp.pop %v1467
    %v1469 = vmul.f32 1.0, %v1468
    %v1471 = vrot.slane %v776, 6
    %v1473 = vmul.f32 %v1462, %v1471
    %v1474 = vmul.f32 %v1456, %v1463
    %v1475 = vadd.f32 %v1473, %v1474
    %v1476 = vtanh.pop %v1475
    %v1477 = vmul.f32 %v1469, %v1476
    %1478 = vmatprep.subr.bf16.mxu0 0
    %1479 = vmatpush1.bf16.msra.mxu0 %v791
    %1480 = vmatprep.subr.bf16.mxu0 0
    %1481 = vmatpush1.bf16.msra.mxu0 %v792
    %1482 = vmatprep.subr.bf16.mxu0 0
    %1483 = vmatpush1.bf16.msra.mxu0 0
    %1484 = vmatprep.subr.bf16.mxu0 0
    %1485 = vmatpush1.bf16.msra.mxu0 0
    %1486 = vmatprep.subr.bf16.mxu0 0
    %1487 = vmatpush1.bf16.msra.mxu0 0
    %1488 = vmatprep.subr.bf16.mxu0 0
    %1489 = vmatpush1.bf16.msra.mxu0 0
    %1490 = vmatprep.subr.bf16.mxu0 0
    %1491 = vmatpush1.bf16.msra.mxu0 0
    %1492 = vmatprep.subr.bf16.mxu0 0
    %1493 = vmatpush1.bf16.msra.mxu0 0
    %1494 = vmatprep.subr.bf16.mxu0 0
    %1495 = vmatpush1.bf16.msra.mxu0 0
    %1496 = vmatprep.subr.bf16.mxu0 0
    %1497 = vmatpush1.bf16.msra.mxu0 0
    %1498 = vmatprep.subr.bf16.mxu0 0
    %1499 = vmatpush1.bf16.msra.mxu0 0
    %1500 = vmatprep.subr.bf16.mxu0 0
    %1501 = vmatpush1.bf16.msra.mxu0 0
    %1502 = vmatprep.subr.bf16.mxu0 0
    %1503 = vmatpush1.bf16.msra.mxu0 0
    %1504 = vmatprep.subr.bf16.mxu0 0
    %1505 = vmatpush1.bf16.msra.mxu0 0
    %1506 = vmatprep.subr.bf16.mxu0 0
    %1507 = vmatpush1.bf16.msra.mxu0 0
    %1508 = vmatprep.subr.bf16.mxu0 0
    %1509 = vmatpush1.bf16.msra.mxu0 0
    %1510 = vmatprep.mubr.bf16.mxu0 0
    %1511 = vmatmul.mubr.bf16.gmra.mrb[0].mxu0 %v1273
    %v1512 = vpop.f32.mrb[0].mxu0
    %v1513 = vadd.f32 0.0, %v1512
    %v1514 = vpop.f32.mrb[0].mxu0
    %v1515 = vpop.f32.mrb[0].mxu0
    %v1516 = vpop.f32.mrb[0].mxu0
    %1517 = vdwg.mxu0
    %v1518 = vadd.f32 %v94, %v1513
    %v1520 = vsel %vm521, %v1269, 0
    %1522 = vmatprep.subr.bf16.mxu0 0
    %1523 = vmatpush1.bf16.msra.mxu0 %v848
    %1524 = vmatprep.subr.bf16.mxu0 0
    %1525 = vmatpush1.bf16.msra.mxu0 %v849
    %1526 = vmatprep.subr.bf16.mxu0 0
    %1527 = vmatpush1.bf16.msra.mxu0 0
    %1528 = vmatprep.subr.bf16.mxu0 0
    %1529 = vmatpush1.bf16.msra.mxu0 0
    %1530 = vmatprep.subr.bf16.mxu0 0
    %1531 = vmatpush1.bf16.msra.mxu0 0
    %1532 = vmatprep.subr.bf16.mxu0 0
    %1533 = vmatpush1.bf16.msra.mxu0 0
    %1534 = vmatprep.subr.bf16.mxu0 0
    %1535 = vmatpush1.bf16.msra.mxu0 0
    %1536 = vmatprep.subr.bf16.mxu0 0
    %1537 = vmatpush1.bf16.msra.mxu0 0
    %1538 = vmatprep.subr.bf16.mxu0 0
    %1539 = vmatpush1.bf16.msra.mxu0 0
    %1540 = vmatprep.subr.bf16.mxu0 0
    %1541 = vmatpush1.bf16.msra.mxu0 0
    %1542 = vmatprep.subr.bf16.mxu0 0
    %1543 = vmatpush1.bf16.msra.mxu0 0
    %1544 = vmatprep.subr.bf16.mxu0 0
    %1545 = vmatpush1.bf16.msra.mxu0 0
    %1546 = vmatprep.subr.bf16.mxu0 0
    %1547 = vmatpush1.bf16.msra.mxu0 0
    %1548 = vmatprep.subr.bf16.mxu0 0
    %1549 = vmatpush1.bf16.msra.mxu0 0
    %1550 = vmatprep.subr.bf16.mxu0 0
    %1551 = vmatpush1.bf16.msra.mxu0 0
    %1552 = vmatprep.subr.bf16.mxu0 0
    %1553 = vmatpush1.bf16.msra.mxu0 0
    %1554 = vmatprep.mubr.bf16.mxu0 0
    %1555 = vmatmul.mubr.bf16.gmra.mrb[0].mxu0 %v1520
    %v1556 = vpop.f32.mrb[0].mxu0
    %v1557 = vadd.f32 0.0, %v1556
    %v1558 = vpop.f32.mrb[0].mxu0
    %v1559 = vpop.f32.mrb[0].mxu0
    %v1560 = vpop.f32.mrb[0].mxu0
    %1561 = vdwg.mxu0
    %v1562 = vadd.f32 %v1518, %v1557
    %1563 = vmatprep.subr.bf16.mxu0 0
    %1564 = vmatpush1.bf16.msra.mxu0 %v909
    %1565 = vmatprep.subr.bf16.mxu0 0
    %1566 = vmatpush1.bf16.msra.mxu0 %v910
    %1567 = vmatprep.subr.bf16.mxu0 0
    %1568 = vmatpush1.bf16.msra.mxu0 0
    %1569 = vmatprep.subr.bf16.mxu0 0
    %1570 = vmatpush1.bf16.msra.mxu0 0
    %1571 = vmatprep.subr.bf16.mxu0 0
    %1572 = vmatpush1.bf16.msra.mxu0 0
    %1573 = vmatprep.subr.bf16.mxu0 0
    %1574 = vmatpush1.bf16.msra.mxu0 0
    %1575 = vmatprep.subr.bf16.mxu0 0
    %1576 = vmatpush1.bf16.msra.mxu0 0
    %1577 = vmatprep.subr.bf16.mxu0 0
    %1578 = vmatpush1.bf16.msra.mxu0 0
    %1579 = vmatprep.subr.bf16.mxu0 0
    %1580 = vmatpush1.bf16.msra.mxu0 0
    %1581 = vmatprep.subr.bf16.mxu0 0
    %1582 = vmatpush1.bf16.msra.mxu0 0
    %1583 = vmatprep.subr.bf16.mxu0 0
    %1584 = vmatpush1.bf16.msra.mxu0 0
    %1585 = vmatprep.subr.bf16.mxu0 0
    %1586 = vmatpush1.bf16.msra.mxu0 0
    %1587 = vmatprep.subr.bf16.mxu0 0
    %1588 = vmatpush1.bf16.msra.mxu0 0
    %1589 = vmatprep.subr.bf16.mxu0 0
    %1590 = vmatpush1.bf16.msra.mxu0 0
    %1591 = vmatprep.subr.bf16.mxu0 0
    %1592 = vmatpush1.bf16.msra.mxu0 0
    %1593 = vmatprep.subr.bf16.mxu0 0
    %1594 = vmatpush1.bf16.msra.mxu0 0
    %1595 = vmatprep.mubr.bf16.mxu0 0
    %1596 = vmatmul.mubr.bf16.gmra.mrb[0].mxu0 %v1273
    %v1597 = vpop.f32.mrb[0].mxu0
    %v1598 = vadd.f32 0.0, %v1597
    %v1599 = vpop.f32.mrb[0].mxu0
    %v1600 = vpop.f32.mrb[0].mxu0
    %v1601 = vpop.f32.mrb[0].mxu0
    %1602 = vdwg.mxu0
    %v1603 = vadd.f32 %v102, %v1598
    %1604 = vmatprep.subr.bf16.mxu0 0
    %1605 = vmatpush1.bf16.msra.mxu0 %v967
    %1606 = vmatprep.subr.bf16.mxu0 0
    %1607 = vmatpush1.bf16.msra.mxu0 %v968
    %1608 = vmatprep.subr.bf16.mxu0 0
    %1609 = vmatpush1.bf16.msra.mxu0 0
    %1610 = vmatprep.subr.bf16.mxu0 0
    %1611 = vmatpush1.bf16.msra.mxu0 0
    %1612 = vmatprep.subr.bf16.mxu0 0
    %1613 = vmatpush1.bf16.msra.mxu0 0
    %1614 = vmatprep.subr.bf16.mxu0 0
    %1615 = vmatpush1.bf16.msra.mxu0 0
    %1616 = vmatprep.subr.bf16.mxu0 0
    %1617 = vmatpush1.bf16.msra.mxu0 0
    %1618 = vmatprep.subr.bf16.mxu0 0
    %1619 = vmatpush1.bf16.msra.mxu0 0
    %1620 = vmatprep.subr.bf16.mxu0 0
    %1621 = vmatpush1.bf16.msra.mxu0 0
    %1622 = vmatprep.subr.bf16.mxu0 0
    %1623 = vmatpush1.bf16.msra.mxu0 0
    %1624 = vmatprep.subr.bf16.mxu0 0
    %1625 = vmatpush1.bf16.msra.mxu0 0
    %1626 = vmatprep.subr.bf16.mxu0 0
    %1627 = vmatpush1.bf16.msra.mxu0 0
    %1628 = vmatprep.subr.bf16.mxu0 0
    %1629 = vmatpush1.bf16.msra.mxu0 0
    %1630 = vmatprep.subr.bf16.mxu0 0
    %1631 = vmatpush1.bf16.msra.mxu0 0
    %1632 = vmatprep.subr.bf16.mxu0 0
    %1633 = vmatpush1.bf16.msra.mxu0 0
    %1634 = vmatprep.subr.bf16.mxu0 0
    %1635 = vmatpush1.bf16.msra.mxu0 0
    %1636 = vmatprep.mubr.bf16.mxu0 0
    %1637 = vmatmul.mubr.bf16.gmra.mrb[0].mxu0 %v1520
    %v1638 = vpop.f32.mrb[0].mxu0
    %v1639 = vadd.f32 0.0, %v1638
    %v1640 = vpop.f32.mrb[0].mxu0
    %v1641 = vpop.f32.mrb[0].mxu0
    %v1642 = vpop.f32.mrb[0].mxu0
    %1643 = vdwg.mxu0
    %v1644 = vadd.f32 %v1603, %v1639
    %1645 = vmatprep.subr.bf16.mxu0 0
    %1646 = vmatpush1.bf16.msra.mxu0 %v1025
    %1647 = vmatprep.subr.bf16.mxu0 0
    %1648 = vmatpush1.bf16.msra.mxu0 %v1026
    %1649 = vmatprep.subr.bf16.mxu0 0
    %1650 = vmatpush1.bf16.msra.mxu0 0
    %1651 = vmatprep.subr.bf16.mxu0 0
    %1652 = vmatpush1.bf16.msra.mxu0 0
    %1653 = vmatprep.subr.bf16.mxu0 0
    %1654 = vmatpush1.bf16.msra.mxu0 0
    %1655 = vmatprep.subr.bf16.mxu0 0
    %1656 = vmatpush1.bf16.msra.mxu0 0
    %1657 = vmatprep.subr.bf16.mxu0 0
    %1658 = vmatpush1.bf16.msra.mxu0 0
    %1659 = vmatprep.subr.bf16.mxu0 0
    %1660 = vmatpush1.bf16.msra.mxu0 0
    %1661 = vmatprep.subr.bf16.mxu0 0
    %1662 = vmatpush1.bf16.msra.mxu0 0
    %1663 = vmatprep.subr.bf16.mxu0 0
    %1664 = vmatpush1.bf16.msra.mxu0 0
    %1665 = vmatprep.subr.bf16.mxu0 0
    %1666 = vmatpush1.bf16.msra.mxu0 0
    %1667 = vmatprep.subr.bf16.mxu0 0
    %1668 = vmatpush1.bf16.msra.mxu0 0
    %1669 = vmatprep.subr.bf16.mxu0 0
    %1670 = vmatpush1.bf16.msra.mxu0 0
    %1671 = vmatprep.subr.bf16.mxu0 0
    %1672 = vmatpush1.bf16.msra.mxu0 0
    %1673 = vmatprep.subr.bf16.mxu0 0
    %1674 = vmatpush1.bf16.msra.mxu0 0
    %1675 = vmatprep.subr.bf16.mxu0 0
    %1676 = vmatpush1.bf16.msra.mxu0 0
    %1677 = vmatprep.mubr.bf16.mxu0 0
    %1678 = vmatmul.mubr.bf16.gmra.mrb[0].mxu0 %v1273
    %v1679 = vpop.f32.mrb[0].mxu0
    %v1680 = vadd.f32 0.0, %v1679
    %v1681 = vpop.f32.mrb[0].mxu0
    %v1682 = vpop.f32.mrb[0].mxu0
    %v1683 = vpop.f32.mrb[0].mxu0
    %1684 = vdwg.mxu0
    %v1685 = vadd.f32 %v110, %v1680
    %1686 = vmatprep.subr.bf16.mxu0 0
    %1687 = vmatpush1.bf16.msra.mxu0 %v1083
    %1688 = vmatprep.subr.bf16.mxu0 0
    %1689 = vmatpush1.bf16.msra.mxu0 %v1084
    %1690 = vmatprep.subr.bf16.mxu0 0
    %1691 = vmatpush1.bf16.msra.mxu0 0
    %1692 = vmatprep.subr.bf16.mxu0 0
    %1693 = vmatpush1.bf16.msra.mxu0 0
    %1694 = vmatprep.subr.bf16.mxu0 0
    %1695 = vmatpush1.bf16.msra.mxu0 0
    %1696 = vmatprep.subr.bf16.mxu0 0
    %1697 = vmatpush1.bf16.msra.mxu0 0
    %1698 = vmatprep.subr.bf16.mxu0 0
    %1699 = vmatpush1.bf16.msra.mxu0 0
    %1700 = vmatprep.subr.bf16.mxu0 0
    %1701 = vmatpush1.bf16.msra.mxu0 0
    %1702 = vmatprep.subr.bf16.mxu0 0
    %1703 = vmatpush1.bf16.msra.mxu0 0
    %1704 = vmatprep.subr.bf16.mxu0 0
    %1705 = vmatpush1.bf16.msra.mxu0 0
    %1706 = vmatprep.subr.bf16.mxu0 0
    %1707 = vmatpush1.bf16.msra.mxu0 0
    %1708 = vmatprep.subr.bf16.mxu0 0
    %1709 = vmatpush1.bf16.msra.mxu0 0
    %1710 = vmatprep.subr.bf16.mxu0 0
    %1711 = vmatpush1.bf16.msra.mxu0 0
    %1712 = vmatprep.subr.bf16.mxu0 0
    %1713 = vmatpush1.bf16.msra.mxu0 0
    %1714 = vmatprep.subr.bf16.mxu0 0
    %1715 = vmatpush1.bf16.msra.mxu0 0
    %1716 = vmatprep.subr.bf16.mxu0 0
    %1717 = vmatpush1.bf16.msra.mxu0 0
    %1718 = vmatprep.mubr.bf16.mxu0 0
    %1719 = vmatmul.mubr.bf16.gmra.mrb[0].mxu0 %v1520
    %v1720 = vpop.f32.mrb[0].mxu0
    %v1721 = vadd.f32 0.0, %v1720
    %v1722 = vpop.f32.mrb[0].mxu0
    %v1723 = vpop.f32.mrb[0].mxu0
    %v1724 = vpop.f32.mrb[0].mxu0
    %1725 = vdwg.mxu0
    %v1726 = vadd.f32 %v1685, %v1721
    %1727 = vmatprep.subr.bf16.mxu0 0
    %1728 = vmatpush1.bf16.msra.mxu0 %v1141
    %1729 = vmatprep.subr.bf16.mxu0 0
    %1730 = vmatpush1.bf16.msra.mxu0 %v1142
    %1731 = vmatprep.subr.bf16.mxu0 0
    %1732 = vmatpush1.bf16.msra.mxu0 0
    %1733 = vmatprep.subr.bf16.mxu0 0
    %1734 = vmatpush1.bf16.msra.mxu0 0
    %1735 = vmatprep.subr.bf16.mxu0 0
    %1736 = vmatpush1.bf16.msra.mxu0 0
    %1737 = vmatprep.subr.bf16.mxu0 0
    %1738 = vmatpush1.bf16.msra.mxu0 0
    %1739 = vmatprep.subr.bf16.mxu0 0
    %1740 = vmatpush1.bf16.msra.mxu0 0
    %1741 = vmatprep.subr.bf16.mxu0 0
    %1742 = vmatpush1.bf16.msra.mxu0 0
    %1743 = vmatprep.subr.bf16.mxu0 0
    %1744 = vmatpush1.bf16.msra.mxu0 0
    %1745 = vmatprep.subr.bf16.mxu0 0
    %1746 = vmatpush1.bf16.msra.mxu0 0
    %1747 = vmatprep.subr.bf16.mxu0 0
    %1748 = vmatpush1.bf16.msra.mxu0 0
    %1749 = vmatprep.subr.bf16.mxu0 0
    %1750 = vmatpush1.bf16.msra.mxu0 0
    %1751 = vmatprep.subr.bf16.mxu0 0
    %1752 = vmatpush1.bf16.msra.mxu0 0
    %1753 = vmatprep.subr.bf16.mxu0 0
    %1754 = vmatpush1.bf16.msra.mxu0 0
    %1755 = vmatprep.subr.bf16.mxu0 0
    %1756 = vmatpush1.bf16.msra.mxu0 0
    %1757 = vmatprep.subr.bf16.mxu0 0
    %1758 = vmatpush1.bf16.msra.mxu0 0
    %1759 = vmatprep.mubr.bf16.mxu0 0
    %1760 = vmatmul.mubr.bf16.gmra.mrb[0].mxu0 %v1273
    %v1761 = vpop.f32.mrb[0].mxu0
    %v1762 = vadd.f32 0.0, %v1761
    %v1763 = vpop.f32.mrb[0].mxu0
    %v1764 = vpop.f32.mrb[0].mxu0
    %v1765 = vpop.f32.mrb[0].mxu0
    %1766 = vdwg.mxu0
    %v1767 = vadd.f32 %v118, %v1762
    %1768 = vmatprep.subr.bf16.mxu0 0
    %1769 = vmatpush1.bf16.msra.mxu0 %v1199
    %1770 = vmatprep.subr.bf16.mxu0 0
    %1771 = vmatpush1.bf16.msra.mxu0 %v1200
    %1772 = vmatprep.subr.bf16.mxu0 0
    %1773 = vmatpush1.bf16.msra.mxu0 0
    %1774 = vmatprep.subr.bf16.mxu0 0
    %1775 = vmatpush1.bf16.msra.mxu0 0
    %1776 = vmatprep.subr.bf16.mxu0 0
    %1777 = vmatpush1.bf16.msra.mxu0 0
    %1778 = vmatprep.subr.bf16.mxu0 0
    %1779 = vmatpush1.bf16.msra.mxu0 0
    %1780 = vmatprep.subr.bf16.mxu0 0
    %1781 = vmatpush1.bf16.msra.mxu0 0
    %1782 = vmatprep.subr.bf16.mxu0 0
    %1783 = vmatpush1.bf16.msra.mxu0 0
    %1784 = vmatprep.subr.bf16.mxu0 0
    %1785 = vmatpush1.bf16.msra.mxu0 0
    %1786 = vmatprep.subr.bf16.mxu0 0
    %1787 = vmatpush1.bf16.msra.mxu0 0
    %1788 = vmatprep.subr.bf16.mxu0 0
    %1789 = vmatpush1.bf16.msra.mxu0 0
    %1790 = vmatprep.subr.bf16.mxu0 0
    %1791 = vmatpush1.bf16.msra.mxu0 0
    %1792 = vmatprep.subr.bf16.mxu0 0
    %1793 = vmatpush1.bf16.msra.mxu0 0
    %1794 = vmatprep.subr.bf16.mxu0 0
    %1795 = vmatpush1.bf16.msra.mxu0 0
    %1796 = vmatprep.subr.bf16.mxu0 0
    %1797 = vmatpush1.bf16.msra.mxu0 0
    %1798 = vmatprep.subr.bf16.mxu0 0
    %1799 = vmatpush1.bf16.msra.mxu0 0
    %1800 = vmatprep.mubr.bf16.mxu0 0
    %1801 = vmatmul.mubr.bf16.gmra.mrb[0].mxu0 %v1520
    %v1802 = vpop.f32.mrb[0].mxu0
    %v1803 = vadd.f32 0.0, %v1802
    %v1804 = vpop.f32.mrb[0].mxu0
    %v1805 = vpop.f32.mrb[0].mxu0
    %v1806 = vpop.f32.mrb[0].mxu0
    %1807 = vdwg.mxu0
    %v1808 = vadd.f32 %v1767, %v1803
    %v1809 = vxor.u32 %v1562, 2147483648
    %v1810 = vmul.f32 %v1809, 1.442695
    %v1811 = vpow.pop %v1810
    %v1812 = vadd.f32 %v1811, 1.0
    %v1813 = vrcp.pop %v1812
    %v1814 = vmul.f32 1.0, %v1813
    %v1815 = vxor.u32 %v1644, 2147483648
    %v1816 = vmul.f32 %v1815, 1.442695
    %v1817 = vpow.pop %v1816
    %v1818 = vadd.f32 %v1817, 1.0
    %v1819 = vrcp.pop %v1818
    %v1820 = vmul.f32 1.0, %v1819
    %v1821 = vtanh.pop %v1726
    %v1822 = vxor.u32 %v1808, 2147483648
    %v1823 = vmul.f32 %v1822, 1.442695
    %v1824 = vpow.pop %v1823
    %v1825 = vadd.f32 %v1824, 1.0
    %v1826 = vrcp.pop %v1825
    %v1827 = vmul.f32 1.0, %v1826
    %v1828 = vmul.f32 %v1820, %v1265
    %v1829 = vmul.f32 %v1814, %v1821
    %v1830 = vadd.f32 %v1828, %v1829
    %v1831 = vtanh.pop %v1830
    %v1832 = vmul.f32 %v1827, %v1831
    %v1833 = vpack.c.bf16 %v1477, %v1477
    %v1834 = vpack.c.bf16 %v1832, %v1832
    %v1836 = vrot.slane %v1833, 2
    %v1838 = vsel %vm521, %v1836, 0
    %1840 = vmatprep.subr.bf16.mxu0 0
    %1841 = vmatpush1.bf16.msra.mxu0 %v517
    %1842 = vmatprep.subr.bf16.mxu0 0
    %1843 = vmatpush1.bf16.msra.mxu0 %v518
    %1844 = vmatprep.subr.bf16.mxu0 0
    %1845 = vmatpush1.bf16.msra.mxu0 0
    %1846 = vmatprep.subr.bf16.mxu0 0
    %1847 = vmatpush1.bf16.msra.mxu0 0
    %1848 = vmatprep.subr.bf16.mxu0 0
    %1849 = vmatpush1.bf16.msra.mxu0 0
    %1850 = vmatprep.subr.bf16.mxu0 0
    %1851 = vmatpush1.bf16.msra.mxu0 0
    %1852 = vmatprep.subr.bf16.mxu0 0
    %1853 = vmatpush1.bf16.msra.mxu0 0
    %1854 = vmatprep.subr.bf16.mxu0 0
    %1855 = vmatpush1.bf16.msra.mxu0 0
    %1856 = vmatprep.subr.bf16.mxu0 0
    %1857 = vmatpush1.bf16.msra.mxu0 0
    %1858 = vmatprep.subr.bf16.mxu0 0
    %1859 = vmatpush1.bf16.msra.mxu0 0
    %1860 = vmatprep.subr.bf16.mxu0 0
    %1861 = vmatpush1.bf16.msra.mxu0 0
    %1862 = vmatprep.subr.bf16.mxu0 0
    %1863 = vmatpush1.bf16.msra.mxu0 0
    %1864 = vmatprep.subr.bf16.mxu0 0
    %1865 = vmatpush1.bf16.msra.mxu0 0
    %1866 = vmatprep.subr.bf16.mxu0 0
    %1867 = vmatpush1.bf16.msra.mxu0 0
    %1868 = vmatprep.subr.bf16.mxu0 0
    %1869 = vmatpush1.bf16.msra.mxu0 0
    %1870 = vmatprep.subr.bf16.mxu0 0
    %1871 = vmatpush1.bf16.msra.mxu0 0
    %1872 = vmatprep.mubr.bf16.mxu0 0
    %1873 = vmatmul.mubr.bf16.gmra.mrb[0].mxu0 %v1838
    %v1874 = vpop.f32.mrb[0].mxu0
    %v1875 = vadd.f32 0.0, %v1874
    %v1876 = vpop.f32.mrb[0].mxu0
    %v1877 = vpop.f32.mrb[0].mxu0
    %v1878 = vpop.f32.mrb[0].mxu0
    %1879 = vdwg.mxu0
    %v1881 = vrot.slane %v1875, 2
    %v1883 = vadd.f32 %v208, %v1881
    %1884 = vmatprep.subr.bf16.mxu0 0
    %1885 = vmatpush1.bf16.msra.mxu0 %v582
    %1886 = vmatprep.subr.bf16.mxu0 0
    %1887 = vmatpush1.bf16.msra.mxu0 %v583
    %1888 = vmatprep.subr.bf16.mxu0 0
    %1889 = vmatpush1.bf16.msra.mxu0 0
    %1890 = vmatprep.subr.bf16.mxu0 0
    %1891 = vmatpush1.bf16.msra.mxu0 0
    %1892 = vmatprep.subr.bf16.mxu0 0
    %1893 = vmatpush1.bf16.msra.mxu0 0
    %1894 = vmatprep.subr.bf16.mxu0 0
    %1895 = vmatpush1.bf16.msra.mxu0 0
    %1896 = vmatprep.subr.bf16.mxu0 0
    %1897 = vmatpush1.bf16.msra.mxu0 0
    %1898 = vmatprep.subr.bf16.mxu0 0
    %1899 = vmatpush1.bf16.msra.mxu0 0
    %1900 = vmatprep.subr.bf16.mxu0 0
    %1901 = vmatpush1.bf16.msra.mxu0 0
    %1902 = vmatprep.subr.bf16.mxu0 0
    %1903 = vmatpush1.bf16.msra.mxu0 0
    %1904 = vmatprep.subr.bf16.mxu0 0
    %1905 = vmatpush1.bf16.msra.mxu0 0
    %1906 = vmatprep.subr.bf16.mxu0 0
    %1907 = vmatpush1.bf16.msra.mxu0 0
    %1908 = vmatprep.subr.bf16.mxu0 0
    %1909 = vmatpush1.bf16.msra.mxu0 0
    %1910 = vmatprep.subr.bf16.mxu0 0
    %1911 = vmatpush1.bf16.msra.mxu0 0
    %1912 = vmatprep.subr.bf16.mxu0 0
    %1913 = vmatpush1.bf16.msra.mxu0 0
    %1914 = vmatprep.subr.bf16.mxu0 0
    %1915 = vmatpush1.bf16.msra.mxu0 0
    %1916 = vmatprep.mubr.bf16.mxu0 0
    %1917 = vmatmul.mubr.bf16.gmra.mrb[0].mxu0 %v1838
    %v1918 = vpop.f32.mrb[0].mxu0
    %v1919 = vadd.f32 0.0, %v1918
    %v1920 = vpop.f32.mrb[0].mxu0
    %v1921 = vpop.f32.mrb[0].mxu0
    %v1922 = vpop.f32.mrb[0].mxu0
    %1923 = vdwg.mxu0
    %v1925 = vrot.slane %v1919, 2
    %v1927 = vadd.f32 %v296, %v1925
    %1928 = vmatprep.subr.bf16.mxu0 0
    %1929 = vmatpush1.bf16.msra.mxu0 %v643
    %1930 = vmatprep.subr.bf16.mxu0 0
    %1931 = vmatpush1.bf16.msra.mxu0 %v644
    %1932 = vmatprep.subr.bf16.mxu0 0
    %1933 = vmatpush1.bf16.msra.mxu0 0
    %1934 = vmatprep.subr.bf16.mxu0 0
    %1935 = vmatpush1.bf16.msra.mxu0 0
    %1936 = vmatprep.subr.bf16.mxu0 0
    %1937 = vmatpush1.bf16.msra.mxu0 0
    %1938 = vmatprep.subr.bf16.mxu0 0
    %1939 = vmatpush1.bf16.msra.mxu0 0
    %1940 = vmatprep.subr.bf16.mxu0 0
    %1941 = vmatpush1.bf16.msra.mxu0 0
    %1942 = vmatprep.subr.bf16.mxu0 0
    %1943 = vmatpush1.bf16.msra.mxu0 0
    %1944 = vmatprep.subr.bf16.mxu0 0
    %1945 = vmatpush1.bf16.msra.mxu0 0
    %1946 = vmatprep.subr.bf16.mxu0 0
    %1947 = vmatpush1.bf16.msra.mxu0 0
    %1948 = vmatprep.subr.bf16.mxu0 0
    %1949 = vmatpush1.bf16.msra.mxu0 0
    %1950 = vmatprep.subr.bf16.mxu0 0
    %1951 = vmatpush1.bf16.msra.mxu0 0
    %1952 = vmatprep.subr.bf16.mxu0 0
    %1953 = vmatpush1.bf16.msra.mxu0 0
    %1954 = vmatprep.subr.bf16.mxu0 0
    %1955 = vmatpush1.bf16.msra.mxu0 0
    %1956 = vmatprep.subr.bf16.mxu0 0
    %1957 = vmatpush1.bf16.msra.mxu0 0
    %1958 = vmatprep.subr.bf16.mxu0 0
    %1959 = vmatpush1.bf16.msra.mxu0 0
    %1960 = vmatprep.mubr.bf16.mxu0 0
    %1961 = vmatmul.mubr.bf16.gmra.mrb[0].mxu0 %v1838
    %v1962 = vpop.f32.mrb[0].mxu0
    %v1963 = vadd.f32 0.0, %v1962
    %v1964 = vpop.f32.mrb[0].mxu0
    %v1965 = vpop.f32.mrb[0].mxu0
    %v1966 = vpop.f32.mrb[0].mxu0
    %1967 = vdwg.mxu0
    %v1969 = vrot.slane %v1963, 2
    %v1971 = vadd.f32 %v384, %v1969
    %1972 = vmatprep.subr.bf16.mxu0 0
    %1973 = vmatpush1.bf16.msra.mxu0 %v704
    %1974 = vmatprep.subr.bf16.mxu0 0
    %1975 = vmatpush1.bf16.msra.mxu0 %v705
    %1976 = vmatprep.subr.bf16.mxu0 0
    %1977 = vmatpush1.bf16.msra.mxu0 0
    %1978 = vmatprep.subr.bf16.mxu0 0
    %1979 = vmatpush1.bf16.msra.mxu0 0
    %1980 = vmatprep.subr.bf16.mxu0 0
    %1981 = vmatpush1.bf16.msra.mxu0 0
    %1982 = vmatprep.subr.bf16.mxu0 0
    %1983 = vmatpush1.bf16.msra.mxu0 0
    %1984 = vmatprep.subr.bf16.mxu0 0
    %1985 = vmatpush1.bf16.msra.mxu0 0
    %1986 = vmatprep.subr.bf16.mxu0 0
    %1987 = vmatpush1.bf16.msra.mxu0 0
    %1988 = vmatprep.subr.bf16.mxu0 0
    %1989 = vmatpush1.bf16.msra.mxu0 0
    %1990 = vmatprep.subr.bf16.mxu0 0
    %1991 = vmatpush1.bf16.msra.mxu0 0
    %1992 = vmatprep.subr.bf16.mxu0 0
    %1993 = vmatpush1.bf16.msra.mxu0 0
    %1994 = vmatprep.subr.bf16.mxu0 0
    %1995 = vmatpush1.bf16.msra.mxu0 0
    %1996 = vmatprep.subr.bf16.mxu0 0
    %1997 = vmatpush1.bf16.msra.mxu0 0
    %1998 = vmatprep.subr.bf16.mxu0 0
    %1999 = vmatpush1.bf16.msra.mxu0 0
    %2000 = vmatprep.subr.bf16.mxu0 0
    %2001 = vmatpush1.bf16.msra.mxu0 0
    %2002 = vmatprep.subr.bf16.mxu0 0
    %2003 = vmatpush1.bf16.msra.mxu0 0
    %2004 = vmatprep.mubr.bf16.mxu0 0
    %2005 = vmatmul.mubr.bf16.gmra.mrb[0].mxu0 %v1838
    %v2006 = vpop.f32.mrb[0].mxu0
    %v2007 = vadd.f32 0.0, %v2006
    %v2008 = vpop.f32.mrb[0].mxu0
    %v2009 = vpop.f32.mrb[0].mxu0
    %v2010 = vpop.f32.mrb[0].mxu0
    %2011 = vdwg.mxu0
    %v2013 = vrot.slane %v2007, 2
    %v2015 = vadd.f32 %v472, %v2013
    %v2016 = vxor.u32 %v1883, 2147483648
    %v2017 = vmul.f32 %v2016, 1.442695
    %v2018 = vpow.pop %v2017
    %v2019 = vadd.f32 %v2018, 1.0
    %v2020 = vrcp.pop %v2019
    %v2021 = vmul.f32 1.0, %v2020
    %v2022 = vxor.u32 %v1927, 2147483648
    %v2023 = vmul.f32 %v2022, 1.442695
    %v2024 = vpow.pop %v2023
    %v2025 = vadd.f32 %v2024, 1.0
    %v2026 = vrcp.pop %v2025
    %v2027 = vmul.f32 1.0, %v2026
    %v2028 = vtanh.pop %v1971
    %v2029 = vxor.u32 %v2015, 2147483648
    %v2030 = vmul.f32 %v2029, 1.442695
    %v2031 = vpow.pop %v2030
    %v2032 = vadd.f32 %v2031, 1.0
    %v2033 = vrcp.pop %v2032
    %v2034 = vmul.f32 1.0, %v2033
    %v2036 = vrot.slane %v1475, 6
    %v2038 = vmul.f32 %v2027, %v2036
    %v2039 = vmul.f32 %v2021, %v2028
    %v2040 = vadd.f32 %v2038, %v2039
    %v2041 = vtanh.pop %v2040
    %v2042 = vmul.f32 %v2034, %v2041
    %2043 = vmatprep.subr.bf16.mxu0 0
    %2044 = vmatpush1.bf16.msra.mxu0 %v791
    %2045 = vmatprep.subr.bf16.mxu0 0
    %2046 = vmatpush1.bf16.msra.mxu0 %v792
    %2047 = vmatprep.subr.bf16.mxu0 0
    %2048 = vmatpush1.bf16.msra.mxu0 0
    %2049 = vmatprep.subr.bf16.mxu0 0
    %2050 = vmatpush1.bf16.msra.mxu0 0
    %2051 = vmatprep.subr.bf16.mxu0 0
    %2052 = vmatpush1.bf16.msra.mxu0 0
    %2053 = vmatprep.subr.bf16.mxu0 0
    %2054 = vmatpush1.bf16.msra.mxu0 0
    %2055 = vmatprep.subr.bf16.mxu0 0
    %2056 = vmatpush1.bf16.msra.mxu0 0
    %2057 = vmatprep.subr.bf16.mxu0 0
    %2058 = vmatpush1.bf16.msra.mxu0 0
    %2059 = vmatprep.subr.bf16.mxu0 0
    %2060 = vmatpush1.bf16.msra.mxu0 0
    %2061 = vmatprep.subr.bf16.mxu0 0
    %2062 = vmatpush1.bf16.msra.mxu0 0
    %2063 = vmatprep.subr.bf16.mxu0 0
    %2064 = vmatpush1.bf16.msra.mxu0 0
    %2065 = vmatprep.subr.bf16.mxu0 0
    %2066 = vmatpush1.bf16.msra.mxu0 0
    %2067 = vmatprep.subr.bf16.mxu0 0
    %2068 = vmatpush1.bf16.msra.mxu0 0
    %2069 = vmatprep.subr.bf16.mxu0 0
    %2070 = vmatpush1.bf16.msra.mxu0 0
    %2071 = vmatprep.subr.bf16.mxu0 0
    %2072 = vmatpush1.bf16.msra.mxu0 0
    %2073 = vmatprep.subr.bf16.mxu0 0
    %2074 = vmatpush1.bf16.msra.mxu0 0
    %2075 = vmatprep.mubr.bf16.mxu0 0
    %2076 = vmatmul.mubr.bf16.gmra.mrb[0].mxu0 %v1838
    %v2077 = vpop.f32.mrb[0].mxu0
    %v2078 = vadd.f32 0.0, %v2077
    %v2079 = vpop.f32.mrb[0].mxu0
    %v2080 = vpop.f32.mrb[0].mxu0
    %v2081 = vpop.f32.mrb[0].mxu0
    %2082 = vdwg.mxu0
    %v2083 = vadd.f32 %v94, %v2078
    %v2085 = vsel %vm521, %v1834, 0
    %2087 = vmatprep.subr.bf16.mxu0 0
    %2088 = vmatpush1.bf16.msra.mxu0 %v848
    %2089 = vmatprep.subr.bf16.mxu0 0
    %2090 = vmatpush1.bf16.msra.mxu0 %v849
    %2091 = vmatprep.subr.bf16.mxu0 0
    %2092 = vmatpush1.bf16.msra.mxu0 0
    %2093 = vmatprep.subr.bf16.mxu0 0
    %2094 = vmatpush1.bf16.msra.mxu0 0
    %2095 = vmatprep.subr.bf16.mxu0 0
    %2096 = vmatpush1.bf16.msra.mxu0 0
    %2097 = vmatprep.subr.bf16.mxu0 0
    %2098 = vmatpush1.bf16.msra.mxu0 0
    %2099 = vmatprep.subr.bf16.mxu0 0
    %2100 = vmatpush1.bf16.msra.mxu0 0
    %2101 = vmatprep.subr.bf16.mxu0 0
    %2102 = vmatpush1.bf16.msra.mxu0 0
    %2103 = vmatprep.subr.bf16.mxu0 0
    %2104 = vmatpush1.bf16.msra.mxu0 0
    %2105 = vmatprep.subr.bf16.mxu0 0
    %2106 = vmatpush1.bf16.msra.mxu0 0
    %2107 = vmatprep.subr.bf16.mxu0 0
    %2108 = vmatpush1.bf16.msra.mxu0 0
    %2109 = vmatprep.subr.bf16.mxu0 0
    %2110 = vmatpush1.bf16.msra.mxu0 0
    %2111 = vmatprep.subr.bf16.mxu0 0
    %2112 = vmatpush1.bf16.msra.mxu0 0
    %2113 = vmatprep.subr.bf16.mxu0 0
    %2114 = vmatpush1.bf16.msra.mxu0 0
    %2115 = vmatprep.subr.bf16.mxu0 0
    %2116 = vmatpush1.bf16.msra.mxu0 0
    %2117 = vmatprep.subr.bf16.mxu0 0
    %2118 = vmatpush1.bf16.msra.mxu0 0
    %2119 = vmatprep.mubr.bf16.mxu0 0
    %2120 = vmatmul.mubr.bf16.gmra.mrb[0].mxu0 %v2085
    %v2121 = vpop.f32.mrb[0].mxu0
    %v2122 = vadd.f32 0.0, %v2121
    %v2123 = vpop.f32.mrb[0].mxu0
    %v2124 = vpop.f32.mrb[0].mxu0
    %v2125 = vpop.f32.mrb[0].mxu0
    %2126 = vdwg.mxu0
    %v2127 = vadd.f32 %v2083, %v2122
    %2128 = vmatprep.subr.bf16.mxu0 0
    %2129 = vmatpush1.bf16.msra.mxu0 %v909
    %2130 = vmatprep.subr.bf16.mxu0 0
    %2131 = vmatpush1.bf16.msra.mxu0 %v910
    %2132 = vmatprep.subr.bf16.mxu0 0
    %2133 = vmatpush1.bf16.msra.mxu0 0
    %2134 = vmatprep.subr.bf16.mxu0 0
    %2135 = vmatpush1.bf16.msra.mxu0 0
    %2136 = vmatprep.subr.bf16.mxu0 0
    %2137 = vmatpush1.bf16.msra.mxu0 0
    %2138 = vmatprep.subr.bf16.mxu0 0
    %2139 = vmatpush1.bf16.msra.mxu0 0
    %2140 = vmatprep.subr.bf16.mxu0 0
    %2141 = vmatpush1.bf16.msra.mxu0 0
    %2142 = vmatprep.subr.bf16.mxu0 0
    %2143 = vmatpush1.bf16.msra.mxu0 0
    %2144 = vmatprep.subr.bf16.mxu0 0
    %2145 = vmatpush1.bf16.msra.mxu0 0
    %2146 = vmatprep.subr.bf16.mxu0 0
    %2147 = vmatpush1.bf16.msra.mxu0 0
    %2148 = vmatprep.subr.bf16.mxu0 0
    %2149 = vmatpush1.bf16.msra.mxu0 0
    %2150 = vmatprep.subr.bf16.mxu0 0
    %2151 = vmatpush1.bf16.msra.mxu0 0
    %2152 = vmatprep.subr.bf16.mxu0 0
    %2153 = vmatpush1.bf16.msra.mxu0 0
    %2154 = vmatprep.subr.bf16.mxu0 0
    %2155 = vmatpush1.bf16.msra.mxu0 0
    %2156 = vmatprep.subr.bf16.mxu0 0
    %2157 = vmatpush1.bf16.msra.mxu0 0
    %2158 = vmatprep.subr.bf16.mxu0 0
    %2159 = vmatpush1.bf16.msra.mxu0 0
    %2160 = vmatprep.mubr.bf16.mxu0 0
    %2161 = vmatmul.mubr.bf16.gmra.mrb[0].mxu0 %v1838
    %v2162 = vpop.f32.mrb[0].mxu0
    %v2163 = vadd.f32 0.0, %v2162
    %v2164 = vpop.f32.mrb[0].mxu0
    %v2165 = vpop.f32.mrb[0].mxu0
    %v2166 = vpop.f32.mrb[0].mxu0
    %2167 = vdwg.mxu0
    %v2168 = vadd.f32 %v102, %v2163
    %2169 = vmatprep.subr.bf16.mxu0 0
    %2170 = vmatpush1.bf16.msra.mxu0 %v967
    %2171 = vmatprep.subr.bf16.mxu0 0
    %2172 = vmatpush1.bf16.msra.mxu0 %v968
    %2173 = vmatprep.subr.bf16.mxu0 0
    %2174 = vmatpush1.bf16.msra.mxu0 0
    %2175 = vmatprep.subr.bf16.mxu0 0
    %2176 = vmatpush1.bf16.msra.mxu0 0
    %2177 = vmatprep.subr.bf16.mxu0 0
    %2178 = vmatpush1.bf16.msra.mxu0 0
    %2179 = vmatprep.subr.bf16.mxu0 0
    %2180 = vmatpush1.bf16.msra.mxu0 0
    %2181 = vmatprep.subr.bf16.mxu0 0
    %2182 = vmatpush1.bf16.msra.mxu0 0
    %2183 = vmatprep.subr.bf16.mxu0 0
    %2184 = vmatpush1.bf16.msra.mxu0 0
    %2185 = vmatprep.subr.bf16.mxu0 0
    %2186 = vmatpush1.bf16.msra.mxu0 0
    %2187 = vmatprep.subr.bf16.mxu0 0
    %2188 = vmatpush1.bf16.msra.mxu0 0
    %2189 = vmatprep.subr.bf16.mxu0 0
    %2190 = vmatpush1.bf16.msra.mxu0 0
    %2191 = vmatprep.subr.bf16.mxu0 0
    %2192 = vmatpush1.bf16.msra.mxu0 0
    %2193 = vmatprep.subr.bf16.mxu0 0
    %2194 = vmatpush1.bf16.msra.mxu0 0
    %2195 = vmatprep.subr.bf16.mxu0 0
    %2196 = vmatpush1.bf16.msra.mxu0 0
    %2197 = vmatprep.subr.bf16.mxu0 0
    %2198 = vmatpush1.bf16.msra.mxu0 0
    %2199 = vmatprep.subr.bf16.mxu0 0
    %2200 = vmatpush1.bf16.msra.mxu0 0
    %2201 = vmatprep.mubr.bf16.mxu0 0
    %2202 = vmatmul.mubr.bf16.gmra.mrb[0].mxu0 %v2085
    %v2203 = vpop.f32.mrb[0].mxu0
    %v2204 = vadd.f32 0.0, %v2203
    %v2205 = vpop.f32.mrb[0].mxu0
    %v2206 = vpop.f32.mrb[0].mxu0
    %v2207 = vpop.f32.mrb[0].mxu0
    %2208 = vdwg.mxu0
    %v2209 = vadd.f32 %v2168, %v2204
    %2210 = vmatprep.subr.bf16.mxu0 0
    %2211 = vmatpush1.bf16.msra.mxu0 %v1025
    %2212 = vmatprep.subr.bf16.mxu0 0
    %2213 = vmatpush1.bf16.msra.mxu0 %v1026
    %2214 = vmatprep.subr.bf16.mxu0 0
    %2215 = vmatpush1.bf16.msra.mxu0 0
    %2216 = vmatprep.subr.bf16.mxu0 0
    %2217 = vmatpush1.bf16.msra.mxu0 0
    %2218 = vmatprep.subr.bf16.mxu0 0
    %2219 = vmatpush1.bf16.msra.mxu0 0
    %2220 = vmatprep.subr.bf16.mxu0 0
    %2221 = vmatpush1.bf16.msra.mxu0 0
    %2222 = vmatprep.subr.bf16.mxu0 0
    %2223 = vmatpush1.bf16.msra.mxu0 0
    %2224 = vmatprep.subr.bf16.mxu0 0
    %2225 = vmatpush1.bf16.msra.mxu0 0
    %2226 = vmatprep.subr.bf16.mxu0 0
    %2227 = vmatpush1.bf16.msra.mxu0 0
    %2228 = vmatprep.subr.bf16.mxu0 0
    %2229 = vmatpush1.bf16.msra.mxu0 0
    %2230 = vmatprep.subr.bf16.mxu0 0
    %2231 = vmatpush1.bf16.msra.mxu0 0
    %2232 = vmatprep.subr.bf16.mxu0 0
    %2233 = vmatpush1.bf16.msra.mxu0 0
    %2234 = vmatprep.subr.bf16.mxu0 0
    %2235 = vmatpush1.bf16.msra.mxu0 0
    %2236 = vmatprep.subr.bf16.mxu0 0
    %2237 = vmatpush1.bf16.msra.mxu0 0
    %2238 = vmatprep.subr.bf16.mxu0 0
    %2239 = vmatpush1.bf16.msra.mxu0 0
    %2240 = vmatprep.subr.bf16.mxu0 0
    %2241 = vmatpush1.bf16.msra.mxu0 0
    %2242 = vmatprep.mubr.bf16.mxu0 0
    %2243 = vmatmul.mubr.bf16.gmra.mrb[0].mxu0 %v1838
    %v2244 = vpop.f32.mrb[0].mxu0
    %v2245 = vadd.f32 0.0, %v2244
    %v2246 = vpop.f32.mrb[0].mxu0
    %v2247 = vpop.f32.mrb[0].mxu0
    %v2248 = vpop.f32.mrb[0].mxu0
    %2249 = vdwg.mxu0
    %v2250 = vadd.f32 %v110, %v2245
    %2251 = vmatprep.subr.bf16.mxu0 0
    %2252 = vmatpush1.bf16.msra.mxu0 %v1083
    %2253 = vmatprep.subr.bf16.mxu0 0
    %2254 = vmatpush1.bf16.msra.mxu0 %v1084
    %2255 = vmatprep.subr.bf16.mxu0 0
    %2256 = vmatpush1.bf16.msra.mxu0 0
    %2257 = vmatprep.subr.bf16.mxu0 0
    %2258 = vmatpush1.bf16.msra.mxu0 0
    %2259 = vmatprep.subr.bf16.mxu0 0
    %2260 = vmatpush1.bf16.msra.mxu0 0
    %2261 = vmatprep.subr.bf16.mxu0 0
    %2262 = vmatpush1.bf16.msra.mxu0 0
    %2263 = vmatprep.subr.bf16.mxu0 0
    %2264 = vmatpush1.bf16.msra.mxu0 0
    %2265 = vmatprep.subr.bf16.mxu0 0
    %2266 = vmatpush1.bf16.msra.mxu0 0
    %2267 = vmatprep.subr.bf16.mxu0 0
    %2268 = vmatpush1.bf16.msra.mxu0 0
    %2269 = vmatprep.subr.bf16.mxu0 0
    %2270 = vmatpush1.bf16.msra.mxu0 0
    %2271 = vmatprep.subr.bf16.mxu0 0
    %2272 = vmatpush1.bf16.msra.mxu0 0
    %2273 = vmatprep.subr.bf16.mxu0 0
    %2274 = vmatpush1.bf16.msra.mxu0 0
    %2275 = vmatprep.subr.bf16.mxu0 0
    %2276 = vmatpush1.bf16.msra.mxu0 0
    %2277 = vmatprep.subr.bf16.mxu0 0
    %2278 = vmatpush1.bf16.msra.mxu0 0
    %2279 = vmatprep.subr.bf16.mxu0 0
    %2280 = vmatpush1.bf16.msra.mxu0 0
    %2281 = vmatprep.subr.bf16.mxu0 0
    %2282 = vmatpush1.bf16.msra.mxu0 0
    %2283 = vmatprep.mubr.bf16.mxu0 0
    %2284 = vmatmul.mubr.bf16.gmra.mrb[0].mxu0 %v2085
    %v2285 = vpop.f32.mrb[0].mxu0
    %v2286 = vadd.f32 0.0, %v2285
    %v2287 = vpop.f32.mrb[0].mxu0
    %v2288 = vpop.f32.mrb[0].mxu0
    %v2289 = vpop.f32.mrb[0].mxu0
    %2290 = vdwg.mxu0
    %v2291 = vadd.f32 %v2250, %v2286
    %2292 = vmatprep.subr.bf16.mxu0 0
    %2293 = vmatpush1.bf16.msra.mxu0 %v1141
    %2294 = vmatprep.subr.bf16.mxu0 0
    %2295 = vmatpush1.bf16.msra.mxu0 %v1142
    %2296 = vmatprep.subr.bf16.mxu0 0
    %2297 = vmatpush1.bf16.msra.mxu0 0
    %2298 = vmatprep.subr.bf16.mxu0 0
    %2299 = vmatpush1.bf16.msra.mxu0 0
    %2300 = vmatprep.subr.bf16.mxu0 0
    %2301 = vmatpush1.bf16.msra.mxu0 0
    %2302 = vmatprep.subr.bf16.mxu0 0
    %2303 = vmatpush1.bf16.msra.mxu0 0
    %2304 = vmatprep.subr.bf16.mxu0 0
    %2305 = vmatpush1.bf16.msra.mxu0 0
    %2306 = vmatprep.subr.bf16.mxu0 0
    %2307 = vmatpush1.bf16.msra.mxu0 0
    %2308 = vmatprep.subr.bf16.mxu0 0
    %2309 = vmatpush1.bf16.msra.mxu0 0
    %2310 = vmatprep.subr.bf16.mxu0 0
    %2311 = vmatpush1.bf16.msra.mxu0 0
    %2312 = vmatprep.subr.bf16.mxu0 0
    %2313 = vmatpush1.bf16.msra.mxu0 0
    %2314 = vmatprep.subr.bf16.mxu0 0
    %2315 = vmatpush1.bf16.msra.mxu0 0
    %2316 = vmatprep.subr.bf16.mxu0 0
    %2317 = vmatpush1.bf16.msra.mxu0 0
    %2318 = vmatprep.subr.bf16.mxu0 0
    %2319 = vmatpush1.bf16.msra.mxu0 0
    %2320 = vmatprep.subr.bf16.mxu0 0
    %2321 = vmatpush1.bf16.msra.mxu0 0
    %2322 = vmatprep.subr.bf16.mxu0 0
    %2323 = vmatpush1.bf16.msra.mxu0 0
    %2324 = vmatprep.mubr.bf16.mxu0 0
    %2325 = vmatmul.mubr.bf16.gmra.mrb[0].mxu0 %v1838
    %v2326 = vpop.f32.mrb[0].mxu0
    %v2327 = vadd.f32 0.0, %v2326
    %v2328 = vpop.f32.mrb[0].mxu0
    %v2329 = vpop.f32.mrb[0].mxu0
    %v2330 = vpop.f32.mrb[0].mxu0
    %2331 = vdwg.mxu0
    %v2332 = vadd.f32 %v118, %v2327
    %2333 = vmatprep.subr.bf16.mxu0 0
    %2334 = vmatpush1.bf16.msra.mxu0 %v1199
    %2335 = vmatprep.subr.bf16.mxu0 0
    %2336 = vmatpush1.bf16.msra.mxu0 %v1200
    %2337 = vmatprep.subr.bf16.mxu0 0
    %2338 = vmatpush1.bf16.msra.mxu0 0
    %2339 = vmatprep.subr.bf16.mxu0 0
    %2340 = vmatpush1.bf16.msra.mxu0 0
    %2341 = vmatprep.subr.bf16.mxu0 0
    %2342 = vmatpush1.bf16.msra.mxu0 0
    %2343 = vmatprep.subr.bf16.mxu0 0
    %2344 = vmatpush1.bf16.msra.mxu0 0
    %2345 = vmatprep.subr.bf16.mxu0 0
    %2346 = vmatpush1.bf16.msra.mxu0 0
    %2347 = vmatprep.subr.bf16.mxu0 0
    %2348 = vmatpush1.bf16.msra.mxu0 0
    %2349 = vmatprep.subr.bf16.mxu0 0
    %2350 = vmatpush1.bf16.msra.mxu0 0
    %2351 = vmatprep.subr.bf16.mxu0 0
    %2352 = vmatpush1.bf16.msra.mxu0 0
    %2353 = vmatprep.subr.bf16.mxu0 0
    %2354 = vmatpush1.bf16.msra.mxu0 0
    %2355 = vmatprep.subr.bf16.mxu0 0
    %2356 = vmatpush1.bf16.msra.mxu0 0
    %2357 = vmatprep.subr.bf16.mxu0 0
    %2358 = vmatpush1.bf16.msra.mxu0 0
    %2359 = vmatprep.subr.bf16.mxu0 0
    %2360 = vmatpush1.bf16.msra.mxu0 0
    %2361 = vmatprep.subr.bf16.mxu0 0
    %2362 = vmatpush1.bf16.msra.mxu0 0
    %2363 = vmatprep.subr.bf16.mxu0 0
    %2364 = vmatpush1.bf16.msra.mxu0 0
    %2365 = vmatprep.mubr.bf16.mxu0 0
    %2366 = vmatmul.mubr.bf16.gmra.mrb[0].mxu0 %v2085
    %v2367 = vpop.f32.mrb[0].mxu0
    %v2368 = vadd.f32 0.0, %v2367
    %v2369 = vpop.f32.mrb[0].mxu0
    %v2370 = vpop.f32.mrb[0].mxu0
    %v2371 = vpop.f32.mrb[0].mxu0
    %2372 = vdwg.mxu0
    %v2373 = vadd.f32 %v2332, %v2368
    %v2374 = vxor.u32 %v2127, 2147483648
    %v2375 = vmul.f32 %v2374, 1.442695
    %v2376 = vpow.pop %v2375
    %v2377 = vadd.f32 %v2376, 1.0
    %v2378 = vrcp.pop %v2377
    %v2379 = vmul.f32 1.0, %v2378
    %v2380 = vxor.u32 %v2209, 2147483648
    %v2381 = vmul.f32 %v2380, 1.442695
    %v2382 = vpow.pop %v2381
    %v2383 = vadd.f32 %v2382, 1.0
    %v2384 = vrcp.pop %v2383
    %v2385 = vmul.f32 1.0, %v2384
    %v2386 = vtanh.pop %v2291
    %v2387 = vxor.u32 %v2373, 2147483648
    %v2388 = vmul.f32 %v2387, 1.442695
    %v2389 = vpow.pop %v2388
    %v2390 = vadd.f32 %v2389, 1.0
    %v2391 = vrcp.pop %v2390
    %v2392 = vmul.f32 1.0, %v2391
    %v2393 = vmul.f32 %v2385, %v1830
    %v2394 = vmul.f32 %v2379, %v2386
    %v2395 = vadd.f32 %v2393, %v2394
    %v2396 = vtanh.pop %v2395
    %v2397 = vmul.f32 %v2392, %v2396
    %v2398 = vpack.c.bf16 %v2042, %v2042
    %v2399 = vpack.c.bf16 %v2397, %v2397
    %v2401 = vrot.slane %v2398, 3
    %v2403 = vsel %vm521, %v2401, 0
    %2405 = vmatprep.subr.bf16.mxu0 0
    %2406 = vmatpush1.bf16.msra.mxu0 %v517
    %2407 = vmatprep.subr.bf16.mxu0 0
    %2408 = vmatpush1.bf16.msra.mxu0 %v518
    %2409 = vmatprep.subr.bf16.mxu0 0
    %2410 = vmatpush1.bf16.msra.mxu0 0
    %2411 = vmatprep.subr.bf16.mxu0 0
    %2412 = vmatpush1.bf16.msra.mxu0 0
    %2413 = vmatprep.subr.bf16.mxu0 0
    %2414 = vmatpush1.bf16.msra.mxu0 0
    %2415 = vmatprep.subr.bf16.mxu0 0
    %2416 = vmatpush1.bf16.msra.mxu0 0
    %2417 = vmatprep.subr.bf16.mxu0 0
    %2418 = vmatpush1.bf16.msra.mxu0 0
    %2419 = vmatprep.subr.bf16.mxu0 0
    %2420 = vmatpush1.bf16.msra.mxu0 0
    %2421 = vmatprep.subr.bf16.mxu0 0
    %2422 = vmatpush1.bf16.msra.mxu0 0
    %2423 = vmatprep.subr.bf16.mxu0 0
    %2424 = vmatpush1.bf16.msra.mxu0 0
    %2425 = vmatprep.subr.bf16.mxu0 0
    %2426 = vmatpush1.bf16.msra.mxu0 0
    %2427 = vmatprep.subr.bf16.mxu0 0
    %2428 = vmatpush1.bf16.msra.mxu0 0
    %2429 = vmatprep.subr.bf16.mxu0 0
    %2430 = vmatpush1.bf16.msra.mxu0 0
    %2431 = vmatprep.subr.bf16.mxu0 0
    %2432 = vmatpush1.bf16.msra.mxu0 0
    %2433 = vmatprep.subr.bf16.mxu0 0
    %2434 = vmatpush1.bf16.msra.mxu0 0
    %2435 = vmatprep.subr.bf16.mxu0 0
    %2436 = vmatpush1.bf16.msra.mxu0 0
    %2437 = vmatprep.mubr.bf16.mxu0 0
    %2438 = vmatmul.mubr.bf16.gmra.mrb[0].mxu0 %v2403
    %v2439 = vpop.f32.mrb[0].mxu0
    %v2440 = vadd.f32 0.0, %v2439
    %v2441 = vpop.f32.mrb[0].mxu0
    %v2442 = vpop.f32.mrb[0].mxu0
    %v2443 = vpop.f32.mrb[0].mxu0
    %2444 = vdwg.mxu0
    %v2445 = vadd.f32 %v213, %v2440
    %2446 = vmatprep.subr.bf16.mxu0 0
    %2447 = vmatpush1.bf16.msra.mxu0 %v582
    %2448 = vmatprep.subr.bf16.mxu0 0
    %2449 = vmatpush1.bf16.msra.mxu0 %v583
    %2450 = vmatprep.subr.bf16.mxu0 0
    %2451 = vmatpush1.bf16.msra.mxu0 0
    %2452 = vmatprep.subr.bf16.mxu0 0
    %2453 = vmatpush1.bf16.msra.mxu0 0
    %2454 = vmatprep.subr.bf16.mxu0 0
    %2455 = vmatpush1.bf16.msra.mxu0 0
    %2456 = vmatprep.subr.bf16.mxu0 0
    %2457 = vmatpush1.bf16.msra.mxu0 0
    %2458 = vmatprep.subr.bf16.mxu0 0
    %2459 = vmatpush1.bf16.msra.mxu0 0
    %2460 = vmatprep.subr.bf16.mxu0 0
    %2461 = vmatpush1.bf16.msra.mxu0 0
    %2462 = vmatprep.subr.bf16.mxu0 0
    %2463 = vmatpush1.bf16.msra.mxu0 0
    %2464 = vmatprep.subr.bf16.mxu0 0
    %2465 = vmatpush1.bf16.msra.mxu0 0
    %2466 = vmatprep.subr.bf16.mxu0 0
    %2467 = vmatpush1.bf16.msra.mxu0 0
    %2468 = vmatprep.subr.bf16.mxu0 0
    %2469 = vmatpush1.bf16.msra.mxu0 0
    %2470 = vmatprep.subr.bf16.mxu0 0
    %2471 = vmatpush1.bf16.msra.mxu0 0
    %2472 = vmatprep.subr.bf16.mxu0 0
    %2473 = vmatpush1.bf16.msra.mxu0 0
    %2474 = vmatprep.subr.bf16.mxu0 0
    %2475 = vmatpush1.bf16.msra.mxu0 0
    %2476 = vmatprep.subr.bf16.mxu0 0
    %2477 = vmatpush1.bf16.msra.mxu0 0
    %2478 = vmatprep.mubr.bf16.mxu0 0
    %2479 = vmatmul.mubr.bf16.gmra.mrb[0].mxu0 %v2403
    %v2480 = vpop.f32.mrb[0].mxu0
    %v2481 = vadd.f32 0.0, %v2480
    %v2482 = vpop.f32.mrb[0].mxu0
    %v2483 = vpop.f32.mrb[0].mxu0
    %v2484 = vpop.f32.mrb[0].mxu0
    %2485 = vdwg.mxu0
    %v2486 = vadd.f32 %v301, %v2481
    %2487 = vmatprep.subr.bf16.mxu0 0
    %2488 = vmatpush1.bf16.msra.mxu0 %v643
    %2489 = vmatprep.subr.bf16.mxu0 0
    %2490 = vmatpush1.bf16.msra.mxu0 %v644
    %2491 = vmatprep.subr.bf16.mxu0 0
    %2492 = vmatpush1.bf16.msra.mxu0 0
    %2493 = vmatprep.subr.bf16.mxu0 0
    %2494 = vmatpush1.bf16.msra.mxu0 0
    %2495 = vmatprep.subr.bf16.mxu0 0
    %2496 = vmatpush1.bf16.msra.mxu0 0
    %2497 = vmatprep.subr.bf16.mxu0 0
    %2498 = vmatpush1.bf16.msra.mxu0 0
    %2499 = vmatprep.subr.bf16.mxu0 0
    %2500 = vmatpush1.bf16.msra.mxu0 0
    %2501 = vmatprep.subr.bf16.mxu0 0
    %2502 = vmatpush1.bf16.msra.mxu0 0
    %2503 = vmatprep.subr.bf16.mxu0 0
    %2504 = vmatpush1.bf16.msra.mxu0 0
    %2505 = vmatprep.subr.bf16.mxu0 0
    %2506 = vmatpush1.bf16.msra.mxu0 0
    %2507 = vmatprep.subr.bf16.mxu0 0
    %2508 = vmatpush1.bf16.msra.mxu0 0
    %2509 = vmatprep.subr.bf16.mxu0 0
    %2510 = vmatpush1.bf16.msra.mxu0 0
    %2511 = vmatprep.subr.bf16.mxu0 0
    %2512 = vmatpush1.bf16.msra.mxu0 0
    %2513 = vmatprep.subr.bf16.mxu0 0
    %2514 = vmatpush1.bf16.msra.mxu0 0
    %2515 = vmatprep.subr.bf16.mxu0 0
    %2516 = vmatpush1.bf16.msra.mxu0 0
    %2517 = vmatprep.subr.bf16.mxu0 0
    %2518 = vmatpush1.bf16.msra.mxu0 0
    %2519 = vmatprep.mubr.bf16.mxu0 0
    %2520 = vmatmul.mubr.bf16.gmra.mrb[0].mxu0 %v2403
    %v2521 = vpop.f32.mrb[0].mxu0
    %v2522 = vadd.f32 0.0, %v2521
    %v2523 = vpop.f32.mrb[0].mxu0
    %v2524 = vpop.f32.mrb[0].mxu0
    %v2525 = vpop.f32.mrb[0].mxu0
    %2526 = vdwg.mxu0
    %v2527 = vadd.f32 %v389, %v2522
    %2528 = vmatprep.subr.bf16.mxu0 0
    %2529 = vmatpush1.bf16.msra.mxu0 %v704
    %2530 = vmatprep.subr.bf16.mxu0 0
    %2531 = vmatpush1.bf16.msra.mxu0 %v705
    %2532 = vmatprep.subr.bf16.mxu0 0
    %2533 = vmatpush1.bf16.msra.mxu0 0
    %2534 = vmatprep.subr.bf16.mxu0 0
    %2535 = vmatpush1.bf16.msra.mxu0 0
    %2536 = vmatprep.subr.bf16.mxu0 0
    %2537 = vmatpush1.bf16.msra.mxu0 0
    %2538 = vmatprep.subr.bf16.mxu0 0
    %2539 = vmatpush1.bf16.msra.mxu0 0
    %2540 = vmatprep.subr.bf16.mxu0 0
    %2541 = vmatpush1.bf16.msra.mxu0 0
    %2542 = vmatprep.subr.bf16.mxu0 0
    %2543 = vmatpush1.bf16.msra.mxu0 0
    %2544 = vmatprep.subr.bf16.mxu0 0
    %2545 = vmatpush1.bf16.msra.mxu0 0
    %2546 = vmatprep.subr.bf16.mxu0 0
    %2547 = vmatpush1.bf16.msra.mxu0 0
    %2548 = vmatprep.subr.bf16.mxu0 0
    %2549 = vmatpush1.bf16.msra.mxu0 0
    %2550 = vmatprep.subr.bf16.mxu0 0
    %2551 = vmatpush1.bf16.msra.mxu0 0
    %2552 = vmatprep.subr.bf16.mxu0 0
    %2553 = vmatpush1.bf16.msra.mxu0 0
    %2554 = vmatprep.subr.bf16.mxu0 0
    %2555 = vmatpush1.bf16.msra.mxu0 0
    %2556 = vmatprep.subr.bf16.mxu0 0
    %2557 = vmatpush1.bf16.msra.mxu0 0
    %2558 = vmatprep.subr.bf16.mxu0 0
    %2559 = vmatpush1.bf16.msra.mxu0 0
    %2560 = vmatprep.mubr.bf16.mxu0 0
    %2561 = vmatmul.mubr.bf16.gmra.mrb[0].mxu0 %v2403
    %v2562 = vpop.f32.mrb[0].mxu0
    %v2563 = vadd.f32 0.0, %v2562
    %v2564 = vpop.f32.mrb[0].mxu0
    %v2565 = vpop.f32.mrb[0].mxu0
    %v2566 = vpop.f32.mrb[0].mxu0
    %2567 = vdwg.mxu0
    %v2568 = vadd.f32 %v477, %v2563
    %v2569 = vxor.u32 %v2445, 2147483648
    %v2570 = vmul.f32 %v2569, 1.442695
    %v2571 = vpow.pop %v2570
    %v2572 = vadd.f32 %v2571, 1.0
    %v2573 = vrcp.pop %v2572
    %v2574 = vmul.f32 1.0, %v2573
    %v2575 = vxor.u32 %v2486, 2147483648
    %v2576 = vmul.f32 %v2575, 1.442695
    %v2577 = vpow.pop %v2576
    %v2578 = vadd.f32 %v2577, 1.0
    %v2579 = vrcp.pop %v2578
    %v2580 = vmul.f32 1.0, %v2579
    %v2581 = vtanh.pop %v2527
    %v2582 = vxor.u32 %v2568, 2147483648
    %v2583 = vmul.f32 %v2582, 1.442695
    %v2584 = vpow.pop %v2583
    %v2585 = vadd.f32 %v2584, 1.0
    %v2586 = vrcp.pop %v2585
    %v2587 = vmul.f32 1.0, %v2586
    %v2589 = vrot.slane %v2040, 6
    %v2591 = vmul.f32 %v2580, %v2589
    %v2592 = vmul.f32 %v2574, %v2581
    %v2593 = vadd.f32 %v2591, %v2592
    %v2594 = vtanh.pop %v2593
    %v2595 = vmul.f32 %v2587, %v2594
    %2596 = vmatprep.subr.bf16.mxu0 0
    %2597 = vmatpush1.bf16.msra.mxu0 %v791
    %2598 = vmatprep.subr.bf16.mxu0 0
    %2599 = vmatpush1.bf16.msra.mxu0 %v792
    %2600 = vmatprep.subr.bf16.mxu0 0
    %2601 = vmatpush1.bf16.msra.mxu0 0
    %2602 = vmatprep.subr.bf16.mxu0 0
    %2603 = vmatpush1.bf16.msra.mxu0 0
    %2604 = vmatprep.subr.bf16.mxu0 0
    %2605 = vmatpush1.bf16.msra.mxu0 0
    %2606 = vmatprep.subr.bf16.mxu0 0
    %2607 = vmatpush1.bf16.msra.mxu0 0
    %2608 = vmatprep.subr.bf16.mxu0 0
    %2609 = vmatpush1.bf16.msra.mxu0 0
    %2610 = vmatprep.subr.bf16.mxu0 0
    %2611 = vmatpush1.bf16.msra.mxu0 0
    %2612 = vmatprep.subr.bf16.mxu0 0
    %2613 = vmatpush1.bf16.msra.mxu0 0
    %2614 = vmatprep.subr.bf16.mxu0 0
    %2615 = vmatpush1.bf16.msra.mxu0 0
    %2616 = vmatprep.subr.bf16.mxu0 0
    %2617 = vmatpush1.bf16.msra.mxu0 0
    %2618 = vmatprep.subr.bf16.mxu0 0
    %2619 = vmatpush1.bf16.msra.mxu0 0
    %2620 = vmatprep.subr.bf16.mxu0 0
    %2621 = vmatpush1.bf16.msra.mxu0 0
    %2622 = vmatprep.subr.bf16.mxu0 0
    %2623 = vmatpush1.bf16.msra.mxu0 0
    %2624 = vmatprep.subr.bf16.mxu0 0
    %2625 = vmatpush1.bf16.msra.mxu0 0
    %2626 = vmatprep.subr.bf16.mxu0 0
    %2627 = vmatpush1.bf16.msra.mxu0 0
    %2628 = vmatprep.mubr.bf16.mxu0 0
    %2629 = vmatmul.mubr.bf16.gmra.mrb[0].mxu0 %v2403
    %v2630 = vpop.f32.mrb[0].mxu0
    %v2631 = vadd.f32 0.0, %v2630
    %v2632 = vpop.f32.mrb[0].mxu0
    %v2633 = vpop.f32.mrb[0].mxu0
    %v2634 = vpop.f32.mrb[0].mxu0
    %2635 = vdwg.mxu0
    %v2636 = vadd.f32 %v94, %v2631
    %v2638 = vsel %vm521, %v2399, 0
    %2640 = vmatprep.subr.bf16.mxu0 0
    %2641 = vmatpush1.bf16.msra.mxu0 %v848
    %2642 = vmatprep.subr.bf16.mxu0 0
    %2643 = vmatpush1.bf16.msra.mxu0 %v849
    %2644 = vmatprep.subr.bf16.mxu0 0
    %2645 = vmatpush1.bf16.msra.mxu0 0
    %2646 = vmatprep.subr.bf16.mxu0 0
    %2647 = vmatpush1.bf16.msra.mxu0 0
    %2648 = vmatprep.subr.bf16.mxu0 0
    %2649 = vmatpush1.bf16.msra.mxu0 0
    %2650 = vmatprep.subr.bf16.mxu0 0
    %2651 = vmatpush1.bf16.msra.mxu0 0
    %2652 = vmatprep.subr.bf16.mxu0 0
    %2653 = vmatpush1.bf16.msra.mxu0 0
    %2654 = vmatprep.subr.bf16.mxu0 0
    %2655 = vmatpush1.bf16.msra.mxu0 0
    %2656 = vmatprep.subr.bf16.mxu0 0
    %2657 = vmatpush1.bf16.msra.mxu0 0
    %2658 = vmatprep.subr.bf16.mxu0 0
    %2659 = vmatpush1.bf16.msra.mxu0 0
    %2660 = vmatprep.subr.bf16.mxu0 0
    %2661 = vmatpush1.bf16.msra.mxu0 0
    %2662 = vmatprep.subr.bf16.mxu0 0
    %2663 = vmatpush1.bf16.msra.mxu0 0
    %2664 = vmatprep.subr.bf16.mxu0 0
    %2665 = vmatpush1.bf16.msra.mxu0 0
    %2666 = vmatprep.subr.bf16.mxu0 0
    %2667 = vmatpush1.bf16.msra.mxu0 0
    %2668 = vmatprep.subr.bf16.mxu0 0
    %2669 = vmatpush1.bf16.msra.mxu0 0
    %2670 = vmatprep.subr.bf16.mxu0 0
    %2671 = vmatpush1.bf16.msra.mxu0 0
    %2672 = vmatprep.mubr.bf16.mxu0 0
    %2673 = vmatmul.mubr.bf16.gmra.mrb[0].mxu0 %v2638
    %v2674 = vpop.f32.mrb[0].mxu0
    %v2675 = vadd.f32 0.0, %v2674
    %v2676 = vpop.f32.mrb[0].mxu0
    %v2677 = vpop.f32.mrb[0].mxu0
    %v2678 = vpop.f32.mrb[0].mxu0
    %2679 = vdwg.mxu0
    %v2680 = vadd.f32 %v2636, %v2675
    %2681 = vmatprep.subr.bf16.mxu0 0
    %2682 = vmatpush1.bf16.msra.mxu0 %v909
    %2683 = vmatprep.subr.bf16.mxu0 0
    %2684 = vmatpush1.bf16.msra.mxu0 %v910
    %2685 = vmatprep.subr.bf16.mxu0 0
    %2686 = vmatpush1.bf16.msra.mxu0 0
    %2687 = vmatprep.subr.bf16.mxu0 0
    %2688 = vmatpush1.bf16.msra.mxu0 0
    %2689 = vmatprep.subr.bf16.mxu0 0
    %2690 = vmatpush1.bf16.msra.mxu0 0
    %2691 = vmatprep.subr.bf16.mxu0 0
    %2692 = vmatpush1.bf16.msra.mxu0 0
    %2693 = vmatprep.subr.bf16.mxu0 0
    %2694 = vmatpush1.bf16.msra.mxu0 0
    %2695 = vmatprep.subr.bf16.mxu0 0
    %2696 = vmatpush1.bf16.msra.mxu0 0
    %2697 = vmatprep.subr.bf16.mxu0 0
    %2698 = vmatpush1.bf16.msra.mxu0 0
    %2699 = vmatprep.subr.bf16.mxu0 0
    %2700 = vmatpush1.bf16.msra.mxu0 0
    %2701 = vmatprep.subr.bf16.mxu0 0
    %2702 = vmatpush1.bf16.msra.mxu0 0
    %2703 = vmatprep.subr.bf16.mxu0 0
    %2704 = vmatpush1.bf16.msra.mxu0 0
    %2705 = vmatprep.subr.bf16.mxu0 0
    %2706 = vmatpush1.bf16.msra.mxu0 0
    %2707 = vmatprep.subr.bf16.mxu0 0
    %2708 = vmatpush1.bf16.msra.mxu0 0
    %2709 = vmatprep.subr.bf16.mxu0 0
    %2710 = vmatpush1.bf16.msra.mxu0 0
    %2711 = vmatprep.subr.bf16.mxu0 0
    %2712 = vmatpush1.bf16.msra.mxu0 0
    %2713 = vmatprep.mubr.bf16.mxu0 0
    %2714 = vmatmul.mubr.bf16.gmra.mrb[0].mxu0 %v2403
    %v2715 = vpop.f32.mrb[0].mxu0
    %v2716 = vadd.f32 0.0, %v2715
    %v2717 = vpop.f32.mrb[0].mxu0
    %v2718 = vpop.f32.mrb[0].mxu0
    %v2719 = vpop.f32.mrb[0].mxu0
    %2720 = vdwg.mxu0
    %v2721 = vadd.f32 %v102, %v2716
    %2722 = vmatprep.subr.bf16.mxu0 0
    %2723 = vmatpush1.bf16.msra.mxu0 %v967
    %2724 = vmatprep.subr.bf16.mxu0 0
    %2725 = vmatpush1.bf16.msra.mxu0 %v968
    %2726 = vmatprep.subr.bf16.mxu0 0
    %2727 = vmatpush1.bf16.msra.mxu0 0
    %2728 = vmatprep.subr.bf16.mxu0 0
    %2729 = vmatpush1.bf16.msra.mxu0 0
    %2730 = vmatprep.subr.bf16.mxu0 0
    %2731 = vmatpush1.bf16.msra.mxu0 0
    %2732 = vmatprep.subr.bf16.mxu0 0
    %2733 = vmatpush1.bf16.msra.mxu0 0
    %2734 = vmatprep.subr.bf16.mxu0 0
    %2735 = vmatpush1.bf16.msra.mxu0 0
    %2736 = vmatprep.subr.bf16.mxu0 0
    %2737 = vmatpush1.bf16.msra.mxu0 0
    %2738 = vmatprep.subr.bf16.mxu0 0
    %2739 = vmatpush1.bf16.msra.mxu0 0
    %2740 = vmatprep.subr.bf16.mxu0 0
    %2741 = vmatpush1.bf16.msra.mxu0 0
    %2742 = vmatprep.subr.bf16.mxu0 0
    %2743 = vmatpush1.bf16.msra.mxu0 0
    %2744 = vmatprep.subr.bf16.mxu0 0
    %2745 = vmatpush1.bf16.msra.mxu0 0
    %2746 = vmatprep.subr.bf16.mxu0 0
    %2747 = vmatpush1.bf16.msra.mxu0 0
    %2748 = vmatprep.subr.bf16.mxu0 0
    %2749 = vmatpush1.bf16.msra.mxu0 0
    %2750 = vmatprep.subr.bf16.mxu0 0
    %2751 = vmatpush1.bf16.msra.mxu0 0
    %2752 = vmatprep.subr.bf16.mxu0 0
    %2753 = vmatpush1.bf16.msra.mxu0 0
    %2754 = vmatprep.mubr.bf16.mxu0 0
    %2755 = vmatmul.mubr.bf16.gmra.mrb[0].mxu0 %v2638
    %v2756 = vpop.f32.mrb[0].mxu0
    %v2757 = vadd.f32 0.0, %v2756
    %v2758 = vpop.f32.mrb[0].mxu0
    %v2759 = vpop.f32.mrb[0].mxu0
    %v2760 = vpop.f32.mrb[0].mxu0
    %2761 = vdwg.mxu0
    %v2762 = vadd.f32 %v2721, %v2757
    %2763 = vmatprep.subr.bf16.mxu0 0
    %2764 = vmatpush1.bf16.msra.mxu0 %v1025
    %2765 = vmatprep.subr.bf16.mxu0 0
    %2766 = vmatpush1.bf16.msra.mxu0 %v1026
    %2767 = vmatprep.subr.bf16.mxu0 0
    %2768 = vmatpush1.bf16.msra.mxu0 0
    %2769 = vmatprep.subr.bf16.mxu0 0
    %2770 = vmatpush1.bf16.msra.mxu0 0
    %2771 = vmatprep.subr.bf16.mxu0 0
    %2772 = vmatpush1.bf16.msra.mxu0 0
    %2773 = vmatprep.subr.bf16.mxu0 0
    %2774 = vmatpush1.bf16.msra.mxu0 0
    %2775 = vmatprep.subr.bf16.mxu0 0
    %2776 = vmatpush1.bf16.msra.mxu0 0
    %2777 = vmatprep.subr.bf16.mxu0 0
    %2778 = vmatpush1.bf16.msra.mxu0 0
    %2779 = vmatprep.subr.bf16.mxu0 0
    %2780 = vmatpush1.bf16.msra.mxu0 0
    %2781 = vmatprep.subr.bf16.mxu0 0
    %2782 = vmatpush1.bf16.msra.mxu0 0
    %2783 = vmatprep.subr.bf16.mxu0 0
    %2784 = vmatpush1.bf16.msra.mxu0 0
    %2785 = vmatprep.subr.bf16.mxu0 0
    %2786 = vmatpush1.bf16.msra.mxu0 0
    %2787 = vmatprep.subr.bf16.mxu0 0
    %2788 = vmatpush1.bf16.msra.mxu0 0
    %2789 = vmatprep.subr.bf16.mxu0 0
    %2790 = vmatpush1.bf16.msra.mxu0 0
    %2791 = vmatprep.subr.bf16.mxu0 0
    %2792 = vmatpush1.bf16.msra.mxu0 0
    %2793 = vmatprep.subr.bf16.mxu0 0
    %2794 = vmatpush1.bf16.msra.mxu0 0
    %2795 = vmatprep.mubr.bf16.mxu0 0
    %2796 = vmatmul.mubr.bf16.gmra.mrb[0].mxu0 %v2403
    %v2797 = vpop.f32.mrb[0].mxu0
    %v2798 = vadd.f32 0.0, %v2797
    %v2799 = vpop.f32.mrb[0].mxu0
    %v2800 = vpop.f32.mrb[0].mxu0
    %v2801 = vpop.f32.mrb[0].mxu0
    %2802 = vdwg.mxu0
    %v2803 = vadd.f32 %v110, %v2798
    %2804 = vmatprep.subr.bf16.mxu0 0
    %2805 = vmatpush1.bf16.msra.mxu0 %v1083
    %2806 = vmatprep.subr.bf16.mxu0 0
    %2807 = vmatpush1.bf16.msra.mxu0 %v1084
    %2808 = vmatprep.subr.bf16.mxu0 0
    %2809 = vmatpush1.bf16.msra.mxu0 0
    %2810 = vmatprep.subr.bf16.mxu0 0
    %2811 = vmatpush1.bf16.msra.mxu0 0
    %2812 = vmatprep.subr.bf16.mxu0 0
    %2813 = vmatpush1.bf16.msra.mxu0 0
    %2814 = vmatprep.subr.bf16.mxu0 0
    %2815 = vmatpush1.bf16.msra.mxu0 0
    %2816 = vmatprep.subr.bf16.mxu0 0
    %2817 = vmatpush1.bf16.msra.mxu0 0
    %2818 = vmatprep.subr.bf16.mxu0 0
    %2819 = vmatpush1.bf16.msra.mxu0 0
    %2820 = vmatprep.subr.bf16.mxu0 0
    %2821 = vmatpush1.bf16.msra.mxu0 0
    %2822 = vmatprep.subr.bf16.mxu0 0
    %2823 = vmatpush1.bf16.msra.mxu0 0
    %2824 = vmatprep.subr.bf16.mxu0 0
    %2825 = vmatpush1.bf16.msra.mxu0 0
    %2826 = vmatprep.subr.bf16.mxu0 0
    %2827 = vmatpush1.bf16.msra.mxu0 0
    %2828 = vmatprep.subr.bf16.mxu0 0
    %2829 = vmatpush1.bf16.msra.mxu0 0
    %2830 = vmatprep.subr.bf16.mxu0 0
    %2831 = vmatpush1.bf16.msra.mxu0 0
    %2832 = vmatprep.subr.bf16.mxu0 0
    %2833 = vmatpush1.bf16.msra.mxu0 0
    %2834 = vmatprep.subr.bf16.mxu0 0
    %2835 = vmatpush1.bf16.msra.mxu0 0
    %2836 = vmatprep.mubr.bf16.mxu0 0
    %2837 = vmatmul.mubr.bf16.gmra.mrb[0].mxu0 %v2638
    %v2838 = vpop.f32.mrb[0].mxu0
    %v2839 = vadd.f32 0.0, %v2838
    %v2840 = vpop.f32.mrb[0].mxu0
    %v2841 = vpop.f32.mrb[0].mxu0
    %v2842 = vpop.f32.mrb[0].mxu0
    %2843 = vdwg.mxu0
    %v2844 = vadd.f32 %v2803, %v2839
    %2845 = vmatprep.subr.bf16.mxu0 0
    %2846 = vmatpush1.bf16.msra.mxu0 %v1141
    %2847 = vmatprep.subr.bf16.mxu0 0
    %2848 = vmatpush1.bf16.msra.mxu0 %v1142
    %2849 = vmatprep.subr.bf16.mxu0 0
    %2850 = vmatpush1.bf16.msra.mxu0 0
    %2851 = vmatprep.subr.bf16.mxu0 0
    %2852 = vmatpush1.bf16.msra.mxu0 0
    %2853 = vmatprep.subr.bf16.mxu0 0
    %2854 = vmatpush1.bf16.msra.mxu0 0
    %2855 = vmatprep.subr.bf16.mxu0 0
    %2856 = vmatpush1.bf16.msra.mxu0 0
    %2857 = vmatprep.subr.bf16.mxu0 0
    %2858 = vmatpush1.bf16.msra.mxu0 0
    %2859 = vmatprep.subr.bf16.mxu0 0
    %2860 = vmatpush1.bf16.msra.mxu0 0
    %2861 = vmatprep.subr.bf16.mxu0 0
    %2862 = vmatpush1.bf16.msra.mxu0 0
    %2863 = vmatprep.subr.bf16.mxu0 0
    %2864 = vmatpush1.bf16.msra.mxu0 0
    %2865 = vmatprep.subr.bf16.mxu0 0
    %2866 = vmatpush1.bf16.msra.mxu0 0
    %2867 = vmatprep.subr.bf16.mxu0 0
    %2868 = vmatpush1.bf16.msra.mxu0 0
    %2869 = vmatprep.subr.bf16.mxu0 0
    %2870 = vmatpush1.bf16.msra.mxu0 0
    %2871 = vmatprep.subr.bf16.mxu0 0
    %2872 = vmatpush1.bf16.msra.mxu0 0
    %2873 = vmatprep.subr.bf16.mxu0 0
    %2874 = vmatpush1.bf16.msra.mxu0 0
    %2875 = vmatprep.subr.bf16.mxu0 0
    %2876 = vmatpush1.bf16.msra.mxu0 0
    %2877 = vmatprep.mubr.bf16.mxu0 0
    %2878 = vmatmul.mubr.bf16.gmra.mrb[0].mxu0 %v2403
    %v2879 = vpop.f32.mrb[0].mxu0
    %v2880 = vadd.f32 0.0, %v2879
    %v2881 = vpop.f32.mrb[0].mxu0
    %v2882 = vpop.f32.mrb[0].mxu0
    %v2883 = vpop.f32.mrb[0].mxu0
    %2884 = vdwg.mxu0
    %v2885 = vadd.f32 %v118, %v2880
    %2886 = vmatprep.subr.bf16.mxu0 0
    %2887 = vmatpush1.bf16.msra.mxu0 %v1199
    %2888 = vmatprep.subr.bf16.mxu0 0
    %2889 = vmatpush1.bf16.msra.mxu0 %v1200
    %2890 = vmatprep.subr.bf16.mxu0 0
    %2891 = vmatpush1.bf16.msra.mxu0 0
    %2892 = vmatprep.subr.bf16.mxu0 0
    %2893 = vmatpush1.bf16.msra.mxu0 0
    %2894 = vmatprep.subr.bf16.mxu0 0
    %2895 = vmatpush1.bf16.msra.mxu0 0
    %2896 = vmatprep.subr.bf16.mxu0 0
    %2897 = vmatpush1.bf16.msra.mxu0 0
    %2898 = vmatprep.subr.bf16.mxu0 0
    %2899 = vmatpush1.bf16.msra.mxu0 0
    %2900 = vmatprep.subr.bf16.mxu0 0
    %2901 = vmatpush1.bf16.msra.mxu0 0
    %2902 = vmatprep.subr.bf16.mxu0 0
    %2903 = vmatpush1.bf16.msra.mxu0 0
    %2904 = vmatprep.subr.bf16.mxu0 0
    %2905 = vmatpush1.bf16.msra.mxu0 0
    %2906 = vmatprep.subr.bf16.mxu0 0
    %2907 = vmatpush1.bf16.msra.mxu0 0
    %2908 = vmatprep.subr.bf16.mxu0 0
    %2909 = vmatpush1.bf16.msra.mxu0 0
    %2910 = vmatprep.subr.bf16.mxu0 0
    %2911 = vmatpush1.bf16.msra.mxu0 0
    %2912 = vmatprep.subr.bf16.mxu0 0
    %2913 = vmatpush1.bf16.msra.mxu0 0
    %2914 = vmatprep.subr.bf16.mxu0 0
    %2915 = vmatpush1.bf16.msra.mxu0 0
    %2916 = vmatprep.subr.bf16.mxu0 0
    %2917 = vmatpush1.bf16.msra.mxu0 0
    %2918 = vmatprep.mubr.bf16.mxu0 0
    %2919 = vmatmul.mubr.bf16.gmra.mrb[0].mxu0 %v2638
    %v2920 = vpop.f32.mrb[0].mxu0
    %v2921 = vadd.f32 0.0, %v2920
    %v2922 = vpop.f32.mrb[0].mxu0
    %v2923 = vpop.f32.mrb[0].mxu0
    %v2924 = vpop.f32.mrb[0].mxu0
    %2925 = vdwg.mxu0
    %v2926 = vadd.f32 %v2885, %v2921
    %v2927 = vxor.u32 %v2680, 2147483648
    %v2928 = vmul.f32 %v2927, 1.442695
    %v2929 = vpow.pop %v2928
    %v2930 = vadd.f32 %v2929, 1.0
    %v2931 = vrcp.pop %v2930
    %v2932 = vmul.f32 1.0, %v2931
    %v2933 = vxor.u32 %v2762, 2147483648
    %v2934 = vmul.f32 %v2933, 1.442695
    %v2935 = vpow.pop %v2934
    %v2936 = vadd.f32 %v2935, 1.0
    %v2937 = vrcp.pop %v2936
    %v2938 = vmul.f32 1.0, %v2937
    %v2939 = vtanh.pop %v2844
    %v2940 = vxor.u32 %v2926, 2147483648
    %v2941 = vmul.f32 %v2940, 1.442695
    %v2942 = vpow.pop %v2941
    %v2943 = vadd.f32 %v2942, 1.0
    %v2944 = vrcp.pop %v2943
    %v2945 = vmul.f32 1.0, %v2944
    %v2946 = vmul.f32 %v2938, %v2395
    %v2947 = vmul.f32 %v2932, %v2939
    %v2948 = vadd.f32 %v2946, %v2947
    %v2949 = vtanh.pop %v2948
    %v2950 = vmul.f32 %v2945, %v2949
    %v2951 = vpack.c.bf16 %v2595, %v2595
    %v2952 = vpack.c.bf16 %v2950, %v2950
    %v2954 = vsel %vm521, %v2951, 0
    %2956 = vmatprep.subr.bf16.mxu0 0
    %2957 = vmatpush1.bf16.msra.mxu0 %v517
    %2958 = vmatprep.subr.bf16.mxu0 0
    %2959 = vmatpush1.bf16.msra.mxu0 %v518
    %2960 = vmatprep.subr.bf16.mxu0 0
    %2961 = vmatpush1.bf16.msra.mxu0 0
    %2962 = vmatprep.subr.bf16.mxu0 0
    %2963 = vmatpush1.bf16.msra.mxu0 0
    %2964 = vmatprep.subr.bf16.mxu0 0
    %2965 = vmatpush1.bf16.msra.mxu0 0
    %2966 = vmatprep.subr.bf16.mxu0 0
    %2967 = vmatpush1.bf16.msra.mxu0 0
    %2968 = vmatprep.subr.bf16.mxu0 0
    %2969 = vmatpush1.bf16.msra.mxu0 0
    %2970 = vmatprep.subr.bf16.mxu0 0
    %2971 = vmatpush1.bf16.msra.mxu0 0
    %2972 = vmatprep.subr.bf16.mxu0 0
    %2973 = vmatpush1.bf16.msra.mxu0 0
    %2974 = vmatprep.subr.bf16.mxu0 0
    %2975 = vmatpush1.bf16.msra.mxu0 0
    %2976 = vmatprep.subr.bf16.mxu0 0
    %2977 = vmatpush1.bf16.msra.mxu0 0
    %2978 = vmatprep.subr.bf16.mxu0 0
    %2979 = vmatpush1.bf16.msra.mxu0 0
    %2980 = vmatprep.subr.bf16.mxu0 0
    %2981 = vmatpush1.bf16.msra.mxu0 0
    %2982 = vmatprep.subr.bf16.mxu0 0
    %2983 = vmatpush1.bf16.msra.mxu0 0
    %2984 = vmatprep.subr.bf16.mxu0 0
    %2985 = vmatpush1.bf16.msra.mxu0 0
    %2986 = vmatprep.subr.bf16.mxu0 0
    %2987 = vmatpush1.bf16.msra.mxu0 0
    %2988 = vmatprep.mubr.bf16.mxu0 0
    %2989 = vmatmul.mubr.bf16.gmra.mrb[0].mxu0 %v2954
    %v2990 = vpop.f32.mrb[0].mxu0
    %v2991 = vadd.f32 0.0, %v2990
    %v2992 = vpop.f32.mrb[0].mxu0
    %v2993 = vpop.f32.mrb[0].mxu0
    %v2994 = vpop.f32.mrb[0].mxu0
    %2995 = vdwg.mxu0
    %v2997 = vrot.slane %v2991, 6
    %v2999 = vadd.f32 %v213, %v2997
    %3000 = vmatprep.subr.bf16.mxu0 0
    %3001 = vmatpush1.bf16.msra.mxu0 %v582
    %3002 = vmatprep.subr.bf16.mxu0 0
    %3003 = vmatpush1.bf16.msra.mxu0 %v583
    %3004 = vmatprep.subr.bf16.mxu0 0
    %3005 = vmatpush1.bf16.msra.mxu0 0
    %3006 = vmatprep.subr.bf16.mxu0 0
    %3007 = vmatpush1.bf16.msra.mxu0 0
    %3008 = vmatprep.subr.bf16.mxu0 0
    %3009 = vmatpush1.bf16.msra.mxu0 0
    %3010 = vmatprep.subr.bf16.mxu0 0
    %3011 = vmatpush1.bf16.msra.mxu0 0
    %3012 = vmatprep.subr.bf16.mxu0 0
    %3013 = vmatpush1.bf16.msra.mxu0 0
    %3014 = vmatprep.subr.bf16.mxu0 0
    %3015 = vmatpush1.bf16.msra.mxu0 0
    %3016 = vmatprep.subr.bf16.mxu0 0
    %3017 = vmatpush1.bf16.msra.mxu0 0
    %3018 = vmatprep.subr.bf16.mxu0 0
    %3019 = vmatpush1.bf16.msra.mxu0 0
    %3020 = vmatprep.subr.bf16.mxu0 0
    %3021 = vmatpush1.bf16.msra.mxu0 0
    %3022 = vmatprep.subr.bf16.mxu0 0
    %3023 = vmatpush1.bf16.msra.mxu0 0
    %3024 = vmatprep.subr.bf16.mxu0 0
    %3025 = vmatpush1.bf16.msra.mxu0 0
    %3026 = vmatprep.subr.bf16.mxu0 0
    %3027 = vmatpush1.bf16.msra.mxu0 0
    %3028 = vmatprep.subr.bf16.mxu0 0
    %3029 = vmatpush1.bf16.msra.mxu0 0
    %3030 = vmatprep.subr.bf16.mxu0 0
    %3031 = vmatpush1.bf16.msra.mxu0 0
    %3032 = vmatprep.mubr.bf16.mxu0 0
    %3033 = vmatmul.mubr.bf16.gmra.mrb[0].mxu0 %v2954
    %v3034 = vpop.f32.mrb[0].mxu0
    %v3035 = vadd.f32 0.0, %v3034
    %v3036 = vpop.f32.mrb[0].mxu0
    %v3037 = vpop.f32.mrb[0].mxu0
    %v3038 = vpop.f32.mrb[0].mxu0
    %3039 = vdwg.mxu0
    %v3041 = vrot.slane %v3035, 6
    %v3043 = vadd.f32 %v301, %v3041
    %3044 = vmatprep.subr.bf16.mxu0 0
    %3045 = vmatpush1.bf16.msra.mxu0 %v643
    %3046 = vmatprep.subr.bf16.mxu0 0
    %3047 = vmatpush1.bf16.msra.mxu0 %v644
    %3048 = vmatprep.subr.bf16.mxu0 0
    %3049 = vmatpush1.bf16.msra.mxu0 0
    %3050 = vmatprep.subr.bf16.mxu0 0
    %3051 = vmatpush1.bf16.msra.mxu0 0
    %3052 = vmatprep.subr.bf16.mxu0 0
    %3053 = vmatpush1.bf16.msra.mxu0 0
    %3054 = vmatprep.subr.bf16.mxu0 0
    %3055 = vmatpush1.bf16.msra.mxu0 0
    %3056 = vmatprep.subr.bf16.mxu0 0
    %3057 = vmatpush1.bf16.msra.mxu0 0
    %3058 = vmatprep.subr.bf16.mxu0 0
    %3059 = vmatpush1.bf16.msra.mxu0 0
    %3060 = vmatprep.subr.bf16.mxu0 0
    %3061 = vmatpush1.bf16.msra.mxu0 0
    %3062 = vmatprep.subr.bf16.mxu0 0
    %3063 = vmatpush1.bf16.msra.mxu0 0
    %3064 = vmatprep.subr.bf16.mxu0 0
    %3065 = vmatpush1.bf16.msra.mxu0 0
    %3066 = vmatprep.subr.bf16.mxu0 0
    %3067 = vmatpush1.bf16.msra.mxu0 0
    %3068 = vmatprep.subr.bf16.mxu0 0
    %3069 = vmatpush1.bf16.msra.mxu0 0
    %3070 = vmatprep.subr.bf16.mxu0 0
    %3071 = vmatpush1.bf16.msra.mxu0 0
    %3072 = vmatprep.subr.bf16.mxu0 0
    %3073 = vmatpush1.bf16.msra.mxu0 0
    %3074 = vmatprep.subr.bf16.mxu0 0
    %3075 = vmatpush1.bf16.msra.mxu0 0
    %3076 = vmatprep.mubr.bf16.mxu0 0
    %3077 = vmatmul.mubr.bf16.gmra.mrb[0].mxu0 %v2954
    %v3078 = vpop.f32.mrb[0].mxu0
    %v3079 = vadd.f32 0.0, %v3078
    %v3080 = vpop.f32.mrb[0].mxu0
    %v3081 = vpop.f32.mrb[0].mxu0
    %v3082 = vpop.f32.mrb[0].mxu0
    %3083 = vdwg.mxu0
    %v3085 = vrot.slane %v3079, 6
    %v3087 = vadd.f32 %v389, %v3085
    %3088 = vmatprep.subr.bf16.mxu0 0
    %3089 = vmatpush1.bf16.msra.mxu0 %v704
    %3090 = vmatprep.subr.bf16.mxu0 0
    %3091 = vmatpush1.bf16.msra.mxu0 %v705
    %3092 = vmatprep.subr.bf16.mxu0 0
    %3093 = vmatpush1.bf16.msra.mxu0 0
    %3094 = vmatprep.subr.bf16.mxu0 0
    %3095 = vmatpush1.bf16.msra.mxu0 0
    %3096 = vmatprep.subr.bf16.mxu0 0
    %3097 = vmatpush1.bf16.msra.mxu0 0
    %3098 = vmatprep.subr.bf16.mxu0 0
    %3099 = vmatpush1.bf16.msra.mxu0 0
    %3100 = vmatprep.subr.bf16.mxu0 0
    %3101 = vmatpush1.bf16.msra.mxu0 0
    %3102 = vmatprep.subr.bf16.mxu0 0
    %3103 = vmatpush1.bf16.msra.mxu0 0
    %3104 = vmatprep.subr.bf16.mxu0 0
    %3105 = vmatpush1.bf16.msra.mxu0 0
    %3106 = vmatprep.subr.bf16.mxu0 0
    %3107 = vmatpush1.bf16.msra.mxu0 0
    %3108 = vmatprep.subr.bf16.mxu0 0
    %3109 = vmatpush1.bf16.msra.mxu0 0
    %3110 = vmatprep.subr.bf16.mxu0 0
    %3111 = vmatpush1.bf16.msra.mxu0 0
    %3112 = vmatprep.subr.bf16.mxu0 0
    %3113 = vmatpush1.bf16.msra.mxu0 0
    %3114 = vmatprep.subr.bf16.mxu0 0
    %3115 = vmatpush1.bf16.msra.mxu0 0
    %3116 = vmatprep.subr.bf16.mxu0 0
    %3117 = vmatpush1.bf16.msra.mxu0 0
    %3118 = vmatprep.subr.bf16.mxu0 0
    %3119 = vmatpush1.bf16.msra.mxu0 0
    %3120 = vmatprep.mubr.bf16.mxu0 0
    %3121 = vmatmul.mubr.bf16.gmra.mrb[0].mxu0 %v2954
    %v3122 = vpop.f32.mrb[0].mxu0
    %v3123 = vadd.f32 0.0, %v3122
    %v3124 = vpop.f32.mrb[0].mxu0
    %v3125 = vpop.f32.mrb[0].mxu0
    %v3126 = vpop.f32.mrb[0].mxu0
    %3127 = vdwg.mxu0
    %v3129 = vrot.slane %v3123, 6
    %v3131 = vadd.f32 %v477, %v3129
    %v3132 = vxor.u32 %v2999, 2147483648
    %v3133 = vmul.f32 %v3132, 1.442695
    %v3134 = vpow.pop %v3133
    %v3135 = vadd.f32 %v3134, 1.0
    %v3136 = vrcp.pop %v3135
    %v3137 = vmul.f32 1.0, %v3136
    %v3138 = vxor.u32 %v3043, 2147483648
    %v3139 = vmul.f32 %v3138, 1.442695
    %v3140 = vpow.pop %v3139
    %v3141 = vadd.f32 %v3140, 1.0
    %v3142 = vrcp.pop %v3141
    %v3143 = vmul.f32 1.0, %v3142
    %v3144 = vtanh.pop %v3087
    %v3145 = vxor.u32 %v3131, 2147483648
    %v3146 = vmul.f32 %v3145, 1.442695
    %v3147 = vpow.pop %v3146
    %v3148 = vadd.f32 %v3147, 1.0
    %v3149 = vrcp.pop %v3148
    %v3150 = vmul.f32 1.0, %v3149
    %v3152 = vrot.slane %v2593, 6
    %v3154 = vmul.f32 %v3143, %v3152
    %v3155 = vmul.f32 %v3137, %v3144
    %v3156 = vadd.f32 %v3154, %v3155
    %v3157 = vtanh.pop %v3156
    %v3158 = vmul.f32 %v3150, %v3157
    %3159 = vmatprep.subr.bf16.mxu0 0
    %3160 = vmatpush1.bf16.msra.mxu0 %v791
    %3161 = vmatprep.subr.bf16.mxu0 0
    %3162 = vmatpush1.bf16.msra.mxu0 %v792
    %3163 = vmatprep.subr.bf16.mxu0 0
    %3164 = vmatpush1.bf16.msra.mxu0 0
    %3165 = vmatprep.subr.bf16.mxu0 0
    %3166 = vmatpush1.bf16.msra.mxu0 0
    %3167 = vmatprep.subr.bf16.mxu0 0
    %3168 = vmatpush1.bf16.msra.mxu0 0
    %3169 = vmatprep.subr.bf16.mxu0 0
    %3170 = vmatpush1.bf16.msra.mxu0 0
    %3171 = vmatprep.subr.bf16.mxu0 0
    %3172 = vmatpush1.bf16.msra.mxu0 0
    %3173 = vmatprep.subr.bf16.mxu0 0
    %3174 = vmatpush1.bf16.msra.mxu0 0
    %3175 = vmatprep.subr.bf16.mxu0 0
    %3176 = vmatpush1.bf16.msra.mxu0 0
    %3177 = vmatprep.subr.bf16.mxu0 0
    %3178 = vmatpush1.bf16.msra.mxu0 0
    %3179 = vmatprep.subr.bf16.mxu0 0
    %3180 = vmatpush1.bf16.msra.mxu0 0
    %3181 = vmatprep.subr.bf16.mxu0 0
    %3182 = vmatpush1.bf16.msra.mxu0 0
    %3183 = vmatprep.subr.bf16.mxu0 0
    %3184 = vmatpush1.bf16.msra.mxu0 0
    %3185 = vmatprep.subr.bf16.mxu0 0
    %3186 = vmatpush1.bf16.msra.mxu0 0
    %3187 = vmatprep.subr.bf16.mxu0 0
    %3188 = vmatpush1.bf16.msra.mxu0 0
    %3189 = vmatprep.subr.bf16.mxu0 0
    %3190 = vmatpush1.bf16.msra.mxu0 0
    %3191 = vmatprep.mubr.bf16.mxu0 0
    %3192 = vmatmul.mubr.bf16.gmra.mrb[0].mxu0 %v2954
    %v3193 = vpop.f32.mrb[0].mxu0
    %v3194 = vadd.f32 0.0, %v3193
    %v3195 = vpop.f32.mrb[0].mxu0
    %v3196 = vpop.f32.mrb[0].mxu0
    %v3197 = vpop.f32.mrb[0].mxu0
    %3198 = vdwg.mxu0
    %v3199 = vadd.f32 %v94, %v3194
    %v3201 = vsel %vm521, %v2952, 0
    %3203 = vmatprep.subr.bf16.mxu0 0
    %3204 = vmatpush1.bf16.msra.mxu0 %v848
    %3205 = vmatprep.subr.bf16.mxu0 0
    %3206 = vmatpush1.bf16.msra.mxu0 %v849
    %3207 = vmatprep.subr.bf16.mxu0 0
    %3208 = vmatpush1.bf16.msra.mxu0 0
    %3209 = vmatprep.subr.bf16.mxu0 0
    %3210 = vmatpush1.bf16.msra.mxu0 0
    %3211 = vmatprep.subr.bf16.mxu0 0
    %3212 = vmatpush1.bf16.msra.mxu0 0
    %3213 = vmatprep.subr.bf16.mxu0 0
    %3214 = vmatpush1.bf16.msra.mxu0 0
    %3215 = vmatprep.subr.bf16.mxu0 0
    %3216 = vmatpush1.bf16.msra.mxu0 0
    %3217 = vmatprep.subr.bf16.mxu0 0
    %3218 = vmatpush1.bf16.msra.mxu0 0
    %3219 = vmatprep.subr.bf16.mxu0 0
    %3220 = vmatpush1.bf16.msra.mxu0 0
    %3221 = vmatprep.subr.bf16.mxu0 0
    %3222 = vmatpush1.bf16.msra.mxu0 0
    %3223 = vmatprep.subr.bf16.mxu0 0
    %3224 = vmatpush1.bf16.msra.mxu0 0
    %3225 = vmatprep.subr.bf16.mxu0 0
    %3226 = vmatpush1.bf16.msra.mxu0 0
    %3227 = vmatprep.subr.bf16.mxu0 0
    %3228 = vmatpush1.bf16.msra.mxu0 0
    %3229 = vmatprep.subr.bf16.mxu0 0
    %3230 = vmatpush1.bf16.msra.mxu0 0
    %3231 = vmatprep.subr.bf16.mxu0 0
    %3232 = vmatpush1.bf16.msra.mxu0 0
    %3233 = vmatprep.subr.bf16.mxu0 0
    %3234 = vmatpush1.bf16.msra.mxu0 0
    %3235 = vmatprep.mubr.bf16.mxu0 0
    %3236 = vmatmul.mubr.bf16.gmra.mrb[0].mxu0 %v3201
    %v3237 = vpop.f32.mrb[0].mxu0
    %v3238 = vadd.f32 0.0, %v3237
    %v3239 = vpop.f32.mrb[0].mxu0
    %v3240 = vpop.f32.mrb[0].mxu0
    %v3241 = vpop.f32.mrb[0].mxu0
    %3242 = vdwg.mxu0
    %v3243 = vadd.f32 %v3199, %v3238
    %3244 = vmatprep.subr.bf16.mxu0 0
    %3245 = vmatpush1.bf16.msra.mxu0 %v909
    %3246 = vmatprep.subr.bf16.mxu0 0
    %3247 = vmatpush1.bf16.msra.mxu0 %v910
    %3248 = vmatprep.subr.bf16.mxu0 0
    %3249 = vmatpush1.bf16.msra.mxu0 0
    %3250 = vmatprep.subr.bf16.mxu0 0
    %3251 = vmatpush1.bf16.msra.mxu0 0
    %3252 = vmatprep.subr.bf16.mxu0 0
    %3253 = vmatpush1.bf16.msra.mxu0 0
    %3254 = vmatprep.subr.bf16.mxu0 0
    %3255 = vmatpush1.bf16.msra.mxu0 0
    %3256 = vmatprep.subr.bf16.mxu0 0
    %3257 = vmatpush1.bf16.msra.mxu0 0
    %3258 = vmatprep.subr.bf16.mxu0 0
    %3259 = vmatpush1.bf16.msra.mxu0 0
    %3260 = vmatprep.subr.bf16.mxu0 0
    %3261 = vmatpush1.bf16.msra.mxu0 0
    %3262 = vmatprep.subr.bf16.mxu0 0
    %3263 = vmatpush1.bf16.msra.mxu0 0
    %3264 = vmatprep.subr.bf16.mxu0 0
    %3265 = vmatpush1.bf16.msra.mxu0 0
    %3266 = vmatprep.subr.bf16.mxu0 0
    %3267 = vmatpush1.bf16.msra.mxu0 0
    %3268 = vmatprep.subr.bf16.mxu0 0
    %3269 = vmatpush1.bf16.msra.mxu0 0
    %3270 = vmatprep.subr.bf16.mxu0 0
    %3271 = vmatpush1.bf16.msra.mxu0 0
    %3272 = vmatprep.subr.bf16.mxu0 0
    %3273 = vmatpush1.bf16.msra.mxu0 0
    %3274 = vmatprep.subr.bf16.mxu0 0
    %3275 = vmatpush1.bf16.msra.mxu0 0
    %3276 = vmatprep.mubr.bf16.mxu0 0
    %3277 = vmatmul.mubr.bf16.gmra.mrb[0].mxu0 %v2954
    %v3278 = vpop.f32.mrb[0].mxu0
    %v3279 = vadd.f32 0.0, %v3278
    %v3280 = vpop.f32.mrb[0].mxu0
    %v3281 = vpop.f32.mrb[0].mxu0
    %v3282 = vpop.f32.mrb[0].mxu0
    %3283 = vdwg.mxu0
    %v3284 = vadd.f32 %v102, %v3279
    %3285 = vmatprep.subr.bf16.mxu0 0
    %3286 = vmatpush1.bf16.msra.mxu0 %v967
    %3287 = vmatprep.subr.bf16.mxu0 0
    %3288 = vmatpush1.bf16.msra.mxu0 %v968
    %3289 = vmatprep.subr.bf16.mxu0 0
    %3290 = vmatpush1.bf16.msra.mxu0 0
    %3291 = vmatprep.subr.bf16.mxu0 0
    %3292 = vmatpush1.bf16.msra.mxu0 0
    %3293 = vmatprep.subr.bf16.mxu0 0
    %3294 = vmatpush1.bf16.msra.mxu0 0
    %3295 = vmatprep.subr.bf16.mxu0 0
    %3296 = vmatpush1.bf16.msra.mxu0 0
    %3297 = vmatprep.subr.bf16.mxu0 0
    %3298 = vmatpush1.bf16.msra.mxu0 0
    %3299 = vmatprep.subr.bf16.mxu0 0
    %3300 = vmatpush1.bf16.msra.mxu0 0
    %3301 = vmatprep.subr.bf16.mxu0 0
    %3302 = vmatpush1.bf16.msra.mxu0 0
    %3303 = vmatprep.subr.bf16.mxu0 0
    %3304 = vmatpush1.bf16.msra.mxu0 0
    %3305 = vmatprep.subr.bf16.mxu0 0
    %3306 = vmatpush1.bf16.msra.mxu0 0
    %3307 = vmatprep.subr.bf16.mxu0 0
    %3308 = vmatpush1.bf16.msra.mxu0 0
    %3309 = vmatprep.subr.bf16.mxu0 0
    %3310 = vmatpush1.bf16.msra.mxu0 0
    %3311 = vmatprep.subr.bf16.mxu0 0
    %3312 = vmatpush1.bf16.msra.mxu0 0
    %3313 = vmatprep.subr.bf16.mxu0 0
    %3314 = vmatpush1.bf16.msra.mxu0 0
    %3315 = vmatprep.subr.bf16.mxu0 0
    %3316 = vmatpush1.bf16.msra.mxu0 0
    %3317 = vmatprep.mubr.bf16.mxu0 0
    %3318 = vmatmul.mubr.bf16.gmra.mrb[0].mxu0 %v3201
    %v3319 = vpop.f32.mrb[0].mxu0
    %v3320 = vadd.f32 0.0, %v3319
    %v3321 = vpop.f32.mrb[0].mxu0
    %v3322 = vpop.f32.mrb[0].mxu0
    %v3323 = vpop.f32.mrb[0].mxu0
    %3324 = vdwg.mxu0
    %v3325 = vadd.f32 %v3284, %v3320
    %3326 = vmatprep.subr.bf16.mxu0 0
    %3327 = vmatpush1.bf16.msra.mxu0 %v1025
    %3328 = vmatprep.subr.bf16.mxu0 0
    %3329 = vmatpush1.bf16.msra.mxu0 %v1026
    %3330 = vmatprep.subr.bf16.mxu0 0
    %3331 = vmatpush1.bf16.msra.mxu0 0
    %3332 = vmatprep.subr.bf16.mxu0 0
    %3333 = vmatpush1.bf16.msra.mxu0 0
    %3334 = vmatprep.subr.bf16.mxu0 0
    %3335 = vmatpush1.bf16.msra.mxu0 0
    %3336 = vmatprep.subr.bf16.mxu0 0
    %3337 = vmatpush1.bf16.msra.mxu0 0
    %3338 = vmatprep.subr.bf16.mxu0 0
    %3339 = vmatpush1.bf16.msra.mxu0 0
    %3340 = vmatprep.subr.bf16.mxu0 0
    %3341 = vmatpush1.bf16.msra.mxu0 0
    %3342 = vmatprep.subr.bf16.mxu0 0
    %3343 = vmatpush1.bf16.msra.mxu0 0
    %3344 = vmatprep.subr.bf16.mxu0 0
    %3345 = vmatpush1.bf16.msra.mxu0 0
    %3346 = vmatprep.subr.bf16.mxu0 0
    %3347 = vmatpush1.bf16.msra.mxu0 0
    %3348 = vmatprep.subr.bf16.mxu0 0
    %3349 = vmatpush1.bf16.msra.mxu0 0
    %3350 = vmatprep.subr.bf16.mxu0 0
    %3351 = vmatpush1.bf16.msra.mxu0 0
    %3352 = vmatprep.subr.bf16.mxu0 0
    %3353 = vmatpush1.bf16.msra.mxu0 0
    %3354 = vmatprep.subr.bf16.mxu0 0
    %3355 = vmatpush1.bf16.msra.mxu0 0
    %3356 = vmatprep.subr.bf16.mxu0 0
    %3357 = vmatpush1.bf16.msra.mxu0 0
    %3358 = vmatprep.mubr.bf16.mxu0 0
    %3359 = vmatmul.mubr.bf16.gmra.mrb[0].mxu0 %v2954
    %v3360 = vpop.f32.mrb[0].mxu0
    %v3361 = vadd.f32 0.0, %v3360
    %v3362 = vpop.f32.mrb[0].mxu0
    %v3363 = vpop.f32.mrb[0].mxu0
    %v3364 = vpop.f32.mrb[0].mxu0
    %3365 = vdwg.mxu0
    %v3366 = vadd.f32 %v110, %v3361
    %3367 = vmatprep.subr.bf16.mxu0 0
    %3368 = vmatpush1.bf16.msra.mxu0 %v1083
    %3369 = vmatprep.subr.bf16.mxu0 0
    %3370 = vmatpush1.bf16.msra.mxu0 %v1084
    %3371 = vmatprep.subr.bf16.mxu0 0
    %3372 = vmatpush1.bf16.msra.mxu0 0
    %3373 = vmatprep.subr.bf16.mxu0 0
    %3374 = vmatpush1.bf16.msra.mxu0 0
    %3375 = vmatprep.subr.bf16.mxu0 0
    %3376 = vmatpush1.bf16.msra.mxu0 0
    %3377 = vmatprep.subr.bf16.mxu0 0
    %3378 = vmatpush1.bf16.msra.mxu0 0
    %3379 = vmatprep.subr.bf16.mxu0 0
    %3380 = vmatpush1.bf16.msra.mxu0 0
    %3381 = vmatprep.subr.bf16.mxu0 0
    %3382 = vmatpush1.bf16.msra.mxu0 0
    %3383 = vmatprep.subr.bf16.mxu0 0
    %3384 = vmatpush1.bf16.msra.mxu0 0
    %3385 = vmatprep.subr.bf16.mxu0 0
    %3386 = vmatpush1.bf16.msra.mxu0 0
    %3387 = vmatprep.subr.bf16.mxu0 0
    %3388 = vmatpush1.bf16.msra.mxu0 0
    %3389 = vmatprep.subr.bf16.mxu0 0
    %3390 = vmatpush1.bf16.msra.mxu0 0
    %3391 = vmatprep.subr.bf16.mxu0 0
    %3392 = vmatpush1.bf16.msra.mxu0 0
    %3393 = vmatprep.subr.bf16.mxu0 0
    %3394 = vmatpush1.bf16.msra.mxu0 0
    %3395 = vmatprep.subr.bf16.mxu0 0
    %3396 = vmatpush1.bf16.msra.mxu0 0
    %3397 = vmatprep.subr.bf16.mxu0 0
    %3398 = vmatpush1.bf16.msra.mxu0 0
    %3399 = vmatprep.mubr.bf16.mxu0 0
    %3400 = vmatmul.mubr.bf16.gmra.mrb[0].mxu0 %v3201
    %v3401 = vpop.f32.mrb[0].mxu0
    %v3402 = vadd.f32 0.0, %v3401
    %v3403 = vpop.f32.mrb[0].mxu0
    %v3404 = vpop.f32.mrb[0].mxu0
    %v3405 = vpop.f32.mrb[0].mxu0
    %3406 = vdwg.mxu0
    %v3407 = vadd.f32 %v3366, %v3402
    %3408 = vmatprep.subr.bf16.mxu0 0
    %3409 = vmatpush1.bf16.msra.mxu0 %v1141
    %3410 = vmatprep.subr.bf16.mxu0 0
    %3411 = vmatpush1.bf16.msra.mxu0 %v1142
    %3412 = vmatprep.subr.bf16.mxu0 0
    %3413 = vmatpush1.bf16.msra.mxu0 0
    %3414 = vmatprep.subr.bf16.mxu0 0
    %3415 = vmatpush1.bf16.msra.mxu0 0
    %3416 = vmatprep.subr.bf16.mxu0 0
    %3417 = vmatpush1.bf16.msra.mxu0 0
    %3418 = vmatprep.subr.bf16.mxu0 0
    %3419 = vmatpush1.bf16.msra.mxu0 0
    %3420 = vmatprep.subr.bf16.mxu0 0
    %3421 = vmatpush1.bf16.msra.mxu0 0
    %3422 = vmatprep.subr.bf16.mxu0 0
    %3423 = vmatpush1.bf16.msra.mxu0 0
    %3424 = vmatprep.subr.bf16.mxu0 0
    %3425 = vmatpush1.bf16.msra.mxu0 0
    %3426 = vmatprep.subr.bf16.mxu0 0
    %3427 = vmatpush1.bf16.msra.mxu0 0
    %3428 = vmatprep.subr.bf16.mxu0 0
    %3429 = vmatpush1.bf16.msra.mxu0 0
    %3430 = vmatprep.subr.bf16.mxu0 0
    %3431 = vmatpush1.bf16.msra.mxu0 0
    %3432 = vmatprep.subr.bf16.mxu0 0
    %3433 = vmatpush1.bf16.msra.mxu0 0
    %3434 = vmatprep.subr.bf16.mxu0 0
    %3435 = vmatpush1.bf16.msra.mxu0 0
    %3436 = vmatprep.subr.bf16.mxu0 0
    %3437 = vmatpush1.bf16.msra.mxu0 0
    %3438 = vmatprep.subr.bf16.mxu0 0
    %3439 = vmatpush1.bf16.msra.mxu0 0
    %3440 = vmatprep.mubr.bf16.mxu0 0
    %3441 = vmatmul.mubr.bf16.gmra.mrb[0].mxu0 %v2954
    %v3442 = vpop.f32.mrb[0].mxu0
    %v3443 = vadd.f32 0.0, %v3442
    %v3444 = vpop.f32.mrb[0].mxu0
    %v3445 = vpop.f32.mrb[0].mxu0
    %v3446 = vpop.f32.mrb[0].mxu0
    %3447 = vdwg.mxu0
    %v3448 = vadd.f32 %v118, %v3443
    %3449 = vmatprep.subr.bf16.mxu0 0
    %3450 = vmatpush1.bf16.msra.mxu0 %v1199
    %3451 = vmatprep.subr.bf16.mxu0 0
    %3452 = vmatpush1.bf16.msra.mxu0 %v1200
    %3453 = vmatprep.subr.bf16.mxu0 0
    %3454 = vmatpush1.bf16.msra.mxu0 0
    %3455 = vmatprep.subr.bf16.mxu0 0
    %3456 = vmatpush1.bf16.msra.mxu0 0
    %3457 = vmatprep.subr.bf16.mxu0 0
    %3458 = vmatpush1.bf16.msra.mxu0 0
    %3459 = vmatprep.subr.bf16.mxu0 0
    %3460 = vmatpush1.bf16.msra.mxu0 0
    %3461 = vmatprep.subr.bf16.mxu0 0
    %3462 = vmatpush1.bf16.msra.mxu0 0
    %3463 = vmatprep.subr.bf16.mxu0 0
    %3464 = vmatpush1.bf16.msra.mxu0 0
    %3465 = vmatprep.subr.bf16.mxu0 0
    %3466 = vmatpush1.bf16.msra.mxu0 0
    %3467 = vmatprep.subr.bf16.mxu0 0
    %3468 = vmatpush1.bf16.msra.mxu0 0
    %3469 = vmatprep.subr.bf16.mxu0 0
    %3470 = vmatpush1.bf16.msra.mxu0 0
    %3471 = vmatprep.subr.bf16.mxu0 0
    %3472 = vmatpush1.bf16.msra.mxu0 0
    %3473 = vmatprep.subr.bf16.mxu0 0
    %3474 = vmatpush1.bf16.msra.mxu0 0
    %3475 = vmatprep.subr.bf16.mxu0 0
    %3476 = vmatpush1.bf16.msra.mxu0 0
    %3477 = vmatprep.subr.bf16.mxu0 0
    %3478 = vmatpush1.bf16.msra.mxu0 0
    %3479 = vmatprep.subr.bf16.mxu0 0
    %3480 = vmatpush1.bf16.msra.mxu0 0
    %3481 = vmatprep.mubr.bf16.mxu0 0
    %3482 = vmatmul.mubr.bf16.gmra.mrb[0].mxu0 %v3201
    %v3483 = vpop.f32.mrb[0].mxu0
    %v3484 = vadd.f32 0.0, %v3483
    %v3485 = vpop.f32.mrb[0].mxu0
    %v3486 = vpop.f32.mrb[0].mxu0
    %v3487 = vpop.f32.mrb[0].mxu0
    %3488 = vdwg.mxu0
    %v3489 = vadd.f32 %v3448, %v3484
    %v3490 = vxor.u32 %v3243, 2147483648
    %v3491 = vmul.f32 %v3490, 1.442695
    %v3492 = vpow.pop %v3491
    %v3493 = vadd.f32 %v3492, 1.0
    %v3494 = vrcp.pop %v3493
    %v3495 = vmul.f32 1.0, %v3494
    %v3496 = vxor.u32 %v3325, 2147483648
    %v3497 = vmul.f32 %v3496, 1.442695
    %v3498 = vpow.pop %v3497
    %v3499 = vadd.f32 %v3498, 1.0
    %v3500 = vrcp.pop %v3499
    %v3501 = vmul.f32 1.0, %v3500
    %v3502 = vtanh.pop %v3407
    %v3503 = vxor.u32 %v3489, 2147483648
    %v3504 = vmul.f32 %v3503, 1.442695
    %v3505 = vpow.pop %v3504
    %v3506 = vadd.f32 %v3505, 1.0
    %v3507 = vrcp.pop %v3506
    %v3508 = vmul.f32 1.0, %v3507
    %v3509 = vmul.f32 %v3501, %v2948
    %v3510 = vmul.f32 %v3495, %v3502
    %v3511 = vadd.f32 %v3509, %v3510
    %v3512 = vtanh.pop %v3511
    %v3513 = vmul.f32 %v3508, %v3512
    %v3514 = vpack.c.bf16 %v3158, %v3158
    %v3515 = vpack.c.bf16 %v3513, %v3513
    %v3517 = vrot.slane %v3514, 1
    %v3519 = vsel %vm521, %v3517, 0
    %3521 = vmatprep.subr.bf16.mxu0 0
    %3522 = vmatpush1.bf16.msra.mxu0 %v517
    %3523 = vmatprep.subr.bf16.mxu0 0
    %3524 = vmatpush1.bf16.msra.mxu0 %v518
    %3525 = vmatprep.subr.bf16.mxu0 0
    %3526 = vmatpush1.bf16.msra.mxu0 0
    %3527 = vmatprep.subr.bf16.mxu0 0
    %3528 = vmatpush1.bf16.msra.mxu0 0
    %3529 = vmatprep.subr.bf16.mxu0 0
    %3530 = vmatpush1.bf16.msra.mxu0 0
    %3531 = vmatprep.subr.bf16.mxu0 0
    %3532 = vmatpush1.bf16.msra.mxu0 0
    %3533 = vmatprep.subr.bf16.mxu0 0
    %3534 = vmatpush1.bf16.msra.mxu0 0
    %3535 = vmatprep.subr.bf16.mxu0 0
    %3536 = vmatpush1.bf16.msra.mxu0 0
    %3537 = vmatprep.subr.bf16.mxu0 0
    %3538 = vmatpush1.bf16.msra.mxu0 0
    %3539 = vmatprep.subr.bf16.mxu0 0
    %3540 = vmatpush1.bf16.msra.mxu0 0
    %3541 = vmatprep.subr.bf16.mxu0 0
    %3542 = vmatpush1.bf16.msra.mxu0 0
    %3543 = vmatprep.subr.bf16.mxu0 0
    %3544 = vmatpush1.bf16.msra.mxu0 0
    %3545 = vmatprep.subr.bf16.mxu0 0
    %3546 = vmatpush1.bf16.msra.mxu0 0
    %3547 = vmatprep.subr.bf16.mxu0 0
    %3548 = vmatpush1.bf16.msra.mxu0 0
    %3549 = vmatprep.subr.bf16.mxu0 0
    %3550 = vmatpush1.bf16.msra.mxu0 0
    %3551 = vmatprep.subr.bf16.mxu0 0
    %3552 = vmatpush1.bf16.msra.mxu0 0
    %3553 = vmatprep.mubr.bf16.mxu0 0
    %3554 = vmatmul.mubr.bf16.gmra.mrb[0].mxu0 %v3519
    %v3555 = vpop.f32.mrb[0].mxu0
    %v3556 = vadd.f32 0.0, %v3555
    %v3557 = vpop.f32.mrb[0].mxu0
    %v3558 = vpop.f32.mrb[0].mxu0
    %v3559 = vpop.f32.mrb[0].mxu0
    %3560 = vdwg.mxu0
    %v3562 = vrot.slane %v3556, 4
    %v3564 = vadd.f32 %v213, %v3562
    %3565 = vmatprep.subr.bf16.mxu0 0
    %3566 = vmatpush1.bf16.msra.mxu0 %v582
    %3567 = vmatprep.subr.bf16.mxu0 0
    %3568 = vmatpush1.bf16.msra.mxu0 %v583
    %3569 = vmatprep.subr.bf16.mxu0 0
    %3570 = vmatpush1.bf16.msra.mxu0 0
    %3571 = vmatprep.subr.bf16.mxu0 0
    %3572 = vmatpush1.bf16.msra.mxu0 0
    %3573 = vmatprep.subr.bf16.mxu0 0
    %3574 = vmatpush1.bf16.msra.mxu0 0
    %3575 = vmatprep.subr.bf16.mxu0 0
    %3576 = vmatpush1.bf16.msra.mxu0 0
    %3577 = vmatprep.subr.bf16.mxu0 0
    %3578 = vmatpush1.bf16.msra.mxu0 0
    %3579 = vmatprep.subr.bf16.mxu0 0
    %3580 = vmatpush1.bf16.msra.mxu0 0
    %3581 = vmatprep.subr.bf16.mxu0 0
    %3582 = vmatpush1.bf16.msra.mxu0 0
    %3583 = vmatprep.subr.bf16.mxu0 0
    %3584 = vmatpush1.bf16.msra.mxu0 0
    %3585 = vmatprep.subr.bf16.mxu0 0
    %3586 = vmatpush1.bf16.msra.mxu0 0
    %3587 = vmatprep.subr.bf16.mxu0 0
    %3588 = vmatpush1.bf16.msra.mxu0 0
    %3589 = vmatprep.subr.bf16.mxu0 0
    %3590 = vmatpush1.bf16.msra.mxu0 0
    %3591 = vmatprep.subr.bf16.mxu0 0
    %3592 = vmatpush1.bf16.msra.mxu0 0
    %3593 = vmatprep.subr.bf16.mxu0 0
    %3594 = vmatpush1.bf16.msra.mxu0 0
    %3595 = vmatprep.subr.bf16.mxu0 0
    %3596 = vmatpush1.bf16.msra.mxu0 0
    %3597 = vmatprep.mubr.bf16.mxu0 0
    %3598 = vmatmul.mubr.bf16.gmra.mrb[0].mxu0 %v3519
    %v3599 = vpop.f32.mrb[0].mxu0
    %v3600 = vadd.f32 0.0, %v3599
    %v3601 = vpop.f32.mrb[0].mxu0
    %v3602 = vpop.f32.mrb[0].mxu0
    %v3603 = vpop.f32.mrb[0].mxu0
    %3604 = vdwg.mxu0
    %v3606 = vrot.slane %v3600, 4
    %v3608 = vadd.f32 %v301, %v3606
    %3609 = vmatprep.subr.bf16.mxu0 0
    %3610 = vmatpush1.bf16.msra.mxu0 %v643
    %3611 = vmatprep.subr.bf16.mxu0 0
    %3612 = vmatpush1.bf16.msra.mxu0 %v644
    %3613 = vmatprep.subr.bf16.mxu0 0
    %3614 = vmatpush1.bf16.msra.mxu0 0
    %3615 = vmatprep.subr.bf16.mxu0 0
    %3616 = vmatpush1.bf16.msra.mxu0 0
    %3617 = vmatprep.subr.bf16.mxu0 0
    %3618 = vmatpush1.bf16.msra.mxu0 0
    %3619 = vmatprep.subr.bf16.mxu0 0
    %3620 = vmatpush1.bf16.msra.mxu0 0
    %3621 = vmatprep.subr.bf16.mxu0 0
    %3622 = vmatpush1.bf16.msra.mxu0 0
    %3623 = vmatprep.subr.bf16.mxu0 0
    %3624 = vmatpush1.bf16.msra.mxu0 0
    %3625 = vmatprep.subr.bf16.mxu0 0
    %3626 = vmatpush1.bf16.msra.mxu0 0
    %3627 = vmatprep.subr.bf16.mxu0 0
    %3628 = vmatpush1.bf16.msra.mxu0 0
    %3629 = vmatprep.subr.bf16.mxu0 0
    %3630 = vmatpush1.bf16.msra.mxu0 0
    %3631 = vmatprep.subr.bf16.mxu0 0
    %3632 = vmatpush1.bf16.msra.mxu0 0
    %3633 = vmatprep.subr.bf16.mxu0 0
    %3634 = vmatpush1.bf16.msra.mxu0 0
    %3635 = vmatprep.subr.bf16.mxu0 0
    %3636 = vmatpush1.bf16.msra.mxu0 0
    %3637 = vmatprep.subr.bf16.mxu0 0
    %3638 = vmatpush1.bf16.msra.mxu0 0
    %3639 = vmatprep.subr.bf16.mxu0 0
    %3640 = vmatpush1.bf16.msra.mxu0 0
    %3641 = vmatprep.mubr.bf16.mxu0 0
    %3642 = vmatmul.mubr.bf16.gmra.mrb[0].mxu0 %v3519
    %v3643 = vpop.f32.mrb[0].mxu0
    %v3644 = vadd.f32 0.0, %v3643
    %v3645 = vpop.f32.mrb[0].mxu0
    %v3646 = vpop.f32.mrb[0].mxu0
    %v3647 = vpop.f32.mrb[0].mxu0
    %3648 = vdwg.mxu0
    %v3650 = vrot.slane %v3644, 4
    %v3652 = vadd.f32 %v389, %v3650
    %3653 = vmatprep.subr.bf16.mxu0 0
    %3654 = vmatpush1.bf16.msra.mxu0 %v704
    %3655 = vmatprep.subr.bf16.mxu0 0
    %3656 = vmatpush1.bf16.msra.mxu0 %v705
    %3657 = vmatprep.subr.bf16.mxu0 0
    %3658 = vmatpush1.bf16.msra.mxu0 0
    %3659 = vmatprep.subr.bf16.mxu0 0
    %3660 = vmatpush1.bf16.msra.mxu0 0
    %3661 = vmatprep.subr.bf16.mxu0 0
    %3662 = vmatpush1.bf16.msra.mxu0 0
    %3663 = vmatprep.subr.bf16.mxu0 0
    %3664 = vmatpush1.bf16.msra.mxu0 0
    %3665 = vmatprep.subr.bf16.mxu0 0
    %3666 = vmatpush1.bf16.msra.mxu0 0
    %3667 = vmatprep.subr.bf16.mxu0 0
    %3668 = vmatpush1.bf16.msra.mxu0 0
    %3669 = vmatprep.subr.bf16.mxu0 0
    %3670 = vmatpush1.bf16.msra.mxu0 0
    %3671 = vmatprep.subr.bf16.mxu0 0
    %3672 = vmatpush1.bf16.msra.mxu0 0
    %3673 = vmatprep.subr.bf16.mxu0 0
    %3674 = vmatpush1.bf16.msra.mxu0 0
    %3675 = vmatprep.subr.bf16.mxu0 0
    %3676 = vmatpush1.bf16.msra.mxu0 0
    %3677 = vmatprep.subr.bf16.mxu0 0
    %3678 = vmatpush1.bf16.msra.mxu0 0
    %3679 = vmatprep.subr.bf16.mxu0 0
    %3680 = vmatpush1.bf16.msra.mxu0 0
    %3681 = vmatprep.subr.bf16.mxu0 0
    %3682 = vmatpush1.bf16.msra.mxu0 0
    %3683 = vmatprep.subr.bf16.mxu0 0
    %3684 = vmatpush1.bf16.msra.mxu0 0
    %3685 = vmatprep.mubr.bf16.mxu0 0
    %3686 = vmatmul.mubr.bf16.gmra.mrb[0].mxu0 %v3519
    %v3687 = vpop.f32.mrb[0].mxu0
    %v3688 = vadd.f32 0.0, %v3687
    %v3689 = vpop.f32.mrb[0].mxu0
    %v3690 = vpop.f32.mrb[0].mxu0
    %v3691 = vpop.f32.mrb[0].mxu0
    %3692 = vdwg.mxu0
    %v3694 = vrot.slane %v3688, 4
    %v3696 = vadd.f32 %v477, %v3694
    %v3697 = vxor.u32 %v3564, 2147483648
    %v3698 = vmul.f32 %v3697, 1.442695
    %v3699 = vpow.pop %v3698
    %v3700 = vadd.f32 %v3699, 1.0
    %v3701 = vrcp.pop %v3700
    %v3702 = vmul.f32 1.0, %v3701
    %v3703 = vxor.u32 %v3608, 2147483648
    %v3704 = vmul.f32 %v3703, 1.442695
    %v3705 = vpow.pop %v3704
    %v3706 = vadd.f32 %v3705, 1.0
    %v3707 = vrcp.pop %v3706
    %v3708 = vmul.f32 1.0, %v3707
    %v3709 = vtanh.pop %v3652
    %v3710 = vxor.u32 %v3696, 2147483648
    %v3711 = vmul.f32 %v3710, 1.442695
    %v3712 = vpow.pop %v3711
    %v3713 = vadd.f32 %v3712, 1.0
    %v3714 = vrcp.pop %v3713
    %v3715 = vmul.f32 1.0, %v3714
    %v3717 = vrot.slane %v3156, 6
    %v3719 = vmul.f32 %v3708, %v3717
    %v3720 = vmul.f32 %v3702, %v3709
    %v3721 = vadd.f32 %v3719, %v3720
    %v3722 = vtanh.pop %v3721
    %v3723 = vmul.f32 %v3715, %v3722
    %3724 = vmatprep.subr.bf16.mxu0 0
    %3725 = vmatpush1.bf16.msra.mxu0 %v791
    %3726 = vmatprep.subr.bf16.mxu0 0
    %3727 = vmatpush1.bf16.msra.mxu0 %v792
    %3728 = vmatprep.subr.bf16.mxu0 0
    %3729 = vmatpush1.bf16.msra.mxu0 0
    %3730 = vmatprep.subr.bf16.mxu0 0
    %3731 = vmatpush1.bf16.msra.mxu0 0
    %3732 = vmatprep.subr.bf16.mxu0 0
    %3733 = vmatpush1.bf16.msra.mxu0 0
    %3734 = vmatprep.subr.bf16.mxu0 0
    %3735 = vmatpush1.bf16.msra.mxu0 0
    %3736 = vmatprep.subr.bf16.mxu0 0
    %3737 = vmatpush1.bf16.msra.mxu0 0
    %3738 = vmatprep.subr.bf16.mxu0 0
    %3739 = vmatpush1.bf16.msra.mxu0 0
    %3740 = vmatprep.subr.bf16.mxu0 0
    %3741 = vmatpush1.bf16.msra.mxu0 0
    %3742 = vmatprep.subr.bf16.mxu0 0
    %3743 = vmatpush1.bf16.msra.mxu0 0
    %3744 = vmatprep.subr.bf16.mxu0 0
    %3745 = vmatpush1.bf16.msra.mxu0 0
    %3746 = vmatprep.subr.bf16.mxu0 0
    %3747 = vmatpush1.bf16.msra.mxu0 0
    %3748 = vmatprep.subr.bf16.mxu0 0
    %3749 = vmatpush1.bf16.msra.mxu0 0
    %3750 = vmatprep.subr.bf16.mxu0 0
    %3751 = vmatpush1.bf16.msra.mxu0 0
    %3752 = vmatprep.subr.bf16.mxu0 0
    %3753 = vmatpush1.bf16.msra.mxu0 0
    %3754 = vmatprep.subr.bf16.mxu0 0
    %3755 = vmatpush1.bf16.msra.mxu0 0
    %3756 = vmatprep.mubr.bf16.mxu0 0
    %3757 = vmatmul.mubr.bf16.gmra.mrb[0].mxu0 %v3519
    %v3758 = vpop.f32.mrb[0].mxu0
    %v3759 = vadd.f32 0.0, %v3758
    %v3760 = vpop.f32.mrb[0].mxu0
    %v3761 = vpop.f32.mrb[0].mxu0
    %v3762 = vpop.f32.mrb[0].mxu0
    %3763 = vdwg.mxu0
    %v3764 = vadd.f32 %v94, %v3759
    %v3766 = vsel %vm521, %v3515, 0
    %3768 = vmatprep.subr.bf16.mxu0 0
    %3769 = vmatpush1.bf16.msra.mxu0 %v848
    %3770 = vmatprep.subr.bf16.mxu0 0
    %3771 = vmatpush1.bf16.msra.mxu0 %v849
    %3772 = vmatprep.subr.bf16.mxu0 0
    %3773 = vmatpush1.bf16.msra.mxu0 0
    %3774 = vmatprep.subr.bf16.mxu0 0
    %3775 = vmatpush1.bf16.msra.mxu0 0
    %3776 = vmatprep.subr.bf16.mxu0 0
    %3777 = vmatpush1.bf16.msra.mxu0 0
    %3778 = vmatprep.subr.bf16.mxu0 0
    %3779 = vmatpush1.bf16.msra.mxu0 0
    %3780 = vmatprep.subr.bf16.mxu0 0
    %3781 = vmatpush1.bf16.msra.mxu0 0
    %3782 = vmatprep.subr.bf16.mxu0 0
    %3783 = vmatpush1.bf16.msra.mxu0 0
    %3784 = vmatprep.subr.bf16.mxu0 0
    %3785 = vmatpush1.bf16.msra.mxu0 0
    %3786 = vmatprep.subr.bf16.mxu0 0
    %3787 = vmatpush1.bf16.msra.mxu0 0
    %3788 = vmatprep.subr.bf16.mxu0 0
    %3789 = vmatpush1.bf16.msra.mxu0 0
    %3790 = vmatprep.subr.bf16.mxu0 0
    %3791 = vmatpush1.bf16.msra.mxu0 0
    %3792 = vmatprep.subr.bf16.mxu0 0
    %3793 = vmatpush1.bf16.msra.mxu0 0
    %3794 = vmatprep.subr.bf16.mxu0 0
    %3795 = vmatpush1.bf16.msra.mxu0 0
    %3796 = vmatprep.subr.bf16.mxu0 0
    %3797 = vmatpush1.bf16.msra.mxu0 0
    %3798 = vmatprep.subr.bf16.mxu0 0
    %3799 = vmatpush1.bf16.msra.mxu0 0
    %3800 = vmatprep.mubr.bf16.mxu0 0
    %3801 = vmatmul.mubr.bf16.gmra.mrb[0].mxu0 %v3766
    %v3802 = vpop.f32.mrb[0].mxu0
    %v3803 = vadd.f32 0.0, %v3802
    %v3804 = vpop.f32.mrb[0].mxu0
    %v3805 = vpop.f32.mrb[0].mxu0
    %v3806 = vpop.f32.mrb[0].mxu0
    %3807 = vdwg.mxu0
    %v3808 = vadd.f32 %v3764, %v3803
    %3809 = vmatprep.subr.bf16.mxu0 0
    %3810 = vmatpush1.bf16.msra.mxu0 %v909
    %3811 = vmatprep.subr.bf16.mxu0 0
    %3812 = vmatpush1.bf16.msra.mxu0 %v910
    %3813 = vmatprep.subr.bf16.mxu0 0
    %3814 = vmatpush1.bf16.msra.mxu0 0
    %3815 = vmatprep.subr.bf16.mxu0 0
    %3816 = vmatpush1.bf16.msra.mxu0 0
    %3817 = vmatprep.subr.bf16.mxu0 0
    %3818 = vmatpush1.bf16.msra.mxu0 0
    %3819 = vmatprep.subr.bf16.mxu0 0
    %3820 = vmatpush1.bf16.msra.mxu0 0
    %3821 = vmatprep.subr.bf16.mxu0 0
    %3822 = vmatpush1.bf16.msra.mxu0 0
    %3823 = vmatprep.subr.bf16.mxu0 0
    %3824 = vmatpush1.bf16.msra.mxu0 0
    %3825 = vmatprep.subr.bf16.mxu0 0
    %3826 = vmatpush1.bf16.msra.mxu0 0
    %3827 = vmatprep.subr.bf16.mxu0 0
    %3828 = vmatpush1.bf16.msra.mxu0 0
    %3829 = vmatprep.subr.bf16.mxu0 0
    %3830 = vmatpush1.bf16.msra.mxu0 0
    %3831 = vmatprep.subr.bf16.mxu0 0
    %3832 = vmatpush1.bf16.msra.mxu0 0
    %3833 = vmatprep.subr.bf16.mxu0 0
    %3834 = vmatpush1.bf16.msra.mxu0 0
    %3835 = vmatprep.subr.bf16.mxu0 0
    %3836 = vmatpush1.bf16.msra.mxu0 0
    %3837 = vmatprep.subr.bf16.mxu0 0
    %3838 = vmatpush1.bf16.msra.mxu0 0
    %3839 = vmatprep.subr.bf16.mxu0 0
    %3840 = vmatpush1.bf16.msra.mxu0 0
    %3841 = vmatprep.mubr.bf16.mxu0 0
    %3842 = vmatmul.mubr.bf16.gmra.mrb[0].mxu0 %v3519
    %v3843 = vpop.f32.mrb[0].mxu0
    %v3844 = vadd.f32 0.0, %v3843
    %v3845 = vpop.f32.mrb[0].mxu0
    %v3846 = vpop.f32.mrb[0].mxu0
    %v3847 = vpop.f32.mrb[0].mxu0
    %3848 = vdwg.mxu0
    %v3849 = vadd.f32 %v102, %v3844
    %3850 = vmatprep.subr.bf16.mxu0 0
    %3851 = vmatpush1.bf16.msra.mxu0 %v967
    %3852 = vmatprep.subr.bf16.mxu0 0
    %3853 = vmatpush1.bf16.msra.mxu0 %v968
    %3854 = vmatprep.subr.bf16.mxu0 0
    %3855 = vmatpush1.bf16.msra.mxu0 0
    %3856 = vmatprep.subr.bf16.mxu0 0
    %3857 = vmatpush1.bf16.msra.mxu0 0
    %3858 = vmatprep.subr.bf16.mxu0 0
    %3859 = vmatpush1.bf16.msra.mxu0 0
    %3860 = vmatprep.subr.bf16.mxu0 0
    %3861 = vmatpush1.bf16.msra.mxu0 0
    %3862 = vmatprep.subr.bf16.mxu0 0
    %3863 = vmatpush1.bf16.msra.mxu0 0
    %3864 = vmatprep.subr.bf16.mxu0 0
    %3865 = vmatpush1.bf16.msra.mxu0 0
    %3866 = vmatprep.subr.bf16.mxu0 0
    %3867 = vmatpush1.bf16.msra.mxu0 0
    %3868 = vmatprep.subr.bf16.mxu0 0
    %3869 = vmatpush1.bf16.msra.mxu0 0
    %3870 = vmatprep.subr.bf16.mxu0 0
    %3871 = vmatpush1.bf16.msra.mxu0 0
    %3872 = vmatprep.subr.bf16.mxu0 0
    %3873 = vmatpush1.bf16.msra.mxu0 0
    %3874 = vmatprep.subr.bf16.mxu0 0
    %3875 = vmatpush1.bf16.msra.mxu0 0
    %3876 = vmatprep.subr.bf16.mxu0 0
    %3877 = vmatpush1.bf16.msra.mxu0 0
    %3878 = vmatprep.subr.bf16.mxu0 0
    %3879 = vmatpush1.bf16.msra.mxu0 0
    %3880 = vmatprep.subr.bf16.mxu0 0
    %3881 = vmatpush1.bf16.msra.mxu0 0
    %3882 = vmatprep.mubr.bf16.mxu0 0
    %3883 = vmatmul.mubr.bf16.gmra.mrb[0].mxu0 %v3766
    %v3884 = vpop.f32.mrb[0].mxu0
    %v3885 = vadd.f32 0.0, %v3884
    %v3886 = vpop.f32.mrb[0].mxu0
    %v3887 = vpop.f32.mrb[0].mxu0
    %v3888 = vpop.f32.mrb[0].mxu0
    %3889 = vdwg.mxu0
    %v3890 = vadd.f32 %v3849, %v3885
    %3891 = vmatprep.subr.bf16.mxu0 0
    %3892 = vmatpush1.bf16.msra.mxu0 %v1025
    %3893 = vmatprep.subr.bf16.mxu0 0
    %3894 = vmatpush1.bf16.msra.mxu0 %v1026
    %3895 = vmatprep.subr.bf16.mxu0 0
    %3896 = vmatpush1.bf16.msra.mxu0 0
    %3897 = vmatprep.subr.bf16.mxu0 0
    %3898 = vmatpush1.bf16.msra.mxu0 0
    %3899 = vmatprep.subr.bf16.mxu0 0
    %3900 = vmatpush1.bf16.msra.mxu0 0
    %3901 = vmatprep.subr.bf16.mxu0 0
    %3902 = vmatpush1.bf16.msra.mxu0 0
    %3903 = vmatprep.subr.bf16.mxu0 0
    %3904 = vmatpush1.bf16.msra.mxu0 0
    %3905 = vmatprep.subr.bf16.mxu0 0
    %3906 = vmatpush1.bf16.msra.mxu0 0
    %3907 = vmatprep.subr.bf16.mxu0 0
    %3908 = vmatpush1.bf16.msra.mxu0 0
    %3909 = vmatprep.subr.bf16.mxu0 0
    %3910 = vmatpush1.bf16.msra.mxu0 0
    %3911 = vmatprep.subr.bf16.mxu0 0
    %3912 = vmatpush1.bf16.msra.mxu0 0
    %3913 = vmatprep.subr.bf16.mxu0 0
    %3914 = vmatpush1.bf16.msra.mxu0 0
    %3915 = vmatprep.subr.bf16.mxu0 0
    %3916 = vmatpush1.bf16.msra.mxu0 0
    %3917 = vmatprep.subr.bf16.mxu0 0
    %3918 = vmatpush1.bf16.msra.mxu0 0
    %3919 = vmatprep.subr.bf16.mxu0 0
    %3920 = vmatpush1.bf16.msra.mxu0 0
    %3921 = vmatprep.subr.bf16.mxu0 0
    %3922 = vmatpush1.bf16.msra.mxu0 0
    %3923 = vmatprep.mubr.bf16.mxu0 0
    %3924 = vmatmul.mubr.bf16.gmra.mrb[0].mxu0 %v3519
    %v3925 = vpop.f32.mrb[0].mxu0
    %v3926 = vadd.f32 0.0, %v3925
    %v3927 = vpop.f32.mrb[0].mxu0
    %v3928 = vpop.f32.mrb[0].mxu0
    %v3929 = vpop.f32.mrb[0].mxu0
    %3930 = vdwg.mxu0
    %v3931 = vadd.f32 %v110, %v3926
    %3932 = vmatprep.subr.bf16.mxu0 0
    %3933 = vmatpush1.bf16.msra.mxu0 %v1083
    %3934 = vmatprep.subr.bf16.mxu0 0
    %3935 = vmatpush1.bf16.msra.mxu0 %v1084
    %3936 = vmatprep.subr.bf16.mxu0 0
    %3937 = vmatpush1.bf16.msra.mxu0 0
    %3938 = vmatprep.subr.bf16.mxu0 0
    %3939 = vmatpush1.bf16.msra.mxu0 0
    %3940 = vmatprep.subr.bf16.mxu0 0
    %3941 = vmatpush1.bf16.msra.mxu0 0
    %3942 = vmatprep.subr.bf16.mxu0 0
    %3943 = vmatpush1.bf16.msra.mxu0 0
    %3944 = vmatprep.subr.bf16.mxu0 0
    %3945 = vmatpush1.bf16.msra.mxu0 0
    %3946 = vmatprep.subr.bf16.mxu0 0
    %3947 = vmatpush1.bf16.msra.mxu0 0
    %3948 = vmatprep.subr.bf16.mxu0 0
    %3949 = vmatpush1.bf16.msra.mxu0 0
    %3950 = vmatprep.subr.bf16.mxu0 0
    %3951 = vmatpush1.bf16.msra.mxu0 0
    %3952 = vmatprep.subr.bf16.mxu0 0
    %3953 = vmatpush1.bf16.msra.mxu0 0
    %3954 = vmatprep.subr.bf16.mxu0 0
    %3955 = vmatpush1.bf16.msra.mxu0 0
    %3956 = vmatprep.subr.bf16.mxu0 0
    %3957 = vmatpush1.bf16.msra.mxu0 0
    %3958 = vmatprep.subr.bf16.mxu0 0
    %3959 = vmatpush1.bf16.msra.mxu0 0
    %3960 = vmatprep.subr.bf16.mxu0 0
    %3961 = vmatpush1.bf16.msra.mxu0 0
    %3962 = vmatprep.subr.bf16.mxu0 0
    %3963 = vmatpush1.bf16.msra.mxu0 0
    %3964 = vmatprep.mubr.bf16.mxu0 0
    %3965 = vmatmul.mubr.bf16.gmra.mrb[0].mxu0 %v3766
    %v3966 = vpop.f32.mrb[0].mxu0
    %v3967 = vadd.f32 0.0, %v3966
    %v3968 = vpop.f32.mrb[0].mxu0
    %v3969 = vpop.f32.mrb[0].mxu0
    %v3970 = vpop.f32.mrb[0].mxu0
    %3971 = vdwg.mxu0
    %v3972 = vadd.f32 %v3931, %v3967
    %3973 = vmatprep.subr.bf16.mxu0 0
    %3974 = vmatpush1.bf16.msra.mxu0 %v1141
    %3975 = vmatprep.subr.bf16.mxu0 0
    %3976 = vmatpush1.bf16.msra.mxu0 %v1142
    %3977 = vmatprep.subr.bf16.mxu0 0
    %3978 = vmatpush1.bf16.msra.mxu0 0
    %3979 = vmatprep.subr.bf16.mxu0 0
    %3980 = vmatpush1.bf16.msra.mxu0 0
    %3981 = vmatprep.subr.bf16.mxu0 0
    %3982 = vmatpush1.bf16.msra.mxu0 0
    %3983 = vmatprep.subr.bf16.mxu0 0
    %3984 = vmatpush1.bf16.msra.mxu0 0
    %3985 = vmatprep.subr.bf16.mxu0 0
    %3986 = vmatpush1.bf16.msra.mxu0 0
    %3987 = vmatprep.subr.bf16.mxu0 0
    %3988 = vmatpush1.bf16.msra.mxu0 0
    %3989 = vmatprep.subr.bf16.mxu0 0
    %3990 = vmatpush1.bf16.msra.mxu0 0
    %3991 = vmatprep.subr.bf16.mxu0 0
    %3992 = vmatpush1.bf16.msra.mxu0 0
    %3993 = vmatprep.subr.bf16.mxu0 0
    %3994 = vmatpush1.bf16.msra.mxu0 0
    %3995 = vmatprep.subr.bf16.mxu0 0
    %3996 = vmatpush1.bf16.msra.mxu0 0
    %3997 = vmatprep.subr.bf16.mxu0 0
    %3998 = vmatpush1.bf16.msra.mxu0 0
    %3999 = vmatprep.subr.bf16.mxu0 0
    %4000 = vmatpush1.bf16.msra.mxu0 0
    %4001 = vmatprep.subr.bf16.mxu0 0
    %4002 = vmatpush1.bf16.msra.mxu0 0
    %4003 = vmatprep.subr.bf16.mxu0 0
    %4004 = vmatpush1.bf16.msra.mxu0 0
    %4005 = vmatprep.mubr.bf16.mxu0 0
    %4006 = vmatmul.mubr.bf16.gmra.mrb[0].mxu0 %v3519
    %v4007 = vpop.f32.mrb[0].mxu0
    %v4008 = vadd.f32 0.0, %v4007
    %v4009 = vpop.f32.mrb[0].mxu0
    %v4010 = vpop.f32.mrb[0].mxu0
    %v4011 = vpop.f32.mrb[0].mxu0
    %4012 = vdwg.mxu0
    %v4013 = vadd.f32 %v118, %v4008
    %4014 = vmatprep.subr.bf16.mxu0 0
    %4015 = vmatpush1.bf16.msra.mxu0 %v1199
    %4016 = vmatprep.subr.bf16.mxu0 0
    %4017 = vmatpush1.bf16.msra.mxu0 %v1200
    %4018 = vmatprep.subr.bf16.mxu0 0
    %4019 = vmatpush1.bf16.msra.mxu0 0
    %4020 = vmatprep.subr.bf16.mxu0 0
    %4021 = vmatpush1.bf16.msra.mxu0 0
    %4022 = vmatprep.subr.bf16.mxu0 0
    %4023 = vmatpush1.bf16.msra.mxu0 0
    %4024 = vmatprep.subr.bf16.mxu0 0
    %4025 = vmatpush1.bf16.msra.mxu0 0
    %4026 = vmatprep.subr.bf16.mxu0 0
    %4027 = vmatpush1.bf16.msra.mxu0 0
    %4028 = vmatprep.subr.bf16.mxu0 0
    %4029 = vmatpush1.bf16.msra.mxu0 0
    %4030 = vmatprep.subr.bf16.mxu0 0
    %4031 = vmatpush1.bf16.msra.mxu0 0
    %4032 = vmatprep.subr.bf16.mxu0 0
    %4033 = vmatpush1.bf16.msra.mxu0 0
    %4034 = vmatprep.subr.bf16.mxu0 0
    %4035 = vmatpush1.bf16.msra.mxu0 0
    %4036 = vmatprep.subr.bf16.mxu0 0
    %4037 = vmatpush1.bf16.msra.mxu0 0
    %4038 = vmatprep.subr.bf16.mxu0 0
    %4039 = vmatpush1.bf16.msra.mxu0 0
    %4040 = vmatprep.subr.bf16.mxu0 0
    %4041 = vmatpush1.bf16.msra.mxu0 0
    %4042 = vmatprep.subr.bf16.mxu0 0
    %4043 = vmatpush1.bf16.msra.mxu0 0
    %4044 = vmatprep.subr.bf16.mxu0 0
    %4045 = vmatpush1.bf16.msra.mxu0 0
    %4046 = vmatprep.mubr.bf16.mxu0 0
    %4047 = vmatmul.mubr.bf16.gmra.mrb[0].mxu0 %v3766
    %v4048 = vpop.f32.mrb[0].mxu0
    %v4049 = vadd.f32 0.0, %v4048
    %v4050 = vpop.f32.mrb[0].mxu0
    %v4051 = vpop.f32.mrb[0].mxu0
    %v4052 = vpop.f32.mrb[0].mxu0
    %4053 = vdwg.mxu0
    %v4054 = vadd.f32 %v4013, %v4049
    %v4055 = vxor.u32 %v3808, 2147483648
    %v4056 = vmul.f32 %v4055, 1.442695
    %v4057 = vpow.pop %v4056
    %v4058 = vadd.f32 %v4057, 1.0
    %v4059 = vrcp.pop %v4058
    %v4060 = vmul.f32 1.0, %v4059
    %v4061 = vxor.u32 %v3890, 2147483648
    %v4062 = vmul.f32 %v4061, 1.442695
    %v4063 = vpow.pop %v4062
    %v4064 = vadd.f32 %v4063, 1.0
    %v4065 = vrcp.pop %v4064
    %v4066 = vmul.f32 1.0, %v4065
    %v4067 = vtanh.pop %v3972
    %v4068 = vxor.u32 %v4054, 2147483648
    %v4069 = vmul.f32 %v4068, 1.442695
    %v4070 = vpow.pop %v4069
    %v4071 = vadd.f32 %v4070, 1.0
    %v4072 = vrcp.pop %v4071
    %v4073 = vmul.f32 1.0, %v4072
    %v4074 = vmul.f32 %v4066, %v3511
    %v4075 = vmul.f32 %v4060, %v4067
    %v4076 = vadd.f32 %v4074, %v4075
    %v4077 = vtanh.pop %v4076
    %v4078 = vmul.f32 %v4073, %v4077
    %v4079 = vpack.c.bf16 %v3723, %v3723
    %v4080 = vpack.c.bf16 %v4078, %v4078
    %v4082 = vrot.slane %v4079, 2
    %v4084 = vsel %vm521, %v4082, 0
    %4086 = vmatprep.subr.bf16.mxu0 0
    %4087 = vmatpush1.bf16.msra.mxu0 %v517
    %4088 = vmatprep.subr.bf16.mxu0 0
    %4089 = vmatpush1.bf16.msra.mxu0 %v518
    %4090 = vmatprep.subr.bf16.mxu0 0
    %4091 = vmatpush1.bf16.msra.mxu0 0
    %4092 = vmatprep.subr.bf16.mxu0 0
    %4093 = vmatpush1.bf16.msra.mxu0 0
    %4094 = vmatprep.subr.bf16.mxu0 0
    %4095 = vmatpush1.bf16.msra.mxu0 0
    %4096 = vmatprep.subr.bf16.mxu0 0
    %4097 = vmatpush1.bf16.msra.mxu0 0
    %4098 = vmatprep.subr.bf16.mxu0 0
    %4099 = vmatpush1.bf16.msra.mxu0 0
    %4100 = vmatprep.subr.bf16.mxu0 0
    %4101 = vmatpush1.bf16.msra.mxu0 0
    %4102 = vmatprep.subr.bf16.mxu0 0
    %4103 = vmatpush1.bf16.msra.mxu0 0
    %4104 = vmatprep.subr.bf16.mxu0 0
    %4105 = vmatpush1.bf16.msra.mxu0 0
    %4106 = vmatprep.subr.bf16.mxu0 0
    %4107 = vmatpush1.bf16.msra.mxu0 0
    %4108 = vmatprep.subr.bf16.mxu0 0
    %4109 = vmatpush1.bf16.msra.mxu0 0
    %4110 = vmatprep.subr.bf16.mxu0 0
    %4111 = vmatpush1.bf16.msra.mxu0 0
    %4112 = vmatprep.subr.bf16.mxu0 0
    %4113 = vmatpush1.bf16.msra.mxu0 0
    %4114 = vmatprep.subr.bf16.mxu0 0
    %4115 = vmatpush1.bf16.msra.mxu0 0
    %4116 = vmatprep.subr.bf16.mxu0 0
    %4117 = vmatpush1.bf16.msra.mxu0 0
    %4118 = vmatprep.mubr.bf16.mxu0 0
    %4119 = vmatmul.mubr.bf16.gmra.mrb[0].mxu0 %v4084
    %v4120 = vpop.f32.mrb[0].mxu0
    %v4121 = vadd.f32 0.0, %v4120
    %v4122 = vpop.f32.mrb[0].mxu0
    %v4123 = vpop.f32.mrb[0].mxu0
    %v4124 = vpop.f32.mrb[0].mxu0
    %4125 = vdwg.mxu0
    %v4127 = vrot.slane %v4121, 2
    %v4129 = vadd.f32 %v213, %v4127
    %4130 = vmatprep.subr.bf16.mxu0 0
    %4131 = vmatpush1.bf16.msra.mxu0 %v582
    %4132 = vmatprep.subr.bf16.mxu0 0
    %4133 = vmatpush1.bf16.msra.mxu0 %v583
    %4134 = vmatprep.subr.bf16.mxu0 0
    %4135 = vmatpush1.bf16.msra.mxu0 0
    %4136 = vmatprep.subr.bf16.mxu0 0
    %4137 = vmatpush1.bf16.msra.mxu0 0
    %4138 = vmatprep.subr.bf16.mxu0 0
    %4139 = vmatpush1.bf16.msra.mxu0 0
    %4140 = vmatprep.subr.bf16.mxu0 0
    %4141 = vmatpush1.bf16.msra.mxu0 0
    %4142 = vmatprep.subr.bf16.mxu0 0
    %4143 = vmatpush1.bf16.msra.mxu0 0
    %4144 = vmatprep.subr.bf16.mxu0 0
    %4145 = vmatpush1.bf16.msra.mxu0 0
    %4146 = vmatprep.subr.bf16.mxu0 0
    %4147 = vmatpush1.bf16.msra.mxu0 0
    %4148 = vmatprep.subr.bf16.mxu0 0
    %4149 = vmatpush1.bf16.msra.mxu0 0
    %4150 = vmatprep.subr.bf16.mxu0 0
    %4151 = vmatpush1.bf16.msra.mxu0 0
    %4152 = vmatprep.subr.bf16.mxu0 0
    %4153 = vmatpush1.bf16.msra.mxu0 0
    %4154 = vmatprep.subr.bf16.mxu0 0
    %4155 = vmatpush1.bf16.msra.mxu0 0
    %4156 = vmatprep.subr.bf16.mxu0 0
    %4157 = vmatpush1.bf16.msra.mxu0 0
    %4158 = vmatprep.subr.bf16.mxu0 0
    %4159 = vmatpush1.bf16.msra.mxu0 0
    %4160 = vmatprep.subr.bf16.mxu0 0
    %4161 = vmatpush1.bf16.msra.mxu0 0
    %4162 = vmatprep.mubr.bf16.mxu0 0
    %4163 = vmatmul.mubr.bf16.gmra.mrb[0].mxu0 %v4084
    %v4164 = vpop.f32.mrb[0].mxu0
    %v4165 = vadd.f32 0.0, %v4164
    %v4166 = vpop.f32.mrb[0].mxu0
    %v4167 = vpop.f32.mrb[0].mxu0
    %v4168 = vpop.f32.mrb[0].mxu0
    %4169 = vdwg.mxu0
    %v4171 = vrot.slane %v4165, 2
    %v4173 = vadd.f32 %v301, %v4171
    %4174 = vmatprep.subr.bf16.mxu0 0
    %4175 = vmatpush1.bf16.msra.mxu0 %v643
    %4176 = vmatprep.subr.bf16.mxu0 0
    %4177 = vmatpush1.bf16.msra.mxu0 %v644
    %4178 = vmatprep.subr.bf16.mxu0 0
    %4179 = vmatpush1.bf16.msra.mxu0 0
    %4180 = vmatprep.subr.bf16.mxu0 0
    %4181 = vmatpush1.bf16.msra.mxu0 0
    %4182 = vmatprep.subr.bf16.mxu0 0
    %4183 = vmatpush1.bf16.msra.mxu0 0
    %4184 = vmatprep.subr.bf16.mxu0 0
    %4185 = vmatpush1.bf16.msra.mxu0 0
    %4186 = vmatprep.subr.bf16.mxu0 0
    %4187 = vmatpush1.bf16.msra.mxu0 0
    %4188 = vmatprep.subr.bf16.mxu0 0
    %4189 = vmatpush1.bf16.msra.mxu0 0
    %4190 = vmatprep.subr.bf16.mxu0 0
    %4191 = vmatpush1.bf16.msra.mxu0 0
    %4192 = vmatprep.subr.bf16.mxu0 0
    %4193 = vmatpush1.bf16.msra.mxu0 0
    %4194 = vmatprep.subr.bf16.mxu0 0
    %4195 = vmatpush1.bf16.msra.mxu0 0
    %4196 = vmatprep.subr.bf16.mxu0 0
    %4197 = vmatpush1.bf16.msra.mxu0 0
    %4198 = vmatprep.subr.bf16.mxu0 0
    %4199 = vmatpush1.bf16.msra.mxu0 0
    %4200 = vmatprep.subr.bf16.mxu0 0
    %4201 = vmatpush1.bf16.msra.mxu0 0
    %4202 = vmatprep.subr.bf16.mxu0 0
    %4203 = vmatpush1.bf16.msra.mxu0 0
    %4204 = vmatprep.subr.bf16.mxu0 0
    %4205 = vmatpush1.bf16.msra.mxu0 0
    %4206 = vmatprep.mubr.bf16.mxu0 0
    %4207 = vmatmul.mubr.bf16.gmra.mrb[0].mxu0 %v4084
    %v4208 = vpop.f32.mrb[0].mxu0
    %v4209 = vadd.f32 0.0, %v4208
    %v4210 = vpop.f32.mrb[0].mxu0
    %v4211 = vpop.f32.mrb[0].mxu0
    %v4212 = vpop.f32.mrb[0].mxu0
    %4213 = vdwg.mxu0
    %v4215 = vrot.slane %v4209, 2
    %v4217 = vadd.f32 %v389, %v4215
    %4218 = vmatprep.subr.bf16.mxu0 0
    %4219 = vmatpush1.bf16.msra.mxu0 %v704
    %4220 = vmatprep.subr.bf16.mxu0 0
    %4221 = vmatpush1.bf16.msra.mxu0 %v705
    %4222 = vmatprep.subr.bf16.mxu0 0
    %4223 = vmatpush1.bf16.msra.mxu0 0
    %4224 = vmatprep.subr.bf16.mxu0 0
    %4225 = vmatpush1.bf16.msra.mxu0 0
    %4226 = vmatprep.subr.bf16.mxu0 0
    %4227 = vmatpush1.bf16.msra.mxu0 0
    %4228 = vmatprep.subr.bf16.mxu0 0
    %4229 = vmatpush1.bf16.msra.mxu0 0
    %4230 = vmatprep.subr.bf16.mxu0 0
    %4231 = vmatpush1.bf16.msra.mxu0 0
    %4232 = vmatprep.subr.bf16.mxu0 0
    %4233 = vmatpush1.bf16.msra.mxu0 0
    %4234 = vmatprep.subr.bf16.mxu0 0
    %4235 = vmatpush1.bf16.msra.mxu0 0
    %4236 = vmatprep.subr.bf16.mxu0 0
    %4237 = vmatpush1.bf16.msra.mxu0 0
    %4238 = vmatprep.subr.bf16.mxu0 0
    %4239 = vmatpush1.bf16.msra.mxu0 0
    %4240 = vmatprep.subr.bf16.mxu0 0
    %4241 = vmatpush1.bf16.msra.mxu0 0
    %4242 = vmatprep.subr.bf16.mxu0 0
    %4243 = vmatpush1.bf16.msra.mxu0 0
    %4244 = vmatprep.subr.bf16.mxu0 0
    %4245 = vmatpush1.bf16.msra.mxu0 0
    %4246 = vmatprep.subr.bf16.mxu0 0
    %4247 = vmatpush1.bf16.msra.mxu0 0
    %4248 = vmatprep.subr.bf16.mxu0 0
    %4249 = vmatpush1.bf16.msra.mxu0 0
    %4250 = vmatprep.mubr.bf16.mxu0 0
    %4251 = vmatmul.mubr.bf16.gmra.mrb[0].mxu0 %v4084
    %v4252 = vpop.f32.mrb[0].mxu0
    %v4253 = vadd.f32 0.0, %v4252
    %v4254 = vpop.f32.mrb[0].mxu0
    %v4255 = vpop.f32.mrb[0].mxu0
    %v4256 = vpop.f32.mrb[0].mxu0
    %4257 = vdwg.mxu0
    %v4259 = vrot.slane %v4253, 2
    %v4261 = vadd.f32 %v477, %v4259
    %v4262 = vxor.u32 %v4129, 2147483648
    %v4263 = vmul.f32 %v4262, 1.442695
    %v4264 = vpow.pop %v4263
    %v4265 = vadd.f32 %v4264, 1.0
    %v4266 = vrcp.pop %v4265
    %v4267 = vmul.f32 1.0, %v4266
    %v4268 = vxor.u32 %v4173, 2147483648
    %v4269 = vmul.f32 %v4268, 1.442695
    %v4270 = vpow.pop %v4269
    %v4271 = vadd.f32 %v4270, 1.0
    %v4272 = vrcp.pop %v4271
    %v4273 = vmul.f32 1.0, %v4272
    %v4274 = vtanh.pop %v4217
    %v4275 = vxor.u32 %v4261, 2147483648
    %v4276 = vmul.f32 %v4275, 1.442695
    %v4277 = vpow.pop %v4276
    %v4278 = vadd.f32 %v4277, 1.0
    %v4279 = vrcp.pop %v4278
    %v4280 = vmul.f32 1.0, %v4279
    %v4282 = vrot.slane %v3721, 6
    %v4284 = vmul.f32 %v4273, %v4282
    %v4285 = vmul.f32 %v4267, %v4274
    %v4286 = vadd.f32 %v4284, %v4285
    %v4287 = vtanh.pop %v4286
    %v4288 = vmul.f32 %v4280, %v4287
    %4289 = vmatprep.subr.bf16.mxu0 0
    %4290 = vmatpush1.bf16.msra.mxu0 %v791
    %4291 = vmatprep.subr.bf16.mxu0 0
    %4292 = vmatpush1.bf16.msra.mxu0 %v792
    %4293 = vmatprep.subr.bf16.mxu0 0
    %4294 = vmatpush1.bf16.msra.mxu0 0
    %4295 = vmatprep.subr.bf16.mxu0 0
    %4296 = vmatpush1.bf16.msra.mxu0 0
    %4297 = vmatprep.subr.bf16.mxu0 0
    %4298 = vmatpush1.bf16.msra.mxu0 0
    %4299 = vmatprep.subr.bf16.mxu0 0
    %4300 = vmatpush1.bf16.msra.mxu0 0
    %4301 = vmatprep.subr.bf16.mxu0 0
    %4302 = vmatpush1.bf16.msra.mxu0 0
    %4303 = vmatprep.subr.bf16.mxu0 0
    %4304 = vmatpush1.bf16.msra.mxu0 0
    %4305 = vmatprep.subr.bf16.mxu0 0
    %4306 = vmatpush1.bf16.msra.mxu0 0
    %4307 = vmatprep.subr.bf16.mxu0 0
    %4308 = vmatpush1.bf16.msra.mxu0 0
    %4309 = vmatprep.subr.bf16.mxu0 0
    %4310 = vmatpush1.bf16.msra.mxu0 0
    %4311 = vmatprep.subr.bf16.mxu0 0
    %4312 = vmatpush1.bf16.msra.mxu0 0
    %4313 = vmatprep.subr.bf16.mxu0 0
    %4314 = vmatpush1.bf16.msra.mxu0 0
    %4315 = vmatprep.subr.bf16.mxu0 0
    %4316 = vmatpush1.bf16.msra.mxu0 0
    %4317 = vmatprep.subr.bf16.mxu0 0
    %4318 = vmatpush1.bf16.msra.mxu0 0
    %4319 = vmatprep.subr.bf16.mxu0 0
    %4320 = vmatpush1.bf16.msra.mxu0 0
    %4321 = vmatprep.mubr.bf16.mxu0 0
    %4322 = vmatmul.mubr.bf16.gmra.mrb[0].mxu0 %v4084
    %v4323 = vpop.f32.mrb[0].mxu0
    %v4324 = vadd.f32 0.0, %v4323
    %v4325 = vpop.f32.mrb[0].mxu0
    %v4326 = vpop.f32.mrb[0].mxu0
    %v4327 = vpop.f32.mrb[0].mxu0
    %4328 = vdwg.mxu0
    %v4329 = vadd.f32 %v94, %v4324
    %v4331 = vsel %vm521, %v4080, 0
    %4333 = vmatprep.subr.bf16.mxu0 0
    %4334 = vmatpush1.bf16.msra.mxu0 %v848
    %4335 = vmatprep.subr.bf16.mxu0 0
    %4336 = vmatpush1.bf16.msra.mxu0 %v849
    %4337 = vmatprep.subr.bf16.mxu0 0
    %4338 = vmatpush1.bf16.msra.mxu0 0
    %4339 = vmatprep.subr.bf16.mxu0 0
    %4340 = vmatpush1.bf16.msra.mxu0 0
    %4341 = vmatprep.subr.bf16.mxu0 0
    %4342 = vmatpush1.bf16.msra.mxu0 0
    %4343 = vmatprep.subr.bf16.mxu0 0
    %4344 = vmatpush1.bf16.msra.mxu0 0
    %4345 = vmatprep.subr.bf16.mxu0 0
    %4346 = vmatpush1.bf16.msra.mxu0 0
    %4347 = vmatprep.subr.bf16.mxu0 0
    %4348 = vmatpush1.bf16.msra.mxu0 0
    %4349 = vmatprep.subr.bf16.mxu0 0
    %4350 = vmatpush1.bf16.msra.mxu0 0
    %4351 = vmatprep.subr.bf16.mxu0 0
    %4352 = vmatpush1.bf16.msra.mxu0 0
    %4353 = vmatprep.subr.bf16.mxu0 0
    %4354 = vmatpush1.bf16.msra.mxu0 0
    %4355 = vmatprep.subr.bf16.mxu0 0
    %4356 = vmatpush1.bf16.msra.mxu0 0
    %4357 = vmatprep.subr.bf16.mxu0 0
    %4358 = vmatpush1.bf16.msra.mxu0 0
    %4359 = vmatprep.subr.bf16.mxu0 0
    %4360 = vmatpush1.bf16.msra.mxu0 0
    %4361 = vmatprep.subr.bf16.mxu0 0
    %4362 = vmatpush1.bf16.msra.mxu0 0
    %4363 = vmatprep.subr.bf16.mxu0 0
    %4364 = vmatpush1.bf16.msra.mxu0 0
    %4365 = vmatprep.mubr.bf16.mxu0 0
    %4366 = vmatmul.mubr.bf16.gmra.mrb[0].mxu0 %v4331
    %v4367 = vpop.f32.mrb[0].mxu0
    %v4368 = vadd.f32 0.0, %v4367
    %v4369 = vpop.f32.mrb[0].mxu0
    %v4370 = vpop.f32.mrb[0].mxu0
    %v4371 = vpop.f32.mrb[0].mxu0
    %4372 = vdwg.mxu0
    %v4373 = vadd.f32 %v4329, %v4368
    %4374 = vmatprep.subr.bf16.mxu0 0
    %4375 = vmatpush1.bf16.msra.mxu0 %v909
    %4376 = vmatprep.subr.bf16.mxu0 0
    %4377 = vmatpush1.bf16.msra.mxu0 %v910
    %4378 = vmatprep.subr.bf16.mxu0 0
    %4379 = vmatpush1.bf16.msra.mxu0 0
    %4380 = vmatprep.subr.bf16.mxu0 0
    %4381 = vmatpush1.bf16.msra.mxu0 0
    %4382 = vmatprep.subr.bf16.mxu0 0
    %4383 = vmatpush1.bf16.msra.mxu0 0
    %4384 = vmatprep.subr.bf16.mxu0 0
    %4385 = vmatpush1.bf16.msra.mxu0 0
    %4386 = vmatprep.subr.bf16.mxu0 0
    %4387 = vmatpush1.bf16.msra.mxu0 0
    %4388 = vmatprep.subr.bf16.mxu0 0
    %4389 = vmatpush1.bf16.msra.mxu0 0
    %4390 = vmatprep.subr.bf16.mxu0 0
    %4391 = vmatpush1.bf16.msra.mxu0 0
    %4392 = vmatprep.subr.bf16.mxu0 0
    %4393 = vmatpush1.bf16.msra.mxu0 0
    %4394 = vmatprep.subr.bf16.mxu0 0
    %4395 = vmatpush1.bf16.msra.mxu0 0
    %4396 = vmatprep.subr.bf16.mxu0 0
    %4397 = vmatpush1.bf16.msra.mxu0 0
    %4398 = vmatprep.subr.bf16.mxu0 0
    %4399 = vmatpush1.bf16.msra.mxu0 0
    %4400 = vmatprep.subr.bf16.mxu0 0
    %4401 = vmatpush1.bf16.msra.mxu0 0
    %4402 = vmatprep.subr.bf16.mxu0 0
    %4403 = vmatpush1.bf16.msra.mxu0 0
    %4404 = vmatprep.subr.bf16.mxu0 0
    %4405 = vmatpush1.bf16.msra.mxu0 0
    %4406 = vmatprep.mubr.bf16.mxu0 0
    %4407 = vmatmul.mubr.bf16.gmra.mrb[0].mxu0 %v4084
    %v4408 = vpop.f32.mrb[0].mxu0
    %v4409 = vadd.f32 0.0, %v4408
    %v4410 = vpop.f32.mrb[0].mxu0
    %v4411 = vpop.f32.mrb[0].mxu0
    %v4412 = vpop.f32.mrb[0].mxu0
    %4413 = vdwg.mxu0
    %v4414 = vadd.f32 %v102, %v4409
    %4415 = vmatprep.subr.bf16.mxu0 0
    %4416 = vmatpush1.bf16.msra.mxu0 %v967
    %4417 = vmatprep.subr.bf16.mxu0 0
    %4418 = vmatpush1.bf16.msra.mxu0 %v968
    %4419 = vmatprep.subr.bf16.mxu0 0
    %4420 = vmatpush1.bf16.msra.mxu0 0
    %4421 = vmatprep.subr.bf16.mxu0 0
    %4422 = vmatpush1.bf16.msra.mxu0 0
    %4423 = vmatprep.subr.bf16.mxu0 0
    %4424 = vmatpush1.bf16.msra.mxu0 0
    %4425 = vmatprep.subr.bf16.mxu0 0
    %4426 = vmatpush1.bf16.msra.mxu0 0
    %4427 = vmatprep.subr.bf16.mxu0 0
    %4428 = vmatpush1.bf16.msra.mxu0 0
    %4429 = vmatprep.subr.bf16.mxu0 0
    %4430 = vmatpush1.bf16.msra.mxu0 0
    %4431 = vmatprep.subr.bf16.mxu0 0
    %4432 = vmatpush1.bf16.msra.mxu0 0
    %4433 = vmatprep.subr.bf16.mxu0 0
    %4434 = vmatpush1.bf16.msra.mxu0 0
    %4435 = vmatprep.subr.bf16.mxu0 0
    %4436 = vmatpush1.bf16.msra.mxu0 0
    %4437 = vmatprep.subr.bf16.mxu0 0
    %4438 = vmatpush1.bf16.msra.mxu0 0
    %4439 = vmatprep.subr.bf16.mxu0 0
    %4440 = vmatpush1.bf16.msra.mxu0 0
    %4441 = vmatprep.subr.bf16.mxu0 0
    %4442 = vmatpush1.bf16.msra.mxu0 0
    %4443 = vmatprep.subr.bf16.mxu0 0
    %4444 = vmatpush1.bf16.msra.mxu0 0
    %4445 = vmatprep.subr.bf16.mxu0 0
    %4446 = vmatpush1.bf16.msra.mxu0 0
    %4447 = vmatprep.mubr.bf16.mxu0 0
    %4448 = vmatmul.mubr.bf16.gmra.mrb[0].mxu0 %v4331
    %v4449 = vpop.f32.mrb[0].mxu0
    %v4450 = vadd.f32 0.0, %v4449
    %v4451 = vpop.f32.mrb[0].mxu0
    %v4452 = vpop.f32.mrb[0].mxu0
    %v4453 = vpop.f32.mrb[0].mxu0
    %4454 = vdwg.mxu0
    %v4455 = vadd.f32 %v4414, %v4450
    %4456 = vmatprep.subr.bf16.mxu0 0
    %4457 = vmatpush1.bf16.msra.mxu0 %v1025
    %4458 = vmatprep.subr.bf16.mxu0 0
    %4459 = vmatpush1.bf16.msra.mxu0 %v1026
    %4460 = vmatprep.subr.bf16.mxu0 0
    %4461 = vmatpush1.bf16.msra.mxu0 0
    %4462 = vmatprep.subr.bf16.mxu0 0
    %4463 = vmatpush1.bf16.msra.mxu0 0
    %4464 = vmatprep.subr.bf16.mxu0 0
    %4465 = vmatpush1.bf16.msra.mxu0 0
    %4466 = vmatprep.subr.bf16.mxu0 0
    %4467 = vmatpush1.bf16.msra.mxu0 0
    %4468 = vmatprep.subr.bf16.mxu0 0
    %4469 = vmatpush1.bf16.msra.mxu0 0
    %4470 = vmatprep.subr.bf16.mxu0 0
    %4471 = vmatpush1.bf16.msra.mxu0 0
    %4472 = vmatprep.subr.bf16.mxu0 0
    %4473 = vmatpush1.bf16.msra.mxu0 0
    %4474 = vmatprep.subr.bf16.mxu0 0
    %4475 = vmatpush1.bf16.msra.mxu0 0
    %4476 = vmatprep.subr.bf16.mxu0 0
    %4477 = vmatpush1.bf16.msra.mxu0 0
    %4478 = vmatprep.subr.bf16.mxu0 0
    %4479 = vmatpush1.bf16.msra.mxu0 0
    %4480 = vmatprep.subr.bf16.mxu0 0
    %4481 = vmatpush1.bf16.msra.mxu0 0
    %4482 = vmatprep.subr.bf16.mxu0 0
    %4483 = vmatpush1.bf16.msra.mxu0 0
    %4484 = vmatprep.subr.bf16.mxu0 0
    %4485 = vmatpush1.bf16.msra.mxu0 0
    %4486 = vmatprep.subr.bf16.mxu0 0
    %4487 = vmatpush1.bf16.msra.mxu0 0
    %4488 = vmatprep.mubr.bf16.mxu0 0
    %4489 = vmatmul.mubr.bf16.gmra.mrb[0].mxu0 %v4084
    %v4490 = vpop.f32.mrb[0].mxu0
    %v4491 = vadd.f32 0.0, %v4490
    %v4492 = vpop.f32.mrb[0].mxu0
    %v4493 = vpop.f32.mrb[0].mxu0
    %v4494 = vpop.f32.mrb[0].mxu0
    %4495 = vdwg.mxu0
    %v4496 = vadd.f32 %v110, %v4491
    %4497 = vmatprep.subr.bf16.mxu0 0
    %4498 = vmatpush1.bf16.msra.mxu0 %v1083
    %4499 = vmatprep.subr.bf16.mxu0 0
    %4500 = vmatpush1.bf16.msra.mxu0 %v1084
    %4501 = vmatprep.subr.bf16.mxu0 0
    %4502 = vmatpush1.bf16.msra.mxu0 0
    %4503 = vmatprep.subr.bf16.mxu0 0
    %4504 = vmatpush1.bf16.msra.mxu0 0
    %4505 = vmatprep.subr.bf16.mxu0 0
    %4506 = vmatpush1.bf16.msra.mxu0 0
    %4507 = vmatprep.subr.bf16.mxu0 0
    %4508 = vmatpush1.bf16.msra.mxu0 0
    %4509 = vmatprep.subr.bf16.mxu0 0
    %4510 = vmatpush1.bf16.msra.mxu0 0
    %4511 = vmatprep.subr.bf16.mxu0 0
    %4512 = vmatpush1.bf16.msra.mxu0 0
    %4513 = vmatprep.subr.bf16.mxu0 0
    %4514 = vmatpush1.bf16.msra.mxu0 0
    %4515 = vmatprep.subr.bf16.mxu0 0
    %4516 = vmatpush1.bf16.msra.mxu0 0
    %4517 = vmatprep.subr.bf16.mxu0 0
    %4518 = vmatpush1.bf16.msra.mxu0 0
    %4519 = vmatprep.subr.bf16.mxu0 0
    %4520 = vmatpush1.bf16.msra.mxu0 0
    %4521 = vmatprep.subr.bf16.mxu0 0
    %4522 = vmatpush1.bf16.msra.mxu0 0
    %4523 = vmatprep.subr.bf16.mxu0 0
    %4524 = vmatpush1.bf16.msra.mxu0 0
    %4525 = vmatprep.subr.bf16.mxu0 0
    %4526 = vmatpush1.bf16.msra.mxu0 0
    %4527 = vmatprep.subr.bf16.mxu0 0
    %4528 = vmatpush1.bf16.msra.mxu0 0
    %4529 = vmatprep.mubr.bf16.mxu0 0
    %4530 = vmatmul.mubr.bf16.gmra.mrb[0].mxu0 %v4331
    %v4531 = vpop.f32.mrb[0].mxu0
    %v4532 = vadd.f32 0.0, %v4531
    %v4533 = vpop.f32.mrb[0].mxu0
    %v4534 = vpop.f32.mrb[0].mxu0
    %v4535 = vpop.f32.mrb[0].mxu0
    %4536 = vdwg.mxu0
    %v4537 = vadd.f32 %v4496, %v4532
    %4538 = vmatprep.subr.bf16.mxu0 0
    %4539 = vmatpush1.bf16.msra.mxu0 %v1141
    %4540 = vmatprep.subr.bf16.mxu0 0
    %4541 = vmatpush1.bf16.msra.mxu0 %v1142
    %4542 = vmatprep.subr.bf16.mxu0 0
    %4543 = vmatpush1.bf16.msra.mxu0 0
    %4544 = vmatprep.subr.bf16.mxu0 0
    %4545 = vmatpush1.bf16.msra.mxu0 0
    %4546 = vmatprep.subr.bf16.mxu0 0
    %4547 = vmatpush1.bf16.msra.mxu0 0
    %4548 = vmatprep.subr.bf16.mxu0 0
    %4549 = vmatpush1.bf16.msra.mxu0 0
    %4550 = vmatprep.subr.bf16.mxu0 0
    %4551 = vmatpush1.bf16.msra.mxu0 0
    %4552 = vmatprep.subr.bf16.mxu0 0
    %4553 = vmatpush1.bf16.msra.mxu0 0
    %4554 = vmatprep.subr.bf16.mxu0 0
    %4555 = vmatpush1.bf16.msra.mxu0 0
    %4556 = vmatprep.subr.bf16.mxu0 0
    %4557 = vmatpush1.bf16.msra.mxu0 0
    %4558 = vmatprep.subr.bf16.mxu0 0
    %4559 = vmatpush1.bf16.msra.mxu0 0
    %4560 = vmatprep.subr.bf16.mxu0 0
    %4561 = vmatpush1.bf16.msra.mxu0 0
    %4562 = vmatprep.subr.bf16.mxu0 0
    %4563 = vmatpush1.bf16.msra.mxu0 0
    %4564 = vmatprep.subr.bf16.mxu0 0
    %4565 = vmatpush1.bf16.msra.mxu0 0
    %4566 = vmatprep.subr.bf16.mxu0 0
    %4567 = vmatpush1.bf16.msra.mxu0 0
    %4568 = vmatprep.subr.bf16.mxu0 0
    %4569 = vmatpush1.bf16.msra.mxu0 0
    %4570 = vmatprep.mubr.bf16.mxu0 0
    %4571 = vmatmul.mubr.bf16.gmra.mrb[0].mxu0 %v4084
    %v4572 = vpop.f32.mrb[0].mxu0
    %v4573 = vadd.f32 0.0, %v4572
    %v4574 = vpop.f32.mrb[0].mxu0
    %v4575 = vpop.f32.mrb[0].mxu0
    %v4576 = vpop.f32.mrb[0].mxu0
    %4577 = vdwg.mxu0
    %v4578 = vadd.f32 %v118, %v4573
    %4579 = vmatprep.subr.bf16.mxu0 0
    %4580 = vmatpush1.bf16.msra.mxu0 %v1199
    %4581 = vmatprep.subr.bf16.mxu0 0
    %4582 = vmatpush1.bf16.msra.mxu0 %v1200
    %4583 = vmatprep.subr.bf16.mxu0 0
    %4584 = vmatpush1.bf16.msra.mxu0 0
    %4585 = vmatprep.subr.bf16.mxu0 0
    %4586 = vmatpush1.bf16.msra.mxu0 0
    %4587 = vmatprep.subr.bf16.mxu0 0
    %4588 = vmatpush1.bf16.msra.mxu0 0
    %4589 = vmatprep.subr.bf16.mxu0 0
    %4590 = vmatpush1.bf16.msra.mxu0 0
    %4591 = vmatprep.subr.bf16.mxu0 0
    %4592 = vmatpush1.bf16.msra.mxu0 0
    %4593 = vmatprep.subr.bf16.mxu0 0
    %4594 = vmatpush1.bf16.msra.mxu0 0
    %4595 = vmatprep.subr.bf16.mxu0 0
    %4596 = vmatpush1.bf16.msra.mxu0 0
    %4597 = vmatprep.subr.bf16.mxu0 0
    %4598 = vmatpush1.bf16.msra.mxu0 0
    %4599 = vmatprep.subr.bf16.mxu0 0
    %4600 = vmatpush1.bf16.msra.mxu0 0
    %4601 = vmatprep.subr.bf16.mxu0 0
    %4602 = vmatpush1.bf16.msra.mxu0 0
    %4603 = vmatprep.subr.bf16.mxu0 0
    %4604 = vmatpush1.bf16.msra.mxu0 0
    %4605 = vmatprep.subr.bf16.mxu0 0
    %4606 = vmatpush1.bf16.msra.mxu0 0
    %4607 = vmatprep.subr.bf16.mxu0 0
    %4608 = vmatpush1.bf16.msra.mxu0 0
    %4609 = vmatprep.subr.bf16.mxu0 0
    %4610 = vmatpush1.bf16.msra.mxu0 0
    %4611 = vmatprep.mubr.bf16.mxu0 0
    %4612 = vmatmul.mubr.bf16.gmra.mrb[0].mxu0 %v4331
    %v4613 = vpop.f32.mrb[0].mxu0
    %v4614 = vadd.f32 0.0, %v4613
    %v4615 = vpop.f32.mrb[0].mxu0
    %v4616 = vpop.f32.mrb[0].mxu0
    %v4617 = vpop.f32.mrb[0].mxu0
    %4618 = vdwg.mxu0
    %v4619 = vadd.f32 %v4578, %v4614
    %v4620 = vxor.u32 %v4373, 2147483648
    %v4621 = vmul.f32 %v4620, 1.442695
    %v4622 = vpow.pop %v4621
    %v4623 = vadd.f32 %v4622, 1.0
    %v4624 = vrcp.pop %v4623
    %v4625 = vmul.f32 1.0, %v4624
    %v4626 = vxor.u32 %v4455, 2147483648
    %v4627 = vmul.f32 %v4626, 1.442695
    %v4628 = vpow.pop %v4627
    %v4629 = vadd.f32 %v4628, 1.0
    %v4630 = vrcp.pop %v4629
    %v4631 = vmul.f32 1.0, %v4630
    %v4632 = vtanh.pop %v4537
    %v4633 = vxor.u32 %v4619, 2147483648
    %v4634 = vmul.f32 %v4633, 1.442695
    %v4635 = vpow.pop %v4634
    %v4636 = vadd.f32 %v4635, 1.0
    %v4637 = vrcp.pop %v4636
    %v4638 = vmul.f32 1.0, %v4637
    %v4639 = vmul.f32 %v4631, %v4076
    %v4640 = vmul.f32 %v4625, %v4632
    %v4641 = vadd.f32 %v4639, %v4640
    %v4642 = vtanh.pop %v4641
    %v4643 = vmul.f32 %v4638, %v4642
    %v4644 = vpack.c.bf16 %v4288, %v4288
    %v4645 = vpack.c.bf16 %v4643, %v4643
    %v4647 = vrot.slane %v4644, 3
    %v4649 = vsel %vm521, %v4647, 0
    %4651 = vmatprep.subr.bf16.mxu0 0
    %4652 = vmatpush1.bf16.msra.mxu0 %v791
    %4653 = vmatprep.subr.bf16.mxu0 0
    %4654 = vmatpush1.bf16.msra.mxu0 %v792
    %4655 = vmatprep.subr.bf16.mxu0 0
    %4656 = vmatpush1.bf16.msra.mxu0 0
    %4657 = vmatprep.subr.bf16.mxu0 0
    %4658 = vmatpush1.bf16.msra.mxu0 0
    %4659 = vmatprep.subr.bf16.mxu0 0
    %4660 = vmatpush1.bf16.msra.mxu0 0
    %4661 = vmatprep.subr.bf16.mxu0 0
    %4662 = vmatpush1.bf16.msra.mxu0 0
    %4663 = vmatprep.subr.bf16.mxu0 0
    %4664 = vmatpush1.bf16.msra.mxu0 0
    %4665 = vmatprep.subr.bf16.mxu0 0
    %4666 = vmatpush1.bf16.msra.mxu0 0
    %4667 = vmatprep.subr.bf16.mxu0 0
    %4668 = vmatpush1.bf16.msra.mxu0 0
    %4669 = vmatprep.subr.bf16.mxu0 0
    %4670 = vmatpush1.bf16.msra.mxu0 0
    %4671 = vmatprep.subr.bf16.mxu0 0
    %4672 = vmatpush1.bf16.msra.mxu0 0
    %4673 = vmatprep.subr.bf16.mxu0 0
    %4674 = vmatpush1.bf16.msra.mxu0 0
    %4675 = vmatprep.subr.bf16.mxu0 0
    %4676 = vmatpush1.bf16.msra.mxu0 0
    %4677 = vmatprep.subr.bf16.mxu0 0
    %4678 = vmatpush1.bf16.msra.mxu0 0
    %4679 = vmatprep.subr.bf16.mxu0 0
    %4680 = vmatpush1.bf16.msra.mxu0 0
    %4681 = vmatprep.subr.bf16.mxu0 0
    %4682 = vmatpush1.bf16.msra.mxu0 0
    %4683 = vmatprep.mubr.bf16.mxu0 0
    %4684 = vmatmul.mubr.bf16.gmra.mrb[0].mxu0 %v4649
    %v4685 = vpop.f32.mrb[0].mxu0
    %v4686 = vadd.f32 0.0, %v4685
    %v4687 = vpop.f32.mrb[0].mxu0
    %v4688 = vpop.f32.mrb[0].mxu0
    %v4689 = vpop.f32.mrb[0].mxu0
    %4690 = vdwg.mxu0
    %v4691 = vadd.f32 %v94, %v4686
    %v4693 = vsel %vm521, %v4645, 0
    %4695 = vmatprep.subr.bf16.mxu0 0
    %4696 = vmatpush1.bf16.msra.mxu0 %v848
    %4697 = vmatprep.subr.bf16.mxu0 0
    %4698 = vmatpush1.bf16.msra.mxu0 %v849
    %4699 = vmatprep.subr.bf16.mxu0 0
    %4700 = vmatpush1.bf16.msra.mxu0 0
    %4701 = vmatprep.subr.bf16.mxu0 0
    %4702 = vmatpush1.bf16.msra.mxu0 0
    %4703 = vmatprep.subr.bf16.mxu0 0
    %4704 = vmatpush1.bf16.msra.mxu0 0
    %4705 = vmatprep.subr.bf16.mxu0 0
    %4706 = vmatpush1.bf16.msra.mxu0 0
    %4707 = vmatprep.subr.bf16.mxu0 0
    %4708 = vmatpush1.bf16.msra.mxu0 0
    %4709 = vmatprep.subr.bf16.mxu0 0
    %4710 = vmatpush1.bf16.msra.mxu0 0
    %4711 = vmatprep.subr.bf16.mxu0 0
    %4712 = vmatpush1.bf16.msra.mxu0 0
    %4713 = vmatprep.subr.bf16.mxu0 0
    %4714 = vmatpush1.bf16.msra.mxu0 0
    %4715 = vmatprep.subr.bf16.mxu0 0
    %4716 = vmatpush1.bf16.msra.mxu0 0
    %4717 = vmatprep.subr.bf16.mxu0 0
    %4718 = vmatpush1.bf16.msra.mxu0 0
    %4719 = vmatprep.subr.bf16.mxu0 0
    %4720 = vmatpush1.bf16.msra.mxu0 0
    %4721 = vmatprep.subr.bf16.mxu0 0
    %4722 = vmatpush1.bf16.msra.mxu0 0
    %4723 = vmatprep.subr.bf16.mxu0 0
    %4724 = vmatpush1.bf16.msra.mxu0 0
    %4725 = vmatprep.subr.bf16.mxu0 0
    %4726 = vmatpush1.bf16.msra.mxu0 0
    %4727 = vmatprep.mubr.bf16.mxu0 0
    %4728 = vmatmul.mubr.bf16.gmra.mrb[0].mxu0 %v4693
    %v4729 = vpop.f32.mrb[0].mxu0
    %v4730 = vadd.f32 0.0, %v4729
    %v4731 = vpop.f32.mrb[0].mxu0
    %v4732 = vpop.f32.mrb[0].mxu0
    %v4733 = vpop.f32.mrb[0].mxu0
    %4734 = vdwg.mxu0
    %v4735 = vadd.f32 %v4691, %v4730
    %4736 = vmatprep.subr.bf16.mxu0 0
    %4737 = vmatpush1.bf16.msra.mxu0 %v909
    %4738 = vmatprep.subr.bf16.mxu0 0
    %4739 = vmatpush1.bf16.msra.mxu0 %v910
    %4740 = vmatprep.subr.bf16.mxu0 0
    %4741 = vmatpush1.bf16.msra.mxu0 0
    %4742 = vmatprep.subr.bf16.mxu0 0
    %4743 = vmatpush1.bf16.msra.mxu0 0
    %4744 = vmatprep.subr.bf16.mxu0 0
    %4745 = vmatpush1.bf16.msra.mxu0 0
    %4746 = vmatprep.subr.bf16.mxu0 0
    %4747 = vmatpush1.bf16.msra.mxu0 0
    %4748 = vmatprep.subr.bf16.mxu0 0
    %4749 = vmatpush1.bf16.msra.mxu0 0
    %4750 = vmatprep.subr.bf16.mxu0 0
    %4751 = vmatpush1.bf16.msra.mxu0 0
    %4752 = vmatprep.subr.bf16.mxu0 0
    %4753 = vmatpush1.bf16.msra.mxu0 0
    %4754 = vmatprep.subr.bf16.mxu0 0
    %4755 = vmatpush1.bf16.msra.mxu0 0
    %4756 = vmatprep.subr.bf16.mxu0 0
    %4757 = vmatpush1.bf16.msra.mxu0 0
    %4758 = vmatprep.subr.bf16.mxu0 0
    %4759 = vmatpush1.bf16.msra.mxu0 0
    %4760 = vmatprep.subr.bf16.mxu0 0
    %4761 = vmatpush1.bf16.msra.mxu0 0
    %4762 = vmatprep.subr.bf16.mxu0 0
    %4763 = vmatpush1.bf16.msra.mxu0 0
    %4764 = vmatprep.subr.bf16.mxu0 0
    %4765 = vmatpush1.bf16.msra.mxu0 0
    %4766 = vmatprep.subr.bf16.mxu0 0
    %4767 = vmatpush1.bf16.msra.mxu0 0
    %4768 = vmatprep.mubr.bf16.mxu0 0
    %4769 = vmatmul.mubr.bf16.gmra.mrb[0].mxu0 %v4649
    %v4770 = vpop.f32.mrb[0].mxu0
    %v4771 = vadd.f32 0.0, %v4770
    %v4772 = vpop.f32.mrb[0].mxu0
    %v4773 = vpop.f32.mrb[0].mxu0
    %v4774 = vpop.f32.mrb[0].mxu0
    %4775 = vdwg.mxu0
    %v4776 = vadd.f32 %v102, %v4771
    %4777 = vmatprep.subr.bf16.mxu0 0
    %4778 = vmatpush1.bf16.msra.mxu0 %v967
    %4779 = vmatprep.subr.bf16.mxu0 0
    %4780 = vmatpush1.bf16.msra.mxu0 %v968
    %4781 = vmatprep.subr.bf16.mxu0 0
    %4782 = vmatpush1.bf16.msra.mxu0 0
    %4783 = vmatprep.subr.bf16.mxu0 0
    %4784 = vmatpush1.bf16.msra.mxu0 0
    %4785 = vmatprep.subr.bf16.mxu0 0
    %4786 = vmatpush1.bf16.msra.mxu0 0
    %4787 = vmatprep.subr.bf16.mxu0 0
    %4788 = vmatpush1.bf16.msra.mxu0 0
    %4789 = vmatprep.subr.bf16.mxu0 0
    %4790 = vmatpush1.bf16.msra.mxu0 0
    %4791 = vmatprep.subr.bf16.mxu0 0
    %4792 = vmatpush1.bf16.msra.mxu0 0
    %4793 = vmatprep.subr.bf16.mxu0 0
    %4794 = vmatpush1.bf16.msra.mxu0 0
    %4795 = vmatprep.subr.bf16.mxu0 0
    %4796 = vmatpush1.bf16.msra.mxu0 0
    %4797 = vmatprep.subr.bf16.mxu0 0
    %4798 = vmatpush1.bf16.msra.mxu0 0
    %4799 = vmatprep.subr.bf16.mxu0 0
    %4800 = vmatpush1.bf16.msra.mxu0 0
    %4801 = vmatprep.subr.bf16.mxu0 0
    %4802 = vmatpush1.bf16.msra.mxu0 0
    %4803 = vmatprep.subr.bf16.mxu0 0
    %4804 = vmatpush1.bf16.msra.mxu0 0
    %4805 = vmatprep.subr.bf16.mxu0 0
    %4806 = vmatpush1.bf16.msra.mxu0 0
    %4807 = vmatprep.subr.bf16.mxu0 0
    %4808 = vmatpush1.bf16.msra.mxu0 0
    %4809 = vmatprep.mubr.bf16.mxu0 0
    %4810 = vmatmul.mubr.bf16.gmra.mrb[0].mxu0 %v4693
    %v4811 = vpop.f32.mrb[0].mxu0
    %v4812 = vadd.f32 0.0, %v4811
    %v4813 = vpop.f32.mrb[0].mxu0
    %v4814 = vpop.f32.mrb[0].mxu0
    %v4815 = vpop.f32.mrb[0].mxu0
    %4816 = vdwg.mxu0
    %v4817 = vadd.f32 %v4776, %v4812
    %4818 = vmatprep.subr.bf16.mxu0 0
    %4819 = vmatpush1.bf16.msra.mxu0 %v1025
    %4820 = vmatprep.subr.bf16.mxu0 0
    %4821 = vmatpush1.bf16.msra.mxu0 %v1026
    %4822 = vmatprep.subr.bf16.mxu0 0
    %4823 = vmatpush1.bf16.msra.mxu0 0
    %4824 = vmatprep.subr.bf16.mxu0 0
    %4825 = vmatpush1.bf16.msra.mxu0 0
    %4826 = vmatprep.subr.bf16.mxu0 0
    %4827 = vmatpush1.bf16.msra.mxu0 0
    %4828 = vmatprep.subr.bf16.mxu0 0
    %4829 = vmatpush1.bf16.msra.mxu0 0
    %4830 = vmatprep.subr.bf16.mxu0 0
    %4831 = vmatpush1.bf16.msra.mxu0 0
    %4832 = vmatprep.subr.bf16.mxu0 0
    %4833 = vmatpush1.bf16.msra.mxu0 0
    %4834 = vmatprep.subr.bf16.mxu0 0
    %4835 = vmatpush1.bf16.msra.mxu0 0
    %4836 = vmatprep.subr.bf16.mxu0 0
    %4837 = vmatpush1.bf16.msra.mxu0 0
    %4838 = vmatprep.subr.bf16.mxu0 0
    %4839 = vmatpush1.bf16.msra.mxu0 0
    %4840 = vmatprep.subr.bf16.mxu0 0
    %4841 = vmatpush1.bf16.msra.mxu0 0
    %4842 = vmatprep.subr.bf16.mxu0 0
    %4843 = vmatpush1.bf16.msra.mxu0 0
    %4844 = vmatprep.subr.bf16.mxu0 0
    %4845 = vmatpush1.bf16.msra.mxu0 0
    %4846 = vmatprep.subr.bf16.mxu0 0
    %4847 = vmatpush1.bf16.msra.mxu0 0
    %4848 = vmatprep.subr.bf16.mxu0 0
    %4849 = vmatpush1.bf16.msra.mxu0 0
    %4850 = vmatprep.mubr.bf16.mxu0 0
    %4851 = vmatmul.mubr.bf16.gmra.mrb[0].mxu0 %v4649
    %v4852 = vpop.f32.mrb[0].mxu0
    %v4853 = vadd.f32 0.0, %v4852
    %v4854 = vpop.f32.mrb[0].mxu0
    %v4855 = vpop.f32.mrb[0].mxu0
    %v4856 = vpop.f32.mrb[0].mxu0
    %4857 = vdwg.mxu0
    %v4858 = vadd.f32 %v110, %v4853
    %4859 = vmatprep.subr.bf16.mxu0 0
    %4860 = vmatpush1.bf16.msra.mxu0 %v1083
    %4861 = vmatprep.subr.bf16.mxu0 0
    %4862 = vmatpush1.bf16.msra.mxu0 %v1084
    %4863 = vmatprep.subr.bf16.mxu0 0
    %4864 = vmatpush1.bf16.msra.mxu0 0
    %4865 = vmatprep.subr.bf16.mxu0 0
    %4866 = vmatpush1.bf16.msra.mxu0 0
    %4867 = vmatprep.subr.bf16.mxu0 0
    %4868 = vmatpush1.bf16.msra.mxu0 0
    %4869 = vmatprep.subr.bf16.mxu0 0
    %4870 = vmatpush1.bf16.msra.mxu0 0
    %4871 = vmatprep.subr.bf16.mxu0 0
    %4872 = vmatpush1.bf16.msra.mxu0 0
    %4873 = vmatprep.subr.bf16.mxu0 0
    %4874 = vmatpush1.bf16.msra.mxu0 0
    %4875 = vmatprep.subr.bf16.mxu0 0
    %4876 = vmatpush1.bf16.msra.mxu0 0
    %4877 = vmatprep.subr.bf16.mxu0 0
    %4878 = vmatpush1.bf16.msra.mxu0 0
    %4879 = vmatprep.subr.bf16.mxu0 0
    %4880 = vmatpush1.bf16.msra.mxu0 0
    %4881 = vmatprep.subr.bf16.mxu0 0
    %4882 = vmatpush1.bf16.msra.mxu0 0
    %4883 = vmatprep.subr.bf16.mxu0 0
    %4884 = vmatpush1.bf16.msra.mxu0 0
    %4885 = vmatprep.subr.bf16.mxu0 0
    %4886 = vmatpush1.bf16.msra.mxu0 0
    %4887 = vmatprep.subr.bf16.mxu0 0
    %4888 = vmatpush1.bf16.msra.mxu0 0
    %4889 = vmatprep.subr.bf16.mxu0 0
    %4890 = vmatpush1.bf16.msra.mxu0 0
    %4891 = vmatprep.mubr.bf16.mxu0 0
    %4892 = vmatmul.mubr.bf16.gmra.mrb[0].mxu0 %v4693
    %v4893 = vpop.f32.mrb[0].mxu0
    %v4894 = vadd.f32 0.0, %v4893
    %v4895 = vpop.f32.mrb[0].mxu0
    %v4896 = vpop.f32.mrb[0].mxu0
    %v4897 = vpop.f32.mrb[0].mxu0
    %4898 = vdwg.mxu0
    %v4899 = vadd.f32 %v4858, %v4894
    %4900 = vmatprep.subr.bf16.mxu0 0
    %4901 = vmatpush1.bf16.msra.mxu0 %v1141
    %4902 = vmatprep.subr.bf16.mxu0 0
    %4903 = vmatpush1.bf16.msra.mxu0 %v1142
    %4904 = vmatprep.subr.bf16.mxu0 0
    %4905 = vmatpush1.bf16.msra.mxu0 0
    %4906 = vmatprep.subr.bf16.mxu0 0
    %4907 = vmatpush1.bf16.msra.mxu0 0
    %4908 = vmatprep.subr.bf16.mxu0 0
    %4909 = vmatpush1.bf16.msra.mxu0 0
    %4910 = vmatprep.subr.bf16.mxu0 0
    %4911 = vmatpush1.bf16.msra.mxu0 0
    %4912 = vmatprep.subr.bf16.mxu0 0
    %4913 = vmatpush1.bf16.msra.mxu0 0
    %4914 = vmatprep.subr.bf16.mxu0 0
    %4915 = vmatpush1.bf16.msra.mxu0 0
    %4916 = vmatprep.subr.bf16.mxu0 0
    %4917 = vmatpush1.bf16.msra.mxu0 0
    %4918 = vmatprep.subr.bf16.mxu0 0
    %4919 = vmatpush1.bf16.msra.mxu0 0
    %4920 = vmatprep.subr.bf16.mxu0 0
    %4921 = vmatpush1.bf16.msra.mxu0 0
    %4922 = vmatprep.subr.bf16.mxu0 0
    %4923 = vmatpush1.bf16.msra.mxu0 0
    %4924 = vmatprep.subr.bf16.mxu0 0
    %4925 = vmatpush1.bf16.msra.mxu0 0
    %4926 = vmatprep.subr.bf16.mxu0 0
    %4927 = vmatpush1.bf16.msra.mxu0 0
    %4928 = vmatprep.subr.bf16.mxu0 0
    %4929 = vmatpush1.bf16.msra.mxu0 0
    %4930 = vmatprep.subr.bf16.mxu0 0
    %4931 = vmatpush1.bf16.msra.mxu0 0
    %4932 = vmatprep.mubr.bf16.mxu0 0
    %4933 = vmatmul.mubr.bf16.gmra.mrb[0].mxu0 %v4649
    %v4934 = vpop.f32.mrb[0].mxu0
    %v4935 = vadd.f32 0.0, %v4934
    %v4936 = vpop.f32.mrb[0].mxu0
    %v4937 = vpop.f32.mrb[0].mxu0
    %v4938 = vpop.f32.mrb[0].mxu0
    %4939 = vdwg.mxu0
    %v4940 = vadd.f32 %v118, %v4935
    %4941 = vmatprep.subr.bf16.mxu0 0
    %4942 = vmatpush1.bf16.msra.mxu0 %v1199
    %4943 = vmatprep.subr.bf16.mxu0 0
    %4944 = vmatpush1.bf16.msra.mxu0 %v1200
    %4945 = vmatprep.subr.bf16.mxu0 0
    %4946 = vmatpush1.bf16.msra.mxu0 0
    %4947 = vmatprep.subr.bf16.mxu0 0
    %4948 = vmatpush1.bf16.msra.mxu0 0
    %4949 = vmatprep.subr.bf16.mxu0 0
    %4950 = vmatpush1.bf16.msra.mxu0 0
    %4951 = vmatprep.subr.bf16.mxu0 0
    %4952 = vmatpush1.bf16.msra.mxu0 0
    %4953 = vmatprep.subr.bf16.mxu0 0
    %4954 = vmatpush1.bf16.msra.mxu0 0
    %4955 = vmatprep.subr.bf16.mxu0 0
    %4956 = vmatpush1.bf16.msra.mxu0 0
    %4957 = vmatprep.subr.bf16.mxu0 0
    %4958 = vmatpush1.bf16.msra.mxu0 0
    %4959 = vmatprep.subr.bf16.mxu0 0
    %4960 = vmatpush1.bf16.msra.mxu0 0
    %4961 = vmatprep.subr.bf16.mxu0 0
    %4962 = vmatpush1.bf16.msra.mxu0 0
    %4963 = vmatprep.subr.bf16.mxu0 0
    %4964 = vmatpush1.bf16.msra.mxu0 0
    %4965 = vmatprep.subr.bf16.mxu0 0
    %4966 = vmatpush1.bf16.msra.mxu0 0
    %4967 = vmatprep.subr.bf16.mxu0 0
    %4968 = vmatpush1.bf16.msra.mxu0 0
    %4969 = vmatprep.subr.bf16.mxu0 0
    %4970 = vmatpush1.bf16.msra.mxu0 0
    %4971 = vmatprep.subr.bf16.mxu0 0
    %4972 = vmatpush1.bf16.msra.mxu0 0
    %4973 = vmatprep.mubr.bf16.mxu0 0
    %4974 = vmatmul.mubr.bf16.gmra.mrb[0].mxu0 %v4693
    %v4975 = vpop.f32.mrb[0].mxu0
    %v4976 = vadd.f32 0.0, %v4975
    %v4977 = vpop.f32.mrb[0].mxu0
    %v4978 = vpop.f32.mrb[0].mxu0
    %v4979 = vpop.f32.mrb[0].mxu0
    %4980 = vdwg.mxu0
    %v4981 = vadd.f32 %v4940, %v4976
    %v4982 = vxor.u32 %v4735, 2147483648
    %v4983 = vmul.f32 %v4982, 1.442695
    %v4984 = vpow.pop %v4983
    %v4985 = vadd.f32 %v4984, 1.0
    %v4986 = vrcp.pop %v4985
    %v4987 = vmul.f32 1.0, %v4986
    %v4988 = vxor.u32 %v4817, 2147483648
    %v4989 = vmul.f32 %v4988, 1.442695
    %v4990 = vpow.pop %v4989
    %v4991 = vadd.f32 %v4990, 1.0
    %v4992 = vrcp.pop %v4991
    %v4993 = vmul.f32 1.0, %v4992
    %v4994 = vtanh.pop %v4899
    %v4995 = vxor.u32 %v4981, 2147483648
    %v4996 = vmul.f32 %v4995, 1.442695
    %v4997 = vpow.pop %v4996
    %v4998 = vadd.f32 %v4997, 1.0
    %v4999 = vrcp.pop %v4998
    %v5000 = vmul.f32 1.0, %v4999
    %v5001 = vmul.f32 %v4993, %v4641
    %v5002 = vmul.f32 %v4987, %v4994
    %v5003 = vadd.f32 %v5001, %v5002
    %v5004 = vtanh.pop %v5003
    %v5005 = vmul.f32 %v5000, %v5004
    %v5006 = vld [vmem:[%s7] sm:$0xff]
    %v5007 = vld [vmem:[%s7 + $0x8] sm:$0xff]
    %v5008 = vld [vmem:[%s7 + $0x10] sm:$0xff]
    %v5009 = vld [vmem:[%s7 + $0x18] sm:$0xff]
    %v5010 = vld [vmem:[%s8] sm:$0x1]
    %v5012 = vlaneseq
    %v5013 = vshrl.u32 %v5012, 7
    %v5014 = vsub.s32 0, %v5013
    %v5015 = vrot.slane %v5010, %v5014
    %v5018 = vsel %vm521, %v5005, 0
    %5020 = vmatprep.subr.mxu0 0.0
    %5021 = vmatpush1.msra.mxu0 %v5006
    %5022 = vmatprep.subr.mxu0 0.0
    %5023 = vmatpush1.msra.mxu0 %v5007
    %5024 = vmatprep.subr.mxu0 0.0
    %5025 = vmatpush1.msra.mxu0 %v5008
    %5026 = vmatprep.subr.mxu0 0.0
    %5027 = vmatpush1.msra.mxu0 %v5009
    %5028 = vmatprep.subr.mxu0 0.0
    %5029 = vmatpush1.msra.mxu0 0.0
    %5030 = vmatprep.subr.mxu0 0.0
    %5031 = vmatpush1.msra.mxu0 0.0
    %5032 = vmatprep.subr.mxu0 0.0
    %5033 = vmatpush1.msra.mxu0 0.0
    %5034 = vmatprep.subr.mxu0 0.0
    %5035 = vmatpush1.msra.mxu0 0.0
    %5036 = vmatprep.subr.mxu0 0.0
    %5037 = vmatpush1.msra.mxu0 0.0
    %5038 = vmatprep.subr.mxu0 0.0
    %5039 = vmatpush1.msra.mxu0 0.0
    %5040 = vmatprep.subr.mxu0 0.0
    %5041 = vmatpush1.msra.mxu0 0.0
    %5042 = vmatprep.subr.mxu0 0.0
    %5043 = vmatpush1.msra.mxu0 0.0
    %5044 = vmatprep.subr.mxu0 0.0
    %5045 = vmatpush1.msra.mxu0 0.0
    %5046 = vmatprep.subr.mxu0 0.0
    %5047 = vmatpush1.msra.mxu0 0.0
    %5048 = vmatprep.subr.mxu0 0.0
    %5049 = vmatpush1.msra.mxu0 0.0
    %5050 = vmatprep.subr.mxu0 0.0
    %5051 = vmatpush1.msra.mxu0 0.0
    %5052 = vmatprep.subr.mxu0 0.0
    %5053 = vmatpush1.msra.mxu0 0.0
    %5054 = vmatprep.subr.mxu0 0.0
    %5055 = vmatpush1.msra.mxu0 0.0
    %5056 = vmatprep.subr.mxu0 0.0
    %5057 = vmatpush1.msra.mxu0 0.0
    %5058 = vmatprep.subr.mxu0 0.0
    %5059 = vmatpush1.msra.mxu0 0.0
    %5060 = vmatprep.subr.mxu0 0.0
    %5061 = vmatpush1.msra.mxu0 0.0
    %5062 = vmatprep.subr.mxu0 0.0
    %5063 = vmatpush1.msra.mxu0 0.0
    %5064 = vmatprep.subr.mxu0 0.0
    %5065 = vmatpush1.msra.mxu0 0.0
    %5066 = vmatprep.subr.mxu0 0.0
    %5067 = vmatpush1.msra.mxu0 0.0
    %5068 = vmatprep.subr.mxu0 0.0
    %5069 = vmatpush1.msra.mxu0 0.0
    %5070 = vmatprep.subr.mxu0 0.0
    %5071 = vmatpush1.msra.mxu0 0.0
    %5072 = vmatprep.subr.mxu0 0.0
    %5073 = vmatpush1.msra.mxu0 0.0
    %5074 = vmatprep.subr.mxu0 0.0
    %5075 = vmatpush1.msra.mxu0 0.0
    %5076 = vmatprep.subr.mxu0 0.0
    %5077 = vmatpush1.msra.mxu0 0.0
    %5078 = vmatprep.subr.mxu0 0.0
    %5079 = vmatpush1.msra.mxu0 0.0
    %5080 = vmatprep.subr.mxu0 0.0
    %5081 = vmatpush1.msra.mxu0 0.0
    %5082 = vmatprep.subr.mxu0 0.0
    %5083 = vmatpush1.msra.mxu0 0.0
    %5084 = vmatprep.mubr.f32.mxu0 0.0
    %5085 = vmatmul.mubr.f32.gmra.mrb[0].mxu0 %v5018
    %v5086 = vpop.f32.mrb[0].mxu0
    %v5087 = vadd.f32 %v5015, %v5086
    %v5088 = vpop.f32.mrb[0].mxu0
    %5089 = vdwg.mxu0
    %vm5090 = vcmask 25600
    %5091 = vst.msk [vmem:[#allocation10] sm:$0x3] %vm5090, %v5087
    // Predicated region
    $region54: #{tpu_custom_call.1} parent=1 // pred_check
      _
    $region55: #{tpu_custom_call.1} parent=1 // pred_check_branch
      %5093 = sbr.rel (0) target = $region57
    $region56: #{tpu_custom_call.1} parent=1 // pred_region
      %s5095 = ssub.s32 32, 32
      %5096 = vsyncadd [#allocation4], %s5095
      %s5098 = sshll.u32 [#allocation10], 4
      %s5099 = int_to_ptr.vmem [resolvable:$true] %s5098
      %5101 = dma.vmem_to_hbm [thread:$0]  %s5099, 32, %s9, [#allocation4]
    $region57: #{tpu_custom_call.1} parent=1 // pred_fallthru
      _
    // Predicated region
    $region58: #{tpu_custom_call.1} parent=1 // pred_check
      _
    $region59: #{tpu_custom_call.1} parent=1 // pred_check_branch
      %5103 = sbr.rel (0) target = $region61
    $region60: #{tpu_custom_call.1} parent=1 // pred_region
      %5104 = dma.done [#allocation4], 32
    $region61: #{tpu_custom_call.1} parent=1 // pred_fallthru
      _
    %5105 = vsyncpa [#allocation3], 1
    %5106 = vsyncpa [#allocation6], 1
    %5107 = vsyncpa [#allocation9], 1
    %5108 = vsyncpa [#allocation4], 1

</llo_original>
